<compile_context>
chip_gen: v7x
topology: tpu7x:2x2x1
jax: 0.10.0
libtpu: 0.0.40
codegen_flags: <defaults>
</compile_context>

<pallas_src>
import math

import jax
import jax.numpy as jnp
from jax import lax
from jax.experimental import pallas as pl
from jax.experimental.pallas import tpu as pltpu

E = 256                 # d_model
H = 8                   # nhead
DH = E // H             # head dim (32)
HG = 4                  # heads per lane-aligned group (4 * 32 = 128 lanes)
N_GROUPS = H // HG      # 2
FF = 2048               # PyTorch default dim_feedforward
FF_CHUNK = 512          # feed-forward chunking along FF
LN_EPS = 1e-5
NUM_LAYERS = 6
LANE = 128
ROW_TILE_TARGET = 256   # rows per tile once the caller batches enough tokens

# Rows of the packed per-layer vector bundle (L, 9, E)
_BQ, _BK, _BV, _BO, _G1, _BE1, _BF2, _G2, _BE2 = range(9)


def _round_up(x, m):
    return ((x + m - 1) // m) * m


def _layernorm(x, gamma, beta):
    mean = jnp.mean(x, axis=-1, keepdims=True)
    xc = x - mean
    var = jnp.mean(xc * xc, axis=-1, keepdims=True)
    return xc * lax.rsqrt(var + LN_EPS) * gamma + beta


def _make_kernel(tm, S):
    n_seq = tm // S

    def kernel(x_ref, wqkv_ref, wo_ref, w1_ref, w2_ref, vec_ref, bf1_ref,
               fcw_ref, fcb_ref, out_ref, x_scr, qkv_scr, ctx_scr):
        layer = pl.program_id(1)

        @pl.when(layer == 0)
        def _():
            x_scr[...] = x_ref[...]

        x = x_scr[...]                              # (tm, E) f32 activation carry
        xb = x.astype(jnp.bfloat16)
        vec = vec_ref[...]                          # (9, E) f32 per-layer vectors

        # Fused QKV projection: one lane-dense (tm, 768) matmul, bf16-in/f32-acc.
        # 1/sqrt(DH) is folded into the Wq slice (and bq) at init time.
        qkv = jnp.dot(xb, wqkv_ref[...], preferred_element_type=jnp.float32)
        qkv_scr[:, 0:E] = (qkv[:, 0:E] + vec[_BQ:_BQ + 1]).astype(jnp.bfloat16)
        qkv_scr[:, E:2 * E] = (qkv[:, E:2 * E] + vec[_BK:_BK + 1]).astype(jnp.bfloat16)
        qkv_scr[:, 2 * E:3 * E] = (qkv[:, 2 * E:3 * E]
                                   + vec[_BV:_BV + 1]).astype(jnp.bfloat16)

        # Multi-head attention.  Sequences never cross a row tile; heads are
        # processed in 4-head (128-lane) groups so all VMEM accesses are
        # unmasked 128-lane loads/stores.
        @pl.loop(0, n_seq, unroll=n_seq <= 4)
        def _attn(n):
            rows = pl.ds(n * S, S)
            for g in range(N_GROUPS):
                c0 = g * HG * DH                     # 0 or 128
                q_g = qkv_scr[rows, c0:c0 + LANE]            # (S, 128) bf16
                k_g = qkv_scr[rows, E + c0:E + c0 + LANE]
                v_g = qkv_scr[rows, 2 * E + c0:2 * E + c0 + LANE]
                outs = []
                for hh in range(HG):
                    h0 = hh * DH
                    qh = q_g[:, h0:h0 + DH]
                    kh = k_g[:, h0:h0 + DH]
                    vh = v_g[:, h0:h0 + DH]
                    s = lax.dot_general(qh, kh, (((1,), (1,)), ((), ())),
                                        preferred_element_type=jnp.float32)
                    s = s - jnp.max(s, axis=-1, keepdims=True)
                    p = jnp.exp(s)
                    p = p * pl.reciprocal(jnp.sum(p, axis=-1, keepdims=True),
                                          approx=True)
                    outs.append(jnp.dot(p.astype(jnp.bfloat16), vh,
                                        preferred_element_type=jnp.float32))
                ctx_scr[rows, c0:c0 + LANE] = (
                    jnp.concatenate(outs, axis=-1).astype(jnp.bfloat16))

        attn = jnp.dot(ctx_scr[...], wo_ref[...],
                       preferred_element_type=jnp.float32) + vec[_BO:_BO + 1]

        # Post-norm residual block 1
        h1 = _layernorm(x + attn, vec[_G1:_G1 + 1], vec[_BE1:_BE1 + 1])

        # Feed-forward (relu), chunked along FF: no (tm, 2048) f32 intermediate.
        h1b = h1.astype(jnp.bfloat16)
        ff = None
        for c in range(FF // FF_CHUNK):
            f0 = c * FF_CHUNK
            t = jnp.dot(h1b, w1_ref[:, f0:f0 + FF_CHUNK],
                        preferred_element_type=jnp.float32)
            t = jnp.maximum(t + bf1_ref[:, f0:f0 + FF_CHUNK], 0.0)
            part = jnp.dot(t.astype(jnp.bfloat16), w2_ref[f0:f0 + FF_CHUNK, :],
                           preferred_element_type=jnp.float32)
            ff = part if ff is None else ff + part
        ff = ff + vec[_BF2:_BF2 + 1]

        # Post-norm residual block 2
        x_new = _layernorm(h1 + ff, vec[_G2:_G2 + 1], vec[_BE2:_BE2 + 1])
        x_scr[...] = x_new

        # Fused final fc on the last layer step only (bf16 weights, lane-dense
        # padded output; wrapper slices back to num_relations).
        @pl.when(layer == pl.num_programs(1) - 1)
        def _():
            out_ref[...] = jnp.dot(x_new.astype(jnp.bfloat16), fcw_ref[...],
                                   preferred_element_type=jnp.float32) + fcb_ref[...]

    return kernel


def fused_transformer_fc(x_flat, params, S):
    """x_flat: (B*S, E) f32 batch-major rows -> logits (B*S, npad) f32."""
    M = x_flat.shape[0]
    L = params["WQKV"].shape[0]
    npad = params["fc_w"].shape[1]

    gran = (S * 8) // math.gcd(S, 8)                    # lcm(S, 8)
    tm = min(_round_up(ROW_TILE_TARGET, gran), _round_up(M, gran))
    M_pad = _round_up(M, tm)
    if M_pad != M:
        x_flat = jnp.pad(x_flat, ((0, M_pad - M), (0, 0)))
    num_tiles = M_pad // tm

    def layer_spec(arr):
        _, a, b = arr.shape
        return pl.BlockSpec((None, a, b), lambda r, l: (l, 0, 0))

    in_specs = [pl.BlockSpec((tm, E), lambda r, l: (r, 0))]
    in_specs += [layer_spec(params[k])
                 for k in ("WQKV", "WO", "W1", "W2", "VEC", "BF1")]
    in_specs += [pl.BlockSpec((E, npad), lambda r, l: (0, 0)),
                 pl.BlockSpec((1, npad), lambda r, l: (0, 0))]

    out = pl.pallas_call(
        _make_kernel(tm, S),
        out_shape=jax.ShapeDtypeStruct((M_pad, npad), jnp.float32),
        grid=(num_tiles, L),
        in_specs=in_specs,
        out_specs=pl.BlockSpec((tm, npad), lambda r, l: (r, 0)),
        scratch_shapes=[pltpu.VMEM((tm, E), jnp.float32),       # activation carry
                        pltpu.VMEM((tm, 3 * E), jnp.bfloat16),  # q | k | v
                        pltpu.VMEM((tm, E), jnp.bfloat16)],     # attention context
        compiler_params=pltpu.CompilerParams(
            dimension_semantics=("parallel", "arbitrary"),
            vmem_limit_bytes=32 << 20),
    )(x_flat, params["WQKV"], params["WO"], params["W1"], params["W2"],
      params["VEC"], params["BF1"], params["fc_w"], params["fc_b"])
    return out[:M]


def relationship_model_forward(subject, relation, params):
    """subject, relation: (S, B) int32 -> logits (S, B, num_relations)."""
    subj_emb = jnp.take(params["subject_embedding"], subject, axis=0)   # (S, B, E)
    rel_emb = jnp.take(params["relation_embedding"], relation, axis=0)  # (S, B, E)
    x = (subj_emb + rel_emb) * 0.5

    S, B, _ = x.shape
    x_flat = jnp.transpose(x, (1, 0, 2)).reshape(B * S, E)   # batch-major rows

    logits = fused_transformer_fc(x_flat, params, S)         # (B*S, npad)
    nrel = params["num_relations"]
    out = logits[:, :nrel].reshape(B, S, nrel)
    return jnp.transpose(out, (1, 0, 2))                     # (S, B, nrel)


def init_params(key, num_subjects, num_relations, num_layers=NUM_LAYERS):
    def nrm(k, shape, scale=0.02):
        return scale * jax.random.normal(k, shape, dtype=jnp.float32)

    keys = jax.random.split(key, 3 + num_layers)
    npad = _round_up(num_relations, LANE)

    fc_w = nrm(keys[2], (E, num_relations))
    fc_w = jnp.pad(fc_w, ((0, 0), (0, npad - num_relations)))      # lane-dense pad

    params = {
        "subject_embedding": jax.random.normal(keys[0], (num_subjects, E),
                                               dtype=jnp.float32),
        "relation_embedding": jax.random.normal(keys[1], (num_relations, E),
                                                dtype=jnp.float32),
        "fc_w": fc_w.astype(jnp.bfloat16),
        "fc_b": jnp.zeros((1, npad), jnp.float32),
        "num_relations": num_relations,
    }

    attn_scale = 1.0 / (DH ** 0.5)
    wqkv_l, wo_l, w1_l, w2_l, vec_l, bf1_l = [], [], [], [], [], []
    for l in range(num_layers):
        lk = jax.random.split(keys[3 + l], 6)
        wq = nrm(lk[0], (E, E)) * attn_scale     # 1/sqrt(DH) folded into Wq (and bq)
        wk = nrm(lk[1], (E, E))
        wv = nrm(lk[2], (E, E))
        wqkv_l.append(jnp.concatenate([wq, wk, wv], axis=1).astype(jnp.bfloat16))
        wo_l.append(nrm(lk[3], (E, E)).astype(jnp.bfloat16))
        w1_l.append(nrm(lk[4], (E, FF)).astype(jnp.bfloat16))
        w2_l.append(nrm(lk[5], (FF, E)).astype(jnp.bfloat16))
        # Packed per-layer vectors: [bq, bk, bv, bo, g1, be1, bf2, g2, be2]
        vec = jnp.zeros((9, E), jnp.float32)
        vec = vec.at[_G1].set(1.0).at[_G2].set(1.0)           # LayerNorm gammas
        vec_l.append(vec)
        bf1_l.append(jnp.zeros((1, FF), jnp.float32))

    params["WQKV"] = jnp.stack(wqkv_l)
    params["WO"] = jnp.stack(wo_l)
    params["W1"] = jnp.stack(w1_l)
    params["W2"] = jnp.stack(w2_l)
    params["VEC"] = jnp.stack(vec_l)
    params["BF1"] = jnp.stack(bf1_l)
    return params


if __name__ == "__main__":
    NUM_SUBJECTS, NUM_RELATIONS = 12, 8
    S, B = 8, 2  # seq len, batch (PyTorch batch_first=False convention)

    key = jax.random.PRNGKey(0)
    pkey, skey, rkey = jax.random.split(key, 3)
    params = init_params(pkey, NUM_SUBJECTS, NUM_RELATIONS)

    subject = jax.random.randint(skey, (S, B), 0, NUM_SUBJECTS, dtype=jnp.int32)
    relation = jax.random.randint(rkey, (S, B), 0, NUM_RELATIONS, dtype=jnp.int32)

    out = relationship_model_forward(subject, relation, params)
    out = jax.block_until_ready(out)

    assert out.shape == (S, B, NUM_RELATIONS), out.shape
    assert bool(jnp.all(jnp.isfinite(out)))
    print("KERNEL_OK")
</pallas_src>

<mosaic_0001>
module attributes {stable_mosaic.version = 11 : i64} {
  func.func @kernel(%arg0: i32, %arg1: i32, %arg2: memref<16x256xf32, #tpu.memory_space<vmem>>, %arg3: memref<1x256x768xbf16, #tpu.memory_space<vmem>>, %arg4: memref<1x256x256xbf16, #tpu.memory_space<vmem>>, %arg5: memref<1x256x2048xbf16, #tpu.memory_space<vmem>>, %arg6: memref<1x2048x256xbf16, #tpu.memory_space<vmem>>, %arg7: memref<1x9x256xf32, #tpu.memory_space<vmem>>, %arg8: memref<1x1x2048xf32, #tpu.memory_space<vmem>>, %arg9: memref<256x128xbf16, #tpu.memory_space<vmem>>, %arg10: memref<1x128xf32, #tpu.memory_space<vmem>>, %arg11: memref<16x128xf32, #tpu.memory_space<vmem>>, %arg12: memref<16x256xf32, #tpu.memory_space<vmem>>, %arg13: memref<16x768xbf16, #tpu.memory_space<vmem>>, %arg14: memref<16x256xbf16, #tpu.memory_space<vmem>>) attributes {dimension_semantics = [#tpu.dimension_semantics<parallel>, #tpu.dimension_semantics<arbitrary>], iteration_bounds = array<i64: 1, 6>, scalar_prefetch = 0 : i64, scratch_operands = 3 : i64, tpu.core_type = #tpu.core_type<tc>, window_params = [{transform_indices = @transform_0, window_bounds = array<i64: 16, 256>}, {transform_indices = @transform_1, window_bounds = array<i64: 1, 256, 768>}, {transform_indices = @transform_2, window_bounds = array<i64: 1, 256, 256>}, {transform_indices = @transform_3, window_bounds = array<i64: 1, 256, 2048>}, {transform_indices = @transform_4, window_bounds = array<i64: 1, 2048, 256>}, {transform_indices = @transform_5, window_bounds = array<i64: 1, 9, 256>}, {transform_indices = @transform_6, window_bounds = array<i64: 1, 1, 2048>}, {pipeline_mode = #tpu.pipeline_mode<synchronous>, transform_indices = @transform_7, window_bounds = array<i64: 256, 128>}, {pipeline_mode = #tpu.pipeline_mode<synchronous>, transform_indices = @transform_8, window_bounds = array<i64: 1, 128>}, {transform_indices = @transform_9, window_bounds = array<i64: 16, 128>}]} {
    %c0_i32 = arith.constant 0 : i32
    %0 = arith.cmpi eq, %arg1, %c0_i32 : i32
    %1 = arith.extui %0 : i1 to i32
    %c0_i32_0 = arith.constant 0 : i32
    %2 = arith.cmpi ne, %1, %c0_i32_0 : i32
    scf.if %2 {
      %c0_160 = arith.constant 0 : index
      %c0_161 = arith.constant 0 : index
      %446 = vector.load %arg2[%c0_160, %c0_161] : memref<16x256xf32, #tpu.memory_space<vmem>>, vector<16x256xf32>
      %c0_162 = arith.constant 0 : index
      %c0_163 = arith.constant 0 : index
      %447 = vector.load %arg12[%c0_162, %c0_163] : memref<16x256xf32, #tpu.memory_space<vmem>>, vector<16x256xf32>
      tpu.vector_store %arg12[%c0_162, %c0_163], %446 {strides = array<i32>} : memref<16x256xf32, #tpu.memory_space<vmem>>, vector<16x256xf32>,
    } else {
    }
    %c0 = arith.constant 0 : index
    %c0_1 = arith.constant 0 : index
    %3 = vector.load %arg12[%c0, %c0_1] : memref<16x256xf32, #tpu.memory_space<vmem>>, vector<16x256xf32>
    %4 = arith.truncf %3 : vector<16x256xf32> to vector<16x256xbf16>
    %c0_2 = arith.constant 0 : index
    %c0_3 = arith.constant 0 : index
    %c0_4 = arith.constant 0 : index
    %5 = vector.load %arg7[%c0_2, %c0_3, %c0_4] : memref<1x9x256xf32, #tpu.memory_space<vmem>>, vector<1x9x256xf32>
    %6 = vector.shape_cast %5 : vector<1x9x256xf32> to vector<9x256xf32>
    %c0_5 = arith.constant 0 : index
    %c0_6 = arith.constant 0 : index
    %c0_7 = arith.constant 0 : index
    %7 = vector.load %arg3[%c0_5, %c0_6, %c0_7] : memref<1x256x768xbf16, #tpu.memory_space<vmem>>, vector<1x256x768xbf16>
    %8 = vector.shape_cast %7 : vector<1x256x768xbf16> to vector<256x768xbf16>
    %cst = arith.constant dense<0.000000e+00> : vector<16x768xf32>
    %9 = tpu.matmul %4, %8, %cst {dimension_numbers = #tpu.dot_dimension_numbers<[1], [0], [0], [1], [0, 0, 1, 1], [], []>} : vector<16x256xbf16>, vector<256x768xbf16>, vector<16x768xf32> -> vector<16x768xf32>
    %10 = vector.extract_strided_slice %9 {offsets = [0, 0], sizes = [16, 256], strides = [1, 1]} : vector<16x768xf32> to vector<16x256xf32>
    %11 = vector.extract_strided_slice %6 {offsets = [0, 0], sizes = [1, 256], strides = [1, 1]} : vector<9x256xf32> to vector<1x256xf32>
    %12 = vector.broadcast %11 : vector<1x256xf32> to vector<16x256xf32>
    %13 = arith.addf %10, %12 : vector<16x256xf32>
    %14 = arith.truncf %13 : vector<16x256xf32> to vector<16x256xbf16>
    %c0_8 = arith.constant 0 : index
    %c0_9 = arith.constant 0 : index
    %15 = vector.load %arg13[%c0_8, %c0_9] : memref<16x768xbf16, #tpu.memory_space<vmem>>, vector<16x256xbf16>
    tpu.vector_store %arg13[%c0_8, %c0_9], %14 {strides = array<i32>} : memref<16x768xbf16, #tpu.memory_space<vmem>>, vector<16x256xbf16>,
    %16 = vector.extract_strided_slice %9 {offsets = [0, 256], sizes = [16, 256], strides = [1, 1]} : vector<16x768xf32> to vector<16x256xf32>
    %17 = vector.extract_strided_slice %6 {offsets = [1, 0], sizes = [1, 256], strides = [1, 1]} : vector<9x256xf32> to vector<1x256xf32>
    %18 = vector.broadcast %17 : vector<1x256xf32> to vector<16x256xf32>
    %19 = arith.addf %16, %18 : vector<16x256xf32>
    %20 = arith.truncf %19 : vector<16x256xf32> to vector<16x256xbf16>
    %c0_10 = arith.constant 0 : index
    %c256 = arith.constant 256 : index
    %21 = vector.load %arg13[%c0_10, %c256] : memref<16x768xbf16, #tpu.memory_space<vmem>>, vector<16x256xbf16>
    tpu.vector_store %arg13[%c0_10, %c256], %20 {strides = array<i32>} : memref<16x768xbf16, #tpu.memory_space<vmem>>, vector<16x256xbf16>,
    %22 = vector.extract_strided_slice %9 {offsets = [0, 512], sizes = [16, 256], strides = [1, 1]} : vector<16x768xf32> to vector<16x256xf32>
    %23 = vector.extract_strided_slice %6 {offsets = [2, 0], sizes = [1, 256], strides = [1, 1]} : vector<9x256xf32> to vector<1x256xf32>
    %24 = vector.broadcast %23 : vector<1x256xf32> to vector<16x256xf32>
    %25 = arith.addf %22, %24 : vector<16x256xf32>
    %26 = arith.truncf %25 : vector<16x256xf32> to vector<16x256xbf16>
    %c0_11 = arith.constant 0 : index
    %c512 = arith.constant 512 : index
    %27 = vector.load %arg13[%c0_11, %c512] : memref<16x768xbf16, #tpu.memory_space<vmem>>, vector<16x256xbf16>
    tpu.vector_store %arg13[%c0_11, %c512], %26 {strides = array<i32>} : memref<16x768xbf16, #tpu.memory_space<vmem>>, vector<16x256xbf16>,
    %c0_i32_12 = arith.constant 0 : i32
    %c1_i32 = arith.constant 1 : i32
    %28 = arith.muli %c0_i32_12, %c1_i32 : i32
    %c0_i32_13 = arith.constant 0 : i32
    %29 = arith.addi %c0_i32_13, %28 : i32
    %c8_i32 = arith.constant 8 : i32
    %30 = arith.muli %29, %c8_i32 : i32
    %31 = arith.index_cast %30 : i32 to index
    %c0_14 = arith.constant 0 : index
    %32 = vector.load %arg13[%31, %c0_14] : memref<16x768xbf16, #tpu.memory_space<vmem>>, vector<8x128xbf16>
    %33 = arith.index_cast %30 : i32 to index
    %c256_15 = arith.constant 256 : index
    %34 = vector.load %arg13[%33, %c256_15] : memref<16x768xbf16, #tpu.memory_space<vmem>>, vector<8x128xbf16>
    %35 = arith.index_cast %30 : i32 to index
    %c512_16 = arith.constant 512 : index
    %36 = vector.load %arg13[%35, %c512_16] : memref<16x768xbf16, #tpu.memory_space<vmem>>, vector<8x128xbf16>
    %37 = vector.extract_strided_slice %32 {offsets = [0, 0], sizes = [8, 32], strides = [1, 1]} : vector<8x128xbf16> to vector<8x32xbf16>
    %38 = vector.extract_strided_slice %34 {offsets = [0, 0], sizes = [8, 32], strides = [1, 1]} : vector<8x128xbf16> to vector<8x32xbf16>
    %39 = vector.extract_strided_slice %36 {offsets = [0, 0], sizes = [8, 32], strides = [1, 1]} : vector<8x128xbf16> to vector<8x32xbf16>
    %cst_17 = arith.constant dense<0.000000e+00> : vector<8x8xf32>
    %40 = tpu.matmul %37, %38, %cst_17 {dimension_numbers = #tpu.dot_dimension_numbers<[1], [1], [0], [0], [0, 0, 1, 0], [], []>} : vector<8x32xbf16>, vector<8x32xbf16>, vector<8x8xf32> -> vector<8x8xf32>
    %cst_18 = arith.constant dense<0xFF800000> : vector<8xf32>
    %41 = vector.multi_reduction <maximumf>, %40, %cst_18 [1] : vector<8x8xf32> to vector<8xf32>
    %42 = vector.shape_cast %41 : vector<8xf32> to vector<8x1xf32>
    %43 = vector.broadcast %42 : vector<8x1xf32> to vector<8x8xf32>
    %44 = arith.subf %40, %43 : vector<8x8xf32>
    %45 = math.exp %44 : vector<8x8xf32>
    %cst_19 = arith.constant dense<0.000000e+00> : vector<8xf32>
    %46 = vector.multi_reduction <add>, %45, %cst_19 [1] : vector<8x8xf32> to vector<8xf32>
    %47 = vector.shape_cast %46 : vector<8xf32> to vector<8x1xf32>
    %48 = tpu.reciprocal %47 {approx = true} : vector<8x1xf32> -> vector<8x1xf32>
    %49 = vector.broadcast %48 : vector<8x1xf32> to vector<8x8xf32>
    %50 = arith.mulf %45, %49 : vector<8x8xf32>
    %51 = arith.truncf %50 : vector<8x8xf32> to vector<8x8xbf16>
    %cst_20 = arith.constant dense<0.000000e+00> : vector<8x32xf32>
    %52 = tpu.matmul %51, %39, %cst_20 {dimension_numbers = #tpu.dot_dimension_numbers<[1], [0], [0], [1], [0, 0, 1, 1], [], []>} : vector<8x8xbf16>, vector<8x32xbf16>, vector<8x32xf32> -> vector<8x32xf32>
    %53 = vector.extract_strided_slice %32 {offsets = [0, 32], sizes = [8, 32], strides = [1, 1]} : vector<8x128xbf16> to vector<8x32xbf16>
    %54 = vector.extract_strided_slice %34 {offsets = [0, 32], sizes = [8, 32], strides = [1, 1]} : vector<8x128xbf16> to vector<8x32xbf16>
    %55 = vector.extract_strided_slice %36 {offsets = [0, 32], sizes = [8, 32], strides = [1, 1]} : vector<8x128xbf16> to vector<8x32xbf16>
    %cst_21 = arith.constant dense<0.000000e+00> : vector<8x8xf32>
    %56 = tpu.matmul %53, %54, %cst_21 {dimension_numbers = #tpu.dot_dimension_numbers<[1], [1], [0], [0], [0, 0, 1, 0], [], []>} : vector<8x32xbf16>, vector<8x32xbf16>, vector<8x8xf32> -> vector<8x8xf32>
    %cst_22 = arith.constant dense<0xFF800000> : vector<8xf32>
    %57 = vector.multi_reduction <maximumf>, %56, %cst_22 [1] : vector<8x8xf32> to vector<8xf32>
    %58 = vector.shape_cast %57 : vector<8xf32> to vector<8x1xf32>
    %59 = vector.broadcast %58 : vector<8x1xf32> to vector<8x8xf32>
    %60 = arith.subf %56, %59 : vector<8x8xf32>
    %61 = math.exp %60 : vector<8x8xf32>
    %cst_23 = arith.constant dense<0.000000e+00> : vector<8xf32>
    %62 = vector.multi_reduction <add>, %61, %cst_23 [1] : vector<8x8xf32> to vector<8xf32>
    %63 = vector.shape_cast %62 : vector<8xf32> to vector<8x1xf32>
    %64 = tpu.reciprocal %63 {approx = true} : vector<8x1xf32> -> vector<8x1xf32>
    %65 = vector.broadcast %64 : vector<8x1xf32> to vector<8x8xf32>
    %66 = arith.mulf %61, %65 : vector<8x8xf32>
    %67 = arith.truncf %66 : vector<8x8xf32> to vector<8x8xbf16>
    %cst_24 = arith.constant dense<0.000000e+00> : vector<8x32xf32>
    %68 = tpu.matmul %67, %55, %cst_24 {dimension_numbers = #tpu.dot_dimension_numbers<[1], [0], [0], [1], [0, 0, 1, 1], [], []>} : vector<8x8xbf16>, vector<8x32xbf16>, vector<8x32xf32> -> vector<8x32xf32>
    %69 = vector.extract_strided_slice %32 {offsets = [0, 64], sizes = [8, 32], strides = [1, 1]} : vector<8x128xbf16> to vector<8x32xbf16>
    %70 = vector.extract_strided_slice %34 {offsets = [0, 64], sizes = [8, 32], strides = [1, 1]} : vector<8x128xbf16> to vector<8x32xbf16>
    %71 = vector.extract_strided_slice %36 {offsets = [0, 64], sizes = [8, 32], strides = [1, 1]} : vector<8x128xbf16> to vector<8x32xbf16>
    %cst_25 = arith.constant dense<0.000000e+00> : vector<8x8xf32>
    %72 = tpu.matmul %69, %70, %cst_25 {dimension_numbers = #tpu.dot_dimension_numbers<[1], [1], [0], [0], [0, 0, 1, 0], [], []>} : vector<8x32xbf16>, vector<8x32xbf16>, vector<8x8xf32> -> vector<8x8xf32>
    %cst_26 = arith.constant dense<0xFF800000> : vector<8xf32>
    %73 = vector.multi_reduction <maximumf>, %72, %cst_26 [1] : vector<8x8xf32> to vector<8xf32>
    %74 = vector.shape_cast %73 : vector<8xf32> to vector<8x1xf32>
    %75 = vector.broadcast %74 : vector<8x1xf32> to vector<8x8xf32>
    %76 = arith.subf %72, %75 : vector<8x8xf32>
    %77 = math.exp %76 : vector<8x8xf32>
    %cst_27 = arith.constant dense<0.000000e+00> : vector<8xf32>
    %78 = vector.multi_reduction <add>, %77, %cst_27 [1] : vector<8x8xf32> to vector<8xf32>
    %79 = vector.shape_cast %78 : vector<8xf32> to vector<8x1xf32>
    %80 = tpu.reciprocal %79 {approx = true} : vector<8x1xf32> -> vector<8x1xf32>
    %81 = vector.broadcast %80 : vector<8x1xf32> to vector<8x8xf32>
    %82 = arith.mulf %77, %81 : vector<8x8xf32>
    %83 = arith.truncf %82 : vector<8x8xf32> to vector<8x8xbf16>
    %cst_28 = arith.constant dense<0.000000e+00> : vector<8x32xf32>
    %84 = tpu.matmul %83, %71, %cst_28 {dimension_numbers = #tpu.dot_dimension_numbers<[1], [0], [0], [1], [0, 0, 1, 1], [], []>} : vector<8x8xbf16>, vector<8x32xbf16>, vector<8x32xf32> -> vector<8x32xf32>
    %85 = vector.extract_strided_slice %32 {offsets = [0, 96], sizes = [8, 32], strides = [1, 1]} : vector<8x128xbf16> to vector<8x32xbf16>
    %86 = vector.extract_strided_slice %34 {offsets = [0, 96], sizes = [8, 32], strides = [1, 1]} : vector<8x128xbf16> to vector<8x32xbf16>
    %87 = vector.extract_strided_slice %36 {offsets = [0, 96], sizes = [8, 32], strides = [1, 1]} : vector<8x128xbf16> to vector<8x32xbf16>
    %cst_29 = arith.constant dense<0.000000e+00> : vector<8x8xf32>
    %88 = tpu.matmul %85, %86, %cst_29 {dimension_numbers = #tpu.dot_dimension_numbers<[1], [1], [0], [0], [0, 0, 1, 0], [], []>} : vector<8x32xbf16>, vector<8x32xbf16>, vector<8x8xf32> -> vector<8x8xf32>
    %cst_30 = arith.constant dense<0xFF800000> : vector<8xf32>
    %89 = vector.multi_reduction <maximumf>, %88, %cst_30 [1] : vector<8x8xf32> to vector<8xf32>
    %90 = vector.shape_cast %89 : vector<8xf32> to vector<8x1xf32>
    %91 = vector.broadcast %90 : vector<8x1xf32> to vector<8x8xf32>
    %92 = arith.subf %88, %91 : vector<8x8xf32>
    %93 = math.exp %92 : vector<8x8xf32>
    %cst_31 = arith.constant dense<0.000000e+00> : vector<8xf32>
    %94 = vector.multi_reduction <add>, %93, %cst_31 [1] : vector<8x8xf32> to vector<8xf32>
    %95 = vector.shape_cast %94 : vector<8xf32> to vector<8x1xf32>
    %96 = tpu.reciprocal %95 {approx = true} : vector<8x1xf32> -> vector<8x1xf32>
    %97 = vector.broadcast %96 : vector<8x1xf32> to vector<8x8xf32>
    %98 = arith.mulf %93, %97 : vector<8x8xf32>
    %99 = arith.truncf %98 : vector<8x8xf32> to vector<8x8xbf16>
    %cst_32 = arith.constant dense<0.000000e+00> : vector<8x32xf32>
    %100 = tpu.matmul %99, %87, %cst_32 {dimension_numbers = #tpu.dot_dimension_numbers<[1], [0], [0], [1], [0, 0, 1, 1], [], []>} : vector<8x8xbf16>, vector<8x32xbf16>, vector<8x32xf32> -> vector<8x32xf32>
    %101 = tpu.concatenate %52, %68, %84, %100 in 1 : vector<8x32xf32>, vector<8x32xf32>, vector<8x32xf32>, vector<8x32xf32> -> vector<8x128xf32>
    %102 = arith.truncf %101 : vector<8x128xf32> to vector<8x128xbf16>
    %103 = arith.index_cast %30 : i32 to index
    %c0_33 = arith.constant 0 : index
    %104 = vector.load %arg14[%103, %c0_33] : memref<16x256xbf16, #tpu.memory_space<vmem>>, vector<8x128xbf16>
    tpu.vector_store %arg14[%103, %c0_33], %102 {strides = array<i32>} : memref<16x256xbf16, #tpu.memory_space<vmem>>, vector<8x128xbf16>,
    %105 = arith.index_cast %30 : i32 to index
    %c128 = arith.constant 128 : index
    %106 = vector.load %arg13[%105, %c128] : memref<16x768xbf16, #tpu.memory_space<vmem>>, vector<8x128xbf16>
    %107 = arith.index_cast %30 : i32 to index
    %c384 = arith.constant 384 : index
    %108 = vector.load %arg13[%107, %c384] : memref<16x768xbf16, #tpu.memory_space<vmem>>, vector<8x128xbf16>
    %109 = arith.index_cast %30 : i32 to index
    %c640 = arith.constant 640 : index
    %110 = vector.load %arg13[%109, %c640] : memref<16x768xbf16, #tpu.memory_space<vmem>>, vector<8x128xbf16>
    %111 = vector.extract_strided_slice %106 {offsets = [0, 0], sizes = [8, 32], strides = [1, 1]} : vector<8x128xbf16> to vector<8x32xbf16>
    %112 = vector.extract_strided_slice %108 {offsets = [0, 0], sizes = [8, 32], strides = [1, 1]} : vector<8x128xbf16> to vector<8x32xbf16>
    %113 = vector.extract_strided_slice %110 {offsets = [0, 0], sizes = [8, 32], strides = [1, 1]} : vector<8x128xbf16> to vector<8x32xbf16>
    %cst_34 = arith.constant dense<0.000000e+00> : vector<8x8xf32>
    %114 = tpu.matmul %111, %112, %cst_34 {dimension_numbers = #tpu.dot_dimension_numbers<[1], [1], [0], [0], [0, 0, 1, 0], [], []>} : vector<8x32xbf16>, vector<8x32xbf16>, vector<8x8xf32> -> vector<8x8xf32>
    %cst_35 = arith.constant dense<0xFF800000> : vector<8xf32>
    %115 = vector.multi_reduction <maximumf>, %114, %cst_35 [1] : vector<8x8xf32> to vector<8xf32>
    %116 = vector.shape_cast %115 : vector<8xf32> to vector<8x1xf32>
    %117 = vector.broadcast %116 : vector<8x1xf32> to vector<8x8xf32>
    %118 = arith.subf %114, %117 : vector<8x8xf32>
    %119 = math.exp %118 : vector<8x8xf32>
    %cst_36 = arith.constant dense<0.000000e+00> : vector<8xf32>
    %120 = vector.multi_reduction <add>, %119, %cst_36 [1] : vector<8x8xf32> to vector<8xf32>
    %121 = vector.shape_cast %120 : vector<8xf32> to vector<8x1xf32>
    %122 = tpu.reciprocal %121 {approx = true} : vector<8x1xf32> -> vector<8x1xf32>
    %123 = vector.broadcast %122 : vector<8x1xf32> to vector<8x8xf32>
    %124 = arith.mulf %119, %123 : vector<8x8xf32>
    %125 = arith.truncf %124 : vector<8x8xf32> to vector<8x8xbf16>
    %cst_37 = arith.constant dense<0.000000e+00> : vector<8x32xf32>
    %126 = tpu.matmul %125, %113, %cst_37 {dimension_numbers = #tpu.dot_dimension_numbers<[1], [0], [0], [1], [0, 0, 1, 1], [], []>} : vector<8x8xbf16>, vector<8x32xbf16>, vector<8x32xf32> -> vector<8x32xf32>
    %127 = vector.extract_strided_slice %106 {offsets = [0, 32], sizes = [8, 32], strides = [1, 1]} : vector<8x128xbf16> to vector<8x32xbf16>
    %128 = vector.extract_strided_slice %108 {offsets = [0, 32], sizes = [8, 32], strides = [1, 1]} : vector<8x128xbf16> to vector<8x32xbf16>
    %129 = vector.extract_strided_slice %110 {offsets = [0, 32], sizes = [8, 32], strides = [1, 1]} : vector<8x128xbf16> to vector<8x32xbf16>
    %cst_38 = arith.constant dense<0.000000e+00> : vector<8x8xf32>
    %130 = tpu.matmul %127, %128, %cst_38 {dimension_numbers = #tpu.dot_dimension_numbers<[1], [1], [0], [0], [0, 0, 1, 0], [], []>} : vector<8x32xbf16>, vector<8x32xbf16>, vector<8x8xf32> -> vector<8x8xf32>
    %cst_39 = arith.constant dense<0xFF800000> : vector<8xf32>
    %131 = vector.multi_reduction <maximumf>, %130, %cst_39 [1] : vector<8x8xf32> to vector<8xf32>
    %132 = vector.shape_cast %131 : vector<8xf32> to vector<8x1xf32>
    %133 = vector.broadcast %132 : vector<8x1xf32> to vector<8x8xf32>
    %134 = arith.subf %130, %133 : vector<8x8xf32>
    %135 = math.exp %134 : vector<8x8xf32>
    %cst_40 = arith.constant dense<0.000000e+00> : vector<8xf32>
    %136 = vector.multi_reduction <add>, %135, %cst_40 [1] : vector<8x8xf32> to vector<8xf32>
    %137 = vector.shape_cast %136 : vector<8xf32> to vector<8x1xf32>
    %138 = tpu.reciprocal %137 {approx = true} : vector<8x1xf32> -> vector<8x1xf32>
    %139 = vector.broadcast %138 : vector<8x1xf32> to vector<8x8xf32>
    %140 = arith.mulf %135, %139 : vector<8x8xf32>
    %141 = arith.truncf %140 : vector<8x8xf32> to vector<8x8xbf16>
    %cst_41 = arith.constant dense<0.000000e+00> : vector<8x32xf32>
    %142 = tpu.matmul %141, %129, %cst_41 {dimension_numbers = #tpu.dot_dimension_numbers<[1], [0], [0], [1], [0, 0, 1, 1], [], []>} : vector<8x8xbf16>, vector<8x32xbf16>, vector<8x32xf32> -> vector<8x32xf32>
    %143 = vector.extract_strided_slice %106 {offsets = [0, 64], sizes = [8, 32], strides = [1, 1]} : vector<8x128xbf16> to vector<8x32xbf16>
    %144 = vector.extract_strided_slice %108 {offsets = [0, 64], sizes = [8, 32], strides = [1, 1]} : vector<8x128xbf16> to vector<8x32xbf16>
    %145 = vector.extract_strided_slice %110 {offsets = [0, 64], sizes = [8, 32], strides = [1, 1]} : vector<8x128xbf16> to vector<8x32xbf16>
    %cst_42 = arith.constant dense<0.000000e+00> : vector<8x8xf32>
    %146 = tpu.matmul %143, %144, %cst_42 {dimension_numbers = #tpu.dot_dimension_numbers<[1], [1], [0], [0], [0, 0, 1, 0], [], []>} : vector<8x32xbf16>, vector<8x32xbf16>, vector<8x8xf32> -> vector<8x8xf32>
    %cst_43 = arith.constant dense<0xFF800000> : vector<8xf32>
    %147 = vector.multi_reduction <maximumf>, %146, %cst_43 [1] : vector<8x8xf32> to vector<8xf32>
    %148 = vector.shape_cast %147 : vector<8xf32> to vector<8x1xf32>
    %149 = vector.broadcast %148 : vector<8x1xf32> to vector<8x8xf32>
    %150 = arith.subf %146, %149 : vector<8x8xf32>
    %151 = math.exp %150 : vector<8x8xf32>
    %cst_44 = arith.constant dense<0.000000e+00> : vector<8xf32>
    %152 = vector.multi_reduction <add>, %151, %cst_44 [1] : vector<8x8xf32> to vector<8xf32>
    %153 = vector.shape_cast %152 : vector<8xf32> to vector<8x1xf32>
    %154 = tpu.reciprocal %153 {approx = true} : vector<8x1xf32> -> vector<8x1xf32>
    %155 = vector.broadcast %154 : vector<8x1xf32> to vector<8x8xf32>
    %156 = arith.mulf %151, %155 : vector<8x8xf32>
    %157 = arith.truncf %156 : vector<8x8xf32> to vector<8x8xbf16>
    %cst_45 = arith.constant dense<0.000000e+00> : vector<8x32xf32>
    %158 = tpu.matmul %157, %145, %cst_45 {dimension_numbers = #tpu.dot_dimension_numbers<[1], [0], [0], [1], [0, 0, 1, 1], [], []>} : vector<8x8xbf16>, vector<8x32xbf16>, vector<8x32xf32> -> vector<8x32xf32>
    %159 = vector.extract_strided_slice %106 {offsets = [0, 96], sizes = [8, 32], strides = [1, 1]} : vector<8x128xbf16> to vector<8x32xbf16>
    %160 = vector.extract_strided_slice %108 {offsets = [0, 96], sizes = [8, 32], strides = [1, 1]} : vector<8x128xbf16> to vector<8x32xbf16>
    %161 = vector.extract_strided_slice %110 {offsets = [0, 96], sizes = [8, 32], strides = [1, 1]} : vector<8x128xbf16> to vector<8x32xbf16>
    %cst_46 = arith.constant dense<0.000000e+00> : vector<8x8xf32>
    %162 = tpu.matmul %159, %160, %cst_46 {dimension_numbers = #tpu.dot_dimension_numbers<[1], [1], [0], [0], [0, 0, 1, 0], [], []>} : vector<8x32xbf16>, vector<8x32xbf16>, vector<8x8xf32> -> vector<8x8xf32>
    %cst_47 = arith.constant dense<0xFF800000> : vector<8xf32>
    %163 = vector.multi_reduction <maximumf>, %162, %cst_47 [1] : vector<8x8xf32> to vector<8xf32>
    %164 = vector.shape_cast %163 : vector<8xf32> to vector<8x1xf32>
    %165 = vector.broadcast %164 : vector<8x1xf32> to vector<8x8xf32>
    %166 = arith.subf %162, %165 : vector<8x8xf32>
    %167 = math.exp %166 : vector<8x8xf32>
    %cst_48 = arith.constant dense<0.000000e+00> : vector<8xf32>
    %168 = vector.multi_reduction <add>, %167, %cst_48 [1] : vector<8x8xf32> to vector<8xf32>
    %169 = vector.shape_cast %168 : vector<8xf32> to vector<8x1xf32>
    %170 = tpu.reciprocal %169 {approx = true} : vector<8x1xf32> -> vector<8x1xf32>
    %171 = vector.broadcast %170 : vector<8x1xf32> to vector<8x8xf32>
    %172 = arith.mulf %167, %171 : vector<8x8xf32>
    %173 = arith.truncf %172 : vector<8x8xf32> to vector<8x8xbf16>
    %cst_49 = arith.constant dense<0.000000e+00> : vector<8x32xf32>
    %174 = tpu.matmul %173, %161, %cst_49 {dimension_numbers = #tpu.dot_dimension_numbers<[1], [0], [0], [1], [0, 0, 1, 1], [], []>} : vector<8x8xbf16>, vector<8x32xbf16>, vector<8x32xf32> -> vector<8x32xf32>
    %175 = tpu.concatenate %126, %142, %158, %174 in 1 : vector<8x32xf32>, vector<8x32xf32>, vector<8x32xf32>, vector<8x32xf32> -> vector<8x128xf32>
    %176 = arith.truncf %175 : vector<8x128xf32> to vector<8x128xbf16>
    %177 = arith.index_cast %30 : i32 to index
    %c128_50 = arith.constant 128 : index
    %178 = vector.load %arg14[%177, %c128_50] : memref<16x256xbf16, #tpu.memory_space<vmem>>, vector<8x128xbf16>
    tpu.vector_store %arg14[%177, %c128_50], %176 {strides = array<i32>} : memref<16x256xbf16, #tpu.memory_space<vmem>>, vector<8x128xbf16>,
    %c1_i32_51 = arith.constant 1 : i32
    %c1_i32_52 = arith.constant 1 : i32
    %179 = arith.muli %c1_i32_51, %c1_i32_52 : i32
    %c0_i32_53 = arith.constant 0 : i32
    %180 = arith.addi %c0_i32_53, %179 : i32
    %c8_i32_54 = arith.constant 8 : i32
    %181 = arith.muli %180, %c8_i32_54 : i32
    %182 = arith.index_cast %181 : i32 to index
    %c0_55 = arith.constant 0 : index
    %183 = vector.load %arg13[%182, %c0_55] : memref<16x768xbf16, #tpu.memory_space<vmem>>, vector<8x128xbf16>
    %184 = arith.index_cast %181 : i32 to index
    %c256_56 = arith.constant 256 : index
    %185 = vector.load %arg13[%184, %c256_56] : memref<16x768xbf16, #tpu.memory_space<vmem>>, vector<8x128xbf16>
    %186 = arith.index_cast %181 : i32 to index
    %c512_57 = arith.constant 512 : index
    %187 = vector.load %arg13[%186, %c512_57] : memref<16x768xbf16, #tpu.memory_space<vmem>>, vector<8x128xbf16>
    %188 = vector.extract_strided_slice %183 {offsets = [0, 0], sizes = [8, 32], strides = [1, 1]} : vector<8x128xbf16> to vector<8x32xbf16>
    %189 = vector.extract_strided_slice %185 {offsets = [0, 0], sizes = [8, 32], strides = [1, 1]} : vector<8x128xbf16> to vector<8x32xbf16>
    %190 = vector.extract_strided_slice %187 {offsets = [0, 0], sizes = [8, 32], strides = [1, 1]} : vector<8x128xbf16> to vector<8x32xbf16>
    %cst_58 = arith.constant dense<0.000000e+00> : vector<8x8xf32>
    %191 = tpu.matmul %188, %189, %cst_58 {dimension_numbers = #tpu.dot_dimension_numbers<[1], [1], [0], [0], [0, 0, 1, 0], [], []>} : vector<8x32xbf16>, vector<8x32xbf16>, vector<8x8xf32> -> vector<8x8xf32>
    %cst_59 = arith.constant dense<0xFF800000> : vector<8xf32>
    %192 = vector.multi_reduction <maximumf>, %191, %cst_59 [1] : vector<8x8xf32> to vector<8xf32>
    %193 = vector.shape_cast %192 : vector<8xf32> to vector<8x1xf32>
    %194 = vector.broadcast %193 : vector<8x1xf32> to vector<8x8xf32>
    %195 = arith.subf %191, %194 : vector<8x8xf32>
    %196 = math.exp %195 : vector<8x8xf32>
    %cst_60 = arith.constant dense<0.000000e+00> : vector<8xf32>
    %197 = vector.multi_reduction <add>, %196, %cst_60 [1] : vector<8x8xf32> to vector<8xf32>
    %198 = vector.shape_cast %197 : vector<8xf32> to vector<8x1xf32>
    %199 = tpu.reciprocal %198 {approx = true} : vector<8x1xf32> -> vector<8x1xf32>
    %200 = vector.broadcast %199 : vector<8x1xf32> to vector<8x8xf32>
    %201 = arith.mulf %196, %200 : vector<8x8xf32>
    %202 = arith.truncf %201 : vector<8x8xf32> to vector<8x8xbf16>
    %cst_61 = arith.constant dense<0.000000e+00> : vector<8x32xf32>
    %203 = tpu.matmul %202, %190, %cst_61 {dimension_numbers = #tpu.dot_dimension_numbers<[1], [0], [0], [1], [0, 0, 1, 1], [], []>} : vector<8x8xbf16>, vector<8x32xbf16>, vector<8x32xf32> -> vector<8x32xf32>
    %204 = vector.extract_strided_slice %183 {offsets = [0, 32], sizes = [8, 32], strides = [1, 1]} : vector<8x128xbf16> to vector<8x32xbf16>
    %205 = vector.extract_strided_slice %185 {offsets = [0, 32], sizes = [8, 32], strides = [1, 1]} : vector<8x128xbf16> to vector<8x32xbf16>
    %206 = vector.extract_strided_slice %187 {offsets = [0, 32], sizes = [8, 32], strides = [1, 1]} : vector<8x128xbf16> to vector<8x32xbf16>
    %cst_62 = arith.constant dense<0.000000e+00> : vector<8x8xf32>
    %207 = tpu.matmul %204, %205, %cst_62 {dimension_numbers = #tpu.dot_dimension_numbers<[1], [1], [0], [0], [0, 0, 1, 0], [], []>} : vector<8x32xbf16>, vector<8x32xbf16>, vector<8x8xf32> -> vector<8x8xf32>
    %cst_63 = arith.constant dense<0xFF800000> : vector<8xf32>
    %208 = vector.multi_reduction <maximumf>, %207, %cst_63 [1] : vector<8x8xf32> to vector<8xf32>
    %209 = vector.shape_cast %208 : vector<8xf32> to vector<8x1xf32>
    %210 = vector.broadcast %209 : vector<8x1xf32> to vector<8x8xf32>
    %211 = arith.subf %207, %210 : vector<8x8xf32>
    %212 = math.exp %211 : vector<8x8xf32>
    %cst_64 = arith.constant dense<0.000000e+00> : vector<8xf32>
    %213 = vector.multi_reduction <add>, %212, %cst_64 [1] : vector<8x8xf32> to vector<8xf32>
    %214 = vector.shape_cast %213 : vector<8xf32> to vector<8x1xf32>
    %215 = tpu.reciprocal %214 {approx = true} : vector<8x1xf32> -> vector<8x1xf32>
    %216 = vector.broadcast %215 : vector<8x1xf32> to vector<8x8xf32>
    %217 = arith.mulf %212, %216 : vector<8x8xf32>
    %218 = arith.truncf %217 : vector<8x8xf32> to vector<8x8xbf16>
    %cst_65 = arith.constant dense<0.000000e+00> : vector<8x32xf32>
    %219 = tpu.matmul %218, %206, %cst_65 {dimension_numbers = #tpu.dot_dimension_numbers<[1], [0], [0], [1], [0, 0, 1, 1], [], []>} : vector<8x8xbf16>, vector<8x32xbf16>, vector<8x32xf32> -> vector<8x32xf32>
    %220 = vector.extract_strided_slice %183 {offsets = [0, 64], sizes = [8, 32], strides = [1, 1]} : vector<8x128xbf16> to vector<8x32xbf16>
    %221 = vector.extract_strided_slice %185 {offsets = [0, 64], sizes = [8, 32], strides = [1, 1]} : vector<8x128xbf16> to vector<8x32xbf16>
    %222 = vector.extract_strided_slice %187 {offsets = [0, 64], sizes = [8, 32], strides = [1, 1]} : vector<8x128xbf16> to vector<8x32xbf16>
    %cst_66 = arith.constant dense<0.000000e+00> : vector<8x8xf32>
    %223 = tpu.matmul %220, %221, %cst_66 {dimension_numbers = #tpu.dot_dimension_numbers<[1], [1], [0], [0], [0, 0, 1, 0], [], []>} : vector<8x32xbf16>, vector<8x32xbf16>, vector<8x8xf32> -> vector<8x8xf32>
    %cst_67 = arith.constant dense<0xFF800000> : vector<8xf32>
    %224 = vector.multi_reduction <maximumf>, %223, %cst_67 [1] : vector<8x8xf32> to vector<8xf32>
    %225 = vector.shape_cast %224 : vector<8xf32> to vector<8x1xf32>
    %226 = vector.broadcast %225 : vector<8x1xf32> to vector<8x8xf32>
    %227 = arith.subf %223, %226 : vector<8x8xf32>
    %228 = math.exp %227 : vector<8x8xf32>
    %cst_68 = arith.constant dense<0.000000e+00> : vector<8xf32>
    %229 = vector.multi_reduction <add>, %228, %cst_68 [1] : vector<8x8xf32> to vector<8xf32>
    %230 = vector.shape_cast %229 : vector<8xf32> to vector<8x1xf32>
    %231 = tpu.reciprocal %230 {approx = true} : vector<8x1xf32> -> vector<8x1xf32>
    %232 = vector.broadcast %231 : vector<8x1xf32> to vector<8x8xf32>
    %233 = arith.mulf %228, %232 : vector<8x8xf32>
    %234 = arith.truncf %233 : vector<8x8xf32> to vector<8x8xbf16>
    %cst_69 = arith.constant dense<0.000000e+00> : vector<8x32xf32>
    %235 = tpu.matmul %234, %222, %cst_69 {dimension_numbers = #tpu.dot_dimension_numbers<[1], [0], [0], [1], [0, 0, 1, 1], [], []>} : vector<8x8xbf16>, vector<8x32xbf16>, vector<8x32xf32> -> vector<8x32xf32>
    %236 = vector.extract_strided_slice %183 {offsets = [0, 96], sizes = [8, 32], strides = [1, 1]} : vector<8x128xbf16> to vector<8x32xbf16>
    %237 = vector.extract_strided_slice %185 {offsets = [0, 96], sizes = [8, 32], strides = [1, 1]} : vector<8x128xbf16> to vector<8x32xbf16>
    %238 = vector.extract_strided_slice %187 {offsets = [0, 96], sizes = [8, 32], strides = [1, 1]} : vector<8x128xbf16> to vector<8x32xbf16>
    %cst_70 = arith.constant dense<0.000000e+00> : vector<8x8xf32>
    %239 = tpu.matmul %236, %237, %cst_70 {dimension_numbers = #tpu.dot_dimension_numbers<[1], [1], [0], [0], [0, 0, 1, 0], [], []>} : vector<8x32xbf16>, vector<8x32xbf16>, vector<8x8xf32> -> vector<8x8xf32>
    %cst_71 = arith.constant dense<0xFF800000> : vector<8xf32>
    %240 = vector.multi_reduction <maximumf>, %239, %cst_71 [1] : vector<8x8xf32> to vector<8xf32>
    %241 = vector.shape_cast %240 : vector<8xf32> to vector<8x1xf32>
    %242 = vector.broadcast %241 : vector<8x1xf32> to vector<8x8xf32>
    %243 = arith.subf %239, %242 : vector<8x8xf32>
    %244 = math.exp %243 : vector<8x8xf32>
    %cst_72 = arith.constant dense<0.000000e+00> : vector<8xf32>
    %245 = vector.multi_reduction <add>, %244, %cst_72 [1] : vector<8x8xf32> to vector<8xf32>
    %246 = vector.shape_cast %245 : vector<8xf32> to vector<8x1xf32>
    %247 = tpu.reciprocal %246 {approx = true} : vector<8x1xf32> -> vector<8x1xf32>
    %248 = vector.broadcast %247 : vector<8x1xf32> to vector<8x8xf32>
    %249 = arith.mulf %244, %248 : vector<8x8xf32>
    %250 = arith.truncf %249 : vector<8x8xf32> to vector<8x8xbf16>
    %cst_73 = arith.constant dense<0.000000e+00> : vector<8x32xf32>
    %251 = tpu.matmul %250, %238, %cst_73 {dimension_numbers = #tpu.dot_dimension_numbers<[1], [0], [0], [1], [0, 0, 1, 1], [], []>} : vector<8x8xbf16>, vector<8x32xbf16>, vector<8x32xf32> -> vector<8x32xf32>
    %252 = tpu.concatenate %203, %219, %235, %251 in 1 : vector<8x32xf32>, vector<8x32xf32>, vector<8x32xf32>, vector<8x32xf32> -> vector<8x128xf32>
    %253 = arith.truncf %252 : vector<8x128xf32> to vector<8x128xbf16>
    %254 = arith.index_cast %181 : i32 to index
    %c0_74 = arith.constant 0 : index
    %255 = vector.load %arg14[%254, %c0_74] : memref<16x256xbf16, #tpu.memory_space<vmem>>, vector<8x128xbf16>
    tpu.vector_store %arg14[%254, %c0_74], %253 {strides = array<i32>} : memref<16x256xbf16, #tpu.memory_space<vmem>>, vector<8x128xbf16>,
    %256 = arith.index_cast %181 : i32 to index
    %c128_75 = arith.constant 128 : index
    %257 = vector.load %arg13[%256, %c128_75] : memref<16x768xbf16, #tpu.memory_space<vmem>>, vector<8x128xbf16>
    %258 = arith.index_cast %181 : i32 to index
    %c384_76 = arith.constant 384 : index
    %259 = vector.load %arg13[%258, %c384_76] : memref<16x768xbf16, #tpu.memory_space<vmem>>, vector<8x128xbf16>
    %260 = arith.index_cast %181 : i32 to index
    %c640_77 = arith.constant 640 : index
    %261 = vector.load %arg13[%260, %c640_77] : memref<16x768xbf16, #tpu.memory_space<vmem>>, vector<8x128xbf16>
    %262 = vector.extract_strided_slice %257 {offsets = [0, 0], sizes = [8, 32], strides = [1, 1]} : vector<8x128xbf16> to vector<8x32xbf16>
    %263 = vector.extract_strided_slice %259 {offsets = [0, 0], sizes = [8, 32], strides = [1, 1]} : vector<8x128xbf16> to vector<8x32xbf16>
    %264 = vector.extract_strided_slice %261 {offsets = [0, 0], sizes = [8, 32], strides = [1, 1]} : vector<8x128xbf16> to vector<8x32xbf16>
    %cst_78 = arith.constant dense<0.000000e+00> : vector<8x8xf32>
    %265 = tpu.matmul %262, %263, %cst_78 {dimension_numbers = #tpu.dot_dimension_numbers<[1], [1], [0], [0], [0, 0, 1, 0], [], []>} : vector<8x32xbf16>, vector<8x32xbf16>, vector<8x8xf32> -> vector<8x8xf32>
    %cst_79 = arith.constant dense<0xFF800000> : vector<8xf32>
    %266 = vector.multi_reduction <maximumf>, %265, %cst_79 [1] : vector<8x8xf32> to vector<8xf32>
    %267 = vector.shape_cast %266 : vector<8xf32> to vector<8x1xf32>
    %268 = vector.broadcast %267 : vector<8x1xf32> to vector<8x8xf32>
    %269 = arith.subf %265, %268 : vector<8x8xf32>
    %270 = math.exp %269 : vector<8x8xf32>
    %cst_80 = arith.constant dense<0.000000e+00> : vector<8xf32>
    %271 = vector.multi_reduction <add>, %270, %cst_80 [1] : vector<8x8xf32> to vector<8xf32>
    %272 = vector.shape_cast %271 : vector<8xf32> to vector<8x1xf32>
    %273 = tpu.reciprocal %272 {approx = true} : vector<8x1xf32> -> vector<8x1xf32>
    %274 = vector.broadcast %273 : vector<8x1xf32> to vector<8x8xf32>
    %275 = arith.mulf %270, %274 : vector<8x8xf32>
    %276 = arith.truncf %275 : vector<8x8xf32> to vector<8x8xbf16>
    %cst_81 = arith.constant dense<0.000000e+00> : vector<8x32xf32>
    %277 = tpu.matmul %276, %264, %cst_81 {dimension_numbers = #tpu.dot_dimension_numbers<[1], [0], [0], [1], [0, 0, 1, 1], [], []>} : vector<8x8xbf16>, vector<8x32xbf16>, vector<8x32xf32> -> vector<8x32xf32>
    %278 = vector.extract_strided_slice %257 {offsets = [0, 32], sizes = [8, 32], strides = [1, 1]} : vector<8x128xbf16> to vector<8x32xbf16>
    %279 = vector.extract_strided_slice %259 {offsets = [0, 32], sizes = [8, 32], strides = [1, 1]} : vector<8x128xbf16> to vector<8x32xbf16>
    %280 = vector.extract_strided_slice %261 {offsets = [0, 32], sizes = [8, 32], strides = [1, 1]} : vector<8x128xbf16> to vector<8x32xbf16>
    %cst_82 = arith.constant dense<0.000000e+00> : vector<8x8xf32>
    %281 = tpu.matmul %278, %279, %cst_82 {dimension_numbers = #tpu.dot_dimension_numbers<[1], [1], [0], [0], [0, 0, 1, 0], [], []>} : vector<8x32xbf16>, vector<8x32xbf16>, vector<8x8xf32> -> vector<8x8xf32>
    %cst_83 = arith.constant dense<0xFF800000> : vector<8xf32>
    %282 = vector.multi_reduction <maximumf>, %281, %cst_83 [1] : vector<8x8xf32> to vector<8xf32>
    %283 = vector.shape_cast %282 : vector<8xf32> to vector<8x1xf32>
    %284 = vector.broadcast %283 : vector<8x1xf32> to vector<8x8xf32>
    %285 = arith.subf %281, %284 : vector<8x8xf32>
    %286 = math.exp %285 : vector<8x8xf32>
    %cst_84 = arith.constant dense<0.000000e+00> : vector<8xf32>
    %287 = vector.multi_reduction <add>, %286, %cst_84 [1] : vector<8x8xf32> to vector<8xf32>
    %288 = vector.shape_cast %287 : vector<8xf32> to vector<8x1xf32>
    %289 = tpu.reciprocal %288 {approx = true} : vector<8x1xf32> -> vector<8x1xf32>
    %290 = vector.broadcast %289 : vector<8x1xf32> to vector<8x8xf32>
    %291 = arith.mulf %286, %290 : vector<8x8xf32>
    %292 = arith.truncf %291 : vector<8x8xf32> to vector<8x8xbf16>
    %cst_85 = arith.constant dense<0.000000e+00> : vector<8x32xf32>
    %293 = tpu.matmul %292, %280, %cst_85 {dimension_numbers = #tpu.dot_dimension_numbers<[1], [0], [0], [1], [0, 0, 1, 1], [], []>} : vector<8x8xbf16>, vector<8x32xbf16>, vector<8x32xf32> -> vector<8x32xf32>
    %294 = vector.extract_strided_slice %257 {offsets = [0, 64], sizes = [8, 32], strides = [1, 1]} : vector<8x128xbf16> to vector<8x32xbf16>
    %295 = vector.extract_strided_slice %259 {offsets = [0, 64], sizes = [8, 32], strides = [1, 1]} : vector<8x128xbf16> to vector<8x32xbf16>
    %296 = vector.extract_strided_slice %261 {offsets = [0, 64], sizes = [8, 32], strides = [1, 1]} : vector<8x128xbf16> to vector<8x32xbf16>
    %cst_86 = arith.constant dense<0.000000e+00> : vector<8x8xf32>
    %297 = tpu.matmul %294, %295, %cst_86 {dimension_numbers = #tpu.dot_dimension_numbers<[1], [1], [0], [0], [0, 0, 1, 0], [], []>} : vector<8x32xbf16>, vector<8x32xbf16>, vector<8x8xf32> -> vector<8x8xf32>
    %cst_87 = arith.constant dense<0xFF800000> : vector<8xf32>
    %298 = vector.multi_reduction <maximumf>, %297, %cst_87 [1] : vector<8x8xf32> to vector<8xf32>
    %299 = vector.shape_cast %298 : vector<8xf32> to vector<8x1xf32>
    %300 = vector.broadcast %299 : vector<8x1xf32> to vector<8x8xf32>
    %301 = arith.subf %297, %300 : vector<8x8xf32>
    %302 = math.exp %301 : vector<8x8xf32>
    %cst_88 = arith.constant dense<0.000000e+00> : vector<8xf32>
    %303 = vector.multi_reduction <add>, %302, %cst_88 [1] : vector<8x8xf32> to vector<8xf32>
    %304 = vector.shape_cast %303 : vector<8xf32> to vector<8x1xf32>
    %305 = tpu.reciprocal %304 {approx = true} : vector<8x1xf32> -> vector<8x1xf32>
    %306 = vector.broadcast %305 : vector<8x1xf32> to vector<8x8xf32>
    %307 = arith.mulf %302, %306 : vector<8x8xf32>
    %308 = arith.truncf %307 : vector<8x8xf32> to vector<8x8xbf16>
    %cst_89 = arith.constant dense<0.000000e+00> : vector<8x32xf32>
    %309 = tpu.matmul %308, %296, %cst_89 {dimension_numbers = #tpu.dot_dimension_numbers<[1], [0], [0], [1], [0, 0, 1, 1], [], []>} : vector<8x8xbf16>, vector<8x32xbf16>, vector<8x32xf32> -> vector<8x32xf32>
    %310 = vector.extract_strided_slice %257 {offsets = [0, 96], sizes = [8, 32], strides = [1, 1]} : vector<8x128xbf16> to vector<8x32xbf16>
    %311 = vector.extract_strided_slice %259 {offsets = [0, 96], sizes = [8, 32], strides = [1, 1]} : vector<8x128xbf16> to vector<8x32xbf16>
    %312 = vector.extract_strided_slice %261 {offsets = [0, 96], sizes = [8, 32], strides = [1, 1]} : vector<8x128xbf16> to vector<8x32xbf16>
    %cst_90 = arith.constant dense<0.000000e+00> : vector<8x8xf32>
    %313 = tpu.matmul %310, %311, %cst_90 {dimension_numbers = #tpu.dot_dimension_numbers<[1], [1], [0], [0], [0, 0, 1, 0], [], []>} : vector<8x32xbf16>, vector<8x32xbf16>, vector<8x8xf32> -> vector<8x8xf32>
    %cst_91 = arith.constant dense<0xFF800000> : vector<8xf32>
    %314 = vector.multi_reduction <maximumf>, %313, %cst_91 [1] : vector<8x8xf32> to vector<8xf32>
    %315 = vector.shape_cast %314 : vector<8xf32> to vector<8x1xf32>
    %316 = vector.broadcast %315 : vector<8x1xf32> to vector<8x8xf32>
    %317 = arith.subf %313, %316 : vector<8x8xf32>
    %318 = math.exp %317 : vector<8x8xf32>
    %cst_92 = arith.constant dense<0.000000e+00> : vector<8xf32>
    %319 = vector.multi_reduction <add>, %318, %cst_92 [1] : vector<8x8xf32> to vector<8xf32>
    %320 = vector.shape_cast %319 : vector<8xf32> to vector<8x1xf32>
    %321 = tpu.reciprocal %320 {approx = true} : vector<8x1xf32> -> vector<8x1xf32>
    %322 = vector.broadcast %321 : vector<8x1xf32> to vector<8x8xf32>
    %323 = arith.mulf %318, %322 : vector<8x8xf32>
    %324 = arith.truncf %323 : vector<8x8xf32> to vector<8x8xbf16>
    %cst_93 = arith.constant dense<0.000000e+00> : vector<8x32xf32>
    %325 = tpu.matmul %324, %312, %cst_93 {dimension_numbers = #tpu.dot_dimension_numbers<[1], [0], [0], [1], [0, 0, 1, 1], [], []>} : vector<8x8xbf16>, vector<8x32xbf16>, vector<8x32xf32> -> vector<8x32xf32>
    %326 = tpu.concatenate %277, %293, %309, %325 in 1 : vector<8x32xf32>, vector<8x32xf32>, vector<8x32xf32>, vector<8x32xf32> -> vector<8x128xf32>
    %327 = arith.truncf %326 : vector<8x128xf32> to vector<8x128xbf16>
    %328 = arith.index_cast %181 : i32 to index
    %c128_94 = arith.constant 128 : index
    %329 = vector.load %arg14[%328, %c128_94] : memref<16x256xbf16, #tpu.memory_space<vmem>>, vector<8x128xbf16>
    tpu.vector_store %arg14[%328, %c128_94], %327 {strides = array<i32>} : memref<16x256xbf16, #tpu.memory_space<vmem>>, vector<8x128xbf16>,
    %c2_i32 = arith.constant 2 : i32
    %c0_95 = arith.constant 0 : index
    %c0_96 = arith.constant 0 : index
    %330 = vector.load %arg14[%c0_95, %c0_96] : memref<16x256xbf16, #tpu.memory_space<vmem>>, vector<16x256xbf16>
    %c0_97 = arith.constant 0 : index
    %c0_98 = arith.constant 0 : index
    %c0_99 = arith.constant 0 : index
    %331 = vector.load %arg4[%c0_97, %c0_98, %c0_99] : memref<1x256x256xbf16, #tpu.memory_space<vmem>>, vector<1x256x256xbf16>
    %332 = vector.shape_cast %331 : vector<1x256x256xbf16> to vector<256x256xbf16>
    %cst_100 = arith.constant dense<0.000000e+00> : vector<16x256xf32>
    %333 = tpu.matmul %330, %332, %cst_100 {dimension_numbers = #tpu.dot_dimension_numbers<[1], [0], [0], [1], [0, 0, 1, 1], [], []>} : vector<16x256xbf16>, vector<256x256xbf16>, vector<16x256xf32> -> vector<16x256xf32>
    %334 = vector.extract_strided_slice %6 {offsets = [3, 0], sizes = [1, 256], strides = [1, 1]} : vector<9x256xf32> to vector<1x256xf32>
    %335 = vector.broadcast %334 : vector<1x256xf32> to vector<16x256xf32>
    %336 = arith.addf %333, %335 : vector<16x256xf32>
    %337 = arith.addf %3, %336 : vector<16x256xf32>
    %338 = vector.extract_strided_slice %6 {offsets = [4, 0], sizes = [1, 256], strides = [1, 1]} : vector<9x256xf32> to vector<1x256xf32>
    %339 = vector.extract_strided_slice %6 {offsets = [5, 0], sizes = [1, 256], strides = [1, 1]} : vector<9x256xf32> to vector<1x256xf32>
    %cst_101 = arith.constant dense<0.000000e+00> : vector<16xf32>
    %340 = vector.multi_reduction <add>, %337, %cst_101 [1] : vector<16x256xf32> to vector<16xf32>
    %341 = vector.shape_cast %340 : vector<16xf32> to vector<16x1xf32>
    %cst_102 = arith.constant 2.560000e+02 : f32
    %342 = vector.broadcast %cst_102 : f32 to vector<16x1xf32>
    %343 = arith.divf %341, %342 : vector<16x1xf32>
    %344 = vector.broadcast %343 : vector<16x1xf32> to vector<16x256xf32>
    %345 = arith.subf %337, %344 : vector<16x256xf32>
    %346 = arith.mulf %345, %345 : vector<16x256xf32>
    %cst_103 = arith.constant dense<0.000000e+00> : vector<16xf32>
    %347 = vector.multi_reduction <add>, %346, %cst_103 [1] : vector<16x256xf32> to vector<16xf32>
    %348 = vector.shape_cast %347 : vector<16xf32> to vector<16x1xf32>
    %cst_104 = arith.constant 2.560000e+02 : f32
    %349 = vector.broadcast %cst_104 : f32 to vector<16x1xf32>
    %350 = arith.divf %348, %349 : vector<16x1xf32>
    %cst_105 = arith.constant 9.99999974E-6 : f32
    %351 = vector.broadcast %cst_105 : f32 to vector<16x1xf32>
    %352 = arith.addf %350, %351 : vector<16x1xf32>
    %353 = math.rsqrt %352 : vector<16x1xf32>
    %354 = vector.broadcast %353 : vector<16x1xf32> to vector<16x256xf32>
    %355 = arith.mulf %345, %354 : vector<16x256xf32>
    %356 = vector.broadcast %338 : vector<1x256xf32> to vector<16x256xf32>
    %357 = arith.mulf %355, %356 : vector<16x256xf32>
    %358 = vector.broadcast %339 : vector<1x256xf32> to vector<16x256xf32>
    %359 = arith.addf %357, %358 : vector<16x256xf32>
    %360 = arith.truncf %359 : vector<16x256xf32> to vector<16x256xbf16>
    %c0_106 = arith.constant 0 : index
    %c0_107 = arith.constant 0 : index
    %c0_108 = arith.constant 0 : index
    %361 = vector.load %arg5[%c0_106, %c0_107, %c0_108] : memref<1x256x2048xbf16, #tpu.memory_space<vmem>>, vector<1x256x512xbf16>
    %362 = vector.shape_cast %361 : vector<1x256x512xbf16> to vector<256x512xbf16>
    %cst_109 = arith.constant dense<0.000000e+00> : vector<16x512xf32>
    %363 = tpu.matmul %360, %362, %cst_109 {dimension_numbers = #tpu.dot_dimension_numbers<[1], [0], [0], [1], [0, 0, 1, 1], [], []>} : vector<16x256xbf16>, vector<256x512xbf16>, vector<16x512xf32> -> vector<16x512xf32>
    %c0_110 = arith.constant 0 : index
    %c0_111 = arith.constant 0 : index
    %c0_112 = arith.constant 0 : index
    %364 = vector.load %arg8[%c0_110, %c0_111, %c0_112] : memref<1x1x2048xf32, #tpu.memory_space<vmem>>, vector<1x1x512xf32>
    %365 = vector.shape_cast %364 : vector<1x1x512xf32> to vector<1x512xf32>
    %366 = vector.broadcast %365 : vector<1x512xf32> to vector<16x512xf32>
    %367 = arith.addf %363, %366 : vector<16x512xf32>
    %cst_113 = arith.constant 0.000000e+00 : f32
    %368 = vector.broadcast %cst_113 : f32 to vector<16x512xf32>
    %369 = arith.maximumf %367, %368 : vector<16x512xf32>
    %370 = arith.truncf %369 : vector<16x512xf32> to vector<16x512xbf16>
    %c0_114 = arith.constant 0 : index
    %c0_115 = arith.constant 0 : index
    %c0_116 = arith.constant 0 : index
    %371 = vector.load %arg6[%c0_114, %c0_115, %c0_116] : memref<1x2048x256xbf16, #tpu.memory_space<vmem>>, vector<1x512x256xbf16>
    %372 = vector.shape_cast %371 : vector<1x512x256xbf16> to vector<512x256xbf16>
    %cst_117 = arith.constant dense<0.000000e+00> : vector<16x256xf32>
    %373 = tpu.matmul %370, %372, %cst_117 {dimension_numbers = #tpu.dot_dimension_numbers<[1], [0], [0], [1], [0, 0, 1, 1], [], []>} : vector<16x512xbf16>, vector<512x256xbf16>, vector<16x256xf32> -> vector<16x256xf32>
    %c0_118 = arith.constant 0 : index
    %c0_119 = arith.constant 0 : index
    %c512_120 = arith.constant 512 : index
    %374 = vector.load %arg5[%c0_118, %c0_119, %c512_120] : memref<1x256x2048xbf16, #tpu.memory_space<vmem>>, vector<1x256x512xbf16>
    %375 = vector.shape_cast %374 : vector<1x256x512xbf16> to vector<256x512xbf16>
    %cst_121 = arith.constant dense<0.000000e+00> : vector<16x512xf32>
    %376 = tpu.matmul %360, %375, %cst_121 {dimension_numbers = #tpu.dot_dimension_numbers<[1], [0], [0], [1], [0, 0, 1, 1], [], []>} : vector<16x256xbf16>, vector<256x512xbf16>, vector<16x512xf32> -> vector<16x512xf32>
    %c0_122 = arith.constant 0 : index
    %c0_123 = arith.constant 0 : index
    %c512_124 = arith.constant 512 : index
    %377 = vector.load %arg8[%c0_122, %c0_123, %c512_124] : memref<1x1x2048xf32, #tpu.memory_space<vmem>>, vector<1x1x512xf32>
    %378 = vector.shape_cast %377 : vector<1x1x512xf32> to vector<1x512xf32>
    %379 = vector.broadcast %378 : vector<1x512xf32> to vector<16x512xf32>
    %380 = arith.addf %376, %379 : vector<16x512xf32>
    %cst_125 = arith.constant 0.000000e+00 : f32
    %381 = vector.broadcast %cst_125 : f32 to vector<16x512xf32>
    %382 = arith.maximumf %380, %381 : vector<16x512xf32>
    %383 = arith.truncf %382 : vector<16x512xf32> to vector<16x512xbf16>
    %c0_126 = arith.constant 0 : index
    %c512_127 = arith.constant 512 : index
    %c0_128 = arith.constant 0 : index
    %384 = vector.load %arg6[%c0_126, %c512_127, %c0_128] : memref<1x2048x256xbf16, #tpu.memory_space<vmem>>, vector<1x512x256xbf16>
    %385 = vector.shape_cast %384 : vector<1x512x256xbf16> to vector<512x256xbf16>
    %cst_129 = arith.constant dense<0.000000e+00> : vector<16x256xf32>
    %386 = tpu.matmul %383, %385, %cst_129 {dimension_numbers = #tpu.dot_dimension_numbers<[1], [0], [0], [1], [0, 0, 1, 1], [], []>} : vector<16x512xbf16>, vector<512x256xbf16>, vector<16x256xf32> -> vector<16x256xf32>
    %387 = arith.addf %373, %386 : vector<16x256xf32>
    %c0_130 = arith.constant 0 : index
    %c0_131 = arith.constant 0 : index
    %c1024 = arith.constant 1024 : index
    %388 = vector.load %arg5[%c0_130, %c0_131, %c1024] : memref<1x256x2048xbf16, #tpu.memory_space<vmem>>, vector<1x256x512xbf16>
    %389 = vector.shape_cast %388 : vector<1x256x512xbf16> to vector<256x512xbf16>
    %cst_132 = arith.constant dense<0.000000e+00> : vector<16x512xf32>
    %390 = tpu.matmul %360, %389, %cst_132 {dimension_numbers = #tpu.dot_dimension_numbers<[1], [0], [0], [1], [0, 0, 1, 1], [], []>} : vector<16x256xbf16>, vector<256x512xbf16>, vector<16x512xf32> -> vector<16x512xf32>
    %c0_133 = arith.constant 0 : index
    %c0_134 = arith.constant 0 : index
    %c1024_135 = arith.constant 1024 : index
    %391 = vector.load %arg8[%c0_133, %c0_134, %c1024_135] : memref<1x1x2048xf32, #tpu.memory_space<vmem>>, vector<1x1x512xf32>
    %392 = vector.shape_cast %391 : vector<1x1x512xf32> to vector<1x512xf32>
    %393 = vector.broadcast %392 : vector<1x512xf32> to vector<16x512xf32>
    %394 = arith.addf %390, %393 : vector<16x512xf32>
    %cst_136 = arith.constant 0.000000e+00 : f32
    %395 = vector.broadcast %cst_136 : f32 to vector<16x512xf32>
    %396 = arith.maximumf %394, %395 : vector<16x512xf32>
    %397 = arith.truncf %396 : vector<16x512xf32> to vector<16x512xbf16>
    %c0_137 = arith.constant 0 : index
    %c1024_138 = arith.constant 1024 : index
    %c0_139 = arith.constant 0 : index
    %398 = vector.load %arg6[%c0_137, %c1024_138, %c0_139] : memref<1x2048x256xbf16, #tpu.memory_space<vmem>>, vector<1x512x256xbf16>
    %399 = vector.shape_cast %398 : vector<1x512x256xbf16> to vector<512x256xbf16>
    %cst_140 = arith.constant dense<0.000000e+00> : vector<16x256xf32>
    %400 = tpu.matmul %397, %399, %cst_140 {dimension_numbers = #tpu.dot_dimension_numbers<[1], [0], [0], [1], [0, 0, 1, 1], [], []>} : vector<16x512xbf16>, vector<512x256xbf16>, vector<16x256xf32> -> vector<16x256xf32>
    %401 = arith.addf %387, %400 : vector<16x256xf32>
    %c0_141 = arith.constant 0 : index
    %c0_142 = arith.constant 0 : index
    %c1536 = arith.constant 1536 : index
    %402 = vector.load %arg5[%c0_141, %c0_142, %c1536] : memref<1x256x2048xbf16, #tpu.memory_space<vmem>>, vector<1x256x512xbf16>
    %403 = vector.shape_cast %402 : vector<1x256x512xbf16> to vector<256x512xbf16>
    %cst_143 = arith.constant dense<0.000000e+00> : vector<16x512xf32>
    %404 = tpu.matmul %360, %403, %cst_143 {dimension_numbers = #tpu.dot_dimension_numbers<[1], [0], [0], [1], [0, 0, 1, 1], [], []>} : vector<16x256xbf16>, vector<256x512xbf16>, vector<16x512xf32> -> vector<16x512xf32>
    %c0_144 = arith.constant 0 : index
    %c0_145 = arith.constant 0 : index
    %c1536_146 = arith.constant 1536 : index
    %405 = vector.load %arg8[%c0_144, %c0_145, %c1536_146] : memref<1x1x2048xf32, #tpu.memory_space<vmem>>, vector<1x1x512xf32>
    %406 = vector.shape_cast %405 : vector<1x1x512xf32> to vector<1x512xf32>
    %407 = vector.broadcast %406 : vector<1x512xf32> to vector<16x512xf32>
    %408 = arith.addf %404, %407 : vector<16x512xf32>
    %cst_147 = arith.constant 0.000000e+00 : f32
    %409 = vector.broadcast %cst_147 : f32 to vector<16x512xf32>
    %410 = arith.maximumf %408, %409 : vector<16x512xf32>
    %411 = arith.truncf %410 : vector<16x512xf32> to vector<16x512xbf16>
    %c0_148 = arith.constant 0 : index
    %c1536_149 = arith.constant 1536 : index
    %c0_150 = arith.constant 0 : index
    %412 = vector.load %arg6[%c0_148, %c1536_149, %c0_150] : memref<1x2048x256xbf16, #tpu.memory_space<vmem>>, vector<1x512x256xbf16>
    %413 = vector.shape_cast %412 : vector<1x512x256xbf16> to vector<512x256xbf16>
    %cst_151 = arith.constant dense<0.000000e+00> : vector<16x256xf32>
    %414 = tpu.matmul %411, %413, %cst_151 {dimension_numbers = #tpu.dot_dimension_numbers<[1], [0], [0], [1], [0, 0, 1, 1], [], []>} : vector<16x512xbf16>, vector<512x256xbf16>, vector<16x256xf32> -> vector<16x256xf32>
    %415 = arith.addf %401, %414 : vector<16x256xf32>
    %416 = vector.extract_strided_slice %6 {offsets = [6, 0], sizes = [1, 256], strides = [1, 1]} : vector<9x256xf32> to vector<1x256xf32>
    %417 = vector.broadcast %416 : vector<1x256xf32> to vector<16x256xf32>
    %418 = arith.addf %415, %417 : vector<16x256xf32>
    %419 = arith.addf %359, %418 : vector<16x256xf32>
    %420 = vector.extract_strided_slice %6 {offsets = [7, 0], sizes = [1, 256], strides = [1, 1]} : vector<9x256xf32> to vector<1x256xf32>
    %421 = vector.extract_strided_slice %6 {offsets = [8, 0], sizes = [1, 256], strides = [1, 1]} : vector<9x256xf32> to vector<1x256xf32>
    %cst_152 = arith.constant dense<0.000000e+00> : vector<16xf32>
    %422 = vector.multi_reduction <add>, %419, %cst_152 [1] : vector<16x256xf32> to vector<16xf32>
    %423 = vector.shape_cast %422 : vector<16xf32> to vector<16x1xf32>
    %cst_153 = arith.constant 2.560000e+02 : f32
    %424 = vector.broadcast %cst_153 : f32 to vector<16x1xf32>
    %425 = arith.divf %423, %424 : vector<16x1xf32>
    %426 = vector.broadcast %425 : vector<16x1xf32> to vector<16x256xf32>
    %427 = arith.subf %419, %426 : vector<16x256xf32>
    %428 = arith.mulf %427, %427 : vector<16x256xf32>
    %cst_154 = arith.constant dense<0.000000e+00> : vector<16xf32>
    %429 = vector.multi_reduction <add>, %428, %cst_154 [1] : vector<16x256xf32> to vector<16xf32>
    %430 = vector.shape_cast %429 : vector<16xf32> to vector<16x1xf32>
    %cst_155 = arith.constant 2.560000e+02 : f32
    %431 = vector.broadcast %cst_155 : f32 to vector<16x1xf32>
    %432 = arith.divf %430, %431 : vector<16x1xf32>
    %cst_156 = arith.constant 9.99999974E-6 : f32
    %433 = vector.broadcast %cst_156 : f32 to vector<16x1xf32>
    %434 = arith.addf %432, %433 : vector<16x1xf32>
    %435 = math.rsqrt %434 : vector<16x1xf32>
    %436 = vector.broadcast %435 : vector<16x1xf32> to vector<16x256xf32>
    %437 = arith.mulf %427, %436 : vector<16x256xf32>
    %438 = vector.broadcast %420 : vector<1x256xf32> to vector<16x256xf32>
    %439 = arith.mulf %437, %438 : vector<16x256xf32>
    %440 = vector.broadcast %421 : vector<1x256xf32> to vector<16x256xf32>
    %441 = arith.addf %439, %440 : vector<16x256xf32>
    %c0_157 = arith.constant 0 : index
    %c0_158 = arith.constant 0 : index
    %442 = vector.load %arg12[%c0_157, %c0_158] : memref<16x256xf32, #tpu.memory_space<vmem>>, vector<16x256xf32>
    tpu.vector_store %arg12[%c0_157, %c0_158], %441 {strides = array<i32>} : memref<16x256xf32, #tpu.memory_space<vmem>>, vector<16x256xf32>,
    %c5_i32 = arith.constant 5 : i32
    %443 = arith.cmpi eq, %arg1, %c5_i32 : i32
    %444 = arith.extui %443 : i1 to i32
    %c0_i32_159 = arith.constant 0 : i32
    %445 = arith.cmpi ne, %444, %c0_i32_159 : i32
    scf.if %445 {
      %446 = arith.truncf %441 : vector<16x256xf32> to vector<16x256xbf16>
      %c0_160 = arith.constant 0 : index
      %c0_161 = arith.constant 0 : index
      %447 = vector.load %arg9[%c0_160, %c0_161] : memref<256x128xbf16, #tpu.memory_space<vmem>>, vector<256x128xbf16>
      %cst_162 = arith.constant dense<0.000000e+00> : vector<16x128xf32>
      %448 = tpu.matmul %446, %447, %cst_162 {dimension_numbers = #tpu.dot_dimension_numbers<[1], [0], [0], [1], [0, 0, 1, 1], [], []>} : vector<16x256xbf16>, vector<256x128xbf16>, vector<16x128xf32> -> vector<16x128xf32>
      %c0_163 = arith.constant 0 : index
      %c0_164 = arith.constant 0 : index
      %449 = vector.load %arg10[%c0_163, %c0_164] : memref<1x128xf32, #tpu.memory_space<vmem>>, vector<1x128xf32>
      %450 = vector.broadcast %449 : vector<1x128xf32> to vector<16x128xf32>
      %451 = arith.addf %448, %450 : vector<16x128xf32>
      %c0_165 = arith.constant 0 : index
      %c0_166 = arith.constant 0 : index
      %452 = vector.load %arg11[%c0_165, %c0_166] : memref<16x128xf32, #tpu.memory_space<vmem>>, vector<16x128xf32>
      tpu.vector_store %arg11[%c0_165, %c0_166], %451 {strides = array<i32>} : memref<16x128xf32, #tpu.memory_space<vmem>>, vector<16x128xf32>,
    } else {
    }
    return
  }
  func.func @transform_0(%arg0: i32, %arg1: i32) -> (i32, i32) {
    %c0_i32 = arith.constant 0 : i32
    %c0_i32_0 = arith.constant 0 : i32
    return %arg0, %c0_i32 : i32, i32
  }
  func.func @transform_1(%arg0: i32, %arg1: i32) -> (i32, i32, i32) {
    %c0_i32 = arith.constant 0 : i32
    %c0_i32_0 = arith.constant 0 : i32
    %c0_i32_1 = arith.constant 0 : i32
    return %arg1, %c0_i32, %c0_i32_0 : i32, i32, i32
  }
  func.func @transform_2(%arg0: i32, %arg1: i32) -> (i32, i32, i32) {
    %c0_i32 = arith.constant 0 : i32
    %c0_i32_0 = arith.constant 0 : i32
    %c0_i32_1 = arith.constant 0 : i32
    return %arg1, %c0_i32, %c0_i32_0 : i32, i32, i32
  }
  func.func @transform_3(%arg0: i32, %arg1: i32) -> (i32, i32, i32) {
    %c0_i32 = arith.constant 0 : i32
    %c0_i32_0 = arith.constant 0 : i32
    %c0_i32_1 = arith.constant 0 : i32
    return %arg1, %c0_i32, %c0_i32_0 : i32, i32, i32
  }
  func.func @transform_4(%arg0: i32, %arg1: i32) -> (i32, i32, i32) {
    %c0_i32 = arith.constant 0 : i32
    %c0_i32_0 = arith.constant 0 : i32
    %c0_i32_1 = arith.constant 0 : i32
    return %arg1, %c0_i32, %c0_i32_0 : i32, i32, i32
  }
  func.func @transform_5(%arg0: i32, %arg1: i32) -> (i32, i32, i32) {
    %c0_i32 = arith.constant 0 : i32
    %c0_i32_0 = arith.constant 0 : i32
    %c0_i32_1 = arith.constant 0 : i32
    return %arg1, %c0_i32, %c0_i32_0 : i32, i32, i32
  }
  func.func @transform_6(%arg0: i32, %arg1: i32) -> (i32, i32, i32) {
    %c0_i32 = arith.constant 0 : i32
    %c0_i32_0 = arith.constant 0 : i32
    %c0_i32_1 = arith.constant 0 : i32
    return %arg1, %c0_i32, %c0_i32_0 : i32, i32, i32
  }
  func.func @transform_7(%arg0: i32, %arg1: i32) -> (i32, i32) {
    %c0_i32 = arith.constant 0 : i32
    %c0_i32_0 = arith.constant 0 : i32
    %c0_i32_1 = arith.constant 0 : i32
    return %c0_i32, %c0_i32_0 : i32, i32
  }
  func.func @transform_8(%arg0: i32, %arg1: i32) -> (i32, i32) {
    %c0_i32 = arith.constant 0 : i32
    %c0_i32_0 = arith.constant 0 : i32
    %c0_i32_1 = arith.constant 0 : i32
    return %c0_i32, %c0_i32_0 : i32, i32
  }
  func.func @transform_9(%arg0: i32, %arg1: i32) -> (i32, i32) {
    %c0_i32 = arith.constant 0 : i32
    %c0_i32_0 = arith.constant 0 : i32
    return %arg0, %c0_i32 : i32, i32
  }
}

</mosaic_0001>

<llo_original>
// kernel: tpu_custom_call.1
$region0: #{tpu_custom_call.1}
  #allocation0 [shape = 'u32[]', space=smem, size = 0x4, offset = 0x4, fixed_abs, tag = 'smem constant byte address 0x4 - core index']
  #allocation1 [shape = 'u32[144,128]{1,0:T(1,128)}', space=vmem, size = 0x12000, scoped, tag = 'internal scratch']
  #allocation2 [shape = 'f32[16,256]{1,0:T(8,128)}', space=vmem, size = 0x4000, scoped, tag = 'scratch operand']
  #allocation3 [shape = 'bf16[16,768]{1,0:T(16,128)(2,1)}', space=vmem, size = 0x6000, scoped, tag = 'scratch operand']
  #allocation4 [shape = 'bf16[16,256]{1,0:T(16,128)(2,1)}', space=vmem, size = 0x2000, scoped, tag = 'scratch operand']
  %s0 = inlined_call_operand.hbm [shape: f32[16,256], index: 0, kind: input, shape index: {}]
  %s1 = inlined_call_operand.hbm [shape: bf16[6,256,768], index: 1, kind: input, shape index: {}]
  %s2 = inlined_call_operand.hbm [shape: bf16[6,256,256], index: 2, kind: input, shape index: {}]
  %s3 = inlined_call_operand.hbm [shape: bf16[6,256,2048], index: 3, kind: input, shape index: {}]
  %s4 = inlined_call_operand.hbm [shape: bf16[6,2048,256], index: 4, kind: input, shape index: {}]
  %s5 = inlined_call_operand.vmem [shape: f32[6,9,256], index: 5, kind: input, shape index: {}]
  %s6 = inlined_call_operand.hbm [shape: f32[6,1,2048], index: 6, kind: input, shape index: {}]
  %s7 = inlined_call_operand.hbm [shape: bf16[256,128], index: 7, kind: input, shape index: {}]
  %s8 = inlined_call_operand.hbm [shape: f32[1,128], index: 8, kind: input, shape index: {}]
  %s9 = inlined_call_operand.hbm [shape: f32[16,128], index: 9, kind: output, shape index: {}]
  %s10 = sld [smem:[#allocation0]]
  $region109: #{tpu_custom_call.1} parent=0
    _
  %s12 = ssub.s32 1, %s10
  %s13 = scalar_select 0, %s12, %s10
  $region1: #{tpu_custom_call.1} parent=0
    #allocation5 [shape = 'u8[16384]{0}', space=vmem, size = 0x4000, scoped, tag = 'input window, operand 0, single buffered']
    #allocation6 [shape = 's32[2]{0}', space=sflag, size = 0x8, scoped, tag = 'scoped memory for tpu_custom_call.1']
    #allocation7 [shape = 's32[2]{0}', space=sflag, size = 0x8, scoped, tag = 'scoped memory for tpu_custom_call.1']
    #allocation8 [shape = 'u8[786432]{0}', space=vmem, size = 0xc0000, scoped, tag = 'input window, operand 1']
    #allocation9 [shape = 's32[2]{0}', space=sflag, size = 0x8, scoped, tag = 'scoped memory for tpu_custom_call.1']
    #allocation10 [shape = 'u8[262144]{0}', space=vmem, size = 0x40000, scoped, tag = 'input window, operand 2']
    #allocation11 [shape = 'u8[2097152]{0}', space=vmem, size = 0x200000, scoped, tag = 'input window, operand 3']
    #allocation12 [shape = 's32[2]{0}', space=sflag, size = 0x8, scoped, tag = 'scoped memory for tpu_custom_call.1']
    #allocation13 [shape = 'u8[2097152]{0}', space=vmem, size = 0x200000, scoped, tag = 'input window, operand 4']
    #allocation14 [shape = 'u8[16384]{0}', space=vmem, size = 0x4000, scoped, tag = 'input window, operand 6']
    #allocation15 [shape = 's32[2]{0}', space=sflag, size = 0x8, scoped, tag = 'scoped memory for tpu_custom_call.1']
    #allocation16 [shape = 'u8[65536]{0}', space=vmem, size = 0x10000, scoped, tag = 'input window, operand 7, single buffered']
    #allocation17 [shape = 'u8[512]{0}', space=vmem, size = 0x400, scoped, tag = 'input window, operand 8, single buffered']
    #allocation18 [shape = 's32[1]{0}', space=sflag, size = 0x4, scoped, tag = 'scoped memory for tpu_custom_call.1']
    #allocation19 [shape = 'u8[8192]{0}', space=vmem, size = 0x2000, scoped, tag = 'output window, operand 0, single buffered']
    %14 = vsyncpa [#allocation6], 0
    %15 = vsyncpa [#allocation9], 0
    %s16 = scalar_lea.sflag [#allocation9], 1
    %17 = vsyncpa %s16, 0
    %18 = vsyncpa [#allocation12], 0
    %s19 = scalar_lea.sflag [#allocation12], 1
    %20 = vsyncpa %s19, 0
    %21 = vsyncpa [#allocation15], 0
    %s22 = scalar_lea.sflag [#allocation15], 1
    %23 = vsyncpa %s22, 0
    %24 = vsyncpa [#allocation18], 0
    %25 = vsyncpa [#allocation7], 0
    loop: start=0, step=1, limit=8
    $region2: #{tpu_custom_call.1} parent=1 // loop_pre_header
      _
    $region3: #{tpu_custom_call.1} parent=1 // loop_header
      %s27 = sphi 0, %s31
      %p28 = scmp.ge.s32.totalorder %s27, 8
      %s34 = sphi 0, %s46
      %s35 = sphi 0, %s42
      %s36 = sphi 0, %s34
      %s37 = sphi 0, %s35
      %s38 = sphi 0, %s36
      %s39 = sphi 0, %s37
      %s49 = sphi 0, %s51
      %s52 = sphi 0, %s49
      %s53 = sphi 0, %s52
      %s69 = sphi 0, %s53
      %s75 = sphi 0, %s77
      %s78 = sphi 0, %s75
      %s79 = sphi 0, %s78
      %s95 = sphi 0, %s79
      %s101 = sphi 0, %s103
      %s104 = sphi 0, %s101
      %s105 = sphi 0, %s104
      %s121 = sphi 0, %s105
      %s127 = sphi 0, %s129
      %s130 = sphi 0, %s127
      %s131 = sphi 0, %s130
      %s147 = sphi 0, %s131
      %s153 = sphi 0, %s155
      %s156 = sphi 0, %s153
      %s157 = sphi 0, %s156
      %s173 = sphi 0, %s157
      %s179 = sphi 0, %s181
      %s182 = sphi 0, %s179
      %s183 = sphi 0, %s182
      %s199 = sphi 0, %s183
      %s205 = sphi 0, %s207
      %s208 = sphi 0, %s205
      %s209 = sphi 0, %s208
      %s225 = sphi 0, %s209
      %s229 = sphi 0, %s229
      %s231 = sphi 0, %s229
      %s232 = sphi 0, %s231
      %s246 = sphi 0, %s232
      %s250 = sphi 0, %s250
      %s252 = sphi 0, %s250
      %s253 = sphi 0, %s252
      %s267 = sphi 0, %s253
      %s273 = sphi 0, %s275
      %s276 = sphi 0, %s273
      %s277 = sphi 0, %s276
      %s293 = sphi 0, %s277
    $region4: #{tpu_custom_call.1} parent=1 // loop_header_branch
      %30 = sbr.rel (%p28) target = $region8
    $region5: #{tpu_custom_call.1} parent=1 // loop_body
      %s32 = ssub.s32 %s27, 1
      %s33 = ssub.s32 %s27, 2
      %s40 = sadd.s32 1, %s35
      %p41 = scmp.ge.s32.totalorder %s40, 6
      %s42 = scalar_select %p41, 0, %s40
      %s43 = sadd.s32 1, %s34
      %s44 = scalar_select %p41, %s43, %s34
      %p45 = scmp.ge.s32.totalorder %s44, 1
      %s46 = scalar_select %p45, 0, %s44
      %s47 = ssub.s32 %s34, %s46
      %p48 = scmp.eq.s32.totalorder %s47, 0
      %s50 = sadd.s32 %s49, 1
      %s51 = scalar_select %p48, %s49, %s50
      %p54 = pneg %p48
      %p55 = scmp.eq.s32.totalorder %s27, 5
      %p56 = por %p54, %p55
      %p57 = scmp.ne.s32.totalorder %s49, %s52
      %p58 = scmp.eq.s32.totalorder %s27, 0
      %p59 = por %p57, %p58
      %p60 = scmp.ne.s32.totalorder %s49, %s52
      %p61 = scmp.eq.s32.totalorder %s32, 5
      %p62 = por %p60, %p61
      %p63 = scmp.ne.s32.totalorder %s52, %s53
      %p64 = scmp.eq.s32.totalorder %s32, 0
      %p65 = por %p63, %p64
      %p66 = scmp.ne.s32.totalorder %s52, %s53
      %p67 = scmp.eq.s32.totalorder %s33, 5
      %p68 = por %p66, %p67
      %p70 = scmp.ne.s32.totalorder %s53, %s69
      %p71 = scmp.eq.s32.totalorder %s33, 0
      %p72 = por %p70, %p71
      %s73 = ssub.s32 %s35, %s42
      %p74 = scmp.eq.s32.totalorder %s73, 0
      %s76 = sadd.s32 %s75, 1
      %s77 = scalar_select %p74, %s75, %s76
      %p80 = pneg %p74
      %p81 = scmp.eq.s32.totalorder %s27, 5
      %p82 = por %p80, %p81
      %p83 = scmp.ne.s32.totalorder %s75, %s78
      %p84 = scmp.eq.s32.totalorder %s27, 0
      %p85 = por %p83, %p84
      %p86 = scmp.ne.s32.totalorder %s75, %s78
      %p87 = scmp.eq.s32.totalorder %s32, 5
      %p88 = por %p86, %p87
      %p89 = scmp.ne.s32.totalorder %s78, %s79
      %p90 = scmp.eq.s32.totalorder %s32, 0
      %p91 = por %p89, %p90
      %p92 = scmp.ne.s32.totalorder %s78, %s79
      %p93 = scmp.eq.s32.totalorder %s33, 5
      %p94 = por %p92, %p93
      %p96 = scmp.ne.s32.totalorder %s79, %s95
      %p97 = scmp.eq.s32.totalorder %s33, 0
      %p98 = por %p96, %p97
      %s99 = ssub.s32 %s35, %s42
      %p100 = scmp.eq.s32.totalorder %s99, 0
      %s102 = sadd.s32 %s101, 1
      %s103 = scalar_select %p100, %s101, %s102
      %p106 = pneg %p100
      %p107 = scmp.eq.s32.totalorder %s27, 5
      %p108 = por %p106, %p107
      %p109 = scmp.ne.s32.totalorder %s101, %s104
      %p110 = scmp.eq.s32.totalorder %s27, 0
      %p111 = por %p109, %p110
      %p112 = scmp.ne.s32.totalorder %s101, %s104
      %p113 = scmp.eq.s32.totalorder %s32, 5
      %p114 = por %p112, %p113
      %p115 = scmp.ne.s32.totalorder %s104, %s105
      %p116 = scmp.eq.s32.totalorder %s32, 0
      %p117 = por %p115, %p116
      %p118 = scmp.ne.s32.totalorder %s104, %s105
      %p119 = scmp.eq.s32.totalorder %s33, 5
      %p120 = por %p118, %p119
      %p122 = scmp.ne.s32.totalorder %s105, %s121
      %p123 = scmp.eq.s32.totalorder %s33, 0
      %p124 = por %p122, %p123
      %s125 = ssub.s32 %s35, %s42
      %p126 = scmp.eq.s32.totalorder %s125, 0
      %s128 = sadd.s32 %s127, 1
      %s129 = scalar_select %p126, %s127, %s128
      %p132 = pneg %p126
      %p133 = scmp.eq.s32.totalorder %s27, 5
      %p134 = por %p132, %p133
      %p135 = scmp.ne.s32.totalorder %s127, %s130
      %p136 = scmp.eq.s32.totalorder %s27, 0
      %p137 = por %p135, %p136
      %p138 = scmp.ne.s32.totalorder %s127, %s130
      %p139 = scmp.eq.s32.totalorder %s32, 5
      %p140 = por %p138, %p139
      %p141 = scmp.ne.s32.totalorder %s130, %s131
      %p142 = scmp.eq.s32.totalorder %s32, 0
      %p143 = por %p141, %p142
      %p144 = scmp.ne.s32.totalorder %s130, %s131
      %p145 = scmp.eq.s32.totalorder %s33, 5
      %p146 = por %p144, %p145
      %p148 = scmp.ne.s32.totalorder %s131, %s147
      %p149 = scmp.eq.s32.totalorder %s33, 0
      %p150 = por %p148, %p149
      %s151 = ssub.s32 %s35, %s42
      %p152 = scmp.eq.s32.totalorder %s151, 0
      %s154 = sadd.s32 %s153, 1
      %s155 = scalar_select %p152, %s153, %s154
      %p158 = pneg %p152
      %p159 = scmp.eq.s32.totalorder %s27, 5
      %p160 = por %p158, %p159
      %p161 = scmp.ne.s32.totalorder %s153, %s156
      %p162 = scmp.eq.s32.totalorder %s27, 0
      %p163 = por %p161, %p162
      %p164 = scmp.ne.s32.totalorder %s153, %s156
      %p165 = scmp.eq.s32.totalorder %s32, 5
      %p166 = por %p164, %p165
      %p167 = scmp.ne.s32.totalorder %s156, %s157
      %p168 = scmp.eq.s32.totalorder %s32, 0
      %p169 = por %p167, %p168
      %p170 = scmp.ne.s32.totalorder %s156, %s157
      %p171 = scmp.eq.s32.totalorder %s33, 5
      %p172 = por %p170, %p171
      %p174 = scmp.ne.s32.totalorder %s157, %s173
      %p175 = scmp.eq.s32.totalorder %s33, 0
      %p176 = por %p174, %p175
      %s177 = ssub.s32 %s35, %s42
      %p178 = scmp.eq.s32.totalorder %s177, 0
      %s180 = sadd.s32 %s179, 1
      %s181 = scalar_select %p178, %s179, %s180
      %p184 = pneg %p178
      %p185 = scmp.eq.s32.totalorder %s27, 5
      %p186 = por %p184, %p185
      %p187 = scmp.ne.s32.totalorder %s179, %s182
      %p188 = scmp.eq.s32.totalorder %s27, 0
      %p189 = por %p187, %p188
      %p190 = scmp.ne.s32.totalorder %s179, %s182
      %p191 = scmp.eq.s32.totalorder %s32, 5
      %p192 = por %p190, %p191
      %p193 = scmp.ne.s32.totalorder %s182, %s183
      %p194 = scmp.eq.s32.totalorder %s32, 0
      %p195 = por %p193, %p194
      %p196 = scmp.ne.s32.totalorder %s182, %s183
      %p197 = scmp.eq.s32.totalorder %s33, 5
      %p198 = por %p196, %p197
      %p200 = scmp.ne.s32.totalorder %s183, %s199
      %p201 = scmp.eq.s32.totalorder %s33, 0
      %p202 = por %p200, %p201
      %s203 = ssub.s32 %s35, %s42
      %p204 = scmp.eq.s32.totalorder %s203, 0
      %s206 = sadd.s32 %s205, 1
      %s207 = scalar_select %p204, %s205, %s206
      %p210 = pneg %p204
      %p211 = scmp.eq.s32.totalorder %s27, 5
      %p212 = por %p210, %p211
      %p213 = scmp.ne.s32.totalorder %s205, %s208
      %p214 = scmp.eq.s32.totalorder %s27, 0
      %p215 = por %p213, %p214
      %p216 = scmp.ne.s32.totalorder %s205, %s208
      %p217 = scmp.eq.s32.totalorder %s32, 5
      %p218 = por %p216, %p217
      %p219 = scmp.ne.s32.totalorder %s208, %s209
      %p220 = scmp.eq.s32.totalorder %s32, 0
      %p221 = por %p219, %p220
      %p222 = scmp.ne.s32.totalorder %s208, %s209
      %p223 = scmp.eq.s32.totalorder %s33, 5
      %p224 = por %p222, %p223
      %p226 = scmp.ne.s32.totalorder %s209, %s225
      %p227 = scmp.eq.s32.totalorder %s33, 0
      %p228 = por %p226, %p227
      %s230 = sadd.s32 %s229, 1
      %p233 = scmp.eq.s32.totalorder %s27, 5
      %p234 = scmp.ne.s32.totalorder %s229, %s231
      %p235 = scmp.eq.s32.totalorder %s27, 0
      %p236 = por %p234, %p235
      %p237 = scmp.ne.s32.totalorder %s229, %s231
      %p238 = scmp.eq.s32.totalorder %s32, 5
      %p239 = por %p237, %p238
      %p240 = scmp.ne.s32.totalorder %s231, %s232
      %p241 = scmp.eq.s32.totalorder %s32, 0
      %p242 = por %p240, %p241
      %p243 = scmp.ne.s32.totalorder %s231, %s232
      %p244 = scmp.eq.s32.totalorder %s33, 5
      %p245 = por %p243, %p244
      %p247 = scmp.ne.s32.totalorder %s232, %s246
      %p248 = scmp.eq.s32.totalorder %s33, 0
      %p249 = por %p247, %p248
      %s251 = sadd.s32 %s250, 1
      %p254 = scmp.eq.s32.totalorder %s27, 5
      %p255 = scmp.ne.s32.totalorder %s250, %s252
      %p256 = scmp.eq.s32.totalorder %s27, 0
      %p257 = por %p255, %p256
      %p258 = scmp.ne.s32.totalorder %s250, %s252
      %p259 = scmp.eq.s32.totalorder %s32, 5
      %p260 = por %p258, %p259
      %p261 = scmp.ne.s32.totalorder %s252, %s253
      %p262 = scmp.eq.s32.totalorder %s32, 0
      %p263 = por %p261, %p262
      %p264 = scmp.ne.s32.totalorder %s252, %s253
      %p265 = scmp.eq.s32.totalorder %s33, 5
      %p266 = por %p264, %p265
      %p268 = scmp.ne.s32.totalorder %s253, %s267
      %p269 = scmp.eq.s32.totalorder %s33, 0
      %p270 = por %p268, %p269
      %s271 = ssub.s32 %s34, %s46
      %p272 = scmp.eq.s32.totalorder %s271, 0
      %s274 = sadd.s32 %s273, 1
      %s275 = scalar_select %p272, %s273, %s274
      %p278 = pneg %p272
      %p279 = scmp.eq.s32.totalorder %s27, 5
      %p280 = por %p278, %p279
      %p281 = scmp.ne.s32.totalorder %s273, %s276
      %p282 = scmp.eq.s32.totalorder %s27, 0
      %p283 = por %p281, %p282
      %p284 = scmp.ne.s32.totalorder %s273, %s276
      %p285 = scmp.eq.s32.totalorder %s32, 5
      %p286 = por %p284, %p285
      %p287 = scmp.ne.s32.totalorder %s276, %s277
      %p288 = scmp.eq.s32.totalorder %s32, 0
      %p289 = por %p287, %p288
      %p290 = scmp.ne.s32.totalorder %s276, %s277
      %p291 = scmp.eq.s32.totalorder %s33, 5
      %p292 = por %p290, %p291
      %p294 = scmp.ne.s32.totalorder %s277, %s293
      %p295 = scmp.eq.s32.totalorder %s33, 0
      %p296 = por %p294, %p295
      %p297 = scmp.le.s32.totalorder 1, %s27
      %p298 = scmp.lt.s32.totalorder %s27, 7
      %p299 = pnand %p297, %p298
      %p300 = pneg %p299
      // Predicated region
      $region9: #{tpu_custom_call.1} parent=5 // pred_check
        _
      $region10: #{tpu_custom_call.1} parent=5 // pred_check_branch
        %302 = sbr.rel (%p299) target = $region12
      $region11: #{tpu_custom_call.1} parent=5 // pred_region
        %s303 = ssub.s32 %s27, 1
        // Predicated region
        $region13: #{tpu_custom_call.1} parent=11 // pred_check
          %p304 = pneg %p65
        $region14: #{tpu_custom_call.1} parent=11 // pred_check_branch
          %306 = sbr.rel (%p304) target = $region16
        $region15: #{tpu_custom_call.1} parent=11 // pred_region
          %s307 = smul.u32 2, %s36
          %s309 = ssub.s32 512, 512
          %310 = vsyncadd [#allocation6], %s309
          %s311 = smul.addr %s307, 2
          %s312 = smul.addr %s311, 128
          %s313 = scalar_lea.hbm %s0, %s312
          %s314 = sshll.u32 [#allocation5], 4
          %s315 = int_to_ptr.vmem [resolvable:$true] %s314
          %320 = dma.hbm_to_vmem [thread:$0]  %s313, 512, %s315, [#allocation6], 256, 256, 16
        $region16: #{tpu_custom_call.1} parent=11 // pred_fallthru
          _
        // Predicated region
        $region17: #{tpu_custom_call.1} parent=11 // pred_check
          %p321 = pneg %p242
        $region18: #{tpu_custom_call.1} parent=11 // pred_check_branch
          %323 = sbr.rel (%p321) target = $region20
        $region19: #{tpu_custom_call.1} parent=11 // pred_region
          %s325 = ssub.s32 2048, 2048
          %326 = vsyncadd [#allocation15], %s325
          %s327 = sshll.u32 [#allocation16], 4
          %s328 = int_to_ptr.vmem [resolvable:$true] %s327
          %333 = dma.hbm_to_vmem [thread:$0]  %s7, 2048, %s328, [#allocation15], 64, 64, 4
        $region20: #{tpu_custom_call.1} parent=11 // pred_fallthru
          _
        // Predicated region
        $region21: #{tpu_custom_call.1} parent=11 // pred_check
          %p334 = pneg %p263
        $region22: #{tpu_custom_call.1} parent=11 // pred_check_branch
          %336 = sbr.rel (%p334) target = $region24
        $region23: #{tpu_custom_call.1} parent=11 // pred_region
          %s338 = ssub.s32 16, 16
          %339 = vsyncadd [#allocation18], %s338
          %s341 = sshll.u32 [#allocation17], 4
          %s342 = int_to_ptr.vmem [resolvable:$true] %s341
          %344 = dma.hbm_to_vmem [thread:$0]  %s8, 16, %s342, [#allocation18]
        $region24: #{tpu_custom_call.1} parent=11 // pred_fallthru
          _
      $region12: #{tpu_custom_call.1} parent=5 // pred_fallthru
        _
      %p345 = scmp.lt.s32.totalorder %s27, 6
      // Predicated region
      $region25: #{tpu_custom_call.1} parent=5 // pred_check
        %p346 = pneg %p345
      $region26: #{tpu_custom_call.1} parent=5 // pred_check_branch
        %348 = sbr.rel (%p346) target = $region28
      $region27: #{tpu_custom_call.1} parent=5 // pred_region
        // Predicated region
        $region29: #{tpu_custom_call.1} parent=27 // pred_check
          %p349 = pneg %p85
        $region30: #{tpu_custom_call.1} parent=27 // pred_check_branch
          %351 = sbr.rel (%p349) target = $region32
        $region31: #{tpu_custom_call.1} parent=27 // pred_region
          %s352 = sand.u32 %s27, 1
          %s353 = scalar_lea.sflag [#allocation9], %s352
          %s354 = sand.u32 %s75, 1
          %s355 = smul.addr %s354, 768
          %s356 = scalar_lea.vmem [#allocation8], %s355
          %s358 = ssub.s32 12288, 12288
          %359 = vsyncadd %s353, %s358
          %s360 = smul.addr %s35, 192
          %s361 = smul.addr %s360, 64
          %s362 = scalar_lea.hbm %s1, %s361
          %s363 = sshll.u32 %s356, 4
          %s364 = int_to_ptr.vmem [resolvable:$true] %s363
          %369 = dma.hbm_to_vmem [thread:$0]  %s362, 12288, %s364, %s353, 384, 384, 24
        $region32: #{tpu_custom_call.1} parent=27 // pred_fallthru
          _
        // Predicated region
        $region33: #{tpu_custom_call.1} parent=27 // pred_check
          %p370 = pneg %p111
        $region34: #{tpu_custom_call.1} parent=27 // pred_check_branch
          %372 = sbr.rel (%p370) target = $region36
        $region35: #{tpu_custom_call.1} parent=27 // pred_region
          %s373 = sand.u32 %s27, 1
          %s374 = scalar_lea.sflag [#allocation9], %s373
          %s375 = sand.u32 %s101, 1
          %s376 = smul.addr %s375, 256
          %s377 = scalar_lea.vmem [#allocation10], %s376
          %s379 = ssub.s32 4096, 4096
          %380 = vsyncadd %s374, %s379
          %s381 = smul.addr %s35, 64
          %s382 = smul.addr %s381, 64
          %s383 = scalar_lea.hbm %s2, %s382
          %s384 = sshll.u32 %s377, 4
          %s385 = int_to_ptr.vmem [resolvable:$true] %s384
          %390 = dma.hbm_to_vmem [thread:$0]  %s383, 4096, %s385, %s374, 128, 128, 8
        $region36: #{tpu_custom_call.1} parent=27 // pred_fallthru
          _
        // Predicated region
        $region37: #{tpu_custom_call.1} parent=27 // pred_check
          %p391 = pneg %p137
        $region38: #{tpu_custom_call.1} parent=27 // pred_check_branch
          %393 = sbr.rel (%p391) target = $region40
        $region39: #{tpu_custom_call.1} parent=27 // pred_region
          %s394 = sand.u32 %s27, 1
          %s395 = scalar_lea.sflag [#allocation12], %s394
          %s396 = sand.u32 %s127, 1
          %s397 = smul.addr %s396, 2048
          %s398 = scalar_lea.vmem [#allocation11], %s397
          %s400 = ssub.s32 32768, 32768
          %401 = vsyncadd %s395, %s400
          %s402 = smul.addr %s35, 512
          %s403 = smul.addr %s402, 64
          %s404 = scalar_lea.hbm %s3, %s403
          %s405 = sshll.u32 %s398, 4
          %s406 = int_to_ptr.vmem [resolvable:$true] %s405
          %411 = dma.hbm_to_vmem [thread:$0]  %s404, 32768, %s406, %s395, 1024, 1024, 64
        $region40: #{tpu_custom_call.1} parent=27 // pred_fallthru
          _
        // Predicated region
        $region41: #{tpu_custom_call.1} parent=27 // pred_check
          %p412 = pneg %p163
        $region42: #{tpu_custom_call.1} parent=27 // pred_check_branch
          %414 = sbr.rel (%p412) target = $region44
        $region43: #{tpu_custom_call.1} parent=27 // pred_region
          %s415 = sand.u32 %s27, 1
          %s416 = scalar_lea.sflag [#allocation12], %s415
          %s417 = sand.u32 %s153, 1
          %s418 = smul.addr %s417, 2048
          %s419 = scalar_lea.vmem [#allocation13], %s418
          %s421 = ssub.s32 32768, 32768
          %422 = vsyncadd %s416, %s421
          %s423 = smul.addr %s35, 512
          %s424 = smul.addr %s423, 64
          %s425 = scalar_lea.hbm %s4, %s424
          %s426 = sshll.u32 %s419, 4
          %s427 = int_to_ptr.vmem [resolvable:$true] %s426
          %432 = dma.hbm_to_vmem [thread:$0]  %s425, 32768, %s427, %s416, 128, 128, 8
        $region44: #{tpu_custom_call.1} parent=27 // pred_fallthru
          _
        // Predicated region
        $region45: #{tpu_custom_call.1} parent=27 // pred_check
          %p433 = pneg %p189
        $region46: #{tpu_custom_call.1} parent=27 // pred_check_branch
          %435 = sbr.rel (%p433) target = $region48
        $region47: #{tpu_custom_call.1} parent=27 // pred_region
          %p436 = scmp.lt.s32.totalorder %s35, 5
          %s437 = scalar_select %p436, %s35, 5
          %s438 = smul.addr %s437, 4
          %s439 = smul.addr %s438, 8
          %s440 = scalar_lea.vmem %s5, %s439
        $region48: #{tpu_custom_call.1} parent=27 // pred_fallthru
          _
        // Predicated region
        $region49: #{tpu_custom_call.1} parent=27 // pred_check
          %p441 = pneg %p215
        $region50: #{tpu_custom_call.1} parent=27 // pred_check_branch
          %443 = sbr.rel (%p441) target = $region52
        $region51: #{tpu_custom_call.1} parent=27 // pred_region
          %s444 = sand.u32 %s27, 1
          %s445 = scalar_lea.sflag [#allocation15], %s444
          %s446 = sand.u32 %s205, 1
          %s447 = smul.addr %s446, 16
          %s448 = scalar_lea.vmem [#allocation14], %s447
          %s450 = ssub.s32 256, 256
          %451 = vsyncadd %s445, %s450
          %s452 = smul.addr %s35, 16
          %s453 = smul.addr %s452, 16
          %s454 = scalar_lea.hbm %s6, %s453
          %s456 = sshll.u32 %s448, 4
          %s457 = int_to_ptr.vmem [resolvable:$true] %s456
          %459 = dma.hbm_to_vmem [thread:$0]  %s454, 256, %s457, %s445
        $region52: #{tpu_custom_call.1} parent=27 // pred_fallthru
          _
      $region28: #{tpu_custom_call.1} parent=5 // pred_fallthru
        _
      %p460 = scmp.le.s32.totalorder 1, %s27
      %p461 = scmp.lt.s32.totalorder %s27, 7
      %p462 = pnand %p460, %p461
      %p463 = pneg %p462
      // Predicated region
      $region53: #{tpu_custom_call.1} parent=5 // pred_check
        _
      $region54: #{tpu_custom_call.1} parent=5 // pred_check_branch
        %465 = sbr.rel (%p462) target = $region56
      $region55: #{tpu_custom_call.1} parent=5 // pred_region
        %s466 = ssub.s32 %s27, 1
        // Predicated region
        $region57: #{tpu_custom_call.1} parent=55 // pred_check
          %p467 = pneg %p65
        $region58: #{tpu_custom_call.1} parent=55 // pred_check_branch
          %469 = sbr.rel (%p467) target = $region60
        $region59: #{tpu_custom_call.1} parent=55 // pred_region
          %470 = dma.done [#allocation6], 512
        $region60: #{tpu_custom_call.1} parent=55 // pred_fallthru
          _
        %s471 = sand.u32 %s32, 1
        %s472 = scalar_lea.sflag [#allocation9], %s471
        %s473 = sand.u32 %s78, 1
        %s474 = smul.addr %s473, 768
        %s475 = scalar_lea.vmem [#allocation8], %s474
        // Predicated region
        $region61: #{tpu_custom_call.1} parent=55 // pred_check
          %p476 = pneg %p91
        $region62: #{tpu_custom_call.1} parent=55 // pred_check_branch
          %478 = sbr.rel (%p476) target = $region64
        $region63: #{tpu_custom_call.1} parent=55 // pred_region
          %479 = dma.done %s472, 12288
        $region64: #{tpu_custom_call.1} parent=55 // pred_fallthru
          _
        %s480 = sand.u32 %s32, 1
        %s481 = scalar_lea.sflag [#allocation9], %s480
        %s482 = sand.u32 %s104, 1
        %s483 = smul.addr %s482, 256
        %s484 = scalar_lea.vmem [#allocation10], %s483
        // Predicated region
        $region65: #{tpu_custom_call.1} parent=55 // pred_check
          %p485 = pneg %p117
        $region66: #{tpu_custom_call.1} parent=55 // pred_check_branch
          %487 = sbr.rel (%p485) target = $region68
        $region67: #{tpu_custom_call.1} parent=55 // pred_region
          %488 = dma.done %s481, 4096
        $region68: #{tpu_custom_call.1} parent=55 // pred_fallthru
          _
        %s489 = sand.u32 %s32, 1
        %s490 = scalar_lea.sflag [#allocation12], %s489
        %s491 = sand.u32 %s130, 1
        %s492 = smul.addr %s491, 2048
        %s493 = scalar_lea.vmem [#allocation11], %s492
        // Predicated region
        $region69: #{tpu_custom_call.1} parent=55 // pred_check
          %p494 = pneg %p143
        $region70: #{tpu_custom_call.1} parent=55 // pred_check_branch
          %496 = sbr.rel (%p494) target = $region72
        $region71: #{tpu_custom_call.1} parent=55 // pred_region
          %497 = dma.done %s490, 32768
        $region72: #{tpu_custom_call.1} parent=55 // pred_fallthru
          _
        %s498 = sand.u32 %s32, 1
        %s499 = scalar_lea.sflag [#allocation12], %s498
        %s500 = sand.u32 %s156, 1
        %s501 = smul.addr %s500, 2048
        %s502 = scalar_lea.vmem [#allocation13], %s501
        // Predicated region
        $region73: #{tpu_custom_call.1} parent=55 // pred_check
          %p503 = pneg %p169
        $region74: #{tpu_custom_call.1} parent=55 // pred_check_branch
          %505 = sbr.rel (%p503) target = $region76
        $region75: #{tpu_custom_call.1} parent=55 // pred_region
          %506 = dma.done %s499, 32768
        $region76: #{tpu_custom_call.1} parent=55 // pred_fallthru
          _
        %s507 = sand.u32 %s32, 1
        %s508 = scalar_lea.sflag [#allocation15], %s507
        %s509 = sand.u32 %s208, 1
        %s510 = smul.addr %s509, 16
        %s511 = scalar_lea.vmem [#allocation14], %s510
        // Predicated region
        $region77: #{tpu_custom_call.1} parent=55 // pred_check
          %p512 = pneg %p221
        $region78: #{tpu_custom_call.1} parent=55 // pred_check_branch
          %514 = sbr.rel (%p512) target = $region80
        $region79: #{tpu_custom_call.1} parent=55 // pred_region
          %515 = dma.done %s508, 256
        $region80: #{tpu_custom_call.1} parent=55 // pred_fallthru
          _
        // Predicated region
        $region81: #{tpu_custom_call.1} parent=55 // pred_check
          %p516 = pneg %p242
        $region82: #{tpu_custom_call.1} parent=55 // pred_check_branch
          %518 = sbr.rel (%p516) target = $region84
        $region83: #{tpu_custom_call.1} parent=55 // pred_region
          %519 = dma.done [#allocation15], 2048
        $region84: #{tpu_custom_call.1} parent=55 // pred_fallthru
          _
        // Predicated region
        $region85: #{tpu_custom_call.1} parent=55 // pred_check
          %p520 = pneg %p263
        $region86: #{tpu_custom_call.1} parent=55 // pred_check_branch
          %522 = sbr.rel (%p520) target = $region88
        $region87: #{tpu_custom_call.1} parent=55 // pred_region
          %523 = dma.done [#allocation18], 16
        $region88: #{tpu_custom_call.1} parent=55 // pred_fallthru
          _
        %p524 = pneg %p65
        %p525 = pneg %p62
        %s526 = sand.u32 %s32, 1
        %s527 = scalar_lea.sflag [#allocation9], %s526
        %s528 = sand.u32 %s78, 1
        %s529 = smul.addr %s528, 768
        %s530 = scalar_lea.vmem [#allocation8], %s529
        %p531 = pneg %p91
        %p532 = pneg %p88
        %s533 = sand.u32 %s32, 1
        %s534 = scalar_lea.sflag [#allocation9], %s533
        %s535 = sand.u32 %s104, 1
        %s536 = smul.addr %s535, 256
        %s537 = scalar_lea.vmem [#allocation10], %s536
        %p538 = pneg %p117
        %p539 = pneg %p114
        %s540 = sand.u32 %s32, 1
        %s541 = scalar_lea.sflag [#allocation12], %s540
        %s542 = sand.u32 %s130, 1
        %s543 = smul.addr %s542, 2048
        %s544 = scalar_lea.vmem [#allocation11], %s543
        %p545 = pneg %p143
        %p546 = pneg %p140
        %s547 = sand.u32 %s32, 1
        %s548 = scalar_lea.sflag [#allocation12], %s547
        %s549 = sand.u32 %s156, 1
        %s550 = smul.addr %s549, 2048
        %s551 = scalar_lea.vmem [#allocation13], %s550
        %p552 = pneg %p169
        %p553 = pneg %p166
        %p554 = scmp.lt.s32.totalorder %s37, 5
        %s555 = scalar_select %p554, %s37, 5
        %s556 = smul.addr %s555, 4
        %s557 = smul.addr %s556, 8
        %s558 = scalar_lea.vmem %s5, %s557
        %p559 = pneg %p195
        %p560 = pneg %p192
        %s561 = sand.u32 %s32, 1
        %s562 = scalar_lea.sflag [#allocation15], %s561
        %s563 = sand.u32 %s208, 1
        %s564 = smul.addr %s563, 16
        %s565 = scalar_lea.vmem [#allocation14], %s564
        %p566 = pneg %p221
        %p567 = pneg %p218
        %p568 = pneg %p242
        %p569 = pneg %p239
        %p570 = pneg %p263
        %p571 = pneg %p260
        %p572 = pneg %p289
        %p573 = pneg %p286
        %s574 = smul.u32 2, %s36
        %p575 = scmp.lt.s32.totalorder %s37, 5
        %s576 = scalar_select %p575, %s37, 5
        %s577 = smul.addr %s576, 4
        %s578 = smul.addr %s577, 8
        %s579 = scalar_lea.vmem %s5, %s578
        %s580 = smul.u32 2, %s36
        %p582 = scmp.eq.s32.totalorder %s37, 0
        // Predicated region
        $region89: #{tpu_custom_call.1} parent=55 // pred_check
          %p583 = pneg %p582
        $region90: #{tpu_custom_call.1} parent=55 // pred_check_branch
          %585 = sbr.rel (%p583) target = $region92
        $region91: #{tpu_custom_call.1} parent=55 // pred_region
          %v586 = vld [vmem:[#allocation5] sm:$0xff]
          %v587 = vld [vmem:[#allocation5 + $0x8] sm:$0xff]
          %v588 = vld [vmem:[#allocation5 + $0x10] sm:$0xff]
          %v589 = vld [vmem:[#allocation5 + $0x18] sm:$0xff]
          %590 = vst [vmem:[#allocation2] sm:$0xff] %v586
          %591 = vst [vmem:[#allocation2 + $0x8] sm:$0xff] %v587
          %592 = vst [vmem:[#allocation2 + $0x10] sm:$0xff] %v588
          %593 = vst [vmem:[#allocation2 + $0x18] sm:$0xff] %v589
        $region92: #{tpu_custom_call.1} parent=55 // pred_fallthru
          _
        %v594 = vld [vmem:[#allocation2] sm:$0xff]
        %v595 = vld [vmem:[#allocation2 + $0x8] sm:$0xff]
        %v596 = vld [vmem:[#allocation2 + $0x10] sm:$0xff]
        %v597 = vld [vmem:[#allocation2 + $0x18] sm:$0xff]
        %v598 = vpack.c.bf16 %v596, %v594
        %v599 = vpack.c.bf16 %v597, %v595
        %v600 = vld [vmem:[%s579] sm:$0xff]
        %v601 = vld [vmem:[%s579 + $0x8] sm:$0xff]
        %v602 = vld [vmem:[%s579 + $0x10] sm:$0x1]
        %v603 = vld [vmem:[%s579 + $0x18] sm:$0x1]
        %v604 = vld [vmem:[%s475] sm:$0xff]
        %v605 = vld [vmem:[%s475 + $0x8] sm:$0xff]
        %v606 = vld [vmem:[%s475 + $0x10] sm:$0xff]
        %v607 = vld [vmem:[%s475 + $0x18] sm:$0xff]
        %v608 = vld [vmem:[%s475 + $0x20] sm:$0xff]
        %v609 = vld [vmem:[%s475 + $0x28] sm:$0xff]
        %v610 = vld [vmem:[%s475 + $0x30] sm:$0xff]
        %v611 = vld [vmem:[%s475 + $0x38] sm:$0xff]
        %v612 = vld [vmem:[%s475 + $0x40] sm:$0xff]
        %v613 = vld [vmem:[%s475 + $0x48] sm:$0xff]
        %v614 = vld [vmem:[%s475 + $0x50] sm:$0xff]
        %v615 = vld [vmem:[%s475 + $0x58] sm:$0xff]
        %v616 = vld [vmem:[%s475 + $0x60] sm:$0xff]
        %v617 = vld [vmem:[%s475 + $0x68] sm:$0xff]
        %v618 = vld [vmem:[%s475 + $0x70] sm:$0xff]
        %v619 = vld [vmem:[%s475 + $0x78] sm:$0xff]
        %v620 = vld [vmem:[%s475 + $0x80] sm:$0xff]
        %v621 = vld [vmem:[%s475 + $0x88] sm:$0xff]
        %v622 = vld [vmem:[%s475 + $0x90] sm:$0xff]
        %v623 = vld [vmem:[%s475 + $0x98] sm:$0xff]
        %v624 = vld [vmem:[%s475 + $0xa0] sm:$0xff]
        %v625 = vld [vmem:[%s475 + $0xa8] sm:$0xff]
        %v626 = vld [vmem:[%s475 + $0xb0] sm:$0xff]
        %v627 = vld [vmem:[%s475 + $0xb8] sm:$0xff]
        %v628 = vld [vmem:[%s475 + $0xc0] sm:$0xff]
        %v629 = vld [vmem:[%s475 + $0xc8] sm:$0xff]
        %v630 = vld [vmem:[%s475 + $0xd0] sm:$0xff]
        %v631 = vld [vmem:[%s475 + $0xd8] sm:$0xff]
        %v632 = vld [vmem:[%s475 + $0xe0] sm:$0xff]
        %v633 = vld [vmem:[%s475 + $0xe8] sm:$0xff]
        %v634 = vld [vmem:[%s475 + $0xf0] sm:$0xff]
        %v635 = vld [vmem:[%s475 + $0xf8] sm:$0xff]
        %v636 = vld [vmem:[%s475 + $0x100] sm:$0xff]
        %v637 = vld [vmem:[%s475 + $0x108] sm:$0xff]
        %v638 = vld [vmem:[%s475 + $0x110] sm:$0xff]
        %v639 = vld [vmem:[%s475 + $0x118] sm:$0xff]
        %v640 = vld [vmem:[%s475 + $0x120] sm:$0xff]
        %v641 = vld [vmem:[%s475 + $0x128] sm:$0xff]
        %v642 = vld [vmem:[%s475 + $0x130] sm:$0xff]
        %v643 = vld [vmem:[%s475 + $0x138] sm:$0xff]
        %v644 = vld [vmem:[%s475 + $0x140] sm:$0xff]
        %v645 = vld [vmem:[%s475 + $0x148] sm:$0xff]
        %v646 = vld [vmem:[%s475 + $0x150] sm:$0xff]
        %v647 = vld [vmem:[%s475 + $0x158] sm:$0xff]
        %v648 = vld [vmem:[%s475 + $0x160] sm:$0xff]
        %v649 = vld [vmem:[%s475 + $0x168] sm:$0xff]
        %v650 = vld [vmem:[%s475 + $0x170] sm:$0xff]
        %v651 = vld [vmem:[%s475 + $0x178] sm:$0xff]
        %v652 = vld [vmem:[%s475 + $0x180] sm:$0xff]
        %v653 = vld [vmem:[%s475 + $0x188] sm:$0xff]
        %v654 = vld [vmem:[%s475 + $0x190] sm:$0xff]
        %v655 = vld [vmem:[%s475 + $0x198] sm:$0xff]
        %v656 = vld [vmem:[%s475 + $0x1a0] sm:$0xff]
        %v657 = vld [vmem:[%s475 + $0x1a8] sm:$0xff]
        %v658 = vld [vmem:[%s475 + $0x1b0] sm:$0xff]
        %v659 = vld [vmem:[%s475 + $0x1b8] sm:$0xff]
        %v660 = vld [vmem:[%s475 + $0x1c0] sm:$0xff]
        %v661 = vld [vmem:[%s475 + $0x1c8] sm:$0xff]
        %v662 = vld [vmem:[%s475 + $0x1d0] sm:$0xff]
        %v663 = vld [vmem:[%s475 + $0x1d8] sm:$0xff]
        %v664 = vld [vmem:[%s475 + $0x1e0] sm:$0xff]
        %v665 = vld [vmem:[%s475 + $0x1e8] sm:$0xff]
        %v666 = vld [vmem:[%s475 + $0x1f0] sm:$0xff]
        %v667 = vld [vmem:[%s475 + $0x1f8] sm:$0xff]
        %v668 = vld [vmem:[%s475 + $0x200] sm:$0xff]
        %v669 = vld [vmem:[%s475 + $0x208] sm:$0xff]
        %v670 = vld [vmem:[%s475 + $0x210] sm:$0xff]
        %v671 = vld [vmem:[%s475 + $0x218] sm:$0xff]
        %v672 = vld [vmem:[%s475 + $0x220] sm:$0xff]
        %v673 = vld [vmem:[%s475 + $0x228] sm:$0xff]
        %v674 = vld [vmem:[%s475 + $0x230] sm:$0xff]
        %v675 = vld [vmem:[%s475 + $0x238] sm:$0xff]
        %v676 = vld [vmem:[%s475 + $0x240] sm:$0xff]
        %v677 = vld [vmem:[%s475 + $0x248] sm:$0xff]
        %v678 = vld [vmem:[%s475 + $0x250] sm:$0xff]
        %v679 = vld [vmem:[%s475 + $0x258] sm:$0xff]
        %v680 = vld [vmem:[%s475 + $0x260] sm:$0xff]
        %v681 = vld [vmem:[%s475 + $0x268] sm:$0xff]
        %v682 = vld [vmem:[%s475 + $0x270] sm:$0xff]
        %v683 = vld [vmem:[%s475 + $0x278] sm:$0xff]
        %v684 = vld [vmem:[%s475 + $0x280] sm:$0xff]
        %v685 = vld [vmem:[%s475 + $0x288] sm:$0xff]
        %v686 = vld [vmem:[%s475 + $0x290] sm:$0xff]
        %v687 = vld [vmem:[%s475 + $0x298] sm:$0xff]
        %v688 = vld [vmem:[%s475 + $0x2a0] sm:$0xff]
        %v689 = vld [vmem:[%s475 + $0x2a8] sm:$0xff]
        %v690 = vld [vmem:[%s475 + $0x2b0] sm:$0xff]
        %v691 = vld [vmem:[%s475 + $0x2b8] sm:$0xff]
        %v692 = vld [vmem:[%s475 + $0x2c0] sm:$0xff]
        %v693 = vld [vmem:[%s475 + $0x2c8] sm:$0xff]
        %v694 = vld [vmem:[%s475 + $0x2d0] sm:$0xff]
        %v695 = vld [vmem:[%s475 + $0x2d8] sm:$0xff]
        %v696 = vld [vmem:[%s475 + $0x2e0] sm:$0xff]
        %v697 = vld [vmem:[%s475 + $0x2e8] sm:$0xff]
        %v698 = vld [vmem:[%s475 + $0x2f0] sm:$0xff]
        %v699 = vld [vmem:[%s475 + $0x2f8] sm:$0xff]
        %v796 = vunpack.c.l.b16 %v604
        %v797 = vunpack.c.h.b16 %v604
        %v798 = vunpack.c.l.b16 %v605
        %v799 = vunpack.c.h.b16 %v605
        %v800 = vunpack.c.l.b16 %v606
        %v801 = vunpack.c.h.b16 %v606
        %v802 = vunpack.c.l.b16 %v607
        %v803 = vunpack.c.h.b16 %v607
        %v804 = vunpack.c.l.b16 %v608
        %v805 = vunpack.c.h.b16 %v608
        %v806 = vunpack.c.l.b16 %v609
        %v807 = vunpack.c.h.b16 %v609
        %v808 = vunpack.c.l.b16 %v610
        %v809 = vunpack.c.h.b16 %v610
        %v810 = vunpack.c.l.b16 %v611
        %v811 = vunpack.c.h.b16 %v611
        %v812 = vunpack.c.l.b16 %v612
        %v813 = vunpack.c.h.b16 %v612
        %v814 = vunpack.c.l.b16 %v613
        %v815 = vunpack.c.h.b16 %v613
        %v816 = vunpack.c.l.b16 %v614
        %v817 = vunpack.c.h.b16 %v614
        %v818 = vunpack.c.l.b16 %v615
        %v819 = vunpack.c.h.b16 %v615
        %v820 = vunpack.c.l.b16 %v616
        %v821 = vunpack.c.h.b16 %v616
        %v822 = vunpack.c.l.b16 %v617
        %v823 = vunpack.c.h.b16 %v617
        %v824 = vunpack.c.l.b16 %v618
        %v825 = vunpack.c.h.b16 %v618
        %v826 = vunpack.c.l.b16 %v619
        %v827 = vunpack.c.h.b16 %v619
        %v828 = vunpack.c.l.b16 %v620
        %v829 = vunpack.c.h.b16 %v620
        %v830 = vunpack.c.l.b16 %v621
        %v831 = vunpack.c.h.b16 %v621
        %v832 = vunpack.c.l.b16 %v622
        %v833 = vunpack.c.h.b16 %v622
        %v834 = vunpack.c.l.b16 %v623
        %v835 = vunpack.c.h.b16 %v623
        %v836 = vunpack.c.l.b16 %v624
        %v837 = vunpack.c.h.b16 %v624
        %v838 = vunpack.c.l.b16 %v625
        %v839 = vunpack.c.h.b16 %v625
        %v840 = vunpack.c.l.b16 %v626
        %v841 = vunpack.c.h.b16 %v626
        %v842 = vunpack.c.l.b16 %v627
        %v843 = vunpack.c.h.b16 %v627
        %v844 = vunpack.c.l.b16 %v628
        %v845 = vunpack.c.h.b16 %v628
        %v846 = vunpack.c.l.b16 %v629
        %v847 = vunpack.c.h.b16 %v629
        %v848 = vunpack.c.l.b16 %v630
        %v849 = vunpack.c.h.b16 %v630
        %v850 = vunpack.c.l.b16 %v631
        %v851 = vunpack.c.h.b16 %v631
        %v852 = vunpack.c.l.b16 %v632
        %v853 = vunpack.c.h.b16 %v632
        %v854 = vunpack.c.l.b16 %v633
        %v855 = vunpack.c.h.b16 %v633
        %v856 = vunpack.c.l.b16 %v634
        %v857 = vunpack.c.h.b16 %v634
        %v858 = vunpack.c.l.b16 %v635
        %v859 = vunpack.c.h.b16 %v635
        %v860 = vunpack.c.l.b16 %v636
        %v861 = vunpack.c.h.b16 %v636
        %v862 = vunpack.c.l.b16 %v637
        %v863 = vunpack.c.h.b16 %v637
        %v864 = vunpack.c.l.b16 %v638
        %v865 = vunpack.c.h.b16 %v638
        %v866 = vunpack.c.l.b16 %v639
        %v867 = vunpack.c.h.b16 %v639
        %v868 = vunpack.c.l.b16 %v640
        %v869 = vunpack.c.h.b16 %v640
        %v870 = vunpack.c.l.b16 %v641
        %v871 = vunpack.c.h.b16 %v641
        %v872 = vunpack.c.l.b16 %v642
        %v873 = vunpack.c.h.b16 %v642
        %v874 = vunpack.c.l.b16 %v643
        %v875 = vunpack.c.h.b16 %v643
        %v876 = vunpack.c.l.b16 %v644
        %v877 = vunpack.c.h.b16 %v644
        %v878 = vunpack.c.l.b16 %v645
        %v879 = vunpack.c.h.b16 %v645
        %v880 = vunpack.c.l.b16 %v646
        %v881 = vunpack.c.h.b16 %v646
        %v882 = vunpack.c.l.b16 %v647
        %v883 = vunpack.c.h.b16 %v647
        %v884 = vunpack.c.l.b16 %v648
        %v885 = vunpack.c.h.b16 %v648
        %v886 = vunpack.c.l.b16 %v649
        %v887 = vunpack.c.h.b16 %v649
        %v888 = vunpack.c.l.b16 %v650
        %v889 = vunpack.c.h.b16 %v650
        %v890 = vunpack.c.l.b16 %v651
        %v891 = vunpack.c.h.b16 %v651
        %v892 = vunpack.c.l.b16 %v652
        %v893 = vunpack.c.h.b16 %v652
        %v894 = vunpack.c.l.b16 %v653
        %v895 = vunpack.c.h.b16 %v653
        %v896 = vunpack.c.l.b16 %v654
        %v897 = vunpack.c.h.b16 %v654
        %v898 = vunpack.c.l.b16 %v655
        %v899 = vunpack.c.h.b16 %v655
        %v900 = vunpack.c.l.b16 %v656
        %v901 = vunpack.c.h.b16 %v656
        %v902 = vunpack.c.l.b16 %v657
        %v903 = vunpack.c.h.b16 %v657
        %v904 = vunpack.c.l.b16 %v658
        %v905 = vunpack.c.h.b16 %v658
        %v906 = vunpack.c.l.b16 %v659
        %v907 = vunpack.c.h.b16 %v659
        %v908 = vunpack.c.l.b16 %v660
        %v909 = vunpack.c.h.b16 %v660
        %v910 = vunpack.c.l.b16 %v661
        %v911 = vunpack.c.h.b16 %v661
        %v912 = vunpack.c.l.b16 %v662
        %v913 = vunpack.c.h.b16 %v662
        %v914 = vunpack.c.l.b16 %v663
        %v915 = vunpack.c.h.b16 %v663
        %v916 = vunpack.c.l.b16 %v664
        %v917 = vunpack.c.h.b16 %v664
        %v918 = vunpack.c.l.b16 %v665
        %v919 = vunpack.c.h.b16 %v665
        %v920 = vunpack.c.l.b16 %v666
        %v921 = vunpack.c.h.b16 %v666
        %v922 = vunpack.c.l.b16 %v667
        %v923 = vunpack.c.h.b16 %v667
        %v924 = vunpack.c.l.b16 %v668
        %v925 = vunpack.c.h.b16 %v668
        %v926 = vunpack.c.l.b16 %v669
        %v927 = vunpack.c.h.b16 %v669
        %v928 = vunpack.c.l.b16 %v670
        %v929 = vunpack.c.h.b16 %v670
        %v930 = vunpack.c.l.b16 %v671
        %v931 = vunpack.c.h.b16 %v671
        %v932 = vunpack.c.l.b16 %v672
        %v933 = vunpack.c.h.b16 %v672
        %v934 = vunpack.c.l.b16 %v673
        %v935 = vunpack.c.h.b16 %v673
        %v936 = vunpack.c.l.b16 %v674
        %v937 = vunpack.c.h.b16 %v674
        %v938 = vunpack.c.l.b16 %v675
        %v939 = vunpack.c.h.b16 %v675
        %v940 = vunpack.c.l.b16 %v676
        %v941 = vunpack.c.h.b16 %v676
        %v942 = vunpack.c.l.b16 %v677
        %v943 = vunpack.c.h.b16 %v677
        %v944 = vunpack.c.l.b16 %v678
        %v945 = vunpack.c.h.b16 %v678
        %v946 = vunpack.c.l.b16 %v679
        %v947 = vunpack.c.h.b16 %v679
        %v948 = vunpack.c.l.b16 %v680
        %v949 = vunpack.c.h.b16 %v680
        %v950 = vunpack.c.l.b16 %v681
        %v951 = vunpack.c.h.b16 %v681
        %v952 = vunpack.c.l.b16 %v682
        %v953 = vunpack.c.h.b16 %v682
        %v954 = vunpack.c.l.b16 %v683
        %v955 = vunpack.c.h.b16 %v683
        %v956 = vunpack.c.l.b16 %v684
        %v957 = vunpack.c.h.b16 %v684
        %v958 = vunpack.c.l.b16 %v685
        %v959 = vunpack.c.h.b16 %v685
        %v960 = vunpack.c.l.b16 %v686
        %v961 = vunpack.c.h.b16 %v686
        %v962 = vunpack.c.l.b16 %v687
        %v963 = vunpack.c.h.b16 %v687
        %v964 = vunpack.c.l.b16 %v688
        %v965 = vunpack.c.h.b16 %v688
        %v966 = vunpack.c.l.b16 %v689
        %v967 = vunpack.c.h.b16 %v689
        %v968 = vunpack.c.l.b16 %v690
        %v969 = vunpack.c.h.b16 %v690
        %v970 = vunpack.c.l.b16 %v691
        %v971 = vunpack.c.h.b16 %v691
        %v972 = vunpack.c.l.b16 %v692
        %v973 = vunpack.c.h.b16 %v692
        %v974 = vunpack.c.l.b16 %v693
        %v975 = vunpack.c.h.b16 %v693
        %v976 = vunpack.c.l.b16 %v694
        %v977 = vunpack.c.h.b16 %v694
        %v978 = vunpack.c.l.b16 %v695
        %v979 = vunpack.c.h.b16 %v695
        %v980 = vunpack.c.l.b16 %v696
        %v981 = vunpack.c.h.b16 %v696
        %v982 = vunpack.c.l.b16 %v697
        %v983 = vunpack.c.h.b16 %v697
        %v984 = vunpack.c.l.b16 %v698
        %v985 = vunpack.c.h.b16 %v698
        %v986 = vunpack.c.l.b16 %v699
        %v987 = vunpack.c.h.b16 %v699
        %v988 = vpack.c.b16 %v802, %v796
        %v989 = vpack.c.b16 %v803, %v797
        %v990 = vpack.c.b16 %v804, %v798
        %v991 = vpack.c.b16 %v805, %v799
        %v992 = vpack.c.b16 %v806, %v800
        %v993 = vpack.c.b16 %v807, %v801
        %v994 = vpack.c.b16 %v814, %v808
        %v995 = vpack.c.b16 %v815, %v809
        %v996 = vpack.c.b16 %v816, %v810
        %v997 = vpack.c.b16 %v817, %v811
        %v998 = vpack.c.b16 %v818, %v812
        %v999 = vpack.c.b16 %v819, %v813
        %v1000 = vpack.c.b16 %v826, %v820
        %v1001 = vpack.c.b16 %v827, %v821
        %v1002 = vpack.c.b16 %v828, %v822
        %v1003 = vpack.c.b16 %v829, %v823
        %v1004 = vpack.c.b16 %v830, %v824
        %v1005 = vpack.c.b16 %v831, %v825
        %v1006 = vpack.c.b16 %v838, %v832
        %v1007 = vpack.c.b16 %v839, %v833
        %v1008 = vpack.c.b16 %v840, %v834
        %v1009 = vpack.c.b16 %v841, %v835
        %v1010 = vpack.c.b16 %v842, %v836
        %v1011 = vpack.c.b16 %v843, %v837
        %v1012 = vpack.c.b16 %v850, %v844
        %v1013 = vpack.c.b16 %v851, %v845
        %v1014 = vpack.c.b16 %v852, %v846
        %v1015 = vpack.c.b16 %v853, %v847
        %v1016 = vpack.c.b16 %v854, %v848
        %v1017 = vpack.c.b16 %v855, %v849
        %v1018 = vpack.c.b16 %v862, %v856
        %v1019 = vpack.c.b16 %v863, %v857
        %v1020 = vpack.c.b16 %v864, %v858
        %v1021 = vpack.c.b16 %v865, %v859
        %v1022 = vpack.c.b16 %v866, %v860
        %v1023 = vpack.c.b16 %v867, %v861
        %v1024 = vpack.c.b16 %v874, %v868
        %v1025 = vpack.c.b16 %v875, %v869
        %v1026 = vpack.c.b16 %v876, %v870
        %v1027 = vpack.c.b16 %v877, %v871
        %v1028 = vpack.c.b16 %v878, %v872
        %v1029 = vpack.c.b16 %v879, %v873
        %v1030 = vpack.c.b16 %v886, %v880
        %v1031 = vpack.c.b16 %v887, %v881
        %v1032 = vpack.c.b16 %v888, %v882
        %v1033 = vpack.c.b16 %v889, %v883
        %v1034 = vpack.c.b16 %v890, %v884
        %v1035 = vpack.c.b16 %v891, %v885
        %v1036 = vpack.c.b16 %v898, %v892
        %v1037 = vpack.c.b16 %v899, %v893
        %v1038 = vpack.c.b16 %v900, %v894
        %v1039 = vpack.c.b16 %v901, %v895
        %v1040 = vpack.c.b16 %v902, %v896
        %v1041 = vpack.c.b16 %v903, %v897
        %v1042 = vpack.c.b16 %v910, %v904
        %v1043 = vpack.c.b16 %v911, %v905
        %v1044 = vpack.c.b16 %v912, %v906
        %v1045 = vpack.c.b16 %v913, %v907
        %v1046 = vpack.c.b16 %v914, %v908
        %v1047 = vpack.c.b16 %v915, %v909
        %v1048 = vpack.c.b16 %v922, %v916
        %v1049 = vpack.c.b16 %v923, %v917
        %v1050 = vpack.c.b16 %v924, %v918
        %v1051 = vpack.c.b16 %v925, %v919
        %v1052 = vpack.c.b16 %v926, %v920
        %v1053 = vpack.c.b16 %v927, %v921
        %v1054 = vpack.c.b16 %v934, %v928
        %v1055 = vpack.c.b16 %v935, %v929
        %v1056 = vpack.c.b16 %v936, %v930
        %v1057 = vpack.c.b16 %v937, %v931
        %v1058 = vpack.c.b16 %v938, %v932
        %v1059 = vpack.c.b16 %v939, %v933
        %v1060 = vpack.c.b16 %v946, %v940
        %v1061 = vpack.c.b16 %v947, %v941
        %v1062 = vpack.c.b16 %v948, %v942
        %v1063 = vpack.c.b16 %v949, %v943
        %v1064 = vpack.c.b16 %v950, %v944
        %v1065 = vpack.c.b16 %v951, %v945
        %v1066 = vpack.c.b16 %v958, %v952
        %v1067 = vpack.c.b16 %v959, %v953
        %v1068 = vpack.c.b16 %v960, %v954
        %v1069 = vpack.c.b16 %v961, %v955
        %v1070 = vpack.c.b16 %v962, %v956
        %v1071 = vpack.c.b16 %v963, %v957
        %v1072 = vpack.c.b16 %v970, %v964
        %v1073 = vpack.c.b16 %v971, %v965
        %v1074 = vpack.c.b16 %v972, %v966
        %v1075 = vpack.c.b16 %v973, %v967
        %v1076 = vpack.c.b16 %v974, %v968
        %v1077 = vpack.c.b16 %v975, %v969
        %v1078 = vpack.c.b16 %v982, %v976
        %v1079 = vpack.c.b16 %v983, %v977
        %v1080 = vpack.c.b16 %v984, %v978
        %v1081 = vpack.c.b16 %v985, %v979
        %v1082 = vpack.c.b16 %v986, %v980
        %v1083 = vpack.c.b16 %v987, %v981
        %1180 = vmatprep.subr.bf16.mxu0 %v989
        %1181 = vmatpush1.bf16.msra.mxu0 %v988
        %1182 = vmatprep.subr.bf16.mxu0 %v995
        %1183 = vmatpush1.bf16.msra.mxu0 %v994
        %1184 = vmatprep.subr.bf16.mxu0 %v1001
        %1185 = vmatpush1.bf16.msra.mxu0 %v1000
        %1186 = vmatprep.subr.bf16.mxu0 %v1007
        %1187 = vmatpush1.bf16.msra.mxu0 %v1006
        %1188 = vmatprep.subr.bf16.mxu0 %v1013
        %1189 = vmatpush1.bf16.msra.mxu0 %v1012
        %1190 = vmatprep.subr.bf16.mxu0 %v1019
        %1191 = vmatpush1.bf16.msra.mxu0 %v1018
        %1192 = vmatprep.subr.bf16.mxu0 %v1025
        %1193 = vmatpush1.bf16.msra.mxu0 %v1024
        %1194 = vmatprep.subr.bf16.mxu0 %v1031
        %1195 = vmatpush1.bf16.msra.mxu0 %v1030
        %1196 = vmatprep.subr.bf16.mxu0 %v1037
        %1197 = vmatpush1.bf16.msra.mxu0 %v1036
        %1198 = vmatprep.subr.bf16.mxu0 %v1043
        %1199 = vmatpush1.bf16.msra.mxu0 %v1042
        %1200 = vmatprep.subr.bf16.mxu0 %v1049
        %1201 = vmatpush1.bf16.msra.mxu0 %v1048
        %1202 = vmatprep.subr.bf16.mxu0 %v1055
        %1203 = vmatpush1.bf16.msra.mxu0 %v1054
        %1204 = vmatprep.subr.bf16.mxu0 %v1061
        %1205 = vmatpush1.bf16.msra.mxu0 %v1060
        %1206 = vmatprep.subr.bf16.mxu0 %v1067
        %1207 = vmatpush1.bf16.msra.mxu0 %v1066
        %1208 = vmatprep.subr.bf16.mxu0 %v1073
        %1209 = vmatpush1.bf16.msra.mxu0 %v1072
        %1210 = vmatprep.subr.bf16.mxu0 %v1079
        %1211 = vmatpush1.bf16.msra.mxu0 %v1078
        %1212 = vmatprep.mubr.bf16.mxu0 %v599
        %1213 = vmatmul.mubr.bf16.gmra.mrb[0].mxu0 %v598
        %v1214 = vpop.f32.mrb[0].mxu0
        %v1215 = vadd.f32 0.0, %v1214
        %v1216 = vpop.f32.mrb[0].mxu0
        %v1217 = vadd.f32 0.0, %v1216
        %v1218 = vpop.f32.mrb[0].mxu0
        %v1219 = vadd.f32 0.0, %v1218
        %v1220 = vpop.f32.mrb[0].mxu0
        %v1221 = vadd.f32 0.0, %v1220
        %1222 = vdwg.mxu0
        %1223 = vmatprep.subr.bf16.mxu0 %v991
        %1224 = vmatpush1.bf16.msra.mxu0 %v990
        %1225 = vmatprep.subr.bf16.mxu0 %v997
        %1226 = vmatpush1.bf16.msra.mxu0 %v996
        %1227 = vmatprep.subr.bf16.mxu0 %v1003
        %1228 = vmatpush1.bf16.msra.mxu0 %v1002
        %1229 = vmatprep.subr.bf16.mxu0 %v1009
        %1230 = vmatpush1.bf16.msra.mxu0 %v1008
        %1231 = vmatprep.subr.bf16.mxu0 %v1015
        %1232 = vmatpush1.bf16.msra.mxu0 %v1014
        %1233 = vmatprep.subr.bf16.mxu0 %v1021
        %1234 = vmatpush1.bf16.msra.mxu0 %v1020
        %1235 = vmatprep.subr.bf16.mxu0 %v1027
        %1236 = vmatpush1.bf16.msra.mxu0 %v1026
        %1237 = vmatprep.subr.bf16.mxu0 %v1033
        %1238 = vmatpush1.bf16.msra.mxu0 %v1032
        %1239 = vmatprep.subr.bf16.mxu0 %v1039
        %1240 = vmatpush1.bf16.msra.mxu0 %v1038
        %1241 = vmatprep.subr.bf16.mxu0 %v1045
        %1242 = vmatpush1.bf16.msra.mxu0 %v1044
        %1243 = vmatprep.subr.bf16.mxu0 %v1051
        %1244 = vmatpush1.bf16.msra.mxu0 %v1050
        %1245 = vmatprep.subr.bf16.mxu0 %v1057
        %1246 = vmatpush1.bf16.msra.mxu0 %v1056
        %1247 = vmatprep.subr.bf16.mxu0 %v1063
        %1248 = vmatpush1.bf16.msra.mxu0 %v1062
        %1249 = vmatprep.subr.bf16.mxu0 %v1069
        %1250 = vmatpush1.bf16.msra.mxu0 %v1068
        %1251 = vmatprep.subr.bf16.mxu0 %v1075
        %1252 = vmatpush1.bf16.msra.mxu0 %v1074
        %1253 = vmatprep.subr.bf16.mxu0 %v1081
        %1254 = vmatpush1.bf16.msra.mxu0 %v1080
        %1255 = vmatprep.mubr.bf16.mxu0 %v599
        %1256 = vmatmul.mubr.bf16.gmra.mrb[0].mxu0 %v598
        %v1257 = vpop.f32.mrb[0].mxu0
        %v1258 = vadd.f32 0.0, %v1257
        %v1259 = vpop.f32.mrb[0].mxu0
        %v1260 = vadd.f32 0.0, %v1259
        %v1261 = vpop.f32.mrb[0].mxu0
        %v1262 = vadd.f32 0.0, %v1261
        %v1263 = vpop.f32.mrb[0].mxu0
        %v1264 = vadd.f32 0.0, %v1263
        %1265 = vdwg.mxu0
        %1266 = vmatprep.subr.bf16.mxu0 %v993
        %1267 = vmatpush1.bf16.msra.mxu0 %v992
        %1268 = vmatprep.subr.bf16.mxu0 %v999
        %1269 = vmatpush1.bf16.msra.mxu0 %v998
        %1270 = vmatprep.subr.bf16.mxu0 %v1005
        %1271 = vmatpush1.bf16.msra.mxu0 %v1004
        %1272 = vmatprep.subr.bf16.mxu0 %v1011
        %1273 = vmatpush1.bf16.msra.mxu0 %v1010
        %1274 = vmatprep.subr.bf16.mxu0 %v1017
        %1275 = vmatpush1.bf16.msra.mxu0 %v1016
        %1276 = vmatprep.subr.bf16.mxu0 %v1023
        %1277 = vmatpush1.bf16.msra.mxu0 %v1022
        %1278 = vmatprep.subr.bf16.mxu0 %v1029
        %1279 = vmatpush1.bf16.msra.mxu0 %v1028
        %1280 = vmatprep.subr.bf16.mxu0 %v1035
        %1281 = vmatpush1.bf16.msra.mxu0 %v1034
        %1282 = vmatprep.subr.bf16.mxu0 %v1041
        %1283 = vmatpush1.bf16.msra.mxu0 %v1040
        %1284 = vmatprep.subr.bf16.mxu0 %v1047
        %1285 = vmatpush1.bf16.msra.mxu0 %v1046
        %1286 = vmatprep.subr.bf16.mxu0 %v1053
        %1287 = vmatpush1.bf16.msra.mxu0 %v1052
        %1288 = vmatprep.subr.bf16.mxu0 %v1059
        %1289 = vmatpush1.bf16.msra.mxu0 %v1058
        %1290 = vmatprep.subr.bf16.mxu0 %v1065
        %1291 = vmatpush1.bf16.msra.mxu0 %v1064
        %1292 = vmatprep.subr.bf16.mxu0 %v1071
        %1293 = vmatpush1.bf16.msra.mxu0 %v1070
        %1294 = vmatprep.subr.bf16.mxu0 %v1077
        %1295 = vmatpush1.bf16.msra.mxu0 %v1076
        %1296 = vmatprep.subr.bf16.mxu0 %v1083
        %1297 = vmatpush1.bf16.msra.mxu0 %v1082
        %1298 = vmatprep.mubr.bf16.mxu0 %v599
        %1299 = vmatmul.mubr.bf16.gmra.mrb[0].mxu0 %v598
        %v1300 = vpop.f32.mrb[0].mxu0
        %v1301 = vadd.f32 0.0, %v1300
        %v1302 = vpop.f32.mrb[0].mxu0
        %v1303 = vadd.f32 0.0, %v1302
        %v1304 = vpop.f32.mrb[0].mxu0
        %v1305 = vadd.f32 0.0, %v1304
        %v1306 = vpop.f32.mrb[0].mxu0
        %v1307 = vadd.f32 0.0, %v1306
        %1308 = vdwg.mxu0
        %v1309 = vlaneseq
        %v1310 = vshrl.u32 %v1309, 7
        %v1311 = vsub.s32 0, %v1310
        %v1312 = vrot.slane %v600, %v1311
        %v1313 = vlaneseq
        %v1314 = vshrl.u32 %v1313, 7
        %v1315 = vsub.s32 0, %v1314
        %v1316 = vrot.slane %v601, %v1315
        %v1317 = vadd.f32 %v1215, %v1312
        %v1318 = vadd.f32 %v1217, %v1316
        %v1319 = vadd.f32 %v1219, %v1312
        %v1320 = vadd.f32 %v1221, %v1316
        %v1321 = vpack.c.bf16 %v1319, %v1317
        %v1322 = vpack.c.bf16 %v1320, %v1318
        %1323 = vst [vmem:[#allocation3] sm:$0xff] %v1321
        %1324 = vst [vmem:[#allocation3 + $0x8] sm:$0xff] %v1322
        %v1325 = vlaneseq
        %v1326 = vshrl.u32 %v1325, 7
        %v1327 = vsub.s32 1, %v1326
        %v1328 = vrot.slane %v600, %v1327
        %v1329 = vlaneseq
        %v1330 = vshrl.u32 %v1329, 7
        %v1331 = vsub.s32 1, %v1330
        %v1332 = vrot.slane %v601, %v1331
        %v1333 = vadd.f32 %v1258, %v1328
        %v1334 = vadd.f32 %v1260, %v1332
        %v1335 = vadd.f32 %v1262, %v1328
        %v1336 = vadd.f32 %v1264, %v1332
        %v1337 = vpack.c.bf16 %v1335, %v1333
        %v1338 = vpack.c.bf16 %v1336, %v1334
        %1339 = vst [vmem:[#allocation3 + $0x10] sm:$0xff] %v1337
        %1340 = vst [vmem:[#allocation3 + $0x18] sm:$0xff] %v1338
        %v1341 = vlaneseq
        %v1342 = vshrl.u32 %v1341, 7
        %v1343 = vsub.s32 2, %v1342
        %v1344 = vrot.slane %v600, %v1343
        %v1345 = vlaneseq
        %v1346 = vshrl.u32 %v1345, 7
        %v1347 = vsub.s32 2, %v1346
        %v1348 = vrot.slane %v601, %v1347
        %v1349 = vadd.f32 %v1301, %v1344
        %v1350 = vadd.f32 %v1303, %v1348
        %v1351 = vadd.f32 %v1305, %v1344
        %v1352 = vadd.f32 %v1307, %v1348
        %v1353 = vpack.c.bf16 %v1351, %v1349
        %v1354 = vpack.c.bf16 %v1352, %v1350
        %1355 = vst [vmem:[#allocation3 + $0x20] sm:$0xff] %v1353
        %1356 = vst [vmem:[#allocation3 + $0x28] sm:$0xff] %v1354
        %v1357 = vld [vmem:[#allocation3] sm:$0xf]
        %v1358 = vld [vmem:[#allocation3 + $0x10] sm:$0xf]
        %v1359 = vld [vmem:[#allocation3 + $0x20] sm:$0xf]
        %vm1360 = vcmask 261120
        %v1362 = vsel %vm1360, %v1357, 0
        %v1365 = vsel %vm1360, %v1358, 0
        %1367 = vmatprep.subr.bf16.mxu0 0
        %1368 = vmatpush1.bf16.xpose.msra.mxu0 %v1365
        %1369 = vmatprep.subr.bf16.mxu0 0
        %1370 = vmatpush1.bf16.xpose.msra.mxu0 0
        %1371 = vmatprep.subr.bf16.mxu0 0
        %1372 = vmatpush1.bf16.xpose.msra.mxu0 0
        %1373 = vmatprep.subr.bf16.mxu0 0
        %1374 = vmatpush1.bf16.xpose.msra.mxu0 0
        %1375 = vmatprep.subr.bf16.mxu0 0
        %1376 = vmatpush1.bf16.xpose.msra.mxu0 0
        %1377 = vmatprep.subr.bf16.mxu0 0
        %1378 = vmatpush1.bf16.xpose.msra.mxu0 0
        %1379 = vmatprep.subr.bf16.mxu0 0
        %1380 = vmatpush1.bf16.xpose.msra.mxu0 0
        %1381 = vmatprep.subr.bf16.mxu0 0
        %1382 = vmatpush1.bf16.xpose.msra.mxu0 0
        %1383 = vmatprep.subr.bf16.mxu0 0
        %1384 = vmatpush1.bf16.xpose.msra.mxu0 0
        %1385 = vmatprep.subr.bf16.mxu0 0
        %1386 = vmatpush1.bf16.xpose.msra.mxu0 0
        %1387 = vmatprep.subr.bf16.mxu0 0
        %1388 = vmatpush1.bf16.xpose.msra.mxu0 0
        %1389 = vmatprep.subr.bf16.mxu0 0
        %1390 = vmatpush1.bf16.xpose.msra.mxu0 0
        %1391 = vmatprep.subr.bf16.mxu0 0
        %1392 = vmatpush1.bf16.xpose.msra.mxu0 0
        %1393 = vmatprep.subr.bf16.mxu0 0
        %1394 = vmatpush1.bf16.xpose.msra.mxu0 0
        %1395 = vmatprep.subr.bf16.mxu0 0
        %1396 = vmatpush1.bf16.xpose.msra.mxu0 0
        %1397 = vmatprep.subr.bf16.mxu0 0
        %1398 = vmatpush1.bf16.xpose.msra.mxu0 0
        %1399 = vmatprep.mubr.bf16.mxu0 0
        %1400 = vmatmul.mubr.bf16.gmra.mrb[0].mxu0 %v1362
        %v1401 = vpop.f32.mrb[0].mxu0
        %v1402 = vadd.f32 0.0, %v1401
        %v1403 = vpop.f32.mrb[0].mxu0
        %v1404 = vpop.f32.mrb[0].mxu0
        %v1405 = vpop.f32.mrb[0].mxu0
        %1406 = vdwg.mxu0
        %vm1407 = vcmask 64512
        %v1408 = vsel %vm1407, %v1402, -inf
        %1409 = vmax.xlane.f32.xlu0 %v1408
        %v1410 = vpop.xlane.xlu0 %1409
        %v1411 = vsub.f32 %v1402, %v1410
        %v1412 = vmul.f32 %v1411, 1.442695
        %v1413 = vpow.pop %v1412
        %v1414 = vsel %vm1407, %v1413, 0.0
        %1415 = vadd.xlane.f32.xlu0 %v1414
        %v1416 = vpop.xlane.xlu0 %1415
        %v1417 = vrcp.pop %v1416
        %v1418 = vmul.f32 %v1413, %v1417
        %v1419 = vpack.c.bf16 %v1418, %v1418
        %v1421 = vsel %vm1407, %v1419, 0
        %vm1423 = vcmask 1043456
        %v1425 = vsel %vm1423, %v1359, 0
        %1427 = vmatprep.subr.bf16.mxu0 0
        %1428 = vmatpush1.bf16.msra.mxu0 %v1425
        %1429 = vmatprep.subr.bf16.mxu0 0
        %1430 = vmatpush1.bf16.msra.mxu0 0
        %1431 = vmatprep.subr.bf16.mxu0 0
        %1432 = vmatpush1.bf16.msra.mxu0 0
        %1433 = vmatprep.subr.bf16.mxu0 0
        %1434 = vmatpush1.bf16.msra.mxu0 0
        %1435 = vmatprep.subr.bf16.mxu0 0
        %1436 = vmatpush1.bf16.msra.mxu0 0
        %1437 = vmatprep.subr.bf16.mxu0 0
        %1438 = vmatpush1.bf16.msra.mxu0 0
        %1439 = vmatprep.subr.bf16.mxu0 0
        %1440 = vmatpush1.bf16.msra.mxu0 0
        %1441 = vmatprep.subr.bf16.mxu0 0
        %1442 = vmatpush1.bf16.msra.mxu0 0
        %1443 = vmatprep.subr.bf16.mxu0 0
        %1444 = vmatpush1.bf16.msra.mxu0 0
        %1445 = vmatprep.subr.bf16.mxu0 0
        %1446 = vmatpush1.bf16.msra.mxu0 0
        %1447 = vmatprep.subr.bf16.mxu0 0
        %1448 = vmatpush1.bf16.msra.mxu0 0
        %1449 = vmatprep.subr.bf16.mxu0 0
        %1450 = vmatpush1.bf16.msra.mxu0 0
        %1451 = vmatprep.subr.bf16.mxu0 0
        %1452 = vmatpush1.bf16.msra.mxu0 0
        %1453 = vmatprep.subr.bf16.mxu0 0
        %1454 = vmatpush1.bf16.msra.mxu0 0
        %1455 = vmatprep.subr.bf16.mxu0 0
        %1456 = vmatpush1.bf16.msra.mxu0 0
        %1457 = vmatprep.subr.bf16.mxu0 0
        %1458 = vmatpush1.bf16.msra.mxu0 0
        %1459 = vmatprep.mubr.bf16.mxu0 0
        %1460 = vmatmul.mubr.bf16.gmra.mrb[0].mxu0 %v1421
        %v1461 = vpop.f32.mrb[0].mxu0
        %v1462 = vadd.f32 0.0, %v1461
        %v1463 = vpop.f32.mrb[0].mxu0
        %v1464 = vpop.f32.mrb[0].mxu0
        %v1465 = vpop.f32.mrb[0].mxu0
        %1466 = vdwg.mxu0
        %1468 = vrot.lane.b32.xlu0 %v1357, 96
        %v1469 = vpop.permute.xlu0 %1468
        %1471 = vrot.lane.b32.xlu0 %v1358, 96
        %v1472 = vpop.permute.xlu0 %1471
        %v1474 = vsel %vm1360, %v1469, 0
        %v1477 = vsel %vm1360, %v1472, 0
        %1479 = vmatprep.subr.bf16.mxu0 0
        %1480 = vmatpush1.bf16.xpose.msra.mxu0 %v1477
        %1481 = vmatprep.subr.bf16.mxu0 0
        %1482 = vmatpush1.bf16.xpose.msra.mxu0 0
        %1483 = vmatprep.subr.bf16.mxu0 0
        %1484 = vmatpush1.bf16.xpose.msra.mxu0 0
        %1485 = vmatprep.subr.bf16.mxu0 0
        %1486 = vmatpush1.bf16.xpose.msra.mxu0 0
        %1487 = vmatprep.subr.bf16.mxu0 0
        %1488 = vmatpush1.bf16.xpose.msra.mxu0 0
        %1489 = vmatprep.subr.bf16.mxu0 0
        %1490 = vmatpush1.bf16.xpose.msra.mxu0 0
        %1491 = vmatprep.subr.bf16.mxu0 0
        %1492 = vmatpush1.bf16.xpose.msra.mxu0 0
        %1493 = vmatprep.subr.bf16.mxu0 0
        %1494 = vmatpush1.bf16.xpose.msra.mxu0 0
        %1495 = vmatprep.subr.bf16.mxu0 0
        %1496 = vmatpush1.bf16.xpose.msra.mxu0 0
        %1497 = vmatprep.subr.bf16.mxu0 0
        %1498 = vmatpush1.bf16.xpose.msra.mxu0 0
        %1499 = vmatprep.subr.bf16.mxu0 0
        %1500 = vmatpush1.bf16.xpose.msra.mxu0 0
        %1501 = vmatprep.subr.bf16.mxu0 0
        %1502 = vmatpush1.bf16.xpose.msra.mxu0 0
        %1503 = vmatprep.subr.bf16.mxu0 0
        %1504 = vmatpush1.bf16.xpose.msra.mxu0 0
        %1505 = vmatprep.subr.bf16.mxu0 0
        %1506 = vmatpush1.bf16.xpose.msra.mxu0 0
        %1507 = vmatprep.subr.bf16.mxu0 0
        %1508 = vmatpush1.bf16.xpose.msra.mxu0 0
        %1509 = vmatprep.subr.bf16.mxu0 0
        %1510 = vmatpush1.bf16.xpose.msra.mxu0 0
        %1511 = vmatprep.mubr.bf16.mxu0 0
        %1512 = vmatmul.mubr.bf16.gmra.mrb[0].mxu0 %v1474
        %v1513 = vpop.f32.mrb[0].mxu0
        %v1514 = vadd.f32 0.0, %v1513
        %v1515 = vpop.f32.mrb[0].mxu0
        %v1516 = vpop.f32.mrb[0].mxu0
        %v1517 = vpop.f32.mrb[0].mxu0
        %1518 = vdwg.mxu0
        %v1519 = vsel %vm1407, %v1514, -inf
        %1520 = vmax.xlane.f32.xlu0 %v1519
        %v1521 = vpop.xlane.xlu0 %1520
        %v1522 = vsub.f32 %v1514, %v1521
        %v1523 = vmul.f32 %v1522, 1.442695
        %v1524 = vpow.pop %v1523
        %v1525 = vsel %vm1407, %v1524, 0.0
        %1526 = vadd.xlane.f32.xlu0 %v1525
        %v1527 = vpop.xlane.xlu0 %1526
        %v1528 = vrcp.pop %v1527
        %v1529 = vmul.f32 %v1524, %v1528
        %v1530 = vpack.c.bf16 %v1529, %v1529
        %1532 = vrot.lane.b32.xlu0 %v1359, 96
        %v1533 = vpop.permute.xlu0 %1532
        %v1535 = vsel %vm1407, %v1530, 0
        %v1538 = vsel %vm1423, %v1533, 0
        %1540 = vmatprep.subr.bf16.mxu0 0
        %1541 = vmatpush1.bf16.msra.mxu0 %v1538
        %1542 = vmatprep.subr.bf16.mxu0 0
        %1543 = vmatpush1.bf16.msra.mxu0 0
        %1544 = vmatprep.subr.bf16.mxu0 0
        %1545 = vmatpush1.bf16.msra.mxu0 0
        %1546 = vmatprep.subr.bf16.mxu0 0
        %1547 = vmatpush1.bf16.msra.mxu0 0
        %1548 = vmatprep.subr.bf16.mxu0 0
        %1549 = vmatpush1.bf16.msra.mxu0 0
        %1550 = vmatprep.subr.bf16.mxu0 0
        %1551 = vmatpush1.bf16.msra.mxu0 0
        %1552 = vmatprep.subr.bf16.mxu0 0
        %1553 = vmatpush1.bf16.msra.mxu0 0
        %1554 = vmatprep.subr.bf16.mxu0 0
        %1555 = vmatpush1.bf16.msra.mxu0 0
        %1556 = vmatprep.subr.bf16.mxu0 0
        %1557 = vmatpush1.bf16.msra.mxu0 0
        %1558 = vmatprep.subr.bf16.mxu0 0
        %1559 = vmatpush1.bf16.msra.mxu0 0
        %1560 = vmatprep.subr.bf16.mxu0 0
        %1561 = vmatpush1.bf16.msra.mxu0 0
        %1562 = vmatprep.subr.bf16.mxu0 0
        %1563 = vmatpush1.bf16.msra.mxu0 0
        %1564 = vmatprep.subr.bf16.mxu0 0
        %1565 = vmatpush1.bf16.msra.mxu0 0
        %1566 = vmatprep.subr.bf16.mxu0 0
        %1567 = vmatpush1.bf16.msra.mxu0 0
        %1568 = vmatprep.subr.bf16.mxu0 0
        %1569 = vmatpush1.bf16.msra.mxu0 0
        %1570 = vmatprep.subr.bf16.mxu0 0
        %1571 = vmatpush1.bf16.msra.mxu0 0
        %1572 = vmatprep.mubr.bf16.mxu0 0
        %1573 = vmatmul.mubr.bf16.gmra.mrb[0].mxu0 %v1535
        %v1574 = vpop.f32.mrb[0].mxu0
        %v1575 = vadd.f32 0.0, %v1574
        %v1576 = vpop.f32.mrb[0].mxu0
        %v1577 = vpop.f32.mrb[0].mxu0
        %v1578 = vpop.f32.mrb[0].mxu0
        %1579 = vdwg.mxu0
        %1580 = vrot.lane.b32.xlu0 %v1357, 64
        %v1581 = vpop.permute.xlu0 %1580
        %1582 = vrot.lane.b32.xlu0 %v1358, 64
        %v1583 = vpop.permute.xlu0 %1582
        %v1585 = vsel %vm1360, %v1581, 0
        %v1588 = vsel %vm1360, %v1583, 0
        %1590 = vmatprep.subr.bf16.mxu0 0
        %1591 = vmatpush1.bf16.xpose.msra.mxu0 %v1588
        %1592 = vmatprep.subr.bf16.mxu0 0
        %1593 = vmatpush1.bf16.xpose.msra.mxu0 0
        %1594 = vmatprep.subr.bf16.mxu0 0
        %1595 = vmatpush1.bf16.xpose.msra.mxu0 0
        %1596 = vmatprep.subr.bf16.mxu0 0
        %1597 = vmatpush1.bf16.xpose.msra.mxu0 0
        %1598 = vmatprep.subr.bf16.mxu0 0
        %1599 = vmatpush1.bf16.xpose.msra.mxu0 0
        %1600 = vmatprep.subr.bf16.mxu0 0
        %1601 = vmatpush1.bf16.xpose.msra.mxu0 0
        %1602 = vmatprep.subr.bf16.mxu0 0
        %1603 = vmatpush1.bf16.xpose.msra.mxu0 0
        %1604 = vmatprep.subr.bf16.mxu0 0
        %1605 = vmatpush1.bf16.xpose.msra.mxu0 0
        %1606 = vmatprep.subr.bf16.mxu0 0
        %1607 = vmatpush1.bf16.xpose.msra.mxu0 0
        %1608 = vmatprep.subr.bf16.mxu0 0
        %1609 = vmatpush1.bf16.xpose.msra.mxu0 0
        %1610 = vmatprep.subr.bf16.mxu0 0
        %1611 = vmatpush1.bf16.xpose.msra.mxu0 0
        %1612 = vmatprep.subr.bf16.mxu0 0
        %1613 = vmatpush1.bf16.xpose.msra.mxu0 0
        %1614 = vmatprep.subr.bf16.mxu0 0
        %1615 = vmatpush1.bf16.xpose.msra.mxu0 0
        %1616 = vmatprep.subr.bf16.mxu0 0
        %1617 = vmatpush1.bf16.xpose.msra.mxu0 0
        %1618 = vmatprep.subr.bf16.mxu0 0
        %1619 = vmatpush1.bf16.xpose.msra.mxu0 0
        %1620 = vmatprep.subr.bf16.mxu0 0
        %1621 = vmatpush1.bf16.xpose.msra.mxu0 0
        %1622 = vmatprep.mubr.bf16.mxu0 0
        %1623 = vmatmul.mubr.bf16.gmra.mrb[0].mxu0 %v1585
        %v1624 = vpop.f32.mrb[0].mxu0
        %v1625 = vadd.f32 0.0, %v1624
        %v1626 = vpop.f32.mrb[0].mxu0
        %v1627 = vpop.f32.mrb[0].mxu0
        %v1628 = vpop.f32.mrb[0].mxu0
        %1629 = vdwg.mxu0
        %v1630 = vsel %vm1407, %v1625, -inf
        %1631 = vmax.xlane.f32.xlu0 %v1630
        %v1632 = vpop.xlane.xlu0 %1631
        %v1633 = vsub.f32 %v1625, %v1632
        %v1634 = vmul.f32 %v1633, 1.442695
        %v1635 = vpow.pop %v1634
        %v1636 = vsel %vm1407, %v1635, 0.0
        %1637 = vadd.xlane.f32.xlu0 %v1636
        %v1638 = vpop.xlane.xlu0 %1637
        %v1639 = vrcp.pop %v1638
        %v1640 = vmul.f32 %v1635, %v1639
        %v1641 = vpack.c.bf16 %v1640, %v1640
        %1642 = vrot.lane.b32.xlu0 %v1359, 64
        %v1643 = vpop.permute.xlu0 %1642
        %v1645 = vsel %vm1407, %v1641, 0
        %v1648 = vsel %vm1423, %v1643, 0
        %1650 = vmatprep.subr.bf16.mxu0 0
        %1651 = vmatpush1.bf16.msra.mxu0 %v1648
        %1652 = vmatprep.subr.bf16.mxu0 0
        %1653 = vmatpush1.bf16.msra.mxu0 0
        %1654 = vmatprep.subr.bf16.mxu0 0
        %1655 = vmatpush1.bf16.msra.mxu0 0
        %1656 = vmatprep.subr.bf16.mxu0 0
        %1657 = vmatpush1.bf16.msra.mxu0 0
        %1658 = vmatprep.subr.bf16.mxu0 0
        %1659 = vmatpush1.bf16.msra.mxu0 0
        %1660 = vmatprep.subr.bf16.mxu0 0
        %1661 = vmatpush1.bf16.msra.mxu0 0
        %1662 = vmatprep.subr.bf16.mxu0 0
        %1663 = vmatpush1.bf16.msra.mxu0 0
        %1664 = vmatprep.subr.bf16.mxu0 0
        %1665 = vmatpush1.bf16.msra.mxu0 0
        %1666 = vmatprep.subr.bf16.mxu0 0
        %1667 = vmatpush1.bf16.msra.mxu0 0
        %1668 = vmatprep.subr.bf16.mxu0 0
        %1669 = vmatpush1.bf16.msra.mxu0 0
        %1670 = vmatprep.subr.bf16.mxu0 0
        %1671 = vmatpush1.bf16.msra.mxu0 0
        %1672 = vmatprep.subr.bf16.mxu0 0
        %1673 = vmatpush1.bf16.msra.mxu0 0
        %1674 = vmatprep.subr.bf16.mxu0 0
        %1675 = vmatpush1.bf16.msra.mxu0 0
        %1676 = vmatprep.subr.bf16.mxu0 0
        %1677 = vmatpush1.bf16.msra.mxu0 0
        %1678 = vmatprep.subr.bf16.mxu0 0
        %1679 = vmatpush1.bf16.msra.mxu0 0
        %1680 = vmatprep.subr.bf16.mxu0 0
        %1681 = vmatpush1.bf16.msra.mxu0 0
        %1682 = vmatprep.mubr.bf16.mxu0 0
        %1683 = vmatmul.mubr.bf16.gmra.mrb[0].mxu0 %v1645
        %v1684 = vpop.f32.mrb[0].mxu0
        %v1685 = vadd.f32 0.0, %v1684
        %v1686 = vpop.f32.mrb[0].mxu0
        %v1687 = vpop.f32.mrb[0].mxu0
        %v1688 = vpop.f32.mrb[0].mxu0
        %1689 = vdwg.mxu0
        %1690 = vrot.lane.b32.xlu0 %v1357, 32
        %v1691 = vpop.permute.xlu0 %1690
        %1692 = vrot.lane.b32.xlu0 %v1358, 32
        %v1693 = vpop.permute.xlu0 %1692
        %v1695 = vsel %vm1360, %v1691, 0
        %v1698 = vsel %vm1360, %v1693, 0
        %1700 = vmatprep.subr.bf16.mxu0 0
        %1701 = vmatpush1.bf16.xpose.msra.mxu0 %v1698
        %1702 = vmatprep.subr.bf16.mxu0 0
        %1703 = vmatpush1.bf16.xpose.msra.mxu0 0
        %1704 = vmatprep.subr.bf16.mxu0 0
        %1705 = vmatpush1.bf16.xpose.msra.mxu0 0
        %1706 = vmatprep.subr.bf16.mxu0 0
        %1707 = vmatpush1.bf16.xpose.msra.mxu0 0
        %1708 = vmatprep.subr.bf16.mxu0 0
        %1709 = vmatpush1.bf16.xpose.msra.mxu0 0
        %1710 = vmatprep.subr.bf16.mxu0 0
        %1711 = vmatpush1.bf16.xpose.msra.mxu0 0
        %1712 = vmatprep.subr.bf16.mxu0 0
        %1713 = vmatpush1.bf16.xpose.msra.mxu0 0
        %1714 = vmatprep.subr.bf16.mxu0 0
        %1715 = vmatpush1.bf16.xpose.msra.mxu0 0
        %1716 = vmatprep.subr.bf16.mxu0 0
        %1717 = vmatpush1.bf16.xpose.msra.mxu0 0
        %1718 = vmatprep.subr.bf16.mxu0 0
        %1719 = vmatpush1.bf16.xpose.msra.mxu0 0
        %1720 = vmatprep.subr.bf16.mxu0 0
        %1721 = vmatpush1.bf16.xpose.msra.mxu0 0
        %1722 = vmatprep.subr.bf16.mxu0 0
        %1723 = vmatpush1.bf16.xpose.msra.mxu0 0
        %1724 = vmatprep.subr.bf16.mxu0 0
        %1725 = vmatpush1.bf16.xpose.msra.mxu0 0
        %1726 = vmatprep.subr.bf16.mxu0 0
        %1727 = vmatpush1.bf16.xpose.msra.mxu0 0
        %1728 = vmatprep.subr.bf16.mxu0 0
        %1729 = vmatpush1.bf16.xpose.msra.mxu0 0
        %1730 = vmatprep.subr.bf16.mxu0 0
        %1731 = vmatpush1.bf16.xpose.msra.mxu0 0
        %1732 = vmatprep.mubr.bf16.mxu0 0
        %1733 = vmatmul.mubr.bf16.gmra.mrb[0].mxu0 %v1695
        %v1734 = vpop.f32.mrb[0].mxu0
        %v1735 = vadd.f32 0.0, %v1734
        %v1736 = vpop.f32.mrb[0].mxu0
        %v1737 = vpop.f32.mrb[0].mxu0
        %v1738 = vpop.f32.mrb[0].mxu0
        %1739 = vdwg.mxu0
        %v1740 = vsel %vm1407, %v1735, -inf
        %1741 = vmax.xlane.f32.xlu0 %v1740
        %v1742 = vpop.xlane.xlu0 %1741
        %v1743 = vsub.f32 %v1735, %v1742
        %v1744 = vmul.f32 %v1743, 1.442695
        %v1745 = vpow.pop %v1744
        %v1746 = vsel %vm1407, %v1745, 0.0
        %1747 = vadd.xlane.f32.xlu0 %v1746
        %v1748 = vpop.xlane.xlu0 %1747
        %v1749 = vrcp.pop %v1748
        %v1750 = vmul.f32 %v1745, %v1749
        %v1751 = vpack.c.bf16 %v1750, %v1750
        %1752 = vrot.lane.b32.xlu0 %v1359, 32
        %v1753 = vpop.permute.xlu0 %1752
        %v1755 = vsel %vm1407, %v1751, 0
        %v1758 = vsel %vm1423, %v1753, 0
        %1760 = vmatprep.subr.bf16.mxu0 0
        %1761 = vmatpush1.bf16.msra.mxu0 %v1758
        %1762 = vmatprep.subr.bf16.mxu0 0
        %1763 = vmatpush1.bf16.msra.mxu0 0
        %1764 = vmatprep.subr.bf16.mxu0 0
        %1765 = vmatpush1.bf16.msra.mxu0 0
        %1766 = vmatprep.subr.bf16.mxu0 0
        %1767 = vmatpush1.bf16.msra.mxu0 0
        %1768 = vmatprep.subr.bf16.mxu0 0
        %1769 = vmatpush1.bf16.msra.mxu0 0
        %1770 = vmatprep.subr.bf16.mxu0 0
        %1771 = vmatpush1.bf16.msra.mxu0 0
        %1772 = vmatprep.subr.bf16.mxu0 0
        %1773 = vmatpush1.bf16.msra.mxu0 0
        %1774 = vmatprep.subr.bf16.mxu0 0
        %1775 = vmatpush1.bf16.msra.mxu0 0
        %1776 = vmatprep.subr.bf16.mxu0 0
        %1777 = vmatpush1.bf16.msra.mxu0 0
        %1778 = vmatprep.subr.bf16.mxu0 0
        %1779 = vmatpush1.bf16.msra.mxu0 0
        %1780 = vmatprep.subr.bf16.mxu0 0
        %1781 = vmatpush1.bf16.msra.mxu0 0
        %1782 = vmatprep.subr.bf16.mxu0 0
        %1783 = vmatpush1.bf16.msra.mxu0 0
        %1784 = vmatprep.subr.bf16.mxu0 0
        %1785 = vmatpush1.bf16.msra.mxu0 0
        %1786 = vmatprep.subr.bf16.mxu0 0
        %1787 = vmatpush1.bf16.msra.mxu0 0
        %1788 = vmatprep.subr.bf16.mxu0 0
        %1789 = vmatpush1.bf16.msra.mxu0 0
        %1790 = vmatprep.subr.bf16.mxu0 0
        %1791 = vmatpush1.bf16.msra.mxu0 0
        %1792 = vmatprep.mubr.bf16.mxu0 0
        %1793 = vmatmul.mubr.bf16.gmra.mrb[0].mxu0 %v1755
        %v1794 = vpop.f32.mrb[0].mxu0
        %v1795 = vadd.f32 0.0, %v1794
        %v1796 = vpop.f32.mrb[0].mxu0
        %v1797 = vpop.f32.mrb[0].mxu0
        %v1798 = vpop.f32.mrb[0].mxu0
        %1799 = vdwg.mxu0
        %1801 = vrot.lane.b32.xlu0 %v1575, 32
        %v1802 = vpop.permute.xlu0 %1801
        %1805 = vrot.lane.b32.xlu0 %v1685, 64
        %v1806 = vpop.permute.xlu0 %1805
        %1809 = vrot.lane.b32.xlu0 %v1795, 96
        %v1810 = vpop.permute.xlu0 %1809
        %v1812 = vsel %vm1360, %v1462, %v1802
        %vm1813 = vcmask 523264
        %v1814 = vsel %vm1813, %v1812, %v1806
        %vm1815 = vcmask 785408
        %v1816 = vsel %vm1815, %v1814, %v1810
        %v1817 = vpack.c.bf16 %v1816, %v1816
        %1818 = vst [vmem:[#allocation4] sm:$0xf] %v1817
        %v1819 = vld [vmem:[#allocation3 + $0x8] sm:$0xf]
        %v1820 = vld [vmem:[#allocation3 + $0x18] sm:$0xf]
        %v1821 = vld [vmem:[#allocation3 + $0x28] sm:$0xf]
        %v1823 = vsel %vm1360, %v1819, 0
        %v1826 = vsel %vm1360, %v1820, 0
        %1828 = vmatprep.subr.bf16.mxu0 0
        %1829 = vmatpush1.bf16.xpose.msra.mxu0 %v1826
        %1830 = vmatprep.subr.bf16.mxu0 0
        %1831 = vmatpush1.bf16.xpose.msra.mxu0 0
        %1832 = vmatprep.subr.bf16.mxu0 0
        %1833 = vmatpush1.bf16.xpose.msra.mxu0 0
        %1834 = vmatprep.subr.bf16.mxu0 0
        %1835 = vmatpush1.bf16.xpose.msra.mxu0 0
        %1836 = vmatprep.subr.bf16.mxu0 0
        %1837 = vmatpush1.bf16.xpose.msra.mxu0 0
        %1838 = vmatprep.subr.bf16.mxu0 0
        %1839 = vmatpush1.bf16.xpose.msra.mxu0 0
        %1840 = vmatprep.subr.bf16.mxu0 0
        %1841 = vmatpush1.bf16.xpose.msra.mxu0 0
        %1842 = vmatprep.subr.bf16.mxu0 0
        %1843 = vmatpush1.bf16.xpose.msra.mxu0 0
        %1844 = vmatprep.subr.bf16.mxu0 0
        %1845 = vmatpush1.bf16.xpose.msra.mxu0 0
        %1846 = vmatprep.subr.bf16.mxu0 0
        %1847 = vmatpush1.bf16.xpose.msra.mxu0 0
        %1848 = vmatprep.subr.bf16.mxu0 0
        %1849 = vmatpush1.bf16.xpose.msra.mxu0 0
        %1850 = vmatprep.subr.bf16.mxu0 0
        %1851 = vmatpush1.bf16.xpose.msra.mxu0 0
        %1852 = vmatprep.subr.bf16.mxu0 0
        %1853 = vmatpush1.bf16.xpose.msra.mxu0 0
        %1854 = vmatprep.subr.bf16.mxu0 0
        %1855 = vmatpush1.bf16.xpose.msra.mxu0 0
        %1856 = vmatprep.subr.bf16.mxu0 0
        %1857 = vmatpush1.bf16.xpose.msra.mxu0 0
        %1858 = vmatprep.subr.bf16.mxu0 0
        %1859 = vmatpush1.bf16.xpose.msra.mxu0 0
        %1860 = vmatprep.mubr.bf16.mxu0 0
        %1861 = vmatmul.mubr.bf16.gmra.mrb[0].mxu0 %v1823
        %v1862 = vpop.f32.mrb[0].mxu0
        %v1863 = vadd.f32 0.0, %v1862
        %v1864 = vpop.f32.mrb[0].mxu0
        %v1865 = vpop.f32.mrb[0].mxu0
        %v1866 = vpop.f32.mrb[0].mxu0
        %1867 = vdwg.mxu0
        %v1868 = vsel %vm1407, %v1863, -inf
        %1869 = vmax.xlane.f32.xlu0 %v1868
        %v1870 = vpop.xlane.xlu0 %1869
        %v1871 = vsub.f32 %v1863, %v1870
        %v1872 = vmul.f32 %v1871, 1.442695
        %v1873 = vpow.pop %v1872
        %v1874 = vsel %vm1407, %v1873, 0.0
        %1875 = vadd.xlane.f32.xlu0 %v1874
        %v1876 = vpop.xlane.xlu0 %1875
        %v1877 = vrcp.pop %v1876
        %v1878 = vmul.f32 %v1873, %v1877
        %v1879 = vpack.c.bf16 %v1878, %v1878
        %v1881 = vsel %vm1407, %v1879, 0
        %v1884 = vsel %vm1423, %v1821, 0
        %1886 = vmatprep.subr.bf16.mxu0 0
        %1887 = vmatpush1.bf16.msra.mxu0 %v1884
        %1888 = vmatprep.subr.bf16.mxu0 0
        %1889 = vmatpush1.bf16.msra.mxu0 0
        %1890 = vmatprep.subr.bf16.mxu0 0
        %1891 = vmatpush1.bf16.msra.mxu0 0
        %1892 = vmatprep.subr.bf16.mxu0 0
        %1893 = vmatpush1.bf16.msra.mxu0 0
        %1894 = vmatprep.subr.bf16.mxu0 0
        %1895 = vmatpush1.bf16.msra.mxu0 0
        %1896 = vmatprep.subr.bf16.mxu0 0
        %1897 = vmatpush1.bf16.msra.mxu0 0
        %1898 = vmatprep.subr.bf16.mxu0 0
        %1899 = vmatpush1.bf16.msra.mxu0 0
        %1900 = vmatprep.subr.bf16.mxu0 0
        %1901 = vmatpush1.bf16.msra.mxu0 0
        %1902 = vmatprep.subr.bf16.mxu0 0
        %1903 = vmatpush1.bf16.msra.mxu0 0
        %1904 = vmatprep.subr.bf16.mxu0 0
        %1905 = vmatpush1.bf16.msra.mxu0 0
        %1906 = vmatprep.subr.bf16.mxu0 0
        %1907 = vmatpush1.bf16.msra.mxu0 0
        %1908 = vmatprep.subr.bf16.mxu0 0
        %1909 = vmatpush1.bf16.msra.mxu0 0
        %1910 = vmatprep.subr.bf16.mxu0 0
        %1911 = vmatpush1.bf16.msra.mxu0 0
        %1912 = vmatprep.subr.bf16.mxu0 0
        %1913 = vmatpush1.bf16.msra.mxu0 0
        %1914 = vmatprep.subr.bf16.mxu0 0
        %1915 = vmatpush1.bf16.msra.mxu0 0
        %1916 = vmatprep.subr.bf16.mxu0 0
        %1917 = vmatpush1.bf16.msra.mxu0 0
        %1918 = vmatprep.mubr.bf16.mxu0 0
        %1919 = vmatmul.mubr.bf16.gmra.mrb[0].mxu0 %v1881
        %v1920 = vpop.f32.mrb[0].mxu0
        %v1921 = vadd.f32 0.0, %v1920
        %v1922 = vpop.f32.mrb[0].mxu0
        %v1923 = vpop.f32.mrb[0].mxu0
        %v1924 = vpop.f32.mrb[0].mxu0
        %1925 = vdwg.mxu0
        %1927 = vrot.lane.b32.xlu0 %v1819, 96
        %v1928 = vpop.permute.xlu0 %1927
        %1930 = vrot.lane.b32.xlu0 %v1820, 96
        %v1931 = vpop.permute.xlu0 %1930
        %v1933 = vsel %vm1360, %v1928, 0
        %v1936 = vsel %vm1360, %v1931, 0
        %1938 = vmatprep.subr.bf16.mxu0 0
        %1939 = vmatpush1.bf16.xpose.msra.mxu0 %v1936
        %1940 = vmatprep.subr.bf16.mxu0 0
        %1941 = vmatpush1.bf16.xpose.msra.mxu0 0
        %1942 = vmatprep.subr.bf16.mxu0 0
        %1943 = vmatpush1.bf16.xpose.msra.mxu0 0
        %1944 = vmatprep.subr.bf16.mxu0 0
        %1945 = vmatpush1.bf16.xpose.msra.mxu0 0
        %1946 = vmatprep.subr.bf16.mxu0 0
        %1947 = vmatpush1.bf16.xpose.msra.mxu0 0
        %1948 = vmatprep.subr.bf16.mxu0 0
        %1949 = vmatpush1.bf16.xpose.msra.mxu0 0
        %1950 = vmatprep.subr.bf16.mxu0 0
        %1951 = vmatpush1.bf16.xpose.msra.mxu0 0
        %1952 = vmatprep.subr.bf16.mxu0 0
        %1953 = vmatpush1.bf16.xpose.msra.mxu0 0
        %1954 = vmatprep.subr.bf16.mxu0 0
        %1955 = vmatpush1.bf16.xpose.msra.mxu0 0
        %1956 = vmatprep.subr.bf16.mxu0 0
        %1957 = vmatpush1.bf16.xpose.msra.mxu0 0
        %1958 = vmatprep.subr.bf16.mxu0 0
        %1959 = vmatpush1.bf16.xpose.msra.mxu0 0
        %1960 = vmatprep.subr.bf16.mxu0 0
        %1961 = vmatpush1.bf16.xpose.msra.mxu0 0
        %1962 = vmatprep.subr.bf16.mxu0 0
        %1963 = vmatpush1.bf16.xpose.msra.mxu0 0
        %1964 = vmatprep.subr.bf16.mxu0 0
        %1965 = vmatpush1.bf16.xpose.msra.mxu0 0
        %1966 = vmatprep.subr.bf16.mxu0 0
        %1967 = vmatpush1.bf16.xpose.msra.mxu0 0
        %1968 = vmatprep.subr.bf16.mxu0 0
        %1969 = vmatpush1.bf16.xpose.msra.mxu0 0
        %1970 = vmatprep.mubr.bf16.mxu0 0
        %1971 = vmatmul.mubr.bf16.gmra.mrb[0].mxu0 %v1933
        %v1972 = vpop.f32.mrb[0].mxu0
        %v1973 = vadd.f32 0.0, %v1972
        %v1974 = vpop.f32.mrb[0].mxu0
        %v1975 = vpop.f32.mrb[0].mxu0
        %v1976 = vpop.f32.mrb[0].mxu0
        %1977 = vdwg.mxu0
        %v1978 = vsel %vm1407, %v1973, -inf
        %1979 = vmax.xlane.f32.xlu0 %v1978
        %v1980 = vpop.xlane.xlu0 %1979
        %v1981 = vsub.f32 %v1973, %v1980
        %v1982 = vmul.f32 %v1981, 1.442695
        %v1983 = vpow.pop %v1982
        %v1984 = vsel %vm1407, %v1983, 0.0
        %1985 = vadd.xlane.f32.xlu0 %v1984
        %v1986 = vpop.xlane.xlu0 %1985
        %v1987 = vrcp.pop %v1986
        %v1988 = vmul.f32 %v1983, %v1987
        %v1989 = vpack.c.bf16 %v1988, %v1988
        %1991 = vrot.lane.b32.xlu0 %v1821, 96
        %v1992 = vpop.permute.xlu0 %1991
        %v1994 = vsel %vm1407, %v1989, 0
        %v1997 = vsel %vm1423, %v1992, 0
        %1999 = vmatprep.subr.bf16.mxu0 0
        %2000 = vmatpush1.bf16.msra.mxu0 %v1997
        %2001 = vmatprep.subr.bf16.mxu0 0
        %2002 = vmatpush1.bf16.msra.mxu0 0
        %2003 = vmatprep.subr.bf16.mxu0 0
        %2004 = vmatpush1.bf16.msra.mxu0 0
        %2005 = vmatprep.subr.bf16.mxu0 0
        %2006 = vmatpush1.bf16.msra.mxu0 0
        %2007 = vmatprep.subr.bf16.mxu0 0
        %2008 = vmatpush1.bf16.msra.mxu0 0
        %2009 = vmatprep.subr.bf16.mxu0 0
        %2010 = vmatpush1.bf16.msra.mxu0 0
        %2011 = vmatprep.subr.bf16.mxu0 0
        %2012 = vmatpush1.bf16.msra.mxu0 0
        %2013 = vmatprep.subr.bf16.mxu0 0
        %2014 = vmatpush1.bf16.msra.mxu0 0
        %2015 = vmatprep.subr.bf16.mxu0 0
        %2016 = vmatpush1.bf16.msra.mxu0 0
        %2017 = vmatprep.subr.bf16.mxu0 0
        %2018 = vmatpush1.bf16.msra.mxu0 0
        %2019 = vmatprep.subr.bf16.mxu0 0
        %2020 = vmatpush1.bf16.msra.mxu0 0
        %2021 = vmatprep.subr.bf16.mxu0 0
        %2022 = vmatpush1.bf16.msra.mxu0 0
        %2023 = vmatprep.subr.bf16.mxu0 0
        %2024 = vmatpush1.bf16.msra.mxu0 0
        %2025 = vmatprep.subr.bf16.mxu0 0
        %2026 = vmatpush1.bf16.msra.mxu0 0
        %2027 = vmatprep.subr.bf16.mxu0 0
        %2028 = vmatpush1.bf16.msra.mxu0 0
        %2029 = vmatprep.subr.bf16.mxu0 0
        %2030 = vmatpush1.bf16.msra.mxu0 0
        %2031 = vmatprep.mubr.bf16.mxu0 0
        %2032 = vmatmul.mubr.bf16.gmra.mrb[0].mxu0 %v1994
        %v2033 = vpop.f32.mrb[0].mxu0
        %v2034 = vadd.f32 0.0, %v2033
        %v2035 = vpop.f32.mrb[0].mxu0
        %v2036 = vpop.f32.mrb[0].mxu0
        %v2037 = vpop.f32.mrb[0].mxu0
        %2038 = vdwg.mxu0
        %2039 = vrot.lane.b32.xlu0 %v1819, 64
        %v2040 = vpop.permute.xlu0 %2039
        %2041 = vrot.lane.b32.xlu0 %v1820, 64
        %v2042 = vpop.permute.xlu0 %2041
        %v2044 = vsel %vm1360, %v2040, 0
        %v2047 = vsel %vm1360, %v2042, 0
        %2049 = vmatprep.subr.bf16.mxu0 0
        %2050 = vmatpush1.bf16.xpose.msra.mxu0 %v2047
        %2051 = vmatprep.subr.bf16.mxu0 0
        %2052 = vmatpush1.bf16.xpose.msra.mxu0 0
        %2053 = vmatprep.subr.bf16.mxu0 0
        %2054 = vmatpush1.bf16.xpose.msra.mxu0 0
        %2055 = vmatprep.subr.bf16.mxu0 0
        %2056 = vmatpush1.bf16.xpose.msra.mxu0 0
        %2057 = vmatprep.subr.bf16.mxu0 0
        %2058 = vmatpush1.bf16.xpose.msra.mxu0 0
        %2059 = vmatprep.subr.bf16.mxu0 0
        %2060 = vmatpush1.bf16.xpose.msra.mxu0 0
        %2061 = vmatprep.subr.bf16.mxu0 0
        %2062 = vmatpush1.bf16.xpose.msra.mxu0 0
        %2063 = vmatprep.subr.bf16.mxu0 0
        %2064 = vmatpush1.bf16.xpose.msra.mxu0 0
        %2065 = vmatprep.subr.bf16.mxu0 0
        %2066 = vmatpush1.bf16.xpose.msra.mxu0 0
        %2067 = vmatprep.subr.bf16.mxu0 0
        %2068 = vmatpush1.bf16.xpose.msra.mxu0 0
        %2069 = vmatprep.subr.bf16.mxu0 0
        %2070 = vmatpush1.bf16.xpose.msra.mxu0 0
        %2071 = vmatprep.subr.bf16.mxu0 0
        %2072 = vmatpush1.bf16.xpose.msra.mxu0 0
        %2073 = vmatprep.subr.bf16.mxu0 0
        %2074 = vmatpush1.bf16.xpose.msra.mxu0 0
        %2075 = vmatprep.subr.bf16.mxu0 0
        %2076 = vmatpush1.bf16.xpose.msra.mxu0 0
        %2077 = vmatprep.subr.bf16.mxu0 0
        %2078 = vmatpush1.bf16.xpose.msra.mxu0 0
        %2079 = vmatprep.subr.bf16.mxu0 0
        %2080 = vmatpush1.bf16.xpose.msra.mxu0 0
        %2081 = vmatprep.mubr.bf16.mxu0 0
        %2082 = vmatmul.mubr.bf16.gmra.mrb[0].mxu0 %v2044
        %v2083 = vpop.f32.mrb[0].mxu0
        %v2084 = vadd.f32 0.0, %v2083
        %v2085 = vpop.f32.mrb[0].mxu0
        %v2086 = vpop.f32.mrb[0].mxu0
        %v2087 = vpop.f32.mrb[0].mxu0
        %2088 = vdwg.mxu0
        %v2089 = vsel %vm1407, %v2084, -inf
        %2090 = vmax.xlane.f32.xlu0 %v2089
        %v2091 = vpop.xlane.xlu0 %2090
        %v2092 = vsub.f32 %v2084, %v2091
        %v2093 = vmul.f32 %v2092, 1.442695
        %v2094 = vpow.pop %v2093
        %v2095 = vsel %vm1407, %v2094, 0.0
        %2096 = vadd.xlane.f32.xlu0 %v2095
        %v2097 = vpop.xlane.xlu0 %2096
        %v2098 = vrcp.pop %v2097
        %v2099 = vmul.f32 %v2094, %v2098
        %v2100 = vpack.c.bf16 %v2099, %v2099
        %2101 = vrot.lane.b32.xlu0 %v1821, 64
        %v2102 = vpop.permute.xlu0 %2101
        %v2104 = vsel %vm1407, %v2100, 0
        %v2107 = vsel %vm1423, %v2102, 0
        %2109 = vmatprep.subr.bf16.mxu0 0
        %2110 = vmatpush1.bf16.msra.mxu0 %v2107
        %2111 = vmatprep.subr.bf16.mxu0 0
        %2112 = vmatpush1.bf16.msra.mxu0 0
        %2113 = vmatprep.subr.bf16.mxu0 0
        %2114 = vmatpush1.bf16.msra.mxu0 0
        %2115 = vmatprep.subr.bf16.mxu0 0
        %2116 = vmatpush1.bf16.msra.mxu0 0
        %2117 = vmatprep.subr.bf16.mxu0 0
        %2118 = vmatpush1.bf16.msra.mxu0 0
        %2119 = vmatprep.subr.bf16.mxu0 0
        %2120 = vmatpush1.bf16.msra.mxu0 0
        %2121 = vmatprep.subr.bf16.mxu0 0
        %2122 = vmatpush1.bf16.msra.mxu0 0
        %2123 = vmatprep.subr.bf16.mxu0 0
        %2124 = vmatpush1.bf16.msra.mxu0 0
        %2125 = vmatprep.subr.bf16.mxu0 0
        %2126 = vmatpush1.bf16.msra.mxu0 0
        %2127 = vmatprep.subr.bf16.mxu0 0
        %2128 = vmatpush1.bf16.msra.mxu0 0
        %2129 = vmatprep.subr.bf16.mxu0 0
        %2130 = vmatpush1.bf16.msra.mxu0 0
        %2131 = vmatprep.subr.bf16.mxu0 0
        %2132 = vmatpush1.bf16.msra.mxu0 0
        %2133 = vmatprep.subr.bf16.mxu0 0
        %2134 = vmatpush1.bf16.msra.mxu0 0
        %2135 = vmatprep.subr.bf16.mxu0 0
        %2136 = vmatpush1.bf16.msra.mxu0 0
        %2137 = vmatprep.subr.bf16.mxu0 0
        %2138 = vmatpush1.bf16.msra.mxu0 0
        %2139 = vmatprep.subr.bf16.mxu0 0
        %2140 = vmatpush1.bf16.msra.mxu0 0
        %2141 = vmatprep.mubr.bf16.mxu0 0
        %2142 = vmatmul.mubr.bf16.gmra.mrb[0].mxu0 %v2104
        %v2143 = vpop.f32.mrb[0].mxu0
        %v2144 = vadd.f32 0.0, %v2143
        %v2145 = vpop.f32.mrb[0].mxu0
        %v2146 = vpop.f32.mrb[0].mxu0
        %v2147 = vpop.f32.mrb[0].mxu0
        %2148 = vdwg.mxu0
        %2149 = vrot.lane.b32.xlu0 %v1819, 32
        %v2150 = vpop.permute.xlu0 %2149
        %2151 = vrot.lane.b32.xlu0 %v1820, 32
        %v2152 = vpop.permute.xlu0 %2151
        %v2154 = vsel %vm1360, %v2150, 0
        %v2157 = vsel %vm1360, %v2152, 0
        %2159 = vmatprep.subr.bf16.mxu0 0
        %2160 = vmatpush1.bf16.xpose.msra.mxu0 %v2157
        %2161 = vmatprep.subr.bf16.mxu0 0
        %2162 = vmatpush1.bf16.xpose.msra.mxu0 0
        %2163 = vmatprep.subr.bf16.mxu0 0
        %2164 = vmatpush1.bf16.xpose.msra.mxu0 0
        %2165 = vmatprep.subr.bf16.mxu0 0
        %2166 = vmatpush1.bf16.xpose.msra.mxu0 0
        %2167 = vmatprep.subr.bf16.mxu0 0
        %2168 = vmatpush1.bf16.xpose.msra.mxu0 0
        %2169 = vmatprep.subr.bf16.mxu0 0
        %2170 = vmatpush1.bf16.xpose.msra.mxu0 0
        %2171 = vmatprep.subr.bf16.mxu0 0
        %2172 = vmatpush1.bf16.xpose.msra.mxu0 0
        %2173 = vmatprep.subr.bf16.mxu0 0
        %2174 = vmatpush1.bf16.xpose.msra.mxu0 0
        %2175 = vmatprep.subr.bf16.mxu0 0
        %2176 = vmatpush1.bf16.xpose.msra.mxu0 0
        %2177 = vmatprep.subr.bf16.mxu0 0
        %2178 = vmatpush1.bf16.xpose.msra.mxu0 0
        %2179 = vmatprep.subr.bf16.mxu0 0
        %2180 = vmatpush1.bf16.xpose.msra.mxu0 0
        %2181 = vmatprep.subr.bf16.mxu0 0
        %2182 = vmatpush1.bf16.xpose.msra.mxu0 0
        %2183 = vmatprep.subr.bf16.mxu0 0
        %2184 = vmatpush1.bf16.xpose.msra.mxu0 0
        %2185 = vmatprep.subr.bf16.mxu0 0
        %2186 = vmatpush1.bf16.xpose.msra.mxu0 0
        %2187 = vmatprep.subr.bf16.mxu0 0
        %2188 = vmatpush1.bf16.xpose.msra.mxu0 0
        %2189 = vmatprep.subr.bf16.mxu0 0
        %2190 = vmatpush1.bf16.xpose.msra.mxu0 0
        %2191 = vmatprep.mubr.bf16.mxu0 0
        %2192 = vmatmul.mubr.bf16.gmra.mrb[0].mxu0 %v2154
        %v2193 = vpop.f32.mrb[0].mxu0
        %v2194 = vadd.f32 0.0, %v2193
        %v2195 = vpop.f32.mrb[0].mxu0
        %v2196 = vpop.f32.mrb[0].mxu0
        %v2197 = vpop.f32.mrb[0].mxu0
        %2198 = vdwg.mxu0
        %v2199 = vsel %vm1407, %v2194, -inf
        %2200 = vmax.xlane.f32.xlu0 %v2199
        %v2201 = vpop.xlane.xlu0 %2200
        %v2202 = vsub.f32 %v2194, %v2201
        %v2203 = vmul.f32 %v2202, 1.442695
        %v2204 = vpow.pop %v2203
        %v2205 = vsel %vm1407, %v2204, 0.0
        %2206 = vadd.xlane.f32.xlu0 %v2205
        %v2207 = vpop.xlane.xlu0 %2206
        %v2208 = vrcp.pop %v2207
        %v2209 = vmul.f32 %v2204, %v2208
        %v2210 = vpack.c.bf16 %v2209, %v2209
        %2211 = vrot.lane.b32.xlu0 %v1821, 32
        %v2212 = vpop.permute.xlu0 %2211
        %v2214 = vsel %vm1407, %v2210, 0
        %v2217 = vsel %vm1423, %v2212, 0
        %2219 = vmatprep.subr.bf16.mxu0 0
        %2220 = vmatpush1.bf16.msra.mxu0 %v2217
        %2221 = vmatprep.subr.bf16.mxu0 0
        %2222 = vmatpush1.bf16.msra.mxu0 0
        %2223 = vmatprep.subr.bf16.mxu0 0
        %2224 = vmatpush1.bf16.msra.mxu0 0
        %2225 = vmatprep.subr.bf16.mxu0 0
        %2226 = vmatpush1.bf16.msra.mxu0 0
        %2227 = vmatprep.subr.bf16.mxu0 0
        %2228 = vmatpush1.bf16.msra.mxu0 0
        %2229 = vmatprep.subr.bf16.mxu0 0
        %2230 = vmatpush1.bf16.msra.mxu0 0
        %2231 = vmatprep.subr.bf16.mxu0 0
        %2232 = vmatpush1.bf16.msra.mxu0 0
        %2233 = vmatprep.subr.bf16.mxu0 0
        %2234 = vmatpush1.bf16.msra.mxu0 0
        %2235 = vmatprep.subr.bf16.mxu0 0
        %2236 = vmatpush1.bf16.msra.mxu0 0
        %2237 = vmatprep.subr.bf16.mxu0 0
        %2238 = vmatpush1.bf16.msra.mxu0 0
        %2239 = vmatprep.subr.bf16.mxu0 0
        %2240 = vmatpush1.bf16.msra.mxu0 0
        %2241 = vmatprep.subr.bf16.mxu0 0
        %2242 = vmatpush1.bf16.msra.mxu0 0
        %2243 = vmatprep.subr.bf16.mxu0 0
        %2244 = vmatpush1.bf16.msra.mxu0 0
        %2245 = vmatprep.subr.bf16.mxu0 0
        %2246 = vmatpush1.bf16.msra.mxu0 0
        %2247 = vmatprep.subr.bf16.mxu0 0
        %2248 = vmatpush1.bf16.msra.mxu0 0
        %2249 = vmatprep.subr.bf16.mxu0 0
        %2250 = vmatpush1.bf16.msra.mxu0 0
        %2251 = vmatprep.mubr.bf16.mxu0 0
        %2252 = vmatmul.mubr.bf16.gmra.mrb[0].mxu0 %v2214
        %v2253 = vpop.f32.mrb[0].mxu0
        %v2254 = vadd.f32 0.0, %v2253
        %v2255 = vpop.f32.mrb[0].mxu0
        %v2256 = vpop.f32.mrb[0].mxu0
        %v2257 = vpop.f32.mrb[0].mxu0
        %2258 = vdwg.mxu0
        %2260 = vrot.lane.b32.xlu0 %v2034, 32
        %v2261 = vpop.permute.xlu0 %2260
        %2264 = vrot.lane.b32.xlu0 %v2144, 64
        %v2265 = vpop.permute.xlu0 %2264
        %2268 = vrot.lane.b32.xlu0 %v2254, 96
        %v2269 = vpop.permute.xlu0 %2268
        %v2271 = vsel %vm1360, %v1921, %v2261
        %v2272 = vsel %vm1813, %v2271, %v2265
        %v2273 = vsel %vm1815, %v2272, %v2269
        %v2274 = vpack.c.bf16 %v2273, %v2273
        %2275 = vst [vmem:[#allocation4 + $0x8] sm:$0xf] %v2274
        %v2276 = vld [vmem:[#allocation3] sm:$0xf0]
        %v2277 = vld [vmem:[#allocation3 + $0x10] sm:$0xf0]
        %v2278 = vld [vmem:[#allocation3 + $0x20] sm:$0xf0]
        %v2280 = vrot.slane %v2276, 4
        %v2282 = vrot.slane %v2277, 4
        %v2284 = vsel %vm1360, %v2280, 0
        %v2287 = vsel %vm1360, %v2282, 0
        %2289 = vmatprep.subr.bf16.mxu0 0
        %2290 = vmatpush1.bf16.xpose.msra.mxu0 %v2287
        %2291 = vmatprep.subr.bf16.mxu0 0
        %2292 = vmatpush1.bf16.xpose.msra.mxu0 0
        %2293 = vmatprep.subr.bf16.mxu0 0
        %2294 = vmatpush1.bf16.xpose.msra.mxu0 0
        %2295 = vmatprep.subr.bf16.mxu0 0
        %2296 = vmatpush1.bf16.xpose.msra.mxu0 0
        %2297 = vmatprep.subr.bf16.mxu0 0
        %2298 = vmatpush1.bf16.xpose.msra.mxu0 0
        %2299 = vmatprep.subr.bf16.mxu0 0
        %2300 = vmatpush1.bf16.xpose.msra.mxu0 0
        %2301 = vmatprep.subr.bf16.mxu0 0
        %2302 = vmatpush1.bf16.xpose.msra.mxu0 0
        %2303 = vmatprep.subr.bf16.mxu0 0
        %2304 = vmatpush1.bf16.xpose.msra.mxu0 0
        %2305 = vmatprep.subr.bf16.mxu0 0
        %2306 = vmatpush1.bf16.xpose.msra.mxu0 0
        %2307 = vmatprep.subr.bf16.mxu0 0
        %2308 = vmatpush1.bf16.xpose.msra.mxu0 0
        %2309 = vmatprep.subr.bf16.mxu0 0
        %2310 = vmatpush1.bf16.xpose.msra.mxu0 0
        %2311 = vmatprep.subr.bf16.mxu0 0
        %2312 = vmatpush1.bf16.xpose.msra.mxu0 0
        %2313 = vmatprep.subr.bf16.mxu0 0
        %2314 = vmatpush1.bf16.xpose.msra.mxu0 0
        %2315 = vmatprep.subr.bf16.mxu0 0
        %2316 = vmatpush1.bf16.xpose.msra.mxu0 0
        %2317 = vmatprep.subr.bf16.mxu0 0
        %2318 = vmatpush1.bf16.xpose.msra.mxu0 0
        %2319 = vmatprep.subr.bf16.mxu0 0
        %2320 = vmatpush1.bf16.xpose.msra.mxu0 0
        %2321 = vmatprep.mubr.bf16.mxu0 0
        %2322 = vmatmul.mubr.bf16.gmra.mrb[0].mxu0 %v2284
        %v2323 = vpop.f32.mrb[0].mxu0
        %v2324 = vadd.f32 0.0, %v2323
        %v2325 = vpop.f32.mrb[0].mxu0
        %v2326 = vpop.f32.mrb[0].mxu0
        %v2327 = vpop.f32.mrb[0].mxu0
        %2328 = vdwg.mxu0
        %v2329 = vsel %vm1407, %v2324, -inf
        %2330 = vmax.xlane.f32.xlu0 %v2329
        %v2331 = vpop.xlane.xlu0 %2330
        %v2332 = vsub.f32 %v2324, %v2331
        %v2333 = vmul.f32 %v2332, 1.442695
        %v2334 = vpow.pop %v2333
        %v2335 = vsel %vm1407, %v2334, 0.0
        %2336 = vadd.xlane.f32.xlu0 %v2335
        %v2337 = vpop.xlane.xlu0 %2336
        %v2338 = vrcp.pop %v2337
        %v2339 = vmul.f32 %v2334, %v2338
        %v2340 = vpack.c.bf16 %v2339, %v2339
        %v2342 = vrot.slane %v2278, 4
        %v2344 = vsel %vm1407, %v2340, 0
        %v2347 = vsel %vm1423, %v2342, 0
        %2349 = vmatprep.subr.bf16.mxu0 0
        %2350 = vmatpush1.bf16.msra.mxu0 %v2347
        %2351 = vmatprep.subr.bf16.mxu0 0
        %2352 = vmatpush1.bf16.msra.mxu0 0
        %2353 = vmatprep.subr.bf16.mxu0 0
        %2354 = vmatpush1.bf16.msra.mxu0 0
        %2355 = vmatprep.subr.bf16.mxu0 0
        %2356 = vmatpush1.bf16.msra.mxu0 0
        %2357 = vmatprep.subr.bf16.mxu0 0
        %2358 = vmatpush1.bf16.msra.mxu0 0
        %2359 = vmatprep.subr.bf16.mxu0 0
        %2360 = vmatpush1.bf16.msra.mxu0 0
        %2361 = vmatprep.subr.bf16.mxu0 0
        %2362 = vmatpush1.bf16.msra.mxu0 0
        %2363 = vmatprep.subr.bf16.mxu0 0
        %2364 = vmatpush1.bf16.msra.mxu0 0
        %2365 = vmatprep.subr.bf16.mxu0 0
        %2366 = vmatpush1.bf16.msra.mxu0 0
        %2367 = vmatprep.subr.bf16.mxu0 0
        %2368 = vmatpush1.bf16.msra.mxu0 0
        %2369 = vmatprep.subr.bf16.mxu0 0
        %2370 = vmatpush1.bf16.msra.mxu0 0
        %2371 = vmatprep.subr.bf16.mxu0 0
        %2372 = vmatpush1.bf16.msra.mxu0 0
        %2373 = vmatprep.subr.bf16.mxu0 0
        %2374 = vmatpush1.bf16.msra.mxu0 0
        %2375 = vmatprep.subr.bf16.mxu0 0
        %2376 = vmatpush1.bf16.msra.mxu0 0
        %2377 = vmatprep.subr.bf16.mxu0 0
        %2378 = vmatpush1.bf16.msra.mxu0 0
        %2379 = vmatprep.subr.bf16.mxu0 0
        %2380 = vmatpush1.bf16.msra.mxu0 0
        %2381 = vmatprep.mubr.bf16.mxu0 0
        %2382 = vmatmul.mubr.bf16.gmra.mrb[0].mxu0 %v2344
        %v2383 = vpop.f32.mrb[0].mxu0
        %v2384 = vadd.f32 0.0, %v2383
        %v2385 = vpop.f32.mrb[0].mxu0
        %v2386 = vpop.f32.mrb[0].mxu0
        %v2387 = vpop.f32.mrb[0].mxu0
        %2388 = vdwg.mxu0
        %2389 = vrot.lane.b32.xlu0 %v2280, 96
        %v2390 = vpop.permute.xlu0 %2389
        %2391 = vrot.lane.b32.xlu0 %v2282, 96
        %v2392 = vpop.permute.xlu0 %2391
        %v2394 = vsel %vm1360, %v2390, 0
        %v2397 = vsel %vm1360, %v2392, 0
        %2399 = vmatprep.subr.bf16.mxu0 0
        %2400 = vmatpush1.bf16.xpose.msra.mxu0 %v2397
        %2401 = vmatprep.subr.bf16.mxu0 0
        %2402 = vmatpush1.bf16.xpose.msra.mxu0 0
        %2403 = vmatprep.subr.bf16.mxu0 0
        %2404 = vmatpush1.bf16.xpose.msra.mxu0 0
        %2405 = vmatprep.subr.bf16.mxu0 0
        %2406 = vmatpush1.bf16.xpose.msra.mxu0 0
        %2407 = vmatprep.subr.bf16.mxu0 0
        %2408 = vmatpush1.bf16.xpose.msra.mxu0 0
        %2409 = vmatprep.subr.bf16.mxu0 0
        %2410 = vmatpush1.bf16.xpose.msra.mxu0 0
        %2411 = vmatprep.subr.bf16.mxu0 0
        %2412 = vmatpush1.bf16.xpose.msra.mxu0 0
        %2413 = vmatprep.subr.bf16.mxu0 0
        %2414 = vmatpush1.bf16.xpose.msra.mxu0 0
        %2415 = vmatprep.subr.bf16.mxu0 0
        %2416 = vmatpush1.bf16.xpose.msra.mxu0 0
        %2417 = vmatprep.subr.bf16.mxu0 0
        %2418 = vmatpush1.bf16.xpose.msra.mxu0 0
        %2419 = vmatprep.subr.bf16.mxu0 0
        %2420 = vmatpush1.bf16.xpose.msra.mxu0 0
        %2421 = vmatprep.subr.bf16.mxu0 0
        %2422 = vmatpush1.bf16.xpose.msra.mxu0 0
        %2423 = vmatprep.subr.bf16.mxu0 0
        %2424 = vmatpush1.bf16.xpose.msra.mxu0 0
        %2425 = vmatprep.subr.bf16.mxu0 0
        %2426 = vmatpush1.bf16.xpose.msra.mxu0 0
        %2427 = vmatprep.subr.bf16.mxu0 0
        %2428 = vmatpush1.bf16.xpose.msra.mxu0 0
        %2429 = vmatprep.subr.bf16.mxu0 0
        %2430 = vmatpush1.bf16.xpose.msra.mxu0 0
        %2431 = vmatprep.mubr.bf16.mxu0 0
        %2432 = vmatmul.mubr.bf16.gmra.mrb[0].mxu0 %v2394
        %v2433 = vpop.f32.mrb[0].mxu0
        %v2434 = vadd.f32 0.0, %v2433
        %v2435 = vpop.f32.mrb[0].mxu0
        %v2436 = vpop.f32.mrb[0].mxu0
        %v2437 = vpop.f32.mrb[0].mxu0
        %2438 = vdwg.mxu0
        %v2439 = vsel %vm1407, %v2434, -inf
        %2440 = vmax.xlane.f32.xlu0 %v2439
        %v2441 = vpop.xlane.xlu0 %2440
        %v2442 = vsub.f32 %v2434, %v2441
        %v2443 = vmul.f32 %v2442, 1.442695
        %v2444 = vpow.pop %v2443
        %v2445 = vsel %vm1407, %v2444, 0.0
        %2446 = vadd.xlane.f32.xlu0 %v2445
        %v2447 = vpop.xlane.xlu0 %2446
        %v2448 = vrcp.pop %v2447
        %v2449 = vmul.f32 %v2444, %v2448
        %v2450 = vpack.c.bf16 %v2449, %v2449
        %2451 = vrot.lane.b32.xlu0 %v2342, 96
        %v2452 = vpop.permute.xlu0 %2451
        %v2454 = vsel %vm1407, %v2450, 0
        %v2457 = vsel %vm1423, %v2452, 0
        %2459 = vmatprep.subr.bf16.mxu0 0
        %2460 = vmatpush1.bf16.msra.mxu0 %v2457
        %2461 = vmatprep.subr.bf16.mxu0 0
        %2462 = vmatpush1.bf16.msra.mxu0 0
        %2463 = vmatprep.subr.bf16.mxu0 0
        %2464 = vmatpush1.bf16.msra.mxu0 0
        %2465 = vmatprep.subr.bf16.mxu0 0
        %2466 = vmatpush1.bf16.msra.mxu0 0
        %2467 = vmatprep.subr.bf16.mxu0 0
        %2468 = vmatpush1.bf16.msra.mxu0 0
        %2469 = vmatprep.subr.bf16.mxu0 0
        %2470 = vmatpush1.bf16.msra.mxu0 0
        %2471 = vmatprep.subr.bf16.mxu0 0
        %2472 = vmatpush1.bf16.msra.mxu0 0
        %2473 = vmatprep.subr.bf16.mxu0 0
        %2474 = vmatpush1.bf16.msra.mxu0 0
        %2475 = vmatprep.subr.bf16.mxu0 0
        %2476 = vmatpush1.bf16.msra.mxu0 0
        %2477 = vmatprep.subr.bf16.mxu0 0
        %2478 = vmatpush1.bf16.msra.mxu0 0
        %2479 = vmatprep.subr.bf16.mxu0 0
        %2480 = vmatpush1.bf16.msra.mxu0 0
        %2481 = vmatprep.subr.bf16.mxu0 0
        %2482 = vmatpush1.bf16.msra.mxu0 0
        %2483 = vmatprep.subr.bf16.mxu0 0
        %2484 = vmatpush1.bf16.msra.mxu0 0
        %2485 = vmatprep.subr.bf16.mxu0 0
        %2486 = vmatpush1.bf16.msra.mxu0 0
        %2487 = vmatprep.subr.bf16.mxu0 0
        %2488 = vmatpush1.bf16.msra.mxu0 0
        %2489 = vmatprep.subr.bf16.mxu0 0
        %2490 = vmatpush1.bf16.msra.mxu0 0
        %2491 = vmatprep.mubr.bf16.mxu0 0
        %2492 = vmatmul.mubr.bf16.gmra.mrb[0].mxu0 %v2454
        %v2493 = vpop.f32.mrb[0].mxu0
        %v2494 = vadd.f32 0.0, %v2493
        %v2495 = vpop.f32.mrb[0].mxu0
        %v2496 = vpop.f32.mrb[0].mxu0
        %v2497 = vpop.f32.mrb[0].mxu0
        %2498 = vdwg.mxu0
        %2499 = vrot.lane.b32.xlu0 %v2280, 64
        %v2500 = vpop.permute.xlu0 %2499
        %2501 = vrot.lane.b32.xlu0 %v2282, 64
        %v2502 = vpop.permute.xlu0 %2501
        %v2504 = vsel %vm1360, %v2500, 0
        %v2507 = vsel %vm1360, %v2502, 0
        %2509 = vmatprep.subr.bf16.mxu0 0
        %2510 = vmatpush1.bf16.xpose.msra.mxu0 %v2507
        %2511 = vmatprep.subr.bf16.mxu0 0
        %2512 = vmatpush1.bf16.xpose.msra.mxu0 0
        %2513 = vmatprep.subr.bf16.mxu0 0
        %2514 = vmatpush1.bf16.xpose.msra.mxu0 0
        %2515 = vmatprep.subr.bf16.mxu0 0
        %2516 = vmatpush1.bf16.xpose.msra.mxu0 0
        %2517 = vmatprep.subr.bf16.mxu0 0
        %2518 = vmatpush1.bf16.xpose.msra.mxu0 0
        %2519 = vmatprep.subr.bf16.mxu0 0
        %2520 = vmatpush1.bf16.xpose.msra.mxu0 0
        %2521 = vmatprep.subr.bf16.mxu0 0
        %2522 = vmatpush1.bf16.xpose.msra.mxu0 0
        %2523 = vmatprep.subr.bf16.mxu0 0
        %2524 = vmatpush1.bf16.xpose.msra.mxu0 0
        %2525 = vmatprep.subr.bf16.mxu0 0
        %2526 = vmatpush1.bf16.xpose.msra.mxu0 0
        %2527 = vmatprep.subr.bf16.mxu0 0
        %2528 = vmatpush1.bf16.xpose.msra.mxu0 0
        %2529 = vmatprep.subr.bf16.mxu0 0
        %2530 = vmatpush1.bf16.xpose.msra.mxu0 0
        %2531 = vmatprep.subr.bf16.mxu0 0
        %2532 = vmatpush1.bf16.xpose.msra.mxu0 0
        %2533 = vmatprep.subr.bf16.mxu0 0
        %2534 = vmatpush1.bf16.xpose.msra.mxu0 0
        %2535 = vmatprep.subr.bf16.mxu0 0
        %2536 = vmatpush1.bf16.xpose.msra.mxu0 0
        %2537 = vmatprep.subr.bf16.mxu0 0
        %2538 = vmatpush1.bf16.xpose.msra.mxu0 0
        %2539 = vmatprep.subr.bf16.mxu0 0
        %2540 = vmatpush1.bf16.xpose.msra.mxu0 0
        %2541 = vmatprep.mubr.bf16.mxu0 0
        %2542 = vmatmul.mubr.bf16.gmra.mrb[0].mxu0 %v2504
        %v2543 = vpop.f32.mrb[0].mxu0
        %v2544 = vadd.f32 0.0, %v2543
        %v2545 = vpop.f32.mrb[0].mxu0
        %v2546 = vpop.f32.mrb[0].mxu0
        %v2547 = vpop.f32.mrb[0].mxu0
        %2548 = vdwg.mxu0
        %v2549 = vsel %vm1407, %v2544, -inf
        %2550 = vmax.xlane.f32.xlu0 %v2549
        %v2551 = vpop.xlane.xlu0 %2550
        %v2552 = vsub.f32 %v2544, %v2551
        %v2553 = vmul.f32 %v2552, 1.442695
        %v2554 = vpow.pop %v2553
        %v2555 = vsel %vm1407, %v2554, 0.0
        %2556 = vadd.xlane.f32.xlu0 %v2555
        %v2557 = vpop.xlane.xlu0 %2556
        %v2558 = vrcp.pop %v2557
        %v2559 = vmul.f32 %v2554, %v2558
        %v2560 = vpack.c.bf16 %v2559, %v2559
        %2561 = vrot.lane.b32.xlu0 %v2342, 64
        %v2562 = vpop.permute.xlu0 %2561
        %v2564 = vsel %vm1407, %v2560, 0
        %v2567 = vsel %vm1423, %v2562, 0
        %2569 = vmatprep.subr.bf16.mxu0 0
        %2570 = vmatpush1.bf16.msra.mxu0 %v2567
        %2571 = vmatprep.subr.bf16.mxu0 0
        %2572 = vmatpush1.bf16.msra.mxu0 0
        %2573 = vmatprep.subr.bf16.mxu0 0
        %2574 = vmatpush1.bf16.msra.mxu0 0
        %2575 = vmatprep.subr.bf16.mxu0 0
        %2576 = vmatpush1.bf16.msra.mxu0 0
        %2577 = vmatprep.subr.bf16.mxu0 0
        %2578 = vmatpush1.bf16.msra.mxu0 0
        %2579 = vmatprep.subr.bf16.mxu0 0
        %2580 = vmatpush1.bf16.msra.mxu0 0
        %2581 = vmatprep.subr.bf16.mxu0 0
        %2582 = vmatpush1.bf16.msra.mxu0 0
        %2583 = vmatprep.subr.bf16.mxu0 0
        %2584 = vmatpush1.bf16.msra.mxu0 0
        %2585 = vmatprep.subr.bf16.mxu0 0
        %2586 = vmatpush1.bf16.msra.mxu0 0
        %2587 = vmatprep.subr.bf16.mxu0 0
        %2588 = vmatpush1.bf16.msra.mxu0 0
        %2589 = vmatprep.subr.bf16.mxu0 0
        %2590 = vmatpush1.bf16.msra.mxu0 0
        %2591 = vmatprep.subr.bf16.mxu0 0
        %2592 = vmatpush1.bf16.msra.mxu0 0
        %2593 = vmatprep.subr.bf16.mxu0 0
        %2594 = vmatpush1.bf16.msra.mxu0 0
        %2595 = vmatprep.subr.bf16.mxu0 0
        %2596 = vmatpush1.bf16.msra.mxu0 0
        %2597 = vmatprep.subr.bf16.mxu0 0
        %2598 = vmatpush1.bf16.msra.mxu0 0
        %2599 = vmatprep.subr.bf16.mxu0 0
        %2600 = vmatpush1.bf16.msra.mxu0 0
        %2601 = vmatprep.mubr.bf16.mxu0 0
        %2602 = vmatmul.mubr.bf16.gmra.mrb[0].mxu0 %v2564
        %v2603 = vpop.f32.mrb[0].mxu0
        %v2604 = vadd.f32 0.0, %v2603
        %v2605 = vpop.f32.mrb[0].mxu0
        %v2606 = vpop.f32.mrb[0].mxu0
        %v2607 = vpop.f32.mrb[0].mxu0
        %2608 = vdwg.mxu0
        %2609 = vrot.lane.b32.xlu0 %v2280, 32
        %v2610 = vpop.permute.xlu0 %2609
        %2611 = vrot.lane.b32.xlu0 %v2282, 32
        %v2612 = vpop.permute.xlu0 %2611
        %v2614 = vsel %vm1360, %v2610, 0
        %v2617 = vsel %vm1360, %v2612, 0
        %2619 = vmatprep.subr.bf16.mxu0 0
        %2620 = vmatpush1.bf16.xpose.msra.mxu0 %v2617
        %2621 = vmatprep.subr.bf16.mxu0 0
        %2622 = vmatpush1.bf16.xpose.msra.mxu0 0
        %2623 = vmatprep.subr.bf16.mxu0 0
        %2624 = vmatpush1.bf16.xpose.msra.mxu0 0
        %2625 = vmatprep.subr.bf16.mxu0 0
        %2626 = vmatpush1.bf16.xpose.msra.mxu0 0
        %2627 = vmatprep.subr.bf16.mxu0 0
        %2628 = vmatpush1.bf16.xpose.msra.mxu0 0
        %2629 = vmatprep.subr.bf16.mxu0 0
        %2630 = vmatpush1.bf16.xpose.msra.mxu0 0
        %2631 = vmatprep.subr.bf16.mxu0 0
        %2632 = vmatpush1.bf16.xpose.msra.mxu0 0
        %2633 = vmatprep.subr.bf16.mxu0 0
        %2634 = vmatpush1.bf16.xpose.msra.mxu0 0
        %2635 = vmatprep.subr.bf16.mxu0 0
        %2636 = vmatpush1.bf16.xpose.msra.mxu0 0
        %2637 = vmatprep.subr.bf16.mxu0 0
        %2638 = vmatpush1.bf16.xpose.msra.mxu0 0
        %2639 = vmatprep.subr.bf16.mxu0 0
        %2640 = vmatpush1.bf16.xpose.msra.mxu0 0
        %2641 = vmatprep.subr.bf16.mxu0 0
        %2642 = vmatpush1.bf16.xpose.msra.mxu0 0
        %2643 = vmatprep.subr.bf16.mxu0 0
        %2644 = vmatpush1.bf16.xpose.msra.mxu0 0
        %2645 = vmatprep.subr.bf16.mxu0 0
        %2646 = vmatpush1.bf16.xpose.msra.mxu0 0
        %2647 = vmatprep.subr.bf16.mxu0 0
        %2648 = vmatpush1.bf16.xpose.msra.mxu0 0
        %2649 = vmatprep.subr.bf16.mxu0 0
        %2650 = vmatpush1.bf16.xpose.msra.mxu0 0
        %2651 = vmatprep.mubr.bf16.mxu0 0
        %2652 = vmatmul.mubr.bf16.gmra.mrb[0].mxu0 %v2614
        %v2653 = vpop.f32.mrb[0].mxu0
        %v2654 = vadd.f32 0.0, %v2653
        %v2655 = vpop.f32.mrb[0].mxu0
        %v2656 = vpop.f32.mrb[0].mxu0
        %v2657 = vpop.f32.mrb[0].mxu0
        %2658 = vdwg.mxu0
        %v2659 = vsel %vm1407, %v2654, -inf
        %2660 = vmax.xlane.f32.xlu0 %v2659
        %v2661 = vpop.xlane.xlu0 %2660
        %v2662 = vsub.f32 %v2654, %v2661
        %v2663 = vmul.f32 %v2662, 1.442695
        %v2664 = vpow.pop %v2663
        %v2665 = vsel %vm1407, %v2664, 0.0
        %2666 = vadd.xlane.f32.xlu0 %v2665
        %v2667 = vpop.xlane.xlu0 %2666
        %v2668 = vrcp.pop %v2667
        %v2669 = vmul.f32 %v2664, %v2668
        %v2670 = vpack.c.bf16 %v2669, %v2669
        %2671 = vrot.lane.b32.xlu0 %v2342, 32
        %v2672 = vpop.permute.xlu0 %2671
        %v2674 = vsel %vm1407, %v2670, 0
        %v2677 = vsel %vm1423, %v2672, 0
        %2679 = vmatprep.subr.bf16.mxu0 0
        %2680 = vmatpush1.bf16.msra.mxu0 %v2677
        %2681 = vmatprep.subr.bf16.mxu0 0
        %2682 = vmatpush1.bf16.msra.mxu0 0
        %2683 = vmatprep.subr.bf16.mxu0 0
        %2684 = vmatpush1.bf16.msra.mxu0 0
        %2685 = vmatprep.subr.bf16.mxu0 0
        %2686 = vmatpush1.bf16.msra.mxu0 0
        %2687 = vmatprep.subr.bf16.mxu0 0
        %2688 = vmatpush1.bf16.msra.mxu0 0
        %2689 = vmatprep.subr.bf16.mxu0 0
        %2690 = vmatpush1.bf16.msra.mxu0 0
        %2691 = vmatprep.subr.bf16.mxu0 0
        %2692 = vmatpush1.bf16.msra.mxu0 0
        %2693 = vmatprep.subr.bf16.mxu0 0
        %2694 = vmatpush1.bf16.msra.mxu0 0
        %2695 = vmatprep.subr.bf16.mxu0 0
        %2696 = vmatpush1.bf16.msra.mxu0 0
        %2697 = vmatprep.subr.bf16.mxu0 0
        %2698 = vmatpush1.bf16.msra.mxu0 0
        %2699 = vmatprep.subr.bf16.mxu0 0
        %2700 = vmatpush1.bf16.msra.mxu0 0
        %2701 = vmatprep.subr.bf16.mxu0 0
        %2702 = vmatpush1.bf16.msra.mxu0 0
        %2703 = vmatprep.subr.bf16.mxu0 0
        %2704 = vmatpush1.bf16.msra.mxu0 0
        %2705 = vmatprep.subr.bf16.mxu0 0
        %2706 = vmatpush1.bf16.msra.mxu0 0
        %2707 = vmatprep.subr.bf16.mxu0 0
        %2708 = vmatpush1.bf16.msra.mxu0 0
        %2709 = vmatprep.subr.bf16.mxu0 0
        %2710 = vmatpush1.bf16.msra.mxu0 0
        %2711 = vmatprep.mubr.bf16.mxu0 0
        %2712 = vmatmul.mubr.bf16.gmra.mrb[0].mxu0 %v2674
        %v2713 = vpop.f32.mrb[0].mxu0
        %v2714 = vadd.f32 0.0, %v2713
        %v2715 = vpop.f32.mrb[0].mxu0
        %v2716 = vpop.f32.mrb[0].mxu0
        %v2717 = vpop.f32.mrb[0].mxu0
        %2718 = vdwg.mxu0
        %2720 = vrot.lane.b32.xlu0 %v2494, 32
        %v2721 = vpop.permute.xlu0 %2720
        %2724 = vrot.lane.b32.xlu0 %v2604, 64
        %v2725 = vpop.permute.xlu0 %2724
        %2728 = vrot.lane.b32.xlu0 %v2714, 96
        %v2729 = vpop.permute.xlu0 %2728
        %v2731 = vsel %vm1360, %v2384, %v2721
        %v2732 = vsel %vm1813, %v2731, %v2725
        %v2733 = vsel %vm1815, %v2732, %v2729
        %v2734 = vpack.c.bf16 %v2733, %v2733
        %v2736 = vrot.slane %v2734, 4
        %2738 = vst [vmem:[#allocation4] sm:$0xf0] %v2736
        %v2739 = vld [vmem:[#allocation3 + $0x8] sm:$0xf0]
        %v2740 = vld [vmem:[#allocation3 + $0x18] sm:$0xf0]
        %v2741 = vld [vmem:[#allocation3 + $0x28] sm:$0xf0]
        %v2743 = vrot.slane %v2739, 4
        %v2745 = vrot.slane %v2740, 4
        %v2747 = vsel %vm1360, %v2743, 0
        %v2750 = vsel %vm1360, %v2745, 0
        %2752 = vmatprep.subr.bf16.mxu0 0
        %2753 = vmatpush1.bf16.xpose.msra.mxu0 %v2750
        %2754 = vmatprep.subr.bf16.mxu0 0
        %2755 = vmatpush1.bf16.xpose.msra.mxu0 0
        %2756 = vmatprep.subr.bf16.mxu0 0
        %2757 = vmatpush1.bf16.xpose.msra.mxu0 0
        %2758 = vmatprep.subr.bf16.mxu0 0
        %2759 = vmatpush1.bf16.xpose.msra.mxu0 0
        %2760 = vmatprep.subr.bf16.mxu0 0
        %2761 = vmatpush1.bf16.xpose.msra.mxu0 0
        %2762 = vmatprep.subr.bf16.mxu0 0
        %2763 = vmatpush1.bf16.xpose.msra.mxu0 0
        %2764 = vmatprep.subr.bf16.mxu0 0
        %2765 = vmatpush1.bf16.xpose.msra.mxu0 0
        %2766 = vmatprep.subr.bf16.mxu0 0
        %2767 = vmatpush1.bf16.xpose.msra.mxu0 0
        %2768 = vmatprep.subr.bf16.mxu0 0
        %2769 = vmatpush1.bf16.xpose.msra.mxu0 0
        %2770 = vmatprep.subr.bf16.mxu0 0
        %2771 = vmatpush1.bf16.xpose.msra.mxu0 0
        %2772 = vmatprep.subr.bf16.mxu0 0
        %2773 = vmatpush1.bf16.xpose.msra.mxu0 0
        %2774 = vmatprep.subr.bf16.mxu0 0
        %2775 = vmatpush1.bf16.xpose.msra.mxu0 0
        %2776 = vmatprep.subr.bf16.mxu0 0
        %2777 = vmatpush1.bf16.xpose.msra.mxu0 0
        %2778 = vmatprep.subr.bf16.mxu0 0
        %2779 = vmatpush1.bf16.xpose.msra.mxu0 0
        %2780 = vmatprep.subr.bf16.mxu0 0
        %2781 = vmatpush1.bf16.xpose.msra.mxu0 0
        %2782 = vmatprep.subr.bf16.mxu0 0
        %2783 = vmatpush1.bf16.xpose.msra.mxu0 0
        %2784 = vmatprep.mubr.bf16.mxu0 0
        %2785 = vmatmul.mubr.bf16.gmra.mrb[0].mxu0 %v2747
        %v2786 = vpop.f32.mrb[0].mxu0
        %v2787 = vadd.f32 0.0, %v2786
        %v2788 = vpop.f32.mrb[0].mxu0
        %v2789 = vpop.f32.mrb[0].mxu0
        %v2790 = vpop.f32.mrb[0].mxu0
        %2791 = vdwg.mxu0
        %v2792 = vsel %vm1407, %v2787, -inf
        %2793 = vmax.xlane.f32.xlu0 %v2792
        %v2794 = vpop.xlane.xlu0 %2793
        %v2795 = vsub.f32 %v2787, %v2794
        %v2796 = vmul.f32 %v2795, 1.442695
        %v2797 = vpow.pop %v2796
        %v2798 = vsel %vm1407, %v2797, 0.0
        %2799 = vadd.xlane.f32.xlu0 %v2798
        %v2800 = vpop.xlane.xlu0 %2799
        %v2801 = vrcp.pop %v2800
        %v2802 = vmul.f32 %v2797, %v2801
        %v2803 = vpack.c.bf16 %v2802, %v2802
        %v2805 = vrot.slane %v2741, 4
        %v2807 = vsel %vm1407, %v2803, 0
        %v2810 = vsel %vm1423, %v2805, 0
        %2812 = vmatprep.subr.bf16.mxu0 0
        %2813 = vmatpush1.bf16.msra.mxu0 %v2810
        %2814 = vmatprep.subr.bf16.mxu0 0
        %2815 = vmatpush1.bf16.msra.mxu0 0
        %2816 = vmatprep.subr.bf16.mxu0 0
        %2817 = vmatpush1.bf16.msra.mxu0 0
        %2818 = vmatprep.subr.bf16.mxu0 0
        %2819 = vmatpush1.bf16.msra.mxu0 0
        %2820 = vmatprep.subr.bf16.mxu0 0
        %2821 = vmatpush1.bf16.msra.mxu0 0
        %2822 = vmatprep.subr.bf16.mxu0 0
        %2823 = vmatpush1.bf16.msra.mxu0 0
        %2824 = vmatprep.subr.bf16.mxu0 0
        %2825 = vmatpush1.bf16.msra.mxu0 0
        %2826 = vmatprep.subr.bf16.mxu0 0
        %2827 = vmatpush1.bf16.msra.mxu0 0
        %2828 = vmatprep.subr.bf16.mxu0 0
        %2829 = vmatpush1.bf16.msra.mxu0 0
        %2830 = vmatprep.subr.bf16.mxu0 0
        %2831 = vmatpush1.bf16.msra.mxu0 0
        %2832 = vmatprep.subr.bf16.mxu0 0
        %2833 = vmatpush1.bf16.msra.mxu0 0
        %2834 = vmatprep.subr.bf16.mxu0 0
        %2835 = vmatpush1.bf16.msra.mxu0 0
        %2836 = vmatprep.subr.bf16.mxu0 0
        %2837 = vmatpush1.bf16.msra.mxu0 0
        %2838 = vmatprep.subr.bf16.mxu0 0
        %2839 = vmatpush1.bf16.msra.mxu0 0
        %2840 = vmatprep.subr.bf16.mxu0 0
        %2841 = vmatpush1.bf16.msra.mxu0 0
        %2842 = vmatprep.subr.bf16.mxu0 0
        %2843 = vmatpush1.bf16.msra.mxu0 0
        %2844 = vmatprep.mubr.bf16.mxu0 0
        %2845 = vmatmul.mubr.bf16.gmra.mrb[0].mxu0 %v2807
        %v2846 = vpop.f32.mrb[0].mxu0
        %v2847 = vadd.f32 0.0, %v2846
        %v2848 = vpop.f32.mrb[0].mxu0
        %v2849 = vpop.f32.mrb[0].mxu0
        %v2850 = vpop.f32.mrb[0].mxu0
        %2851 = vdwg.mxu0
        %2852 = vrot.lane.b32.xlu0 %v2743, 96
        %v2853 = vpop.permute.xlu0 %2852
        %2854 = vrot.lane.b32.xlu0 %v2745, 96
        %v2855 = vpop.permute.xlu0 %2854
        %v2857 = vsel %vm1360, %v2853, 0
        %v2860 = vsel %vm1360, %v2855, 0
        %2862 = vmatprep.subr.bf16.mxu0 0
        %2863 = vmatpush1.bf16.xpose.msra.mxu0 %v2860
        %2864 = vmatprep.subr.bf16.mxu0 0
        %2865 = vmatpush1.bf16.xpose.msra.mxu0 0
        %2866 = vmatprep.subr.bf16.mxu0 0
        %2867 = vmatpush1.bf16.xpose.msra.mxu0 0
        %2868 = vmatprep.subr.bf16.mxu0 0
        %2869 = vmatpush1.bf16.xpose.msra.mxu0 0
        %2870 = vmatprep.subr.bf16.mxu0 0
        %2871 = vmatpush1.bf16.xpose.msra.mxu0 0
        %2872 = vmatprep.subr.bf16.mxu0 0
        %2873 = vmatpush1.bf16.xpose.msra.mxu0 0
        %2874 = vmatprep.subr.bf16.mxu0 0
        %2875 = vmatpush1.bf16.xpose.msra.mxu0 0
        %2876 = vmatprep.subr.bf16.mxu0 0
        %2877 = vmatpush1.bf16.xpose.msra.mxu0 0
        %2878 = vmatprep.subr.bf16.mxu0 0
        %2879 = vmatpush1.bf16.xpose.msra.mxu0 0
        %2880 = vmatprep.subr.bf16.mxu0 0
        %2881 = vmatpush1.bf16.xpose.msra.mxu0 0
        %2882 = vmatprep.subr.bf16.mxu0 0
        %2883 = vmatpush1.bf16.xpose.msra.mxu0 0
        %2884 = vmatprep.subr.bf16.mxu0 0
        %2885 = vmatpush1.bf16.xpose.msra.mxu0 0
        %2886 = vmatprep.subr.bf16.mxu0 0
        %2887 = vmatpush1.bf16.xpose.msra.mxu0 0
        %2888 = vmatprep.subr.bf16.mxu0 0
        %2889 = vmatpush1.bf16.xpose.msra.mxu0 0
        %2890 = vmatprep.subr.bf16.mxu0 0
        %2891 = vmatpush1.bf16.xpose.msra.mxu0 0
        %2892 = vmatprep.subr.bf16.mxu0 0
        %2893 = vmatpush1.bf16.xpose.msra.mxu0 0
        %2894 = vmatprep.mubr.bf16.mxu0 0
        %2895 = vmatmul.mubr.bf16.gmra.mrb[0].mxu0 %v2857
        %v2896 = vpop.f32.mrb[0].mxu0
        %v2897 = vadd.f32 0.0, %v2896
        %v2898 = vpop.f32.mrb[0].mxu0
        %v2899 = vpop.f32.mrb[0].mxu0
        %v2900 = vpop.f32.mrb[0].mxu0
        %2901 = vdwg.mxu0
        %v2902 = vsel %vm1407, %v2897, -inf
        %2903 = vmax.xlane.f32.xlu0 %v2902
        %v2904 = vpop.xlane.xlu0 %2903
        %v2905 = vsub.f32 %v2897, %v2904
        %v2906 = vmul.f32 %v2905, 1.442695
        %v2907 = vpow.pop %v2906
        %v2908 = vsel %vm1407, %v2907, 0.0
        %2909 = vadd.xlane.f32.xlu0 %v2908
        %v2910 = vpop.xlane.xlu0 %2909
        %v2911 = vrcp.pop %v2910
        %v2912 = vmul.f32 %v2907, %v2911
        %v2913 = vpack.c.bf16 %v2912, %v2912
        %2914 = vrot.lane.b32.xlu0 %v2805, 96
        %v2915 = vpop.permute.xlu0 %2914
        %v2917 = vsel %vm1407, %v2913, 0
        %v2920 = vsel %vm1423, %v2915, 0
        %2922 = vmatprep.subr.bf16.mxu0 0
        %2923 = vmatpush1.bf16.msra.mxu0 %v2920
        %2924 = vmatprep.subr.bf16.mxu0 0
        %2925 = vmatpush1.bf16.msra.mxu0 0
        %2926 = vmatprep.subr.bf16.mxu0 0
        %2927 = vmatpush1.bf16.msra.mxu0 0
        %2928 = vmatprep.subr.bf16.mxu0 0
        %2929 = vmatpush1.bf16.msra.mxu0 0
        %2930 = vmatprep.subr.bf16.mxu0 0
        %2931 = vmatpush1.bf16.msra.mxu0 0
        %2932 = vmatprep.subr.bf16.mxu0 0
        %2933 = vmatpush1.bf16.msra.mxu0 0
        %2934 = vmatprep.subr.bf16.mxu0 0
        %2935 = vmatpush1.bf16.msra.mxu0 0
        %2936 = vmatprep.subr.bf16.mxu0 0
        %2937 = vmatpush1.bf16.msra.mxu0 0
        %2938 = vmatprep.subr.bf16.mxu0 0
        %2939 = vmatpush1.bf16.msra.mxu0 0
        %2940 = vmatprep.subr.bf16.mxu0 0
        %2941 = vmatpush1.bf16.msra.mxu0 0
        %2942 = vmatprep.subr.bf16.mxu0 0
        %2943 = vmatpush1.bf16.msra.mxu0 0
        %2944 = vmatprep.subr.bf16.mxu0 0
        %2945 = vmatpush1.bf16.msra.mxu0 0
        %2946 = vmatprep.subr.bf16.mxu0 0
        %2947 = vmatpush1.bf16.msra.mxu0 0
        %2948 = vmatprep.subr.bf16.mxu0 0
        %2949 = vmatpush1.bf16.msra.mxu0 0
        %2950 = vmatprep.subr.bf16.mxu0 0
        %2951 = vmatpush1.bf16.msra.mxu0 0
        %2952 = vmatprep.subr.bf16.mxu0 0
        %2953 = vmatpush1.bf16.msra.mxu0 0
        %2954 = vmatprep.mubr.bf16.mxu0 0
        %2955 = vmatmul.mubr.bf16.gmra.mrb[0].mxu0 %v2917
        %v2956 = vpop.f32.mrb[0].mxu0
        %v2957 = vadd.f32 0.0, %v2956
        %v2958 = vpop.f32.mrb[0].mxu0
        %v2959 = vpop.f32.mrb[0].mxu0
        %v2960 = vpop.f32.mrb[0].mxu0
        %2961 = vdwg.mxu0
        %2962 = vrot.lane.b32.xlu0 %v2743, 64
        %v2963 = vpop.permute.xlu0 %2962
        %2964 = vrot.lane.b32.xlu0 %v2745, 64
        %v2965 = vpop.permute.xlu0 %2964
        %v2967 = vsel %vm1360, %v2963, 0
        %v2970 = vsel %vm1360, %v2965, 0
        %2972 = vmatprep.subr.bf16.mxu0 0
        %2973 = vmatpush1.bf16.xpose.msra.mxu0 %v2970
        %2974 = vmatprep.subr.bf16.mxu0 0
        %2975 = vmatpush1.bf16.xpose.msra.mxu0 0
        %2976 = vmatprep.subr.bf16.mxu0 0
        %2977 = vmatpush1.bf16.xpose.msra.mxu0 0
        %2978 = vmatprep.subr.bf16.mxu0 0
        %2979 = vmatpush1.bf16.xpose.msra.mxu0 0
        %2980 = vmatprep.subr.bf16.mxu0 0
        %2981 = vmatpush1.bf16.xpose.msra.mxu0 0
        %2982 = vmatprep.subr.bf16.mxu0 0
        %2983 = vmatpush1.bf16.xpose.msra.mxu0 0
        %2984 = vmatprep.subr.bf16.mxu0 0
        %2985 = vmatpush1.bf16.xpose.msra.mxu0 0
        %2986 = vmatprep.subr.bf16.mxu0 0
        %2987 = vmatpush1.bf16.xpose.msra.mxu0 0
        %2988 = vmatprep.subr.bf16.mxu0 0
        %2989 = vmatpush1.bf16.xpose.msra.mxu0 0
        %2990 = vmatprep.subr.bf16.mxu0 0
        %2991 = vmatpush1.bf16.xpose.msra.mxu0 0
        %2992 = vmatprep.subr.bf16.mxu0 0
        %2993 = vmatpush1.bf16.xpose.msra.mxu0 0
        %2994 = vmatprep.subr.bf16.mxu0 0
        %2995 = vmatpush1.bf16.xpose.msra.mxu0 0
        %2996 = vmatprep.subr.bf16.mxu0 0
        %2997 = vmatpush1.bf16.xpose.msra.mxu0 0
        %2998 = vmatprep.subr.bf16.mxu0 0
        %2999 = vmatpush1.bf16.xpose.msra.mxu0 0
        %3000 = vmatprep.subr.bf16.mxu0 0
        %3001 = vmatpush1.bf16.xpose.msra.mxu0 0
        %3002 = vmatprep.subr.bf16.mxu0 0
        %3003 = vmatpush1.bf16.xpose.msra.mxu0 0
        %3004 = vmatprep.mubr.bf16.mxu0 0
        %3005 = vmatmul.mubr.bf16.gmra.mrb[0].mxu0 %v2967
        %v3006 = vpop.f32.mrb[0].mxu0
        %v3007 = vadd.f32 0.0, %v3006
        %v3008 = vpop.f32.mrb[0].mxu0
        %v3009 = vpop.f32.mrb[0].mxu0
        %v3010 = vpop.f32.mrb[0].mxu0
        %3011 = vdwg.mxu0
        %v3012 = vsel %vm1407, %v3007, -inf
        %3013 = vmax.xlane.f32.xlu0 %v3012
        %v3014 = vpop.xlane.xlu0 %3013
        %v3015 = vsub.f32 %v3007, %v3014
        %v3016 = vmul.f32 %v3015, 1.442695
        %v3017 = vpow.pop %v3016
        %v3018 = vsel %vm1407, %v3017, 0.0
        %3019 = vadd.xlane.f32.xlu0 %v3018
        %v3020 = vpop.xlane.xlu0 %3019
        %v3021 = vrcp.pop %v3020
        %v3022 = vmul.f32 %v3017, %v3021
        %v3023 = vpack.c.bf16 %v3022, %v3022
        %3024 = vrot.lane.b32.xlu0 %v2805, 64
        %v3025 = vpop.permute.xlu0 %3024
        %v3027 = vsel %vm1407, %v3023, 0
        %v3030 = vsel %vm1423, %v3025, 0
        %3032 = vmatprep.subr.bf16.mxu0 0
        %3033 = vmatpush1.bf16.msra.mxu0 %v3030
        %3034 = vmatprep.subr.bf16.mxu0 0
        %3035 = vmatpush1.bf16.msra.mxu0 0
        %3036 = vmatprep.subr.bf16.mxu0 0
        %3037 = vmatpush1.bf16.msra.mxu0 0
        %3038 = vmatprep.subr.bf16.mxu0 0
        %3039 = vmatpush1.bf16.msra.mxu0 0
        %3040 = vmatprep.subr.bf16.mxu0 0
        %3041 = vmatpush1.bf16.msra.mxu0 0
        %3042 = vmatprep.subr.bf16.mxu0 0
        %3043 = vmatpush1.bf16.msra.mxu0 0
        %3044 = vmatprep.subr.bf16.mxu0 0
        %3045 = vmatpush1.bf16.msra.mxu0 0
        %3046 = vmatprep.subr.bf16.mxu0 0
        %3047 = vmatpush1.bf16.msra.mxu0 0
        %3048 = vmatprep.subr.bf16.mxu0 0
        %3049 = vmatpush1.bf16.msra.mxu0 0
        %3050 = vmatprep.subr.bf16.mxu0 0
        %3051 = vmatpush1.bf16.msra.mxu0 0
        %3052 = vmatprep.subr.bf16.mxu0 0
        %3053 = vmatpush1.bf16.msra.mxu0 0
        %3054 = vmatprep.subr.bf16.mxu0 0
        %3055 = vmatpush1.bf16.msra.mxu0 0
        %3056 = vmatprep.subr.bf16.mxu0 0
        %3057 = vmatpush1.bf16.msra.mxu0 0
        %3058 = vmatprep.subr.bf16.mxu0 0
        %3059 = vmatpush1.bf16.msra.mxu0 0
        %3060 = vmatprep.subr.bf16.mxu0 0
        %3061 = vmatpush1.bf16.msra.mxu0 0
        %3062 = vmatprep.subr.bf16.mxu0 0
        %3063 = vmatpush1.bf16.msra.mxu0 0
        %3064 = vmatprep.mubr.bf16.mxu0 0
        %3065 = vmatmul.mubr.bf16.gmra.mrb[0].mxu0 %v3027
        %v3066 = vpop.f32.mrb[0].mxu0
        %v3067 = vadd.f32 0.0, %v3066
        %v3068 = vpop.f32.mrb[0].mxu0
        %v3069 = vpop.f32.mrb[0].mxu0
        %v3070 = vpop.f32.mrb[0].mxu0
        %3071 = vdwg.mxu0
        %3072 = vrot.lane.b32.xlu0 %v2743, 32
        %v3073 = vpop.permute.xlu0 %3072
        %3074 = vrot.lane.b32.xlu0 %v2745, 32
        %v3075 = vpop.permute.xlu0 %3074
        %v3077 = vsel %vm1360, %v3073, 0
        %v3080 = vsel %vm1360, %v3075, 0
        %3082 = vmatprep.subr.bf16.mxu0 0
        %3083 = vmatpush1.bf16.xpose.msra.mxu0 %v3080
        %3084 = vmatprep.subr.bf16.mxu0 0
        %3085 = vmatpush1.bf16.xpose.msra.mxu0 0
        %3086 = vmatprep.subr.bf16.mxu0 0
        %3087 = vmatpush1.bf16.xpose.msra.mxu0 0
        %3088 = vmatprep.subr.bf16.mxu0 0
        %3089 = vmatpush1.bf16.xpose.msra.mxu0 0
        %3090 = vmatprep.subr.bf16.mxu0 0
        %3091 = vmatpush1.bf16.xpose.msra.mxu0 0
        %3092 = vmatprep.subr.bf16.mxu0 0
        %3093 = vmatpush1.bf16.xpose.msra.mxu0 0
        %3094 = vmatprep.subr.bf16.mxu0 0
        %3095 = vmatpush1.bf16.xpose.msra.mxu0 0
        %3096 = vmatprep.subr.bf16.mxu0 0
        %3097 = vmatpush1.bf16.xpose.msra.mxu0 0
        %3098 = vmatprep.subr.bf16.mxu0 0
        %3099 = vmatpush1.bf16.xpose.msra.mxu0 0
        %3100 = vmatprep.subr.bf16.mxu0 0
        %3101 = vmatpush1.bf16.xpose.msra.mxu0 0
        %3102 = vmatprep.subr.bf16.mxu0 0
        %3103 = vmatpush1.bf16.xpose.msra.mxu0 0
        %3104 = vmatprep.subr.bf16.mxu0 0
        %3105 = vmatpush1.bf16.xpose.msra.mxu0 0
        %3106 = vmatprep.subr.bf16.mxu0 0
        %3107 = vmatpush1.bf16.xpose.msra.mxu0 0
        %3108 = vmatprep.subr.bf16.mxu0 0
        %3109 = vmatpush1.bf16.xpose.msra.mxu0 0
        %3110 = vmatprep.subr.bf16.mxu0 0
        %3111 = vmatpush1.bf16.xpose.msra.mxu0 0
        %3112 = vmatprep.subr.bf16.mxu0 0
        %3113 = vmatpush1.bf16.xpose.msra.mxu0 0
        %3114 = vmatprep.mubr.bf16.mxu0 0
        %3115 = vmatmul.mubr.bf16.gmra.mrb[0].mxu0 %v3077
        %v3116 = vpop.f32.mrb[0].mxu0
        %v3117 = vadd.f32 0.0, %v3116
        %v3118 = vpop.f32.mrb[0].mxu0
        %v3119 = vpop.f32.mrb[0].mxu0
        %v3120 = vpop.f32.mrb[0].mxu0
        %3121 = vdwg.mxu0
        %v3122 = vsel %vm1407, %v3117, -inf
        %3123 = vmax.xlane.f32.xlu0 %v3122
        %v3124 = vpop.xlane.xlu0 %3123
        %v3125 = vsub.f32 %v3117, %v3124
        %v3126 = vmul.f32 %v3125, 1.442695
        %v3127 = vpow.pop %v3126
        %v3128 = vsel %vm1407, %v3127, 0.0
        %3129 = vadd.xlane.f32.xlu0 %v3128
        %v3130 = vpop.xlane.xlu0 %3129
        %v3131 = vrcp.pop %v3130
        %v3132 = vmul.f32 %v3127, %v3131
        %v3133 = vpack.c.bf16 %v3132, %v3132
        %3134 = vrot.lane.b32.xlu0 %v2805, 32
        %v3135 = vpop.permute.xlu0 %3134
        %v3137 = vsel %vm1407, %v3133, 0
        %v3140 = vsel %vm1423, %v3135, 0
        %3142 = vmatprep.subr.bf16.mxu0 0
        %3143 = vmatpush1.bf16.msra.mxu0 %v3140
        %3144 = vmatprep.subr.bf16.mxu0 0
        %3145 = vmatpush1.bf16.msra.mxu0 0
        %3146 = vmatprep.subr.bf16.mxu0 0
        %3147 = vmatpush1.bf16.msra.mxu0 0
        %3148 = vmatprep.subr.bf16.mxu0 0
        %3149 = vmatpush1.bf16.msra.mxu0 0
        %3150 = vmatprep.subr.bf16.mxu0 0
        %3151 = vmatpush1.bf16.msra.mxu0 0
        %3152 = vmatprep.subr.bf16.mxu0 0
        %3153 = vmatpush1.bf16.msra.mxu0 0
        %3154 = vmatprep.subr.bf16.mxu0 0
        %3155 = vmatpush1.bf16.msra.mxu0 0
        %3156 = vmatprep.subr.bf16.mxu0 0
        %3157 = vmatpush1.bf16.msra.mxu0 0
        %3158 = vmatprep.subr.bf16.mxu0 0
        %3159 = vmatpush1.bf16.msra.mxu0 0
        %3160 = vmatprep.subr.bf16.mxu0 0
        %3161 = vmatpush1.bf16.msra.mxu0 0
        %3162 = vmatprep.subr.bf16.mxu0 0
        %3163 = vmatpush1.bf16.msra.mxu0 0
        %3164 = vmatprep.subr.bf16.mxu0 0
        %3165 = vmatpush1.bf16.msra.mxu0 0
        %3166 = vmatprep.subr.bf16.mxu0 0
        %3167 = vmatpush1.bf16.msra.mxu0 0
        %3168 = vmatprep.subr.bf16.mxu0 0
        %3169 = vmatpush1.bf16.msra.mxu0 0
        %3170 = vmatprep.subr.bf16.mxu0 0
        %3171 = vmatpush1.bf16.msra.mxu0 0
        %3172 = vmatprep.subr.bf16.mxu0 0
        %3173 = vmatpush1.bf16.msra.mxu0 0
        %3174 = vmatprep.mubr.bf16.mxu0 0
        %3175 = vmatmul.mubr.bf16.gmra.mrb[0].mxu0 %v3137
        %v3176 = vpop.f32.mrb[0].mxu0
        %v3177 = vadd.f32 0.0, %v3176
        %v3178 = vpop.f32.mrb[0].mxu0
        %v3179 = vpop.f32.mrb[0].mxu0
        %v3180 = vpop.f32.mrb[0].mxu0
        %3181 = vdwg.mxu0
        %3183 = vrot.lane.b32.xlu0 %v2957, 32
        %v3184 = vpop.permute.xlu0 %3183
        %3187 = vrot.lane.b32.xlu0 %v3067, 64
        %v3188 = vpop.permute.xlu0 %3187
        %3191 = vrot.lane.b32.xlu0 %v3177, 96
        %v3192 = vpop.permute.xlu0 %3191
        %v3194 = vsel %vm1360, %v2847, %v3184
        %v3195 = vsel %vm1813, %v3194, %v3188
        %v3196 = vsel %vm1815, %v3195, %v3192
        %v3197 = vpack.c.bf16 %v3196, %v3196
        %v3199 = vrot.slane %v3197, 4
        %3201 = vst [vmem:[#allocation4 + $0x8] sm:$0xf0] %v3199
        %v3202 = vld [vmem:[#allocation4] sm:$0xff]
        %v3203 = vld [vmem:[#allocation4 + $0x8] sm:$0xff]
        %v3204 = vld [vmem:[%s484] sm:$0xff]
        %v3205 = vld [vmem:[%s484 + $0x8] sm:$0xff]
        %v3206 = vld [vmem:[%s484 + $0x10] sm:$0xff]
        %v3207 = vld [vmem:[%s484 + $0x18] sm:$0xff]
        %v3208 = vld [vmem:[%s484 + $0x20] sm:$0xff]
        %v3209 = vld [vmem:[%s484 + $0x28] sm:$0xff]
        %v3210 = vld [vmem:[%s484 + $0x30] sm:$0xff]
        %v3211 = vld [vmem:[%s484 + $0x38] sm:$0xff]
        %v3212 = vld [vmem:[%s484 + $0x40] sm:$0xff]
        %v3213 = vld [vmem:[%s484 + $0x48] sm:$0xff]
        %v3214 = vld [vmem:[%s484 + $0x50] sm:$0xff]
        %v3215 = vld [vmem:[%s484 + $0x58] sm:$0xff]
        %v3216 = vld [vmem:[%s484 + $0x60] sm:$0xff]
        %v3217 = vld [vmem:[%s484 + $0x68] sm:$0xff]
        %v3218 = vld [vmem:[%s484 + $0x70] sm:$0xff]
        %v3219 = vld [vmem:[%s484 + $0x78] sm:$0xff]
        %v3220 = vld [vmem:[%s484 + $0x80] sm:$0xff]
        %v3221 = vld [vmem:[%s484 + $0x88] sm:$0xff]
        %v3222 = vld [vmem:[%s484 + $0x90] sm:$0xff]
        %v3223 = vld [vmem:[%s484 + $0x98] sm:$0xff]
        %v3224 = vld [vmem:[%s484 + $0xa0] sm:$0xff]
        %v3225 = vld [vmem:[%s484 + $0xa8] sm:$0xff]
        %v3226 = vld [vmem:[%s484 + $0xb0] sm:$0xff]
        %v3227 = vld [vmem:[%s484 + $0xb8] sm:$0xff]
        %v3228 = vld [vmem:[%s484 + $0xc0] sm:$0xff]
        %v3229 = vld [vmem:[%s484 + $0xc8] sm:$0xff]
        %v3230 = vld [vmem:[%s484 + $0xd0] sm:$0xff]
        %v3231 = vld [vmem:[%s484 + $0xd8] sm:$0xff]
        %v3232 = vld [vmem:[%s484 + $0xe0] sm:$0xff]
        %v3233 = vld [vmem:[%s484 + $0xe8] sm:$0xff]
        %v3234 = vld [vmem:[%s484 + $0xf0] sm:$0xff]
        %v3235 = vld [vmem:[%s484 + $0xf8] sm:$0xff]
        %v3236 = vlaneseq
        %v3237 = vshrl.u32 %v3236, 7
        %v3238 = vsub.s32 3, %v3237
        %v3239 = vrot.slane %v600, %v3238
        %v3240 = vlaneseq
        %v3241 = vshrl.u32 %v3240, 7
        %v3242 = vsub.s32 3, %v3241
        %v3243 = vrot.slane %v601, %v3242
        %v3276 = vunpack.c.l.b16 %v3204
        %v3277 = vunpack.c.h.b16 %v3204
        %v3278 = vunpack.c.l.b16 %v3205
        %v3279 = vunpack.c.h.b16 %v3205
        %v3280 = vunpack.c.l.b16 %v3206
        %v3281 = vunpack.c.h.b16 %v3206
        %v3282 = vunpack.c.l.b16 %v3207
        %v3283 = vunpack.c.h.b16 %v3207
        %v3284 = vunpack.c.l.b16 %v3208
        %v3285 = vunpack.c.h.b16 %v3208
        %v3286 = vunpack.c.l.b16 %v3209
        %v3287 = vunpack.c.h.b16 %v3209
        %v3288 = vunpack.c.l.b16 %v3210
        %v3289 = vunpack.c.h.b16 %v3210
        %v3290 = vunpack.c.l.b16 %v3211
        %v3291 = vunpack.c.h.b16 %v3211
        %v3292 = vunpack.c.l.b16 %v3212
        %v3293 = vunpack.c.h.b16 %v3212
        %v3294 = vunpack.c.l.b16 %v3213
        %v3295 = vunpack.c.h.b16 %v3213
        %v3296 = vunpack.c.l.b16 %v3214
        %v3297 = vunpack.c.h.b16 %v3214
        %v3298 = vunpack.c.l.b16 %v3215
        %v3299 = vunpack.c.h.b16 %v3215
        %v3300 = vunpack.c.l.b16 %v3216
        %v3301 = vunpack.c.h.b16 %v3216
        %v3302 = vunpack.c.l.b16 %v3217
        %v3303 = vunpack.c.h.b16 %v3217
        %v3304 = vunpack.c.l.b16 %v3218
        %v3305 = vunpack.c.h.b16 %v3218
        %v3306 = vunpack.c.l.b16 %v3219
        %v3307 = vunpack.c.h.b16 %v3219
        %v3308 = vunpack.c.l.b16 %v3220
        %v3309 = vunpack.c.h.b16 %v3220
        %v3310 = vunpack.c.l.b16 %v3221
        %v3311 = vunpack.c.h.b16 %v3221
        %v3312 = vunpack.c.l.b16 %v3222
        %v3313 = vunpack.c.h.b16 %v3222
        %v3314 = vunpack.c.l.b16 %v3223
        %v3315 = vunpack.c.h.b16 %v3223
        %v3316 = vunpack.c.l.b16 %v3224
        %v3317 = vunpack.c.h.b16 %v3224
        %v3318 = vunpack.c.l.b16 %v3225
        %v3319 = vunpack.c.h.b16 %v3225
        %v3320 = vunpack.c.l.b16 %v3226
        %v3321 = vunpack.c.h.b16 %v3226
        %v3322 = vunpack.c.l.b16 %v3227
        %v3323 = vunpack.c.h.b16 %v3227
        %v3324 = vunpack.c.l.b16 %v3228
        %v3325 = vunpack.c.h.b16 %v3228
        %v3326 = vunpack.c.l.b16 %v3229
        %v3327 = vunpack.c.h.b16 %v3229
        %v3328 = vunpack.c.l.b16 %v3230
        %v3329 = vunpack.c.h.b16 %v3230
        %v3330 = vunpack.c.l.b16 %v3231
        %v3331 = vunpack.c.h.b16 %v3231
        %v3332 = vunpack.c.l.b16 %v3232
        %v3333 = vunpack.c.h.b16 %v3232
        %v3334 = vunpack.c.l.b16 %v3233
        %v3335 = vunpack.c.h.b16 %v3233
        %v3336 = vunpack.c.l.b16 %v3234
        %v3337 = vunpack.c.h.b16 %v3234
        %v3338 = vunpack.c.l.b16 %v3235
        %v3339 = vunpack.c.h.b16 %v3235
        %v3340 = vpack.c.b16 %v3278, %v3276
        %v3341 = vpack.c.b16 %v3279, %v3277
        %v3342 = vpack.c.b16 %v3282, %v3280
        %v3343 = vpack.c.b16 %v3283, %v3281
        %v3344 = vpack.c.b16 %v3286, %v3284
        %v3345 = vpack.c.b16 %v3287, %v3285
        %v3346 = vpack.c.b16 %v3290, %v3288
        %v3347 = vpack.c.b16 %v3291, %v3289
        %v3348 = vpack.c.b16 %v3294, %v3292
        %v3349 = vpack.c.b16 %v3295, %v3293
        %v3350 = vpack.c.b16 %v3298, %v3296
        %v3351 = vpack.c.b16 %v3299, %v3297
        %v3352 = vpack.c.b16 %v3302, %v3300
        %v3353 = vpack.c.b16 %v3303, %v3301
        %v3354 = vpack.c.b16 %v3306, %v3304
        %v3355 = vpack.c.b16 %v3307, %v3305
        %v3356 = vpack.c.b16 %v3310, %v3308
        %v3357 = vpack.c.b16 %v3311, %v3309
        %v3358 = vpack.c.b16 %v3314, %v3312
        %v3359 = vpack.c.b16 %v3315, %v3313
        %v3360 = vpack.c.b16 %v3318, %v3316
        %v3361 = vpack.c.b16 %v3319, %v3317
        %v3362 = vpack.c.b16 %v3322, %v3320
        %v3363 = vpack.c.b16 %v3323, %v3321
        %v3364 = vpack.c.b16 %v3326, %v3324
        %v3365 = vpack.c.b16 %v3327, %v3325
        %v3366 = vpack.c.b16 %v3330, %v3328
        %v3367 = vpack.c.b16 %v3331, %v3329
        %v3368 = vpack.c.b16 %v3334, %v3332
        %v3369 = vpack.c.b16 %v3335, %v3333
        %v3370 = vpack.c.b16 %v3338, %v3336
        %v3371 = vpack.c.b16 %v3339, %v3337
        %3404 = vmatprep.subr.bf16.mxu0 %v3341
        %3405 = vmatpush1.bf16.msra.mxu0 %v3340
        %3406 = vmatprep.subr.bf16.mxu0 %v3343
        %3407 = vmatpush1.bf16.msra.mxu0 %v3342
        %3408 = vmatprep.subr.bf16.mxu0 %v3345
        %3409 = vmatpush1.bf16.msra.mxu0 %v3344
        %3410 = vmatprep.subr.bf16.mxu0 %v3347
        %3411 = vmatpush1.bf16.msra.mxu0 %v3346
        %3412 = vmatprep.subr.bf16.mxu0 %v3349
        %3413 = vmatpush1.bf16.msra.mxu0 %v3348
        %3414 = vmatprep.subr.bf16.mxu0 %v3351
        %3415 = vmatpush1.bf16.msra.mxu0 %v3350
        %3416 = vmatprep.subr.bf16.mxu0 %v3353
        %3417 = vmatpush1.bf16.msra.mxu0 %v3352
        %3418 = vmatprep.subr.bf16.mxu0 %v3355
        %3419 = vmatpush1.bf16.msra.mxu0 %v3354
        %3420 = vmatprep.subr.bf16.mxu0 %v3357
        %3421 = vmatpush1.bf16.msra.mxu0 %v3356
        %3422 = vmatprep.subr.bf16.mxu0 %v3359
        %3423 = vmatpush1.bf16.msra.mxu0 %v3358
        %3424 = vmatprep.subr.bf16.mxu0 %v3361
        %3425 = vmatpush1.bf16.msra.mxu0 %v3360
        %3426 = vmatprep.subr.bf16.mxu0 %v3363
        %3427 = vmatpush1.bf16.msra.mxu0 %v3362
        %3428 = vmatprep.subr.bf16.mxu0 %v3365
        %3429 = vmatpush1.bf16.msra.mxu0 %v3364
        %3430 = vmatprep.subr.bf16.mxu0 %v3367
        %3431 = vmatpush1.bf16.msra.mxu0 %v3366
        %3432 = vmatprep.subr.bf16.mxu0 %v3369
        %3433 = vmatpush1.bf16.msra.mxu0 %v3368
        %3434 = vmatprep.subr.bf16.mxu0 %v3371
        %3435 = vmatpush1.bf16.msra.mxu0 %v3370
        %3436 = vmatprep.mubr.bf16.mxu0 %v3203
        %3437 = vmatmul.mubr.bf16.gmra.mrb[0].mxu0 %v3202
        %v3438 = vpop.f32.mrb[0].mxu0
        %v3439 = vadd.f32 %v3239, %v3438
        %v3440 = vpop.f32.mrb[0].mxu0
        %v3441 = vadd.f32 %v3243, %v3440
        %v3442 = vpop.f32.mrb[0].mxu0
        %v3443 = vadd.f32 %v3239, %v3442
        %v3444 = vpop.f32.mrb[0].mxu0
        %v3445 = vadd.f32 %v3243, %v3444
        %3446 = vdwg.mxu0
        %v3447 = vadd.f32 %v594, %v3439
        %v3448 = vadd.f32 %v595, %v3441
        %v3449 = vadd.f32 %v596, %v3443
        %v3450 = vadd.f32 %v597, %v3445
        %v3451 = vadd.f32 %v3447, %v3448
        %3452 = vadd.xlane.f32.xlu0 %v3451
        %v3453 = vpop.xlane.xlu0 %3452
        %v3454 = vadd.f32 %v3449, %v3450
        %3455 = vadd.xlane.f32.xlu0 %v3454
        %v3456 = vpop.xlane.xlu0 %3455
        %v3457 = vrcp.pop 256.0
        %v3458 = vmul.f32 %v3453, %v3457
        %v3459 = vmul.f32 %v3456, %v3457
        %v3460 = vsub.f32 %v3447, %v3458
        %v3461 = vsub.f32 %v3448, %v3458
        %v3462 = vsub.f32 %v3449, %v3459
        %v3463 = vsub.f32 %v3450, %v3459
        %v3464 = vmul.f32 %v3460, %v3460
        %v3465 = vmul.f32 %v3461, %v3461
        %v3466 = vmul.f32 %v3462, %v3462
        %v3467 = vmul.f32 %v3463, %v3463
        %v3468 = vadd.f32 %v3464, %v3465
        %3469 = vadd.xlane.f32.xlu0 %v3468
        %v3470 = vpop.xlane.xlu0 %3469
        %v3471 = vadd.f32 %v3466, %v3467
        %3472 = vadd.xlane.f32.xlu0 %v3471
        %v3473 = vpop.xlane.xlu0 %3472
        %v3474 = vmul.f32 %v3470, %v3457
        %v3475 = vmul.f32 %v3473, %v3457
        %v3476 = vadd.f32 %v3474, 1e-05
        %v3477 = vadd.f32 %v3475, 1e-05
        %v3478 = vrsqrt.pop %v3476
        %v3479 = vrsqrt.pop %v3477
        %v3480 = vmul.f32 %v3460, %v3478
        %v3481 = vmul.f32 %v3461, %v3478
        %v3482 = vmul.f32 %v3462, %v3479
        %v3483 = vmul.f32 %v3463, %v3479
        %v3484 = vlaneseq
        %v3485 = vshrl.u32 %v3484, 7
        %v3486 = vsub.s32 4, %v3485
        %v3487 = vrot.slane %v600, %v3486
        %v3488 = vlaneseq
        %v3489 = vshrl.u32 %v3488, 7
        %v3490 = vsub.s32 4, %v3489
        %v3491 = vrot.slane %v601, %v3490
        %v3492 = vmul.f32 %v3480, %v3487
        %v3493 = vmul.f32 %v3481, %v3491
        %v3494 = vmul.f32 %v3482, %v3487
        %v3495 = vmul.f32 %v3483, %v3491
        %v3496 = vlaneseq
        %v3497 = vshrl.u32 %v3496, 7
        %v3498 = vsub.s32 5, %v3497
        %v3499 = vrot.slane %v600, %v3498
        %v3500 = vlaneseq
        %v3501 = vshrl.u32 %v3500, 7
        %v3502 = vsub.s32 5, %v3501
        %v3503 = vrot.slane %v601, %v3502
        %v3504 = vadd.f32 %v3492, %v3499
        %v3505 = vadd.f32 %v3493, %v3503
        %v3506 = vadd.f32 %v3494, %v3499
        %v3507 = vadd.f32 %v3495, %v3503
        %v3508 = vpack.c.bf16 %v3506, %v3504
        %v3509 = vpack.c.bf16 %v3507, %v3505
        %v3510 = vld [vmem:[%s493] sm:$0xff]
        %v3511 = vld [vmem:[%s493 + $0x8] sm:$0xff]
        %v3512 = vld [vmem:[%s493 + $0x40] sm:$0xff]
        %v3513 = vld [vmem:[%s493 + $0x48] sm:$0xff]
        %v3514 = vld [vmem:[%s493 + $0x80] sm:$0xff]
        %v3515 = vld [vmem:[%s493 + $0x88] sm:$0xff]
        %v3516 = vld [vmem:[%s493 + $0xc0] sm:$0xff]
        %v3517 = vld [vmem:[%s493 + $0xc8] sm:$0xff]
        %v3518 = vld [vmem:[%s493 + $0x100] sm:$0xff]
        %v3519 = vld [vmem:[%s493 + $0x108] sm:$0xff]
        %v3520 = vld [vmem:[%s493 + $0x140] sm:$0xff]
        %v3521 = vld [vmem:[%s493 + $0x148] sm:$0xff]
        %v3522 = vld [vmem:[%s493 + $0x180] sm:$0xff]
        %v3523 = vld [vmem:[%s493 + $0x188] sm:$0xff]
        %v3524 = vld [vmem:[%s493 + $0x1c0] sm:$0xff]
        %v3525 = vld [vmem:[%s493 + $0x1c8] sm:$0xff]
        %v3526 = vld [vmem:[%s493 + $0x200] sm:$0xff]
        %v3527 = vld [vmem:[%s493 + $0x208] sm:$0xff]
        %v3528 = vld [vmem:[%s493 + $0x240] sm:$0xff]
        %v3529 = vld [vmem:[%s493 + $0x248] sm:$0xff]
        %v3530 = vld [vmem:[%s493 + $0x280] sm:$0xff]
        %v3531 = vld [vmem:[%s493 + $0x288] sm:$0xff]
        %v3532 = vld [vmem:[%s493 + $0x2c0] sm:$0xff]
        %v3533 = vld [vmem:[%s493 + $0x2c8] sm:$0xff]
        %v3534 = vld [vmem:[%s493 + $0x300] sm:$0xff]
        %v3535 = vld [vmem:[%s493 + $0x308] sm:$0xff]
        %v3536 = vld [vmem:[%s493 + $0x340] sm:$0xff]
        %v3537 = vld [vmem:[%s493 + $0x348] sm:$0xff]
        %v3538 = vld [vmem:[%s493 + $0x380] sm:$0xff]
        %v3539 = vld [vmem:[%s493 + $0x388] sm:$0xff]
        %v3540 = vld [vmem:[%s493 + $0x3c0] sm:$0xff]
        %v3541 = vld [vmem:[%s493 + $0x3c8] sm:$0xff]
        %v3542 = vld [vmem:[%s493 + $0x400] sm:$0xff]
        %v3543 = vld [vmem:[%s493 + $0x408] sm:$0xff]
        %v3544 = vld [vmem:[%s493 + $0x440] sm:$0xff]
        %v3545 = vld [vmem:[%s493 + $0x448] sm:$0xff]
        %v3546 = vld [vmem:[%s493 + $0x480] sm:$0xff]
        %v3547 = vld [vmem:[%s493 + $0x488] sm:$0xff]
        %v3548 = vld [vmem:[%s493 + $0x4c0] sm:$0xff]
        %v3549 = vld [vmem:[%s493 + $0x4c8] sm:$0xff]
        %v3550 = vld [vmem:[%s493 + $0x500] sm:$0xff]
        %v3551 = vld [vmem:[%s493 + $0x508] sm:$0xff]
        %v3552 = vld [vmem:[%s493 + $0x540] sm:$0xff]
        %v3553 = vld [vmem:[%s493 + $0x548] sm:$0xff]
        %v3554 = vld [vmem:[%s493 + $0x580] sm:$0xff]
        %v3555 = vld [vmem:[%s493 + $0x588] sm:$0xff]
        %v3556 = vld [vmem:[%s493 + $0x5c0] sm:$0xff]
        %v3557 = vld [vmem:[%s493 + $0x5c8] sm:$0xff]
        %v3558 = vld [vmem:[%s493 + $0x600] sm:$0xff]
        %v3559 = vld [vmem:[%s493 + $0x608] sm:$0xff]
        %v3560 = vld [vmem:[%s493 + $0x640] sm:$0xff]
        %v3561 = vld [vmem:[%s493 + $0x648] sm:$0xff]
        %v3562 = vld [vmem:[%s493 + $0x680] sm:$0xff]
        %v3563 = vld [vmem:[%s493 + $0x688] sm:$0xff]
        %v3564 = vld [vmem:[%s493 + $0x6c0] sm:$0xff]
        %v3565 = vld [vmem:[%s493 + $0x6c8] sm:$0xff]
        %v3566 = vld [vmem:[%s493 + $0x700] sm:$0xff]
        %v3567 = vld [vmem:[%s493 + $0x708] sm:$0xff]
        %v3568 = vld [vmem:[%s493 + $0x740] sm:$0xff]
        %v3569 = vld [vmem:[%s493 + $0x748] sm:$0xff]
        %v3570 = vld [vmem:[%s493 + $0x780] sm:$0xff]
        %v3571 = vld [vmem:[%s493 + $0x788] sm:$0xff]
        %v3572 = vld [vmem:[%s493 + $0x7c0] sm:$0xff]
        %v3573 = vld [vmem:[%s493 + $0x7c8] sm:$0xff]
        %v3574 = vld [vmem:[%s511] sm:$0xf]
        %v3576 = vlaneseq
        %v3577 = vshrl.u32 %v3576, 7
        %v3578 = vsub.s32 0, %v3577
        %v3579 = vrot.slane %v3574, %v3578
        %v3580 = vlaneseq
        %v3581 = vshrl.u32 %v3580, 7
        %v3582 = vsub.s32 1, %v3581
        %v3583 = vrot.slane %v3574, %v3582
        %v3584 = vlaneseq
        %v3585 = vshrl.u32 %v3584, 7
        %v3586 = vsub.s32 2, %v3585
        %v3587 = vrot.slane %v3574, %v3586
        %v3588 = vlaneseq
        %v3589 = vshrl.u32 %v3588, 7
        %v3590 = vsub.s32 3, %v3589
        %v3591 = vrot.slane %v3574, %v3590
        %v3660 = vunpack.c.l.b16 %v3510
        %v3661 = vunpack.c.h.b16 %v3510
        %v3662 = vunpack.c.l.b16 %v3511
        %v3663 = vunpack.c.h.b16 %v3511
        %v3664 = vunpack.c.l.b16 %v3512
        %v3665 = vunpack.c.h.b16 %v3512
        %v3666 = vunpack.c.l.b16 %v3513
        %v3667 = vunpack.c.h.b16 %v3513
        %v3668 = vunpack.c.l.b16 %v3514
        %v3669 = vunpack.c.h.b16 %v3514
        %v3670 = vunpack.c.l.b16 %v3515
        %v3671 = vunpack.c.h.b16 %v3515
        %v3672 = vunpack.c.l.b16 %v3516
        %v3673 = vunpack.c.h.b16 %v3516
        %v3674 = vunpack.c.l.b16 %v3517
        %v3675 = vunpack.c.h.b16 %v3517
        %v3676 = vunpack.c.l.b16 %v3518
        %v3677 = vunpack.c.h.b16 %v3518
        %v3678 = vunpack.c.l.b16 %v3519
        %v3679 = vunpack.c.h.b16 %v3519
        %v3680 = vunpack.c.l.b16 %v3520
        %v3681 = vunpack.c.h.b16 %v3520
        %v3682 = vunpack.c.l.b16 %v3521
        %v3683 = vunpack.c.h.b16 %v3521
        %v3684 = vunpack.c.l.b16 %v3522
        %v3685 = vunpack.c.h.b16 %v3522
        %v3686 = vunpack.c.l.b16 %v3523
        %v3687 = vunpack.c.h.b16 %v3523
        %v3688 = vunpack.c.l.b16 %v3524
        %v3689 = vunpack.c.h.b16 %v3524
        %v3690 = vunpack.c.l.b16 %v3525
        %v3691 = vunpack.c.h.b16 %v3525
        %v3692 = vunpack.c.l.b16 %v3526
        %v3693 = vunpack.c.h.b16 %v3526
        %v3694 = vunpack.c.l.b16 %v3527
        %v3695 = vunpack.c.h.b16 %v3527
        %v3696 = vunpack.c.l.b16 %v3528
        %v3697 = vunpack.c.h.b16 %v3528
        %v3698 = vunpack.c.l.b16 %v3529
        %v3699 = vunpack.c.h.b16 %v3529
        %v3700 = vunpack.c.l.b16 %v3530
        %v3701 = vunpack.c.h.b16 %v3530
        %v3702 = vunpack.c.l.b16 %v3531
        %v3703 = vunpack.c.h.b16 %v3531
        %v3704 = vunpack.c.l.b16 %v3532
        %v3705 = vunpack.c.h.b16 %v3532
        %v3706 = vunpack.c.l.b16 %v3533
        %v3707 = vunpack.c.h.b16 %v3533
        %v3708 = vunpack.c.l.b16 %v3534
        %v3709 = vunpack.c.h.b16 %v3534
        %v3710 = vunpack.c.l.b16 %v3535
        %v3711 = vunpack.c.h.b16 %v3535
        %v3712 = vunpack.c.l.b16 %v3536
        %v3713 = vunpack.c.h.b16 %v3536
        %v3714 = vunpack.c.l.b16 %v3537
        %v3715 = vunpack.c.h.b16 %v3537
        %v3716 = vunpack.c.l.b16 %v3538
        %v3717 = vunpack.c.h.b16 %v3538
        %v3718 = vunpack.c.l.b16 %v3539
        %v3719 = vunpack.c.h.b16 %v3539
        %v3720 = vunpack.c.l.b16 %v3540
        %v3721 = vunpack.c.h.b16 %v3540
        %v3722 = vunpack.c.l.b16 %v3541
        %v3723 = vunpack.c.h.b16 %v3541
        %v3724 = vunpack.c.l.b16 %v3542
        %v3725 = vunpack.c.h.b16 %v3542
        %v3726 = vunpack.c.l.b16 %v3543
        %v3727 = vunpack.c.h.b16 %v3543
        %v3728 = vunpack.c.l.b16 %v3544
        %v3729 = vunpack.c.h.b16 %v3544
        %v3730 = vunpack.c.l.b16 %v3545
        %v3731 = vunpack.c.h.b16 %v3545
        %v3732 = vunpack.c.l.b16 %v3546
        %v3733 = vunpack.c.h.b16 %v3546
        %v3734 = vunpack.c.l.b16 %v3547
        %v3735 = vunpack.c.h.b16 %v3547
        %v3736 = vunpack.c.l.b16 %v3548
        %v3737 = vunpack.c.h.b16 %v3548
        %v3738 = vunpack.c.l.b16 %v3549
        %v3739 = vunpack.c.h.b16 %v3549
        %v3740 = vunpack.c.l.b16 %v3550
        %v3741 = vunpack.c.h.b16 %v3550
        %v3742 = vunpack.c.l.b16 %v3551
        %v3743 = vunpack.c.h.b16 %v3551
        %v3744 = vunpack.c.l.b16 %v3552
        %v3745 = vunpack.c.h.b16 %v3552
        %v3746 = vunpack.c.l.b16 %v3553
        %v3747 = vunpack.c.h.b16 %v3553
        %v3748 = vunpack.c.l.b16 %v3554
        %v3749 = vunpack.c.h.b16 %v3554
        %v3750 = vunpack.c.l.b16 %v3555
        %v3751 = vunpack.c.h.b16 %v3555
        %v3752 = vunpack.c.l.b16 %v3556
        %v3753 = vunpack.c.h.b16 %v3556
        %v3754 = vunpack.c.l.b16 %v3557
        %v3755 = vunpack.c.h.b16 %v3557
        %v3756 = vunpack.c.l.b16 %v3558
        %v3757 = vunpack.c.h.b16 %v3558
        %v3758 = vunpack.c.l.b16 %v3559
        %v3759 = vunpack.c.h.b16 %v3559
        %v3760 = vunpack.c.l.b16 %v3560
        %v3761 = vunpack.c.h.b16 %v3560
        %v3762 = vunpack.c.l.b16 %v3561
        %v3763 = vunpack.c.h.b16 %v3561
        %v3764 = vunpack.c.l.b16 %v3562
        %v3765 = vunpack.c.h.b16 %v3562
        %v3766 = vunpack.c.l.b16 %v3563
        %v3767 = vunpack.c.h.b16 %v3563
        %v3768 = vunpack.c.l.b16 %v3564
        %v3769 = vunpack.c.h.b16 %v3564
        %v3770 = vunpack.c.l.b16 %v3565
        %v3771 = vunpack.c.h.b16 %v3565
        %v3772 = vunpack.c.l.b16 %v3566
        %v3773 = vunpack.c.h.b16 %v3566
        %v3774 = vunpack.c.l.b16 %v3567
        %v3775 = vunpack.c.h.b16 %v3567
        %v3776 = vunpack.c.l.b16 %v3568
        %v3777 = vunpack.c.h.b16 %v3568
        %v3778 = vunpack.c.l.b16 %v3569
        %v3779 = vunpack.c.h.b16 %v3569
        %v3780 = vunpack.c.l.b16 %v3570
        %v3781 = vunpack.c.h.b16 %v3570
        %v3782 = vunpack.c.l.b16 %v3571
        %v3783 = vunpack.c.h.b16 %v3571
        %v3784 = vunpack.c.l.b16 %v3572
        %v3785 = vunpack.c.h.b16 %v3572
        %v3786 = vunpack.c.l.b16 %v3573
        %v3787 = vunpack.c.h.b16 %v3573
        %v3788 = vpack.c.b16 %v3664, %v3660
        %v3789 = vpack.c.b16 %v3665, %v3661
        %v3790 = vpack.c.b16 %v3666, %v3662
        %v3791 = vpack.c.b16 %v3667, %v3663
        %v3792 = vpack.c.b16 %v3672, %v3668
        %v3793 = vpack.c.b16 %v3673, %v3669
        %v3794 = vpack.c.b16 %v3674, %v3670
        %v3795 = vpack.c.b16 %v3675, %v3671
        %v3796 = vpack.c.b16 %v3680, %v3676
        %v3797 = vpack.c.b16 %v3681, %v3677
        %v3798 = vpack.c.b16 %v3682, %v3678
        %v3799 = vpack.c.b16 %v3683, %v3679
        %v3800 = vpack.c.b16 %v3688, %v3684
        %v3801 = vpack.c.b16 %v3689, %v3685
        %v3802 = vpack.c.b16 %v3690, %v3686
        %v3803 = vpack.c.b16 %v3691, %v3687
        %v3804 = vpack.c.b16 %v3696, %v3692
        %v3805 = vpack.c.b16 %v3697, %v3693
        %v3806 = vpack.c.b16 %v3698, %v3694
        %v3807 = vpack.c.b16 %v3699, %v3695
        %v3808 = vpack.c.b16 %v3704, %v3700
        %v3809 = vpack.c.b16 %v3705, %v3701
        %v3810 = vpack.c.b16 %v3706, %v3702
        %v3811 = vpack.c.b16 %v3707, %v3703
        %v3812 = vpack.c.b16 %v3712, %v3708
        %v3813 = vpack.c.b16 %v3713, %v3709
        %v3814 = vpack.c.b16 %v3714, %v3710
        %v3815 = vpack.c.b16 %v3715, %v3711
        %v3816 = vpack.c.b16 %v3720, %v3716
        %v3817 = vpack.c.b16 %v3721, %v3717
        %v3818 = vpack.c.b16 %v3722, %v3718
        %v3819 = vpack.c.b16 %v3723, %v3719
        %v3820 = vpack.c.b16 %v3728, %v3724
        %v3821 = vpack.c.b16 %v3729, %v3725
        %v3822 = vpack.c.b16 %v3730, %v3726
        %v3823 = vpack.c.b16 %v3731, %v3727
        %v3824 = vpack.c.b16 %v3736, %v3732
        %v3825 = vpack.c.b16 %v3737, %v3733
        %v3826 = vpack.c.b16 %v3738, %v3734
        %v3827 = vpack.c.b16 %v3739, %v3735
        %v3828 = vpack.c.b16 %v3744, %v3740
        %v3829 = vpack.c.b16 %v3745, %v3741
        %v3830 = vpack.c.b16 %v3746, %v3742
        %v3831 = vpack.c.b16 %v3747, %v3743
        %v3832 = vpack.c.b16 %v3752, %v3748
        %v3833 = vpack.c.b16 %v3753, %v3749
        %v3834 = vpack.c.b16 %v3754, %v3750
        %v3835 = vpack.c.b16 %v3755, %v3751
        %v3836 = vpack.c.b16 %v3760, %v3756
        %v3837 = vpack.c.b16 %v3761, %v3757
        %v3838 = vpack.c.b16 %v3762, %v3758
        %v3839 = vpack.c.b16 %v3763, %v3759
        %v3840 = vpack.c.b16 %v3768, %v3764
        %v3841 = vpack.c.b16 %v3769, %v3765
        %v3842 = vpack.c.b16 %v3770, %v3766
        %v3843 = vpack.c.b16 %v3771, %v3767
        %v3844 = vpack.c.b16 %v3776, %v3772
        %v3845 = vpack.c.b16 %v3777, %v3773
        %v3846 = vpack.c.b16 %v3778, %v3774
        %v3847 = vpack.c.b16 %v3779, %v3775
        %v3848 = vpack.c.b16 %v3784, %v3780
        %v3849 = vpack.c.b16 %v3785, %v3781
        %v3850 = vpack.c.b16 %v3786, %v3782
        %v3851 = vpack.c.b16 %v3787, %v3783
        %3916 = vmatprep.subr.bf16.mxu0 %v3789
        %3917 = vmatpush1.bf16.msra.mxu0 %v3788
        %3918 = vmatprep.subr.bf16.mxu0 %v3793
        %3919 = vmatpush1.bf16.msra.mxu0 %v3792
        %3920 = vmatprep.subr.bf16.mxu0 %v3797
        %3921 = vmatpush1.bf16.msra.mxu0 %v3796
        %3922 = vmatprep.subr.bf16.mxu0 %v3801
        %3923 = vmatpush1.bf16.msra.mxu0 %v3800
        %3924 = vmatprep.subr.bf16.mxu0 %v3805
        %3925 = vmatpush1.bf16.msra.mxu0 %v3804
        %3926 = vmatprep.subr.bf16.mxu0 %v3809
        %3927 = vmatpush1.bf16.msra.mxu0 %v3808
        %3928 = vmatprep.subr.bf16.mxu0 %v3813
        %3929 = vmatpush1.bf16.msra.mxu0 %v3812
        %3930 = vmatprep.subr.bf16.mxu0 %v3817
        %3931 = vmatpush1.bf16.msra.mxu0 %v3816
        %3932 = vmatprep.subr.bf16.mxu0 %v3821
        %3933 = vmatpush1.bf16.msra.mxu0 %v3820
        %3934 = vmatprep.subr.bf16.mxu0 %v3825
        %3935 = vmatpush1.bf16.msra.mxu0 %v3824
        %3936 = vmatprep.subr.bf16.mxu0 %v3829
        %3937 = vmatpush1.bf16.msra.mxu0 %v3828
        %3938 = vmatprep.subr.bf16.mxu0 %v3833
        %3939 = vmatpush1.bf16.msra.mxu0 %v3832
        %3940 = vmatprep.subr.bf16.mxu0 %v3837
        %3941 = vmatpush1.bf16.msra.mxu0 %v3836
        %3942 = vmatprep.subr.bf16.mxu0 %v3841
        %3943 = vmatpush1.bf16.msra.mxu0 %v3840
        %3944 = vmatprep.subr.bf16.mxu0 %v3845
        %3945 = vmatpush1.bf16.msra.mxu0 %v3844
        %3946 = vmatprep.subr.bf16.mxu0 %v3849
        %3947 = vmatpush1.bf16.msra.mxu0 %v3848
        %3948 = vmatprep.mubr.bf16.mxu0 %v3509
        %3949 = vmatmul.mubr.bf16.gmra.mrb[0].mxu0 %v3508
        %v3950 = vpop.f32.mrb[0].mxu0
        %v3951 = vadd.f32 %v3579, %v3950
        %v3952 = vpop.f32.mrb[0].mxu0
        %v3953 = vadd.f32 %v3583, %v3952
        %v3954 = vpop.f32.mrb[0].mxu0
        %v3955 = vadd.f32 %v3579, %v3954
        %v3956 = vpop.f32.mrb[0].mxu0
        %v3957 = vadd.f32 %v3583, %v3956
        %3958 = vdwg.mxu0
        %3959 = vmatprep.subr.bf16.mxu0 %v3791
        %3960 = vmatpush1.bf16.msra.mxu0 %v3790
        %3961 = vmatprep.subr.bf16.mxu0 %v3795
        %3962 = vmatpush1.bf16.msra.mxu0 %v3794
        %3963 = vmatprep.subr.bf16.mxu0 %v3799
        %3964 = vmatpush1.bf16.msra.mxu0 %v3798
        %3965 = vmatprep.subr.bf16.mxu0 %v3803
        %3966 = vmatpush1.bf16.msra.mxu0 %v3802
        %3967 = vmatprep.subr.bf16.mxu0 %v3807
        %3968 = vmatpush1.bf16.msra.mxu0 %v3806
        %3969 = vmatprep.subr.bf16.mxu0 %v3811
        %3970 = vmatpush1.bf16.msra.mxu0 %v3810
        %3971 = vmatprep.subr.bf16.mxu0 %v3815
        %3972 = vmatpush1.bf16.msra.mxu0 %v3814
        %3973 = vmatprep.subr.bf16.mxu0 %v3819
        %3974 = vmatpush1.bf16.msra.mxu0 %v3818
        %3975 = vmatprep.subr.bf16.mxu0 %v3823
        %3976 = vmatpush1.bf16.msra.mxu0 %v3822
        %3977 = vmatprep.subr.bf16.mxu0 %v3827
        %3978 = vmatpush1.bf16.msra.mxu0 %v3826
        %3979 = vmatprep.subr.bf16.mxu0 %v3831
        %3980 = vmatpush1.bf16.msra.mxu0 %v3830
        %3981 = vmatprep.subr.bf16.mxu0 %v3835
        %3982 = vmatpush1.bf16.msra.mxu0 %v3834
        %3983 = vmatprep.subr.bf16.mxu0 %v3839
        %3984 = vmatpush1.bf16.msra.mxu0 %v3838
        %3985 = vmatprep.subr.bf16.mxu0 %v3843
        %3986 = vmatpush1.bf16.msra.mxu0 %v3842
        %3987 = vmatprep.subr.bf16.mxu0 %v3847
        %3988 = vmatpush1.bf16.msra.mxu0 %v3846
        %3989 = vmatprep.subr.bf16.mxu0 %v3851
        %3990 = vmatpush1.bf16.msra.mxu0 %v3850
        %3991 = vmatprep.mubr.bf16.mxu0 %v3509
        %3992 = vmatmul.mubr.bf16.gmra.mrb[0].mxu0 %v3508
        %v3993 = vpop.f32.mrb[0].mxu0
        %v3994 = vadd.f32 %v3587, %v3993
        %v3995 = vpop.f32.mrb[0].mxu0
        %v3996 = vadd.f32 %v3591, %v3995
        %v3997 = vpop.f32.mrb[0].mxu0
        %v3998 = vadd.f32 %v3587, %v3997
        %v3999 = vpop.f32.mrb[0].mxu0
        %v4000 = vadd.f32 %v3591, %v3999
        %4001 = vdwg.mxu0
        %v4002 = vmax.f32 %v3951, 0.0
        %v4003 = vmax.f32 %v3953, 0.0
        %v4004 = vmax.f32 %v3994, 0.0
        %v4005 = vmax.f32 %v3996, 0.0
        %v4006 = vmax.f32 %v3955, 0.0
        %v4007 = vmax.f32 %v3957, 0.0
        %v4008 = vmax.f32 %v3998, 0.0
        %v4009 = vmax.f32 %v4000, 0.0
        %v4010 = vpack.c.bf16 %v4006, %v4002
        %v4011 = vpack.c.bf16 %v4007, %v4003
        %v4012 = vpack.c.bf16 %v4008, %v4004
        %v4013 = vpack.c.bf16 %v4009, %v4005
        %v4014 = vld [vmem:[%s502] sm:$0xff]
        %v4015 = vld [vmem:[%s502 + $0x8] sm:$0xff]
        %v4016 = vld [vmem:[%s502 + $0x10] sm:$0xff]
        %v4017 = vld [vmem:[%s502 + $0x18] sm:$0xff]
        %v4018 = vld [vmem:[%s502 + $0x20] sm:$0xff]
        %v4019 = vld [vmem:[%s502 + $0x28] sm:$0xff]
        %v4020 = vld [vmem:[%s502 + $0x30] sm:$0xff]
        %v4021 = vld [vmem:[%s502 + $0x38] sm:$0xff]
        %v4022 = vld [vmem:[%s502 + $0x40] sm:$0xff]
        %v4023 = vld [vmem:[%s502 + $0x48] sm:$0xff]
        %v4024 = vld [vmem:[%s502 + $0x50] sm:$0xff]
        %v4025 = vld [vmem:[%s502 + $0x58] sm:$0xff]
        %v4026 = vld [vmem:[%s502 + $0x60] sm:$0xff]
        %v4027 = vld [vmem:[%s502 + $0x68] sm:$0xff]
        %v4028 = vld [vmem:[%s502 + $0x70] sm:$0xff]
        %v4029 = vld [vmem:[%s502 + $0x78] sm:$0xff]
        %v4030 = vld [vmem:[%s502 + $0x80] sm:$0xff]
        %v4031 = vld [vmem:[%s502 + $0x88] sm:$0xff]
        %v4032 = vld [vmem:[%s502 + $0x90] sm:$0xff]
        %v4033 = vld [vmem:[%s502 + $0x98] sm:$0xff]
        %v4034 = vld [vmem:[%s502 + $0xa0] sm:$0xff]
        %v4035 = vld [vmem:[%s502 + $0xa8] sm:$0xff]
        %v4036 = vld [vmem:[%s502 + $0xb0] sm:$0xff]
        %v4037 = vld [vmem:[%s502 + $0xb8] sm:$0xff]
        %v4038 = vld [vmem:[%s502 + $0xc0] sm:$0xff]
        %v4039 = vld [vmem:[%s502 + $0xc8] sm:$0xff]
        %v4040 = vld [vmem:[%s502 + $0xd0] sm:$0xff]
        %v4041 = vld [vmem:[%s502 + $0xd8] sm:$0xff]
        %v4042 = vld [vmem:[%s502 + $0xe0] sm:$0xff]
        %v4043 = vld [vmem:[%s502 + $0xe8] sm:$0xff]
        %v4044 = vld [vmem:[%s502 + $0xf0] sm:$0xff]
        %v4045 = vld [vmem:[%s502 + $0xf8] sm:$0xff]
        %v4046 = vld [vmem:[%s502 + $0x100] sm:$0xff]
        %v4047 = vld [vmem:[%s502 + $0x108] sm:$0xff]
        %v4048 = vld [vmem:[%s502 + $0x110] sm:$0xff]
        %v4049 = vld [vmem:[%s502 + $0x118] sm:$0xff]
        %v4050 = vld [vmem:[%s502 + $0x120] sm:$0xff]
        %v4051 = vld [vmem:[%s502 + $0x128] sm:$0xff]
        %v4052 = vld [vmem:[%s502 + $0x130] sm:$0xff]
        %v4053 = vld [vmem:[%s502 + $0x138] sm:$0xff]
        %v4054 = vld [vmem:[%s502 + $0x140] sm:$0xff]
        %v4055 = vld [vmem:[%s502 + $0x148] sm:$0xff]
        %v4056 = vld [vmem:[%s502 + $0x150] sm:$0xff]
        %v4057 = vld [vmem:[%s502 + $0x158] sm:$0xff]
        %v4058 = vld [vmem:[%s502 + $0x160] sm:$0xff]
        %v4059 = vld [vmem:[%s502 + $0x168] sm:$0xff]
        %v4060 = vld [vmem:[%s502 + $0x170] sm:$0xff]
        %v4061 = vld [vmem:[%s502 + $0x178] sm:$0xff]
        %v4062 = vld [vmem:[%s502 + $0x180] sm:$0xff]
        %v4063 = vld [vmem:[%s502 + $0x188] sm:$0xff]
        %v4064 = vld [vmem:[%s502 + $0x190] sm:$0xff]
        %v4065 = vld [vmem:[%s502 + $0x198] sm:$0xff]
        %v4066 = vld [vmem:[%s502 + $0x1a0] sm:$0xff]
        %v4067 = vld [vmem:[%s502 + $0x1a8] sm:$0xff]
        %v4068 = vld [vmem:[%s502 + $0x1b0] sm:$0xff]
        %v4069 = vld [vmem:[%s502 + $0x1b8] sm:$0xff]
        %v4070 = vld [vmem:[%s502 + $0x1c0] sm:$0xff]
        %v4071 = vld [vmem:[%s502 + $0x1c8] sm:$0xff]
        %v4072 = vld [vmem:[%s502 + $0x1d0] sm:$0xff]
        %v4073 = vld [vmem:[%s502 + $0x1d8] sm:$0xff]
        %v4074 = vld [vmem:[%s502 + $0x1e0] sm:$0xff]
        %v4075 = vld [vmem:[%s502 + $0x1e8] sm:$0xff]
        %v4076 = vld [vmem:[%s502 + $0x1f0] sm:$0xff]
        %v4077 = vld [vmem:[%s502 + $0x1f8] sm:$0xff]
        %v4078 = vld [vmem:[%s493 + $0x10] sm:$0xff]
        %v4079 = vld [vmem:[%s493 + $0x18] sm:$0xff]
        %v4080 = vld [vmem:[%s493 + $0x50] sm:$0xff]
        %v4081 = vld [vmem:[%s493 + $0x58] sm:$0xff]
        %v4082 = vld [vmem:[%s493 + $0x90] sm:$0xff]
        %v4083 = vld [vmem:[%s493 + $0x98] sm:$0xff]
        %v4084 = vld [vmem:[%s493 + $0xd0] sm:$0xff]
        %v4085 = vld [vmem:[%s493 + $0xd8] sm:$0xff]
        %v4086 = vld [vmem:[%s493 + $0x110] sm:$0xff]
        %v4087 = vld [vmem:[%s493 + $0x118] sm:$0xff]
        %v4088 = vld [vmem:[%s493 + $0x150] sm:$0xff]
        %v4089 = vld [vmem:[%s493 + $0x158] sm:$0xff]
        %v4090 = vld [vmem:[%s493 + $0x190] sm:$0xff]
        %v4091 = vld [vmem:[%s493 + $0x198] sm:$0xff]
        %v4092 = vld [vmem:[%s493 + $0x1d0] sm:$0xff]
        %v4093 = vld [vmem:[%s493 + $0x1d8] sm:$0xff]
        %v4094 = vld [vmem:[%s493 + $0x210] sm:$0xff]
        %v4095 = vld [vmem:[%s493 + $0x218] sm:$0xff]
        %v4096 = vld [vmem:[%s493 + $0x250] sm:$0xff]
        %v4097 = vld [vmem:[%s493 + $0x258] sm:$0xff]
        %v4098 = vld [vmem:[%s493 + $0x290] sm:$0xff]
        %v4099 = vld [vmem:[%s493 + $0x298] sm:$0xff]
        %v4100 = vld [vmem:[%s493 + $0x2d0] sm:$0xff]
        %v4101 = vld [vmem:[%s493 + $0x2d8] sm:$0xff]
        %v4102 = vld [vmem:[%s493 + $0x310] sm:$0xff]
        %v4103 = vld [vmem:[%s493 + $0x318] sm:$0xff]
        %v4104 = vld [vmem:[%s493 + $0x350] sm:$0xff]
        %v4105 = vld [vmem:[%s493 + $0x358] sm:$0xff]
        %v4106 = vld [vmem:[%s493 + $0x390] sm:$0xff]
        %v4107 = vld [vmem:[%s493 + $0x398] sm:$0xff]
        %v4108 = vld [vmem:[%s493 + $0x3d0] sm:$0xff]
        %v4109 = vld [vmem:[%s493 + $0x3d8] sm:$0xff]
        %v4110 = vld [vmem:[%s493 + $0x410] sm:$0xff]
        %v4111 = vld [vmem:[%s493 + $0x418] sm:$0xff]
        %v4112 = vld [vmem:[%s493 + $0x450] sm:$0xff]
        %v4113 = vld [vmem:[%s493 + $0x458] sm:$0xff]
        %v4114 = vld [vmem:[%s493 + $0x490] sm:$0xff]
        %v4115 = vld [vmem:[%s493 + $0x498] sm:$0xff]
        %v4116 = vld [vmem:[%s493 + $0x4d0] sm:$0xff]
        %v4117 = vld [vmem:[%s493 + $0x4d8] sm:$0xff]
        %v4118 = vld [vmem:[%s493 + $0x510] sm:$0xff]
        %v4119 = vld [vmem:[%s493 + $0x518] sm:$0xff]
        %v4120 = vld [vmem:[%s493 + $0x550] sm:$0xff]
        %v4121 = vld [vmem:[%s493 + $0x558] sm:$0xff]
        %v4122 = vld [vmem:[%s493 + $0x590] sm:$0xff]
        %v4123 = vld [vmem:[%s493 + $0x598] sm:$0xff]
        %v4124 = vld [vmem:[%s493 + $0x5d0] sm:$0xff]
        %v4125 = vld [vmem:[%s493 + $0x5d8] sm:$0xff]
        %v4126 = vld [vmem:[%s493 + $0x610] sm:$0xff]
        %v4127 = vld [vmem:[%s493 + $0x618] sm:$0xff]
        %v4128 = vld [vmem:[%s493 + $0x650] sm:$0xff]
        %v4129 = vld [vmem:[%s493 + $0x658] sm:$0xff]
        %v4130 = vld [vmem:[%s493 + $0x690] sm:$0xff]
        %v4131 = vld [vmem:[%s493 + $0x698] sm:$0xff]
        %v4132 = vld [vmem:[%s493 + $0x6d0] sm:$0xff]
        %v4133 = vld [vmem:[%s493 + $0x6d8] sm:$0xff]
        %v4134 = vld [vmem:[%s493 + $0x710] sm:$0xff]
        %v4135 = vld [vmem:[%s493 + $0x718] sm:$0xff]
        %v4136 = vld [vmem:[%s493 + $0x750] sm:$0xff]
        %v4137 = vld [vmem:[%s493 + $0x758] sm:$0xff]
        %v4138 = vld [vmem:[%s493 + $0x790] sm:$0xff]
        %v4139 = vld [vmem:[%s493 + $0x798] sm:$0xff]
        %v4140 = vld [vmem:[%s493 + $0x7d0] sm:$0xff]
        %v4141 = vld [vmem:[%s493 + $0x7d8] sm:$0xff]
        %v4142 = vld [vmem:[%s511 + $0x4] sm:$0xf]
        %v4144 = vlaneseq
        %v4145 = vshrl.u32 %v4144, 7
        %v4146 = vsub.s32 0, %v4145
        %v4147 = vrot.slane %v4142, %v4146
        %v4148 = vlaneseq
        %v4149 = vshrl.u32 %v4148, 7
        %v4150 = vsub.s32 1, %v4149
        %v4151 = vrot.slane %v4142, %v4150
        %v4152 = vlaneseq
        %v4153 = vshrl.u32 %v4152, 7
        %v4154 = vsub.s32 2, %v4153
        %v4155 = vrot.slane %v4142, %v4154
        %v4156 = vlaneseq
        %v4157 = vshrl.u32 %v4156, 7
        %v4158 = vsub.s32 3, %v4157
        %v4159 = vrot.slane %v4142, %v4158
        %v4228 = vunpack.c.l.b16 %v4078
        %v4229 = vunpack.c.h.b16 %v4078
        %v4230 = vunpack.c.l.b16 %v4079
        %v4231 = vunpack.c.h.b16 %v4079
        %v4232 = vunpack.c.l.b16 %v4080
        %v4233 = vunpack.c.h.b16 %v4080
        %v4234 = vunpack.c.l.b16 %v4081
        %v4235 = vunpack.c.h.b16 %v4081
        %v4236 = vunpack.c.l.b16 %v4082
        %v4237 = vunpack.c.h.b16 %v4082
        %v4238 = vunpack.c.l.b16 %v4083
        %v4239 = vunpack.c.h.b16 %v4083
        %v4240 = vunpack.c.l.b16 %v4084
        %v4241 = vunpack.c.h.b16 %v4084
        %v4242 = vunpack.c.l.b16 %v4085
        %v4243 = vunpack.c.h.b16 %v4085
        %v4244 = vunpack.c.l.b16 %v4086
        %v4245 = vunpack.c.h.b16 %v4086
        %v4246 = vunpack.c.l.b16 %v4087
        %v4247 = vunpack.c.h.b16 %v4087
        %v4248 = vunpack.c.l.b16 %v4088
        %v4249 = vunpack.c.h.b16 %v4088
        %v4250 = vunpack.c.l.b16 %v4089
        %v4251 = vunpack.c.h.b16 %v4089
        %v4252 = vunpack.c.l.b16 %v4090
        %v4253 = vunpack.c.h.b16 %v4090
        %v4254 = vunpack.c.l.b16 %v4091
        %v4255 = vunpack.c.h.b16 %v4091
        %v4256 = vunpack.c.l.b16 %v4092
        %v4257 = vunpack.c.h.b16 %v4092
        %v4258 = vunpack.c.l.b16 %v4093
        %v4259 = vunpack.c.h.b16 %v4093
        %v4260 = vunpack.c.l.b16 %v4094
        %v4261 = vunpack.c.h.b16 %v4094
        %v4262 = vunpack.c.l.b16 %v4095
        %v4263 = vunpack.c.h.b16 %v4095
        %v4264 = vunpack.c.l.b16 %v4096
        %v4265 = vunpack.c.h.b16 %v4096
        %v4266 = vunpack.c.l.b16 %v4097
        %v4267 = vunpack.c.h.b16 %v4097
        %v4268 = vunpack.c.l.b16 %v4098
        %v4269 = vunpack.c.h.b16 %v4098
        %v4270 = vunpack.c.l.b16 %v4099
        %v4271 = vunpack.c.h.b16 %v4099
        %v4272 = vunpack.c.l.b16 %v4100
        %v4273 = vunpack.c.h.b16 %v4100
        %v4274 = vunpack.c.l.b16 %v4101
        %v4275 = vunpack.c.h.b16 %v4101
        %v4276 = vunpack.c.l.b16 %v4102
        %v4277 = vunpack.c.h.b16 %v4102
        %v4278 = vunpack.c.l.b16 %v4103
        %v4279 = vunpack.c.h.b16 %v4103
        %v4280 = vunpack.c.l.b16 %v4104
        %v4281 = vunpack.c.h.b16 %v4104
        %v4282 = vunpack.c.l.b16 %v4105
        %v4283 = vunpack.c.h.b16 %v4105
        %v4284 = vunpack.c.l.b16 %v4106
        %v4285 = vunpack.c.h.b16 %v4106
        %v4286 = vunpack.c.l.b16 %v4107
        %v4287 = vunpack.c.h.b16 %v4107
        %v4288 = vunpack.c.l.b16 %v4108
        %v4289 = vunpack.c.h.b16 %v4108
        %v4290 = vunpack.c.l.b16 %v4109
        %v4291 = vunpack.c.h.b16 %v4109
        %v4292 = vunpack.c.l.b16 %v4110
        %v4293 = vunpack.c.h.b16 %v4110
        %v4294 = vunpack.c.l.b16 %v4111
        %v4295 = vunpack.c.h.b16 %v4111
        %v4296 = vunpack.c.l.b16 %v4112
        %v4297 = vunpack.c.h.b16 %v4112
        %v4298 = vunpack.c.l.b16 %v4113
        %v4299 = vunpack.c.h.b16 %v4113
        %v4300 = vunpack.c.l.b16 %v4114
        %v4301 = vunpack.c.h.b16 %v4114
        %v4302 = vunpack.c.l.b16 %v4115
        %v4303 = vunpack.c.h.b16 %v4115
        %v4304 = vunpack.c.l.b16 %v4116
        %v4305 = vunpack.c.h.b16 %v4116
        %v4306 = vunpack.c.l.b16 %v4117
        %v4307 = vunpack.c.h.b16 %v4117
        %v4308 = vunpack.c.l.b16 %v4118
        %v4309 = vunpack.c.h.b16 %v4118
        %v4310 = vunpack.c.l.b16 %v4119
        %v4311 = vunpack.c.h.b16 %v4119
        %v4312 = vunpack.c.l.b16 %v4120
        %v4313 = vunpack.c.h.b16 %v4120
        %v4314 = vunpack.c.l.b16 %v4121
        %v4315 = vunpack.c.h.b16 %v4121
        %v4316 = vunpack.c.l.b16 %v4122
        %v4317 = vunpack.c.h.b16 %v4122
        %v4318 = vunpack.c.l.b16 %v4123
        %v4319 = vunpack.c.h.b16 %v4123
        %v4320 = vunpack.c.l.b16 %v4124
        %v4321 = vunpack.c.h.b16 %v4124
        %v4322 = vunpack.c.l.b16 %v4125
        %v4323 = vunpack.c.h.b16 %v4125
        %v4324 = vunpack.c.l.b16 %v4126
        %v4325 = vunpack.c.h.b16 %v4126
        %v4326 = vunpack.c.l.b16 %v4127
        %v4327 = vunpack.c.h.b16 %v4127
        %v4328 = vunpack.c.l.b16 %v4128
        %v4329 = vunpack.c.h.b16 %v4128
        %v4330 = vunpack.c.l.b16 %v4129
        %v4331 = vunpack.c.h.b16 %v4129
        %v4332 = vunpack.c.l.b16 %v4130
        %v4333 = vunpack.c.h.b16 %v4130
        %v4334 = vunpack.c.l.b16 %v4131
        %v4335 = vunpack.c.h.b16 %v4131
        %v4336 = vunpack.c.l.b16 %v4132
        %v4337 = vunpack.c.h.b16 %v4132
        %v4338 = vunpack.c.l.b16 %v4133
        %v4339 = vunpack.c.h.b16 %v4133
        %v4340 = vunpack.c.l.b16 %v4134
        %v4341 = vunpack.c.h.b16 %v4134
        %v4342 = vunpack.c.l.b16 %v4135
        %v4343 = vunpack.c.h.b16 %v4135
        %v4344 = vunpack.c.l.b16 %v4136
        %v4345 = vunpack.c.h.b16 %v4136
        %v4346 = vunpack.c.l.b16 %v4137
        %v4347 = vunpack.c.h.b16 %v4137
        %v4348 = vunpack.c.l.b16 %v4138
        %v4349 = vunpack.c.h.b16 %v4138
        %v4350 = vunpack.c.l.b16 %v4139
        %v4351 = vunpack.c.h.b16 %v4139
        %v4352 = vunpack.c.l.b16 %v4140
        %v4353 = vunpack.c.h.b16 %v4140
        %v4354 = vunpack.c.l.b16 %v4141
        %v4355 = vunpack.c.h.b16 %v4141
        %v4356 = vpack.c.b16 %v4232, %v4228
        %v4357 = vpack.c.b16 %v4233, %v4229
        %v4358 = vpack.c.b16 %v4234, %v4230
        %v4359 = vpack.c.b16 %v4235, %v4231
        %v4360 = vpack.c.b16 %v4240, %v4236
        %v4361 = vpack.c.b16 %v4241, %v4237
        %v4362 = vpack.c.b16 %v4242, %v4238
        %v4363 = vpack.c.b16 %v4243, %v4239
        %v4364 = vpack.c.b16 %v4248, %v4244
        %v4365 = vpack.c.b16 %v4249, %v4245
        %v4366 = vpack.c.b16 %v4250, %v4246
        %v4367 = vpack.c.b16 %v4251, %v4247
        %v4368 = vpack.c.b16 %v4256, %v4252
        %v4369 = vpack.c.b16 %v4257, %v4253
        %v4370 = vpack.c.b16 %v4258, %v4254
        %v4371 = vpack.c.b16 %v4259, %v4255
        %v4372 = vpack.c.b16 %v4264, %v4260
        %v4373 = vpack.c.b16 %v4265, %v4261
        %v4374 = vpack.c.b16 %v4266, %v4262
        %v4375 = vpack.c.b16 %v4267, %v4263
        %v4376 = vpack.c.b16 %v4272, %v4268
        %v4377 = vpack.c.b16 %v4273, %v4269
        %v4378 = vpack.c.b16 %v4274, %v4270
        %v4379 = vpack.c.b16 %v4275, %v4271
        %v4380 = vpack.c.b16 %v4280, %v4276
        %v4381 = vpack.c.b16 %v4281, %v4277
        %v4382 = vpack.c.b16 %v4282, %v4278
        %v4383 = vpack.c.b16 %v4283, %v4279
        %v4384 = vpack.c.b16 %v4288, %v4284
        %v4385 = vpack.c.b16 %v4289, %v4285
        %v4386 = vpack.c.b16 %v4290, %v4286
        %v4387 = vpack.c.b16 %v4291, %v4287
        %v4388 = vpack.c.b16 %v4296, %v4292
        %v4389 = vpack.c.b16 %v4297, %v4293
        %v4390 = vpack.c.b16 %v4298, %v4294
        %v4391 = vpack.c.b16 %v4299, %v4295
        %v4392 = vpack.c.b16 %v4304, %v4300
        %v4393 = vpack.c.b16 %v4305, %v4301
        %v4394 = vpack.c.b16 %v4306, %v4302
        %v4395 = vpack.c.b16 %v4307, %v4303
        %v4396 = vpack.c.b16 %v4312, %v4308
        %v4397 = vpack.c.b16 %v4313, %v4309
        %v4398 = vpack.c.b16 %v4314, %v4310
        %v4399 = vpack.c.b16 %v4315, %v4311
        %v4400 = vpack.c.b16 %v4320, %v4316
        %v4401 = vpack.c.b16 %v4321, %v4317
        %v4402 = vpack.c.b16 %v4322, %v4318
        %v4403 = vpack.c.b16 %v4323, %v4319
        %v4404 = vpack.c.b16 %v4328, %v4324
        %v4405 = vpack.c.b16 %v4329, %v4325
        %v4406 = vpack.c.b16 %v4330, %v4326
        %v4407 = vpack.c.b16 %v4331, %v4327
        %v4408 = vpack.c.b16 %v4336, %v4332
        %v4409 = vpack.c.b16 %v4337, %v4333
        %v4410 = vpack.c.b16 %v4338, %v4334
        %v4411 = vpack.c.b16 %v4339, %v4335
        %v4412 = vpack.c.b16 %v4344, %v4340
        %v4413 = vpack.c.b16 %v4345, %v4341
        %v4414 = vpack.c.b16 %v4346, %v4342
        %v4415 = vpack.c.b16 %v4347, %v4343
        %v4416 = vpack.c.b16 %v4352, %v4348
        %v4417 = vpack.c.b16 %v4353, %v4349
        %v4418 = vpack.c.b16 %v4354, %v4350
        %v4419 = vpack.c.b16 %v4355, %v4351
        %4484 = vmatprep.subr.bf16.mxu0 %v4357
        %4485 = vmatpush1.bf16.msra.mxu0 %v4356
        %4486 = vmatprep.subr.bf16.mxu0 %v4361
        %4487 = vmatpush1.bf16.msra.mxu0 %v4360
        %4488 = vmatprep.subr.bf16.mxu0 %v4365
        %4489 = vmatpush1.bf16.msra.mxu0 %v4364
        %4490 = vmatprep.subr.bf16.mxu0 %v4369
        %4491 = vmatpush1.bf16.msra.mxu0 %v4368
        %4492 = vmatprep.subr.bf16.mxu0 %v4373
        %4493 = vmatpush1.bf16.msra.mxu0 %v4372
        %4494 = vmatprep.subr.bf16.mxu0 %v4377
        %4495 = vmatpush1.bf16.msra.mxu0 %v4376
        %4496 = vmatprep.subr.bf16.mxu0 %v4381
        %4497 = vmatpush1.bf16.msra.mxu0 %v4380
        %4498 = vmatprep.subr.bf16.mxu0 %v4385
        %4499 = vmatpush1.bf16.msra.mxu0 %v4384
        %4500 = vmatprep.subr.bf16.mxu0 %v4389
        %4501 = vmatpush1.bf16.msra.mxu0 %v4388
        %4502 = vmatprep.subr.bf16.mxu0 %v4393
        %4503 = vmatpush1.bf16.msra.mxu0 %v4392
        %4504 = vmatprep.subr.bf16.mxu0 %v4397
        %4505 = vmatpush1.bf16.msra.mxu0 %v4396
        %4506 = vmatprep.subr.bf16.mxu0 %v4401
        %4507 = vmatpush1.bf16.msra.mxu0 %v4400
        %4508 = vmatprep.subr.bf16.mxu0 %v4405
        %4509 = vmatpush1.bf16.msra.mxu0 %v4404
        %4510 = vmatprep.subr.bf16.mxu0 %v4409
        %4511 = vmatpush1.bf16.msra.mxu0 %v4408
        %4512 = vmatprep.subr.bf16.mxu0 %v4413
        %4513 = vmatpush1.bf16.msra.mxu0 %v4412
        %4514 = vmatprep.subr.bf16.mxu0 %v4417
        %4515 = vmatpush1.bf16.msra.mxu0 %v4416
        %4516 = vmatprep.mubr.bf16.mxu0 %v3509
        %4517 = vmatmul.mubr.bf16.gmra.mrb[0].mxu0 %v3508
        %v4518 = vpop.f32.mrb[0].mxu0
        %v4519 = vadd.f32 %v4147, %v4518
        %v4520 = vpop.f32.mrb[0].mxu0
        %v4521 = vadd.f32 %v4151, %v4520
        %v4522 = vpop.f32.mrb[0].mxu0
        %v4523 = vadd.f32 %v4147, %v4522
        %v4524 = vpop.f32.mrb[0].mxu0
        %v4525 = vadd.f32 %v4151, %v4524
        %4526 = vdwg.mxu0
        %4527 = vmatprep.subr.bf16.mxu0 %v4359
        %4528 = vmatpush1.bf16.msra.mxu0 %v4358
        %4529 = vmatprep.subr.bf16.mxu0 %v4363
        %4530 = vmatpush1.bf16.msra.mxu0 %v4362
        %4531 = vmatprep.subr.bf16.mxu0 %v4367
        %4532 = vmatpush1.bf16.msra.mxu0 %v4366
        %4533 = vmatprep.subr.bf16.mxu0 %v4371
        %4534 = vmatpush1.bf16.msra.mxu0 %v4370
        %4535 = vmatprep.subr.bf16.mxu0 %v4375
        %4536 = vmatpush1.bf16.msra.mxu0 %v4374
        %4537 = vmatprep.subr.bf16.mxu0 %v4379
        %4538 = vmatpush1.bf16.msra.mxu0 %v4378
        %4539 = vmatprep.subr.bf16.mxu0 %v4383
        %4540 = vmatpush1.bf16.msra.mxu0 %v4382
        %4541 = vmatprep.subr.bf16.mxu0 %v4387
        %4542 = vmatpush1.bf16.msra.mxu0 %v4386
        %4543 = vmatprep.subr.bf16.mxu0 %v4391
        %4544 = vmatpush1.bf16.msra.mxu0 %v4390
        %4545 = vmatprep.subr.bf16.mxu0 %v4395
        %4546 = vmatpush1.bf16.msra.mxu0 %v4394
        %4547 = vmatprep.subr.bf16.mxu0 %v4399
        %4548 = vmatpush1.bf16.msra.mxu0 %v4398
        %4549 = vmatprep.subr.bf16.mxu0 %v4403
        %4550 = vmatpush1.bf16.msra.mxu0 %v4402
        %4551 = vmatprep.subr.bf16.mxu0 %v4407
        %4552 = vmatpush1.bf16.msra.mxu0 %v4406
        %4553 = vmatprep.subr.bf16.mxu0 %v4411
        %4554 = vmatpush1.bf16.msra.mxu0 %v4410
        %4555 = vmatprep.subr.bf16.mxu0 %v4415
        %4556 = vmatpush1.bf16.msra.mxu0 %v4414
        %4557 = vmatprep.subr.bf16.mxu0 %v4419
        %4558 = vmatpush1.bf16.msra.mxu0 %v4418
        %4559 = vmatprep.mubr.bf16.mxu0 %v3509
        %4560 = vmatmul.mubr.bf16.gmra.mrb[0].mxu0 %v3508
        %v4561 = vpop.f32.mrb[0].mxu0
        %v4562 = vadd.f32 %v4155, %v4561
        %v4563 = vpop.f32.mrb[0].mxu0
        %v4564 = vadd.f32 %v4159, %v4563
        %v4565 = vpop.f32.mrb[0].mxu0
        %v4566 = vadd.f32 %v4155, %v4565
        %v4567 = vpop.f32.mrb[0].mxu0
        %v4568 = vadd.f32 %v4159, %v4567
        %4569 = vdwg.mxu0
        %v4570 = vmax.f32 %v4519, 0.0
        %v4571 = vmax.f32 %v4521, 0.0
        %v4572 = vmax.f32 %v4562, 0.0
        %v4573 = vmax.f32 %v4564, 0.0
        %v4574 = vmax.f32 %v4523, 0.0
        %v4575 = vmax.f32 %v4525, 0.0
        %v4576 = vmax.f32 %v4566, 0.0
        %v4577 = vmax.f32 %v4568, 0.0
        %v4578 = vpack.c.bf16 %v4574, %v4570
        %v4579 = vpack.c.bf16 %v4575, %v4571
        %v4580 = vpack.c.bf16 %v4576, %v4572
        %v4581 = vpack.c.bf16 %v4577, %v4573
        %v4582 = vld [vmem:[%s502 + $0x200] sm:$0xff]
        %v4583 = vld [vmem:[%s502 + $0x208] sm:$0xff]
        %v4584 = vld [vmem:[%s502 + $0x210] sm:$0xff]
        %v4585 = vld [vmem:[%s502 + $0x218] sm:$0xff]
        %v4586 = vld [vmem:[%s502 + $0x220] sm:$0xff]
        %v4587 = vld [vmem:[%s502 + $0x228] sm:$0xff]
        %v4588 = vld [vmem:[%s502 + $0x230] sm:$0xff]
        %v4589 = vld [vmem:[%s502 + $0x238] sm:$0xff]
        %v4590 = vld [vmem:[%s502 + $0x240] sm:$0xff]
        %v4591 = vld [vmem:[%s502 + $0x248] sm:$0xff]
        %v4592 = vld [vmem:[%s502 + $0x250] sm:$0xff]
        %v4593 = vld [vmem:[%s502 + $0x258] sm:$0xff]
        %v4594 = vld [vmem:[%s502 + $0x260] sm:$0xff]
        %v4595 = vld [vmem:[%s502 + $0x268] sm:$0xff]
        %v4596 = vld [vmem:[%s502 + $0x270] sm:$0xff]
        %v4597 = vld [vmem:[%s502 + $0x278] sm:$0xff]
        %v4598 = vld [vmem:[%s502 + $0x280] sm:$0xff]
        %v4599 = vld [vmem:[%s502 + $0x288] sm:$0xff]
        %v4600 = vld [vmem:[%s502 + $0x290] sm:$0xff]
        %v4601 = vld [vmem:[%s502 + $0x298] sm:$0xff]
        %v4602 = vld [vmem:[%s502 + $0x2a0] sm:$0xff]
        %v4603 = vld [vmem:[%s502 + $0x2a8] sm:$0xff]
        %v4604 = vld [vmem:[%s502 + $0x2b0] sm:$0xff]
        %v4605 = vld [vmem:[%s502 + $0x2b8] sm:$0xff]
        %v4606 = vld [vmem:[%s502 + $0x2c0] sm:$0xff]
        %v4607 = vld [vmem:[%s502 + $0x2c8] sm:$0xff]
        %v4608 = vld [vmem:[%s502 + $0x2d0] sm:$0xff]
        %v4609 = vld [vmem:[%s502 + $0x2d8] sm:$0xff]
        %v4610 = vld [vmem:[%s502 + $0x2e0] sm:$0xff]
        %v4611 = vld [vmem:[%s502 + $0x2e8] sm:$0xff]
        %v4612 = vld [vmem:[%s502 + $0x2f0] sm:$0xff]
        %v4613 = vld [vmem:[%s502 + $0x2f8] sm:$0xff]
        %v4614 = vld [vmem:[%s502 + $0x300] sm:$0xff]
        %v4615 = vld [vmem:[%s502 + $0x308] sm:$0xff]
        %v4616 = vld [vmem:[%s502 + $0x310] sm:$0xff]
        %v4617 = vld [vmem:[%s502 + $0x318] sm:$0xff]
        %v4618 = vld [vmem:[%s502 + $0x320] sm:$0xff]
        %v4619 = vld [vmem:[%s502 + $0x328] sm:$0xff]
        %v4620 = vld [vmem:[%s502 + $0x330] sm:$0xff]
        %v4621 = vld [vmem:[%s502 + $0x338] sm:$0xff]
        %v4622 = vld [vmem:[%s502 + $0x340] sm:$0xff]
        %v4623 = vld [vmem:[%s502 + $0x348] sm:$0xff]
        %v4624 = vld [vmem:[%s502 + $0x350] sm:$0xff]
        %v4625 = vld [vmem:[%s502 + $0x358] sm:$0xff]
        %v4626 = vld [vmem:[%s502 + $0x360] sm:$0xff]
        %v4627 = vld [vmem:[%s502 + $0x368] sm:$0xff]
        %v4628 = vld [vmem:[%s502 + $0x370] sm:$0xff]
        %v4629 = vld [vmem:[%s502 + $0x378] sm:$0xff]
        %v4630 = vld [vmem:[%s502 + $0x380] sm:$0xff]
        %v4631 = vld [vmem:[%s502 + $0x388] sm:$0xff]
        %v4632 = vld [vmem:[%s502 + $0x390] sm:$0xff]
        %v4633 = vld [vmem:[%s502 + $0x398] sm:$0xff]
        %v4634 = vld [vmem:[%s502 + $0x3a0] sm:$0xff]
        %v4635 = vld [vmem:[%s502 + $0x3a8] sm:$0xff]
        %v4636 = vld [vmem:[%s502 + $0x3b0] sm:$0xff]
        %v4637 = vld [vmem:[%s502 + $0x3b8] sm:$0xff]
        %v4638 = vld [vmem:[%s502 + $0x3c0] sm:$0xff]
        %v4639 = vld [vmem:[%s502 + $0x3c8] sm:$0xff]
        %v4640 = vld [vmem:[%s502 + $0x3d0] sm:$0xff]
        %v4641 = vld [vmem:[%s502 + $0x3d8] sm:$0xff]
        %v4642 = vld [vmem:[%s502 + $0x3e0] sm:$0xff]
        %v4643 = vld [vmem:[%s502 + $0x3e8] sm:$0xff]
        %v4644 = vld [vmem:[%s502 + $0x3f0] sm:$0xff]
        %v4645 = vld [vmem:[%s502 + $0x3f8] sm:$0xff]
        %v4710 = vunpack.c.l.b16 %v4582
        %v4711 = vunpack.c.h.b16 %v4582
        %v4712 = vunpack.c.l.b16 %v4583
        %v4713 = vunpack.c.h.b16 %v4583
        %v4714 = vunpack.c.l.b16 %v4584
        %v4715 = vunpack.c.h.b16 %v4584
        %v4716 = vunpack.c.l.b16 %v4585
        %v4717 = vunpack.c.h.b16 %v4585
        %v4718 = vunpack.c.l.b16 %v4586
        %v4719 = vunpack.c.h.b16 %v4586
        %v4720 = vunpack.c.l.b16 %v4587
        %v4721 = vunpack.c.h.b16 %v4587
        %v4722 = vunpack.c.l.b16 %v4588
        %v4723 = vunpack.c.h.b16 %v4588
        %v4724 = vunpack.c.l.b16 %v4589
        %v4725 = vunpack.c.h.b16 %v4589
        %v4726 = vunpack.c.l.b16 %v4590
        %v4727 = vunpack.c.h.b16 %v4590
        %v4728 = vunpack.c.l.b16 %v4591
        %v4729 = vunpack.c.h.b16 %v4591
        %v4730 = vunpack.c.l.b16 %v4592
        %v4731 = vunpack.c.h.b16 %v4592
        %v4732 = vunpack.c.l.b16 %v4593
        %v4733 = vunpack.c.h.b16 %v4593
        %v4734 = vunpack.c.l.b16 %v4594
        %v4735 = vunpack.c.h.b16 %v4594
        %v4736 = vunpack.c.l.b16 %v4595
        %v4737 = vunpack.c.h.b16 %v4595
        %v4738 = vunpack.c.l.b16 %v4596
        %v4739 = vunpack.c.h.b16 %v4596
        %v4740 = vunpack.c.l.b16 %v4597
        %v4741 = vunpack.c.h.b16 %v4597
        %v4742 = vunpack.c.l.b16 %v4598
        %v4743 = vunpack.c.h.b16 %v4598
        %v4744 = vunpack.c.l.b16 %v4599
        %v4745 = vunpack.c.h.b16 %v4599
        %v4746 = vunpack.c.l.b16 %v4600
        %v4747 = vunpack.c.h.b16 %v4600
        %v4748 = vunpack.c.l.b16 %v4601
        %v4749 = vunpack.c.h.b16 %v4601
        %v4750 = vunpack.c.l.b16 %v4602
        %v4751 = vunpack.c.h.b16 %v4602
        %v4752 = vunpack.c.l.b16 %v4603
        %v4753 = vunpack.c.h.b16 %v4603
        %v4754 = vunpack.c.l.b16 %v4604
        %v4755 = vunpack.c.h.b16 %v4604
        %v4756 = vunpack.c.l.b16 %v4605
        %v4757 = vunpack.c.h.b16 %v4605
        %v4758 = vunpack.c.l.b16 %v4606
        %v4759 = vunpack.c.h.b16 %v4606
        %v4760 = vunpack.c.l.b16 %v4607
        %v4761 = vunpack.c.h.b16 %v4607
        %v4762 = vunpack.c.l.b16 %v4608
        %v4763 = vunpack.c.h.b16 %v4608
        %v4764 = vunpack.c.l.b16 %v4609
        %v4765 = vunpack.c.h.b16 %v4609
        %v4766 = vunpack.c.l.b16 %v4610
        %v4767 = vunpack.c.h.b16 %v4610
        %v4768 = vunpack.c.l.b16 %v4611
        %v4769 = vunpack.c.h.b16 %v4611
        %v4770 = vunpack.c.l.b16 %v4612
        %v4771 = vunpack.c.h.b16 %v4612
        %v4772 = vunpack.c.l.b16 %v4613
        %v4773 = vunpack.c.h.b16 %v4613
        %v4774 = vunpack.c.l.b16 %v4614
        %v4775 = vunpack.c.h.b16 %v4614
        %v4776 = vunpack.c.l.b16 %v4615
        %v4777 = vunpack.c.h.b16 %v4615
        %v4778 = vunpack.c.l.b16 %v4616
        %v4779 = vunpack.c.h.b16 %v4616
        %v4780 = vunpack.c.l.b16 %v4617
        %v4781 = vunpack.c.h.b16 %v4617
        %v4782 = vunpack.c.l.b16 %v4618
        %v4783 = vunpack.c.h.b16 %v4618
        %v4784 = vunpack.c.l.b16 %v4619
        %v4785 = vunpack.c.h.b16 %v4619
        %v4786 = vunpack.c.l.b16 %v4620
        %v4787 = vunpack.c.h.b16 %v4620
        %v4788 = vunpack.c.l.b16 %v4621
        %v4789 = vunpack.c.h.b16 %v4621
        %v4790 = vunpack.c.l.b16 %v4622
        %v4791 = vunpack.c.h.b16 %v4622
        %v4792 = vunpack.c.l.b16 %v4623
        %v4793 = vunpack.c.h.b16 %v4623
        %v4794 = vunpack.c.l.b16 %v4624
        %v4795 = vunpack.c.h.b16 %v4624
        %v4796 = vunpack.c.l.b16 %v4625
        %v4797 = vunpack.c.h.b16 %v4625
        %v4798 = vunpack.c.l.b16 %v4626
        %v4799 = vunpack.c.h.b16 %v4626
        %v4800 = vunpack.c.l.b16 %v4627
        %v4801 = vunpack.c.h.b16 %v4627
        %v4802 = vunpack.c.l.b16 %v4628
        %v4803 = vunpack.c.h.b16 %v4628
        %v4804 = vunpack.c.l.b16 %v4629
        %v4805 = vunpack.c.h.b16 %v4629
        %v4806 = vunpack.c.l.b16 %v4630
        %v4807 = vunpack.c.h.b16 %v4630
        %v4808 = vunpack.c.l.b16 %v4631
        %v4809 = vunpack.c.h.b16 %v4631
        %v4810 = vunpack.c.l.b16 %v4632
        %v4811 = vunpack.c.h.b16 %v4632
        %v4812 = vunpack.c.l.b16 %v4633
        %v4813 = vunpack.c.h.b16 %v4633
        %v4814 = vunpack.c.l.b16 %v4634
        %v4815 = vunpack.c.h.b16 %v4634
        %v4816 = vunpack.c.l.b16 %v4635
        %v4817 = vunpack.c.h.b16 %v4635
        %v4818 = vunpack.c.l.b16 %v4636
        %v4819 = vunpack.c.h.b16 %v4636
        %v4820 = vunpack.c.l.b16 %v4637
        %v4821 = vunpack.c.h.b16 %v4637
        %v4822 = vunpack.c.l.b16 %v4638
        %v4823 = vunpack.c.h.b16 %v4638
        %v4824 = vunpack.c.l.b16 %v4639
        %v4825 = vunpack.c.h.b16 %v4639
        %v4826 = vunpack.c.l.b16 %v4640
        %v4827 = vunpack.c.h.b16 %v4640
        %v4828 = vunpack.c.l.b16 %v4641
        %v4829 = vunpack.c.h.b16 %v4641
        %v4830 = vunpack.c.l.b16 %v4642
        %v4831 = vunpack.c.h.b16 %v4642
        %v4832 = vunpack.c.l.b16 %v4643
        %v4833 = vunpack.c.h.b16 %v4643
        %v4834 = vunpack.c.l.b16 %v4644
        %v4835 = vunpack.c.h.b16 %v4644
        %v4836 = vunpack.c.l.b16 %v4645
        %v4837 = vunpack.c.h.b16 %v4645
        %v4838 = vpack.c.b16 %v4712, %v4710
        %v4839 = vpack.c.b16 %v4713, %v4711
        %v4840 = vpack.c.b16 %v4716, %v4714
        %v4841 = vpack.c.b16 %v4717, %v4715
        %v4842 = vpack.c.b16 %v4720, %v4718
        %v4843 = vpack.c.b16 %v4721, %v4719
        %v4844 = vpack.c.b16 %v4724, %v4722
        %v4845 = vpack.c.b16 %v4725, %v4723
        %v4846 = vpack.c.b16 %v4728, %v4726
        %v4847 = vpack.c.b16 %v4729, %v4727
        %v4848 = vpack.c.b16 %v4732, %v4730
        %v4849 = vpack.c.b16 %v4733, %v4731
        %v4850 = vpack.c.b16 %v4736, %v4734
        %v4851 = vpack.c.b16 %v4737, %v4735
        %v4852 = vpack.c.b16 %v4740, %v4738
        %v4853 = vpack.c.b16 %v4741, %v4739
        %v4854 = vpack.c.b16 %v4744, %v4742
        %v4855 = vpack.c.b16 %v4745, %v4743
        %v4856 = vpack.c.b16 %v4748, %v4746
        %v4857 = vpack.c.b16 %v4749, %v4747
        %v4858 = vpack.c.b16 %v4752, %v4750
        %v4859 = vpack.c.b16 %v4753, %v4751
        %v4860 = vpack.c.b16 %v4756, %v4754
        %v4861 = vpack.c.b16 %v4757, %v4755
        %v4862 = vpack.c.b16 %v4760, %v4758
        %v4863 = vpack.c.b16 %v4761, %v4759
        %v4864 = vpack.c.b16 %v4764, %v4762
        %v4865 = vpack.c.b16 %v4765, %v4763
        %v4866 = vpack.c.b16 %v4768, %v4766
        %v4867 = vpack.c.b16 %v4769, %v4767
        %v4868 = vpack.c.b16 %v4772, %v4770
        %v4869 = vpack.c.b16 %v4773, %v4771
        %v4870 = vpack.c.b16 %v4776, %v4774
        %v4871 = vpack.c.b16 %v4777, %v4775
        %v4872 = vpack.c.b16 %v4780, %v4778
        %v4873 = vpack.c.b16 %v4781, %v4779
        %v4874 = vpack.c.b16 %v4784, %v4782
        %v4875 = vpack.c.b16 %v4785, %v4783
        %v4876 = vpack.c.b16 %v4788, %v4786
        %v4877 = vpack.c.b16 %v4789, %v4787
        %v4878 = vpack.c.b16 %v4792, %v4790
        %v4879 = vpack.c.b16 %v4793, %v4791
        %v4880 = vpack.c.b16 %v4796, %v4794
        %v4881 = vpack.c.b16 %v4797, %v4795
        %v4882 = vpack.c.b16 %v4800, %v4798
        %v4883 = vpack.c.b16 %v4801, %v4799
        %v4884 = vpack.c.b16 %v4804, %v4802
        %v4885 = vpack.c.b16 %v4805, %v4803
        %v4886 = vpack.c.b16 %v4808, %v4806
        %v4887 = vpack.c.b16 %v4809, %v4807
        %v4888 = vpack.c.b16 %v4812, %v4810
        %v4889 = vpack.c.b16 %v4813, %v4811
        %v4890 = vpack.c.b16 %v4816, %v4814
        %v4891 = vpack.c.b16 %v4817, %v4815
        %v4892 = vpack.c.b16 %v4820, %v4818
        %v4893 = vpack.c.b16 %v4821, %v4819
        %v4894 = vpack.c.b16 %v4824, %v4822
        %v4895 = vpack.c.b16 %v4825, %v4823
        %v4896 = vpack.c.b16 %v4828, %v4826
        %v4897 = vpack.c.b16 %v4829, %v4827
        %v4898 = vpack.c.b16 %v4832, %v4830
        %v4899 = vpack.c.b16 %v4833, %v4831
        %v4900 = vpack.c.b16 %v4836, %v4834
        %v4901 = vpack.c.b16 %v4837, %v4835
        %4966 = vmatprep.subr.bf16.mxu0 %v4839
        %4967 = vmatpush1.bf16.msra.mxu0 %v4838
        %4968 = vmatprep.subr.bf16.mxu0 %v4841
        %4969 = vmatpush1.bf16.msra.mxu0 %v4840
        %4970 = vmatprep.subr.bf16.mxu0 %v4843
        %4971 = vmatpush1.bf16.msra.mxu0 %v4842
        %4972 = vmatprep.subr.bf16.mxu0 %v4845
        %4973 = vmatpush1.bf16.msra.mxu0 %v4844
        %4974 = vmatprep.subr.bf16.mxu0 %v4847
        %4975 = vmatpush1.bf16.msra.mxu0 %v4846
        %4976 = vmatprep.subr.bf16.mxu0 %v4849
        %4977 = vmatpush1.bf16.msra.mxu0 %v4848
        %4978 = vmatprep.subr.bf16.mxu0 %v4851
        %4979 = vmatpush1.bf16.msra.mxu0 %v4850
        %4980 = vmatprep.subr.bf16.mxu0 %v4853
        %4981 = vmatpush1.bf16.msra.mxu0 %v4852
        %4982 = vmatprep.subr.bf16.mxu0 %v4855
        %4983 = vmatpush1.bf16.msra.mxu0 %v4854
        %4984 = vmatprep.subr.bf16.mxu0 %v4857
        %4985 = vmatpush1.bf16.msra.mxu0 %v4856
        %4986 = vmatprep.subr.bf16.mxu0 %v4859
        %4987 = vmatpush1.bf16.msra.mxu0 %v4858
        %4988 = vmatprep.subr.bf16.mxu0 %v4861
        %4989 = vmatpush1.bf16.msra.mxu0 %v4860
        %4990 = vmatprep.subr.bf16.mxu0 %v4863
        %4991 = vmatpush1.bf16.msra.mxu0 %v4862
        %4992 = vmatprep.subr.bf16.mxu0 %v4865
        %4993 = vmatpush1.bf16.msra.mxu0 %v4864
        %4994 = vmatprep.subr.bf16.mxu0 %v4867
        %4995 = vmatpush1.bf16.msra.mxu0 %v4866
        %4996 = vmatprep.subr.bf16.mxu0 %v4869
        %4997 = vmatpush1.bf16.msra.mxu0 %v4868
        %4998 = vmatprep.mubr.bf16.mxu0 %v4579
        %4999 = vmatmul.mubr.bf16.gmra.mrb[0].mxu0 %v4578
        %v5000 = vpop.f32.mrb[0].mxu0
        %v5001 = vadd.f32 0.0, %v5000
        %v5002 = vpop.f32.mrb[0].mxu0
        %v5003 = vadd.f32 0.0, %v5002
        %v5004 = vpop.f32.mrb[0].mxu0
        %v5005 = vadd.f32 0.0, %v5004
        %v5006 = vpop.f32.mrb[0].mxu0
        %v5007 = vadd.f32 0.0, %v5006
        %5008 = vdwg.mxu0
        %5009 = vmatprep.subr.bf16.mxu0 %v4871
        %5010 = vmatpush1.bf16.msra.mxu0 %v4870
        %5011 = vmatprep.subr.bf16.mxu0 %v4873
        %5012 = vmatpush1.bf16.msra.mxu0 %v4872
        %5013 = vmatprep.subr.bf16.mxu0 %v4875
        %5014 = vmatpush1.bf16.msra.mxu0 %v4874
        %5015 = vmatprep.subr.bf16.mxu0 %v4877
        %5016 = vmatpush1.bf16.msra.mxu0 %v4876
        %5017 = vmatprep.subr.bf16.mxu0 %v4879
        %5018 = vmatpush1.bf16.msra.mxu0 %v4878
        %5019 = vmatprep.subr.bf16.mxu0 %v4881
        %5020 = vmatpush1.bf16.msra.mxu0 %v4880
        %5021 = vmatprep.subr.bf16.mxu0 %v4883
        %5022 = vmatpush1.bf16.msra.mxu0 %v4882
        %5023 = vmatprep.subr.bf16.mxu0 %v4885
        %5024 = vmatpush1.bf16.msra.mxu0 %v4884
        %5025 = vmatprep.subr.bf16.mxu0 %v4887
        %5026 = vmatpush1.bf16.msra.mxu0 %v4886
        %5027 = vmatprep.subr.bf16.mxu0 %v4889
        %5028 = vmatpush1.bf16.msra.mxu0 %v4888
        %5029 = vmatprep.subr.bf16.mxu0 %v4891
        %5030 = vmatpush1.bf16.msra.mxu0 %v4890
        %5031 = vmatprep.subr.bf16.mxu0 %v4893
        %5032 = vmatpush1.bf16.msra.mxu0 %v4892
        %5033 = vmatprep.subr.bf16.mxu0 %v4895
        %5034 = vmatpush1.bf16.msra.mxu0 %v4894
        %5035 = vmatprep.subr.bf16.mxu0 %v4897
        %5036 = vmatpush1.bf16.msra.mxu0 %v4896
        %5037 = vmatprep.subr.bf16.mxu0 %v4899
        %5038 = vmatpush1.bf16.msra.mxu0 %v4898
        %5039 = vmatprep.subr.bf16.mxu0 %v4901
        %5040 = vmatpush1.bf16.msra.mxu0 %v4900
        %5041 = vmatprep.mubr.bf16.mxu0 %v4581
        %5042 = vmatmul.mubr.bf16.gmra.mrb[0].mxu0 %v4580
        %v5043 = vpop.f32.mrb[0].mxu0
        %v5044 = vadd.f32 %v5001, %v5043
        %v5045 = vpop.f32.mrb[0].mxu0
        %v5046 = vadd.f32 %v5003, %v5045
        %v5047 = vpop.f32.mrb[0].mxu0
        %v5048 = vadd.f32 %v5005, %v5047
        %v5049 = vpop.f32.mrb[0].mxu0
        %v5050 = vadd.f32 %v5007, %v5049
        %5051 = vdwg.mxu0
        %v5116 = vunpack.c.l.b16 %v4014
        %v5117 = vunpack.c.h.b16 %v4014
        %v5118 = vunpack.c.l.b16 %v4015
        %v5119 = vunpack.c.h.b16 %v4015
        %v5120 = vunpack.c.l.b16 %v4016
        %v5121 = vunpack.c.h.b16 %v4016
        %v5122 = vunpack.c.l.b16 %v4017
        %v5123 = vunpack.c.h.b16 %v4017
        %v5124 = vunpack.c.l.b16 %v4018
        %v5125 = vunpack.c.h.b16 %v4018
        %v5126 = vunpack.c.l.b16 %v4019
        %v5127 = vunpack.c.h.b16 %v4019
        %v5128 = vunpack.c.l.b16 %v4020
        %v5129 = vunpack.c.h.b16 %v4020
        %v5130 = vunpack.c.l.b16 %v4021
        %v5131 = vunpack.c.h.b16 %v4021
        %v5132 = vunpack.c.l.b16 %v4022
        %v5133 = vunpack.c.h.b16 %v4022
        %v5134 = vunpack.c.l.b16 %v4023
        %v5135 = vunpack.c.h.b16 %v4023
        %v5136 = vunpack.c.l.b16 %v4024
        %v5137 = vunpack.c.h.b16 %v4024
        %v5138 = vunpack.c.l.b16 %v4025
        %v5139 = vunpack.c.h.b16 %v4025
        %v5140 = vunpack.c.l.b16 %v4026
        %v5141 = vunpack.c.h.b16 %v4026
        %v5142 = vunpack.c.l.b16 %v4027
        %v5143 = vunpack.c.h.b16 %v4027
        %v5144 = vunpack.c.l.b16 %v4028
        %v5145 = vunpack.c.h.b16 %v4028
        %v5146 = vunpack.c.l.b16 %v4029
        %v5147 = vunpack.c.h.b16 %v4029
        %v5148 = vunpack.c.l.b16 %v4030
        %v5149 = vunpack.c.h.b16 %v4030
        %v5150 = vunpack.c.l.b16 %v4031
        %v5151 = vunpack.c.h.b16 %v4031
        %v5152 = vunpack.c.l.b16 %v4032
        %v5153 = vunpack.c.h.b16 %v4032
        %v5154 = vunpack.c.l.b16 %v4033
        %v5155 = vunpack.c.h.b16 %v4033
        %v5156 = vunpack.c.l.b16 %v4034
        %v5157 = vunpack.c.h.b16 %v4034
        %v5158 = vunpack.c.l.b16 %v4035
        %v5159 = vunpack.c.h.b16 %v4035
        %v5160 = vunpack.c.l.b16 %v4036
        %v5161 = vunpack.c.h.b16 %v4036
        %v5162 = vunpack.c.l.b16 %v4037
        %v5163 = vunpack.c.h.b16 %v4037
        %v5164 = vunpack.c.l.b16 %v4038
        %v5165 = vunpack.c.h.b16 %v4038
        %v5166 = vunpack.c.l.b16 %v4039
        %v5167 = vunpack.c.h.b16 %v4039
        %v5168 = vunpack.c.l.b16 %v4040
        %v5169 = vunpack.c.h.b16 %v4040
        %v5170 = vunpack.c.l.b16 %v4041
        %v5171 = vunpack.c.h.b16 %v4041
        %v5172 = vunpack.c.l.b16 %v4042
        %v5173 = vunpack.c.h.b16 %v4042
        %v5174 = vunpack.c.l.b16 %v4043
        %v5175 = vunpack.c.h.b16 %v4043
        %v5176 = vunpack.c.l.b16 %v4044
        %v5177 = vunpack.c.h.b16 %v4044
        %v5178 = vunpack.c.l.b16 %v4045
        %v5179 = vunpack.c.h.b16 %v4045
        %v5180 = vunpack.c.l.b16 %v4046
        %v5181 = vunpack.c.h.b16 %v4046
        %v5182 = vunpack.c.l.b16 %v4047
        %v5183 = vunpack.c.h.b16 %v4047
        %v5184 = vunpack.c.l.b16 %v4048
        %v5185 = vunpack.c.h.b16 %v4048
        %v5186 = vunpack.c.l.b16 %v4049
        %v5187 = vunpack.c.h.b16 %v4049
        %v5188 = vunpack.c.l.b16 %v4050
        %v5189 = vunpack.c.h.b16 %v4050
        %v5190 = vunpack.c.l.b16 %v4051
        %v5191 = vunpack.c.h.b16 %v4051
        %v5192 = vunpack.c.l.b16 %v4052
        %v5193 = vunpack.c.h.b16 %v4052
        %v5194 = vunpack.c.l.b16 %v4053
        %v5195 = vunpack.c.h.b16 %v4053
        %v5196 = vunpack.c.l.b16 %v4054
        %v5197 = vunpack.c.h.b16 %v4054
        %v5198 = vunpack.c.l.b16 %v4055
        %v5199 = vunpack.c.h.b16 %v4055
        %v5200 = vunpack.c.l.b16 %v4056
        %v5201 = vunpack.c.h.b16 %v4056
        %v5202 = vunpack.c.l.b16 %v4057
        %v5203 = vunpack.c.h.b16 %v4057
        %v5204 = vunpack.c.l.b16 %v4058
        %v5205 = vunpack.c.h.b16 %v4058
        %v5206 = vunpack.c.l.b16 %v4059
        %v5207 = vunpack.c.h.b16 %v4059
        %v5208 = vunpack.c.l.b16 %v4060
        %v5209 = vunpack.c.h.b16 %v4060
        %v5210 = vunpack.c.l.b16 %v4061
        %v5211 = vunpack.c.h.b16 %v4061
        %v5212 = vunpack.c.l.b16 %v4062
        %v5213 = vunpack.c.h.b16 %v4062
        %v5214 = vunpack.c.l.b16 %v4063
        %v5215 = vunpack.c.h.b16 %v4063
        %v5216 = vunpack.c.l.b16 %v4064
        %v5217 = vunpack.c.h.b16 %v4064
        %v5218 = vunpack.c.l.b16 %v4065
        %v5219 = vunpack.c.h.b16 %v4065
        %v5220 = vunpack.c.l.b16 %v4066
        %v5221 = vunpack.c.h.b16 %v4066
        %v5222 = vunpack.c.l.b16 %v4067
        %v5223 = vunpack.c.h.b16 %v4067
        %v5224 = vunpack.c.l.b16 %v4068
        %v5225 = vunpack.c.h.b16 %v4068
        %v5226 = vunpack.c.l.b16 %v4069
        %v5227 = vunpack.c.h.b16 %v4069
        %v5228 = vunpack.c.l.b16 %v4070
        %v5229 = vunpack.c.h.b16 %v4070
        %v5230 = vunpack.c.l.b16 %v4071
        %v5231 = vunpack.c.h.b16 %v4071
        %v5232 = vunpack.c.l.b16 %v4072
        %v5233 = vunpack.c.h.b16 %v4072
        %v5234 = vunpack.c.l.b16 %v4073
        %v5235 = vunpack.c.h.b16 %v4073
        %v5236 = vunpack.c.l.b16 %v4074
        %v5237 = vunpack.c.h.b16 %v4074
        %v5238 = vunpack.c.l.b16 %v4075
        %v5239 = vunpack.c.h.b16 %v4075
        %v5240 = vunpack.c.l.b16 %v4076
        %v5241 = vunpack.c.h.b16 %v4076
        %v5242 = vunpack.c.l.b16 %v4077
        %v5243 = vunpack.c.h.b16 %v4077
        %v5244 = vpack.c.b16 %v5118, %v5116
        %v5245 = vpack.c.b16 %v5119, %v5117
        %v5246 = vpack.c.b16 %v5122, %v5120
        %v5247 = vpack.c.b16 %v5123, %v5121
        %v5248 = vpack.c.b16 %v5126, %v5124
        %v5249 = vpack.c.b16 %v5127, %v5125
        %v5250 = vpack.c.b16 %v5130, %v5128
        %v5251 = vpack.c.b16 %v5131, %v5129
        %v5252 = vpack.c.b16 %v5134, %v5132
        %v5253 = vpack.c.b16 %v5135, %v5133
        %v5254 = vpack.c.b16 %v5138, %v5136
        %v5255 = vpack.c.b16 %v5139, %v5137
        %v5256 = vpack.c.b16 %v5142, %v5140
        %v5257 = vpack.c.b16 %v5143, %v5141
        %v5258 = vpack.c.b16 %v5146, %v5144
        %v5259 = vpack.c.b16 %v5147, %v5145
        %v5260 = vpack.c.b16 %v5150, %v5148
        %v5261 = vpack.c.b16 %v5151, %v5149
        %v5262 = vpack.c.b16 %v5154, %v5152
        %v5263 = vpack.c.b16 %v5155, %v5153
        %v5264 = vpack.c.b16 %v5158, %v5156
        %v5265 = vpack.c.b16 %v5159, %v5157
        %v5266 = vpack.c.b16 %v5162, %v5160
        %v5267 = vpack.c.b16 %v5163, %v5161
        %v5268 = vpack.c.b16 %v5166, %v5164
        %v5269 = vpack.c.b16 %v5167, %v5165
        %v5270 = vpack.c.b16 %v5170, %v5168
        %v5271 = vpack.c.b16 %v5171, %v5169
        %v5272 = vpack.c.b16 %v5174, %v5172
        %v5273 = vpack.c.b16 %v5175, %v5173
        %v5274 = vpack.c.b16 %v5178, %v5176
        %v5275 = vpack.c.b16 %v5179, %v5177
        %v5276 = vpack.c.b16 %v5182, %v5180
        %v5277 = vpack.c.b16 %v5183, %v5181
        %v5278 = vpack.c.b16 %v5186, %v5184
        %v5279 = vpack.c.b16 %v5187, %v5185
        %v5280 = vpack.c.b16 %v5190, %v5188
        %v5281 = vpack.c.b16 %v5191, %v5189
        %v5282 = vpack.c.b16 %v5194, %v5192
        %v5283 = vpack.c.b16 %v5195, %v5193
        %v5284 = vpack.c.b16 %v5198, %v5196
        %v5285 = vpack.c.b16 %v5199, %v5197
        %v5286 = vpack.c.b16 %v5202, %v5200
        %v5287 = vpack.c.b16 %v5203, %v5201
        %v5288 = vpack.c.b16 %v5206, %v5204
        %v5289 = vpack.c.b16 %v5207, %v5205
        %v5290 = vpack.c.b16 %v5210, %v5208
        %v5291 = vpack.c.b16 %v5211, %v5209
        %v5292 = vpack.c.b16 %v5214, %v5212
        %v5293 = vpack.c.b16 %v5215, %v5213
        %v5294 = vpack.c.b16 %v5218, %v5216
        %v5295 = vpack.c.b16 %v5219, %v5217
        %v5296 = vpack.c.b16 %v5222, %v5220
        %v5297 = vpack.c.b16 %v5223, %v5221
        %v5298 = vpack.c.b16 %v5226, %v5224
        %v5299 = vpack.c.b16 %v5227, %v5225
        %v5300 = vpack.c.b16 %v5230, %v5228
        %v5301 = vpack.c.b16 %v5231, %v5229
        %v5302 = vpack.c.b16 %v5234, %v5232
        %v5303 = vpack.c.b16 %v5235, %v5233
        %v5304 = vpack.c.b16 %v5238, %v5236
        %v5305 = vpack.c.b16 %v5239, %v5237
        %v5306 = vpack.c.b16 %v5242, %v5240
        %v5307 = vpack.c.b16 %v5243, %v5241
        %5372 = vmatprep.subr.bf16.mxu0 %v5245
        %5373 = vmatpush1.bf16.msra.mxu0 %v5244
        %5374 = vmatprep.subr.bf16.mxu0 %v5247
        %5375 = vmatpush1.bf16.msra.mxu0 %v5246
        %5376 = vmatprep.subr.bf16.mxu0 %v5249
        %5377 = vmatpush1.bf16.msra.mxu0 %v5248
        %5378 = vmatprep.subr.bf16.mxu0 %v5251
        %5379 = vmatpush1.bf16.msra.mxu0 %v5250
        %5380 = vmatprep.subr.bf16.mxu0 %v5253
        %5381 = vmatpush1.bf16.msra.mxu0 %v5252
        %5382 = vmatprep.subr.bf16.mxu0 %v5255
        %5383 = vmatpush1.bf16.msra.mxu0 %v5254
        %5384 = vmatprep.subr.bf16.mxu0 %v5257
        %5385 = vmatpush1.bf16.msra.mxu0 %v5256
        %5386 = vmatprep.subr.bf16.mxu0 %v5259
        %5387 = vmatpush1.bf16.msra.mxu0 %v5258
        %5388 = vmatprep.subr.bf16.mxu0 %v5261
        %5389 = vmatpush1.bf16.msra.mxu0 %v5260
        %5390 = vmatprep.subr.bf16.mxu0 %v5263
        %5391 = vmatpush1.bf16.msra.mxu0 %v5262
        %5392 = vmatprep.subr.bf16.mxu0 %v5265
        %5393 = vmatpush1.bf16.msra.mxu0 %v5264
        %5394 = vmatprep.subr.bf16.mxu0 %v5267
        %5395 = vmatpush1.bf16.msra.mxu0 %v5266
        %5396 = vmatprep.subr.bf16.mxu0 %v5269
        %5397 = vmatpush1.bf16.msra.mxu0 %v5268
        %5398 = vmatprep.subr.bf16.mxu0 %v5271
        %5399 = vmatpush1.bf16.msra.mxu0 %v5270
        %5400 = vmatprep.subr.bf16.mxu0 %v5273
        %5401 = vmatpush1.bf16.msra.mxu0 %v5272
        %5402 = vmatprep.subr.bf16.mxu0 %v5275
        %5403 = vmatpush1.bf16.msra.mxu0 %v5274
        %5404 = vmatprep.mubr.bf16.mxu0 %v4011
        %5405 = vmatmul.mubr.bf16.gmra.mrb[0].mxu0 %v4010
        %v5406 = vpop.f32.mrb[0].mxu0
        %v5407 = vadd.f32 %v5044, %v5406
        %v5408 = vpop.f32.mrb[0].mxu0
        %v5409 = vadd.f32 %v5046, %v5408
        %v5410 = vpop.f32.mrb[0].mxu0
        %v5411 = vadd.f32 %v5048, %v5410
        %v5412 = vpop.f32.mrb[0].mxu0
        %v5413 = vadd.f32 %v5050, %v5412
        %5414 = vdwg.mxu0
        %5415 = vmatprep.subr.bf16.mxu0 %v5277
        %5416 = vmatpush1.bf16.msra.mxu0 %v5276
        %5417 = vmatprep.subr.bf16.mxu0 %v5279
        %5418 = vmatpush1.bf16.msra.mxu0 %v5278
        %5419 = vmatprep.subr.bf16.mxu0 %v5281
        %5420 = vmatpush1.bf16.msra.mxu0 %v5280
        %5421 = vmatprep.subr.bf16.mxu0 %v5283
        %5422 = vmatpush1.bf16.msra.mxu0 %v5282
        %5423 = vmatprep.subr.bf16.mxu0 %v5285
        %5424 = vmatpush1.bf16.msra.mxu0 %v5284
        %5425 = vmatprep.subr.bf16.mxu0 %v5287
        %5426 = vmatpush1.bf16.msra.mxu0 %v5286
        %5427 = vmatprep.subr.bf16.mxu0 %v5289
        %5428 = vmatpush1.bf16.msra.mxu0 %v5288
        %5429 = vmatprep.subr.bf16.mxu0 %v5291
        %5430 = vmatpush1.bf16.msra.mxu0 %v5290
        %5431 = vmatprep.subr.bf16.mxu0 %v5293
        %5432 = vmatpush1.bf16.msra.mxu0 %v5292
        %5433 = vmatprep.subr.bf16.mxu0 %v5295
        %5434 = vmatpush1.bf16.msra.mxu0 %v5294
        %5435 = vmatprep.subr.bf16.mxu0 %v5297
        %5436 = vmatpush1.bf16.msra.mxu0 %v5296
        %5437 = vmatprep.subr.bf16.mxu0 %v5299
        %5438 = vmatpush1.bf16.msra.mxu0 %v5298
        %5439 = vmatprep.subr.bf16.mxu0 %v5301
        %5440 = vmatpush1.bf16.msra.mxu0 %v5300
        %5441 = vmatprep.subr.bf16.mxu0 %v5303
        %5442 = vmatpush1.bf16.msra.mxu0 %v5302
        %5443 = vmatprep.subr.bf16.mxu0 %v5305
        %5444 = vmatpush1.bf16.msra.mxu0 %v5304
        %5445 = vmatprep.subr.bf16.mxu0 %v5307
        %5446 = vmatpush1.bf16.msra.mxu0 %v5306
        %5447 = vmatprep.mubr.bf16.mxu0 %v4013
        %5448 = vmatmul.mubr.bf16.gmra.mrb[0].mxu0 %v4012
        %v5449 = vpop.f32.mrb[0].mxu0
        %v5450 = vadd.f32 %v5407, %v5449
        %v5451 = vpop.f32.mrb[0].mxu0
        %v5452 = vadd.f32 %v5409, %v5451
        %v5453 = vpop.f32.mrb[0].mxu0
        %v5454 = vadd.f32 %v5411, %v5453
        %v5455 = vpop.f32.mrb[0].mxu0
        %v5456 = vadd.f32 %v5413, %v5455
        %5457 = vdwg.mxu0
        %v5458 = vld [vmem:[%s493 + $0x20] sm:$0xff]
        %v5459 = vld [vmem:[%s493 + $0x28] sm:$0xff]
        %v5460 = vld [vmem:[%s493 + $0x60] sm:$0xff]
        %v5461 = vld [vmem:[%s493 + $0x68] sm:$0xff]
        %v5462 = vld [vmem:[%s493 + $0xa0] sm:$0xff]
        %v5463 = vld [vmem:[%s493 + $0xa8] sm:$0xff]
        %v5464 = vld [vmem:[%s493 + $0xe0] sm:$0xff]
        %v5465 = vld [vmem:[%s493 + $0xe8] sm:$0xff]
        %v5466 = vld [vmem:[%s493 + $0x120] sm:$0xff]
        %v5467 = vld [vmem:[%s493 + $0x128] sm:$0xff]
        %v5468 = vld [vmem:[%s493 + $0x160] sm:$0xff]
        %v5469 = vld [vmem:[%s493 + $0x168] sm:$0xff]
        %v5470 = vld [vmem:[%s493 + $0x1a0] sm:$0xff]
        %v5471 = vld [vmem:[%s493 + $0x1a8] sm:$0xff]
        %v5472 = vld [vmem:[%s493 + $0x1e0] sm:$0xff]
        %v5473 = vld [vmem:[%s493 + $0x1e8] sm:$0xff]
        %v5474 = vld [vmem:[%s493 + $0x220] sm:$0xff]
        %v5475 = vld [vmem:[%s493 + $0x228] sm:$0xff]
        %v5476 = vld [vmem:[%s493 + $0x260] sm:$0xff]
        %v5477 = vld [vmem:[%s493 + $0x268] sm:$0xff]
        %v5478 = vld [vmem:[%s493 + $0x2a0] sm:$0xff]
        %v5479 = vld [vmem:[%s493 + $0x2a8] sm:$0xff]
        %v5480 = vld [vmem:[%s493 + $0x2e0] sm:$0xff]
        %v5481 = vld [vmem:[%s493 + $0x2e8] sm:$0xff]
        %v5482 = vld [vmem:[%s493 + $0x320] sm:$0xff]
        %v5483 = vld [vmem:[%s493 + $0x328] sm:$0xff]
        %v5484 = vld [vmem:[%s493 + $0x360] sm:$0xff]
        %v5485 = vld [vmem:[%s493 + $0x368] sm:$0xff]
        %v5486 = vld [vmem:[%s493 + $0x3a0] sm:$0xff]
        %v5487 = vld [vmem:[%s493 + $0x3a8] sm:$0xff]
        %v5488 = vld [vmem:[%s493 + $0x3e0] sm:$0xff]
        %v5489 = vld [vmem:[%s493 + $0x3e8] sm:$0xff]
        %v5490 = vld [vmem:[%s493 + $0x420] sm:$0xff]
        %v5491 = vld [vmem:[%s493 + $0x428] sm:$0xff]
        %v5492 = vld [vmem:[%s493 + $0x460] sm:$0xff]
        %v5493 = vld [vmem:[%s493 + $0x468] sm:$0xff]
        %v5494 = vld [vmem:[%s493 + $0x4a0] sm:$0xff]
        %v5495 = vld [vmem:[%s493 + $0x4a8] sm:$0xff]
        %v5496 = vld [vmem:[%s493 + $0x4e0] sm:$0xff]
        %v5497 = vld [vmem:[%s493 + $0x4e8] sm:$0xff]
        %v5498 = vld [vmem:[%s493 + $0x520] sm:$0xff]
        %v5499 = vld [vmem:[%s493 + $0x528] sm:$0xff]
        %v5500 = vld [vmem:[%s493 + $0x560] sm:$0xff]
        %v5501 = vld [vmem:[%s493 + $0x568] sm:$0xff]
        %v5502 = vld [vmem:[%s493 + $0x5a0] sm:$0xff]
        %v5503 = vld [vmem:[%s493 + $0x5a8] sm:$0xff]
        %v5504 = vld [vmem:[%s493 + $0x5e0] sm:$0xff]
        %v5505 = vld [vmem:[%s493 + $0x5e8] sm:$0xff]
        %v5506 = vld [vmem:[%s493 + $0x620] sm:$0xff]
        %v5507 = vld [vmem:[%s493 + $0x628] sm:$0xff]
        %v5508 = vld [vmem:[%s493 + $0x660] sm:$0xff]
        %v5509 = vld [vmem:[%s493 + $0x668] sm:$0xff]
        %v5510 = vld [vmem:[%s493 + $0x6a0] sm:$0xff]
        %v5511 = vld [vmem:[%s493 + $0x6a8] sm:$0xff]
        %v5512 = vld [vmem:[%s493 + $0x6e0] sm:$0xff]
        %v5513 = vld [vmem:[%s493 + $0x6e8] sm:$0xff]
        %v5514 = vld [vmem:[%s493 + $0x720] sm:$0xff]
        %v5515 = vld [vmem:[%s493 + $0x728] sm:$0xff]
        %v5516 = vld [vmem:[%s493 + $0x760] sm:$0xff]
        %v5517 = vld [vmem:[%s493 + $0x768] sm:$0xff]
        %v5518 = vld [vmem:[%s493 + $0x7a0] sm:$0xff]
        %v5519 = vld [vmem:[%s493 + $0x7a8] sm:$0xff]
        %v5520 = vld [vmem:[%s493 + $0x7e0] sm:$0xff]
        %v5521 = vld [vmem:[%s493 + $0x7e8] sm:$0xff]
        %v5522 = vld [vmem:[%s511 + $0x8] sm:$0xf]
        %v5524 = vlaneseq
        %v5525 = vshrl.u32 %v5524, 7
        %v5526 = vsub.s32 0, %v5525
        %v5527 = vrot.slane %v5522, %v5526
        %v5528 = vlaneseq
        %v5529 = vshrl.u32 %v5528, 7
        %v5530 = vsub.s32 1, %v5529
        %v5531 = vrot.slane %v5522, %v5530
        %v5532 = vlaneseq
        %v5533 = vshrl.u32 %v5532, 7
        %v5534 = vsub.s32 2, %v5533
        %v5535 = vrot.slane %v5522, %v5534
        %v5536 = vlaneseq
        %v5537 = vshrl.u32 %v5536, 7
        %v5538 = vsub.s32 3, %v5537
        %v5539 = vrot.slane %v5522, %v5538
        %v5608 = vunpack.c.l.b16 %v5458
        %v5609 = vunpack.c.h.b16 %v5458
        %v5610 = vunpack.c.l.b16 %v5459
        %v5611 = vunpack.c.h.b16 %v5459
        %v5612 = vunpack.c.l.b16 %v5460
        %v5613 = vunpack.c.h.b16 %v5460
        %v5614 = vunpack.c.l.b16 %v5461
        %v5615 = vunpack.c.h.b16 %v5461
        %v5616 = vunpack.c.l.b16 %v5462
        %v5617 = vunpack.c.h.b16 %v5462
        %v5618 = vunpack.c.l.b16 %v5463
        %v5619 = vunpack.c.h.b16 %v5463
        %v5620 = vunpack.c.l.b16 %v5464
        %v5621 = vunpack.c.h.b16 %v5464
        %v5622 = vunpack.c.l.b16 %v5465
        %v5623 = vunpack.c.h.b16 %v5465
        %v5624 = vunpack.c.l.b16 %v5466
        %v5625 = vunpack.c.h.b16 %v5466
        %v5626 = vunpack.c.l.b16 %v5467
        %v5627 = vunpack.c.h.b16 %v5467
        %v5628 = vunpack.c.l.b16 %v5468
        %v5629 = vunpack.c.h.b16 %v5468
        %v5630 = vunpack.c.l.b16 %v5469
        %v5631 = vunpack.c.h.b16 %v5469
        %v5632 = vunpack.c.l.b16 %v5470
        %v5633 = vunpack.c.h.b16 %v5470
        %v5634 = vunpack.c.l.b16 %v5471
        %v5635 = vunpack.c.h.b16 %v5471
        %v5636 = vunpack.c.l.b16 %v5472
        %v5637 = vunpack.c.h.b16 %v5472
        %v5638 = vunpack.c.l.b16 %v5473
        %v5639 = vunpack.c.h.b16 %v5473
        %v5640 = vunpack.c.l.b16 %v5474
        %v5641 = vunpack.c.h.b16 %v5474
        %v5642 = vunpack.c.l.b16 %v5475
        %v5643 = vunpack.c.h.b16 %v5475
        %v5644 = vunpack.c.l.b16 %v5476
        %v5645 = vunpack.c.h.b16 %v5476
        %v5646 = vunpack.c.l.b16 %v5477
        %v5647 = vunpack.c.h.b16 %v5477
        %v5648 = vunpack.c.l.b16 %v5478
        %v5649 = vunpack.c.h.b16 %v5478
        %v5650 = vunpack.c.l.b16 %v5479
        %v5651 = vunpack.c.h.b16 %v5479
        %v5652 = vunpack.c.l.b16 %v5480
        %v5653 = vunpack.c.h.b16 %v5480
        %v5654 = vunpack.c.l.b16 %v5481
        %v5655 = vunpack.c.h.b16 %v5481
        %v5656 = vunpack.c.l.b16 %v5482
        %v5657 = vunpack.c.h.b16 %v5482
        %v5658 = vunpack.c.l.b16 %v5483
        %v5659 = vunpack.c.h.b16 %v5483
        %v5660 = vunpack.c.l.b16 %v5484
        %v5661 = vunpack.c.h.b16 %v5484
        %v5662 = vunpack.c.l.b16 %v5485
        %v5663 = vunpack.c.h.b16 %v5485
        %v5664 = vunpack.c.l.b16 %v5486
        %v5665 = vunpack.c.h.b16 %v5486
        %v5666 = vunpack.c.l.b16 %v5487
        %v5667 = vunpack.c.h.b16 %v5487
        %v5668 = vunpack.c.l.b16 %v5488
        %v5669 = vunpack.c.h.b16 %v5488
        %v5670 = vunpack.c.l.b16 %v5489
        %v5671 = vunpack.c.h.b16 %v5489
        %v5672 = vunpack.c.l.b16 %v5490
        %v5673 = vunpack.c.h.b16 %v5490
        %v5674 = vunpack.c.l.b16 %v5491
        %v5675 = vunpack.c.h.b16 %v5491
        %v5676 = vunpack.c.l.b16 %v5492
        %v5677 = vunpack.c.h.b16 %v5492
        %v5678 = vunpack.c.l.b16 %v5493
        %v5679 = vunpack.c.h.b16 %v5493
        %v5680 = vunpack.c.l.b16 %v5494
        %v5681 = vunpack.c.h.b16 %v5494
        %v5682 = vunpack.c.l.b16 %v5495
        %v5683 = vunpack.c.h.b16 %v5495
        %v5684 = vunpack.c.l.b16 %v5496
        %v5685 = vunpack.c.h.b16 %v5496
        %v5686 = vunpack.c.l.b16 %v5497
        %v5687 = vunpack.c.h.b16 %v5497
        %v5688 = vunpack.c.l.b16 %v5498
        %v5689 = vunpack.c.h.b16 %v5498
        %v5690 = vunpack.c.l.b16 %v5499
        %v5691 = vunpack.c.h.b16 %v5499
        %v5692 = vunpack.c.l.b16 %v5500
        %v5693 = vunpack.c.h.b16 %v5500
        %v5694 = vunpack.c.l.b16 %v5501
        %v5695 = vunpack.c.h.b16 %v5501
        %v5696 = vunpack.c.l.b16 %v5502
        %v5697 = vunpack.c.h.b16 %v5502
        %v5698 = vunpack.c.l.b16 %v5503
        %v5699 = vunpack.c.h.b16 %v5503
        %v5700 = vunpack.c.l.b16 %v5504
        %v5701 = vunpack.c.h.b16 %v5504
        %v5702 = vunpack.c.l.b16 %v5505
        %v5703 = vunpack.c.h.b16 %v5505
        %v5704 = vunpack.c.l.b16 %v5506
        %v5705 = vunpack.c.h.b16 %v5506
        %v5706 = vunpack.c.l.b16 %v5507
        %v5707 = vunpack.c.h.b16 %v5507
        %v5708 = vunpack.c.l.b16 %v5508
        %v5709 = vunpack.c.h.b16 %v5508
        %v5710 = vunpack.c.l.b16 %v5509
        %v5711 = vunpack.c.h.b16 %v5509
        %v5712 = vunpack.c.l.b16 %v5510
        %v5713 = vunpack.c.h.b16 %v5510
        %v5714 = vunpack.c.l.b16 %v5511
        %v5715 = vunpack.c.h.b16 %v5511
        %v5716 = vunpack.c.l.b16 %v5512
        %v5717 = vunpack.c.h.b16 %v5512
        %v5718 = vunpack.c.l.b16 %v5513
        %v5719 = vunpack.c.h.b16 %v5513
        %v5720 = vunpack.c.l.b16 %v5514
        %v5721 = vunpack.c.h.b16 %v5514
        %v5722 = vunpack.c.l.b16 %v5515
        %v5723 = vunpack.c.h.b16 %v5515
        %v5724 = vunpack.c.l.b16 %v5516
        %v5725 = vunpack.c.h.b16 %v5516
        %v5726 = vunpack.c.l.b16 %v5517
        %v5727 = vunpack.c.h.b16 %v5517
        %v5728 = vunpack.c.l.b16 %v5518
        %v5729 = vunpack.c.h.b16 %v5518
        %v5730 = vunpack.c.l.b16 %v5519
        %v5731 = vunpack.c.h.b16 %v5519
        %v5732 = vunpack.c.l.b16 %v5520
        %v5733 = vunpack.c.h.b16 %v5520
        %v5734 = vunpack.c.l.b16 %v5521
        %v5735 = vunpack.c.h.b16 %v5521
        %v5736 = vpack.c.b16 %v5612, %v5608
        %v5737 = vpack.c.b16 %v5613, %v5609
        %v5738 = vpack.c.b16 %v5614, %v5610
        %v5739 = vpack.c.b16 %v5615, %v5611
        %v5740 = vpack.c.b16 %v5620, %v5616
        %v5741 = vpack.c.b16 %v5621, %v5617
        %v5742 = vpack.c.b16 %v5622, %v5618
        %v5743 = vpack.c.b16 %v5623, %v5619
        %v5744 = vpack.c.b16 %v5628, %v5624
        %v5745 = vpack.c.b16 %v5629, %v5625
        %v5746 = vpack.c.b16 %v5630, %v5626
        %v5747 = vpack.c.b16 %v5631, %v5627
        %v5748 = vpack.c.b16 %v5636, %v5632
        %v5749 = vpack.c.b16 %v5637, %v5633
        %v5750 = vpack.c.b16 %v5638, %v5634
        %v5751 = vpack.c.b16 %v5639, %v5635
        %v5752 = vpack.c.b16 %v5644, %v5640
        %v5753 = vpack.c.b16 %v5645, %v5641
        %v5754 = vpack.c.b16 %v5646, %v5642
        %v5755 = vpack.c.b16 %v5647, %v5643
        %v5756 = vpack.c.b16 %v5652, %v5648
        %v5757 = vpack.c.b16 %v5653, %v5649
        %v5758 = vpack.c.b16 %v5654, %v5650
        %v5759 = vpack.c.b16 %v5655, %v5651
        %v5760 = vpack.c.b16 %v5660, %v5656
        %v5761 = vpack.c.b16 %v5661, %v5657
        %v5762 = vpack.c.b16 %v5662, %v5658
        %v5763 = vpack.c.b16 %v5663, %v5659
        %v5764 = vpack.c.b16 %v5668, %v5664
        %v5765 = vpack.c.b16 %v5669, %v5665
        %v5766 = vpack.c.b16 %v5670, %v5666
        %v5767 = vpack.c.b16 %v5671, %v5667
        %v5768 = vpack.c.b16 %v5676, %v5672
        %v5769 = vpack.c.b16 %v5677, %v5673
        %v5770 = vpack.c.b16 %v5678, %v5674
        %v5771 = vpack.c.b16 %v5679, %v5675
        %v5772 = vpack.c.b16 %v5684, %v5680
        %v5773 = vpack.c.b16 %v5685, %v5681
        %v5774 = vpack.c.b16 %v5686, %v5682
        %v5775 = vpack.c.b16 %v5687, %v5683
        %v5776 = vpack.c.b16 %v5692, %v5688
        %v5777 = vpack.c.b16 %v5693, %v5689
        %v5778 = vpack.c.b16 %v5694, %v5690
        %v5779 = vpack.c.b16 %v5695, %v5691
        %v5780 = vpack.c.b16 %v5700, %v5696
        %v5781 = vpack.c.b16 %v5701, %v5697
        %v5782 = vpack.c.b16 %v5702, %v5698
        %v5783 = vpack.c.b16 %v5703, %v5699
        %v5784 = vpack.c.b16 %v5708, %v5704
        %v5785 = vpack.c.b16 %v5709, %v5705
        %v5786 = vpack.c.b16 %v5710, %v5706
        %v5787 = vpack.c.b16 %v5711, %v5707
        %v5788 = vpack.c.b16 %v5716, %v5712
        %v5789 = vpack.c.b16 %v5717, %v5713
        %v5790 = vpack.c.b16 %v5718, %v5714
        %v5791 = vpack.c.b16 %v5719, %v5715
        %v5792 = vpack.c.b16 %v5724, %v5720
        %v5793 = vpack.c.b16 %v5725, %v5721
        %v5794 = vpack.c.b16 %v5726, %v5722
        %v5795 = vpack.c.b16 %v5727, %v5723
        %v5796 = vpack.c.b16 %v5732, %v5728
        %v5797 = vpack.c.b16 %v5733, %v5729
        %v5798 = vpack.c.b16 %v5734, %v5730
        %v5799 = vpack.c.b16 %v5735, %v5731
        %5864 = vmatprep.subr.bf16.mxu0 %v5737
        %5865 = vmatpush1.bf16.msra.mxu0 %v5736
        %5866 = vmatprep.subr.bf16.mxu0 %v5741
        %5867 = vmatpush1.bf16.msra.mxu0 %v5740
        %5868 = vmatprep.subr.bf16.mxu0 %v5745
        %5869 = vmatpush1.bf16.msra.mxu0 %v5744
        %5870 = vmatprep.subr.bf16.mxu0 %v5749
        %5871 = vmatpush1.bf16.msra.mxu0 %v5748
        %5872 = vmatprep.subr.bf16.mxu0 %v5753
        %5873 = vmatpush1.bf16.msra.mxu0 %v5752
        %5874 = vmatprep.subr.bf16.mxu0 %v5757
        %5875 = vmatpush1.bf16.msra.mxu0 %v5756
        %5876 = vmatprep.subr.bf16.mxu0 %v5761
        %5877 = vmatpush1.bf16.msra.mxu0 %v5760
        %5878 = vmatprep.subr.bf16.mxu0 %v5765
        %5879 = vmatpush1.bf16.msra.mxu0 %v5764
        %5880 = vmatprep.subr.bf16.mxu0 %v5769
        %5881 = vmatpush1.bf16.msra.mxu0 %v5768
        %5882 = vmatprep.subr.bf16.mxu0 %v5773
        %5883 = vmatpush1.bf16.msra.mxu0 %v5772
        %5884 = vmatprep.subr.bf16.mxu0 %v5777
        %5885 = vmatpush1.bf16.msra.mxu0 %v5776
        %5886 = vmatprep.subr.bf16.mxu0 %v5781
        %5887 = vmatpush1.bf16.msra.mxu0 %v5780
        %5888 = vmatprep.subr.bf16.mxu0 %v5785
        %5889 = vmatpush1.bf16.msra.mxu0 %v5784
        %5890 = vmatprep.subr.bf16.mxu0 %v5789
        %5891 = vmatpush1.bf16.msra.mxu0 %v5788
        %5892 = vmatprep.subr.bf16.mxu0 %v5793
        %5893 = vmatpush1.bf16.msra.mxu0 %v5792
        %5894 = vmatprep.subr.bf16.mxu0 %v5797
        %5895 = vmatpush1.bf16.msra.mxu0 %v5796
        %5896 = vmatprep.mubr.bf16.mxu0 %v3509
        %5897 = vmatmul.mubr.bf16.gmra.mrb[0].mxu0 %v3508
        %v5898 = vpop.f32.mrb[0].mxu0
        %v5899 = vadd.f32 %v5527, %v5898
        %v5900 = vpop.f32.mrb[0].mxu0
        %v5901 = vadd.f32 %v5531, %v5900
        %v5902 = vpop.f32.mrb[0].mxu0
        %v5903 = vadd.f32 %v5527, %v5902
        %v5904 = vpop.f32.mrb[0].mxu0
        %v5905 = vadd.f32 %v5531, %v5904
        %5906 = vdwg.mxu0
        %5907 = vmatprep.subr.bf16.mxu0 %v5739
        %5908 = vmatpush1.bf16.msra.mxu0 %v5738
        %5909 = vmatprep.subr.bf16.mxu0 %v5743
        %5910 = vmatpush1.bf16.msra.mxu0 %v5742
        %5911 = vmatprep.subr.bf16.mxu0 %v5747
        %5912 = vmatpush1.bf16.msra.mxu0 %v5746
        %5913 = vmatprep.subr.bf16.mxu0 %v5751
        %5914 = vmatpush1.bf16.msra.mxu0 %v5750
        %5915 = vmatprep.subr.bf16.mxu0 %v5755
        %5916 = vmatpush1.bf16.msra.mxu0 %v5754
        %5917 = vmatprep.subr.bf16.mxu0 %v5759
        %5918 = vmatpush1.bf16.msra.mxu0 %v5758
        %5919 = vmatprep.subr.bf16.mxu0 %v5763
        %5920 = vmatpush1.bf16.msra.mxu0 %v5762
        %5921 = vmatprep.subr.bf16.mxu0 %v5767
        %5922 = vmatpush1.bf16.msra.mxu0 %v5766
        %5923 = vmatprep.subr.bf16.mxu0 %v5771
        %5924 = vmatpush1.bf16.msra.mxu0 %v5770
        %5925 = vmatprep.subr.bf16.mxu0 %v5775
        %5926 = vmatpush1.bf16.msra.mxu0 %v5774
        %5927 = vmatprep.subr.bf16.mxu0 %v5779
        %5928 = vmatpush1.bf16.msra.mxu0 %v5778
        %5929 = vmatprep.subr.bf16.mxu0 %v5783
        %5930 = vmatpush1.bf16.msra.mxu0 %v5782
        %5931 = vmatprep.subr.bf16.mxu0 %v5787
        %5932 = vmatpush1.bf16.msra.mxu0 %v5786
        %5933 = vmatprep.subr.bf16.mxu0 %v5791
        %5934 = vmatpush1.bf16.msra.mxu0 %v5790
        %5935 = vmatprep.subr.bf16.mxu0 %v5795
        %5936 = vmatpush1.bf16.msra.mxu0 %v5794
        %5937 = vmatprep.subr.bf16.mxu0 %v5799
        %5938 = vmatpush1.bf16.msra.mxu0 %v5798
        %5939 = vmatprep.mubr.bf16.mxu0 %v3509
        %5940 = vmatmul.mubr.bf16.gmra.mrb[0].mxu0 %v3508
        %v5941 = vpop.f32.mrb[0].mxu0
        %v5942 = vadd.f32 %v5535, %v5941
        %v5943 = vpop.f32.mrb[0].mxu0
        %v5944 = vadd.f32 %v5539, %v5943
        %v5945 = vpop.f32.mrb[0].mxu0
        %v5946 = vadd.f32 %v5535, %v5945
        %v5947 = vpop.f32.mrb[0].mxu0
        %v5948 = vadd.f32 %v5539, %v5947
        %5949 = vdwg.mxu0
        %v5950 = vmax.f32 %v5899, 0.0
        %v5951 = vmax.f32 %v5901, 0.0
        %v5952 = vmax.f32 %v5942, 0.0
        %v5953 = vmax.f32 %v5944, 0.0
        %v5954 = vmax.f32 %v5903, 0.0
        %v5955 = vmax.f32 %v5905, 0.0
        %v5956 = vmax.f32 %v5946, 0.0
        %v5957 = vmax.f32 %v5948, 0.0
        %v5958 = vpack.c.bf16 %v5954, %v5950
        %v5959 = vpack.c.bf16 %v5955, %v5951
        %v5960 = vpack.c.bf16 %v5956, %v5952
        %v5961 = vpack.c.bf16 %v5957, %v5953
        %v5962 = vld [vmem:[%s502 + $0x400] sm:$0xff]
        %v5963 = vld [vmem:[%s502 + $0x408] sm:$0xff]
        %v5964 = vld [vmem:[%s502 + $0x410] sm:$0xff]
        %v5965 = vld [vmem:[%s502 + $0x418] sm:$0xff]
        %v5966 = vld [vmem:[%s502 + $0x420] sm:$0xff]
        %v5967 = vld [vmem:[%s502 + $0x428] sm:$0xff]
        %v5968 = vld [vmem:[%s502 + $0x430] sm:$0xff]
        %v5969 = vld [vmem:[%s502 + $0x438] sm:$0xff]
        %v5970 = vld [vmem:[%s502 + $0x440] sm:$0xff]
        %v5971 = vld [vmem:[%s502 + $0x448] sm:$0xff]
        %v5972 = vld [vmem:[%s502 + $0x450] sm:$0xff]
        %v5973 = vld [vmem:[%s502 + $0x458] sm:$0xff]
        %v5974 = vld [vmem:[%s502 + $0x460] sm:$0xff]
        %v5975 = vld [vmem:[%s502 + $0x468] sm:$0xff]
        %v5976 = vld [vmem:[%s502 + $0x470] sm:$0xff]
        %v5977 = vld [vmem:[%s502 + $0x478] sm:$0xff]
        %v5978 = vld [vmem:[%s502 + $0x480] sm:$0xff]
        %v5979 = vld [vmem:[%s502 + $0x488] sm:$0xff]
        %v5980 = vld [vmem:[%s502 + $0x490] sm:$0xff]
        %v5981 = vld [vmem:[%s502 + $0x498] sm:$0xff]
        %v5982 = vld [vmem:[%s502 + $0x4a0] sm:$0xff]
        %v5983 = vld [vmem:[%s502 + $0x4a8] sm:$0xff]
        %v5984 = vld [vmem:[%s502 + $0x4b0] sm:$0xff]
        %v5985 = vld [vmem:[%s502 + $0x4b8] sm:$0xff]
        %v5986 = vld [vmem:[%s502 + $0x4c0] sm:$0xff]
        %v5987 = vld [vmem:[%s502 + $0x4c8] sm:$0xff]
        %v5988 = vld [vmem:[%s502 + $0x4d0] sm:$0xff]
        %v5989 = vld [vmem:[%s502 + $0x4d8] sm:$0xff]
        %v5990 = vld [vmem:[%s502 + $0x4e0] sm:$0xff]
        %v5991 = vld [vmem:[%s502 + $0x4e8] sm:$0xff]
        %v5992 = vld [vmem:[%s502 + $0x4f0] sm:$0xff]
        %v5993 = vld [vmem:[%s502 + $0x4f8] sm:$0xff]
        %v5994 = vld [vmem:[%s502 + $0x500] sm:$0xff]
        %v5995 = vld [vmem:[%s502 + $0x508] sm:$0xff]
        %v5996 = vld [vmem:[%s502 + $0x510] sm:$0xff]
        %v5997 = vld [vmem:[%s502 + $0x518] sm:$0xff]
        %v5998 = vld [vmem:[%s502 + $0x520] sm:$0xff]
        %v5999 = vld [vmem:[%s502 + $0x528] sm:$0xff]
        %v6000 = vld [vmem:[%s502 + $0x530] sm:$0xff]
        %v6001 = vld [vmem:[%s502 + $0x538] sm:$0xff]
        %v6002 = vld [vmem:[%s502 + $0x540] sm:$0xff]
        %v6003 = vld [vmem:[%s502 + $0x548] sm:$0xff]
        %v6004 = vld [vmem:[%s502 + $0x550] sm:$0xff]
        %v6005 = vld [vmem:[%s502 + $0x558] sm:$0xff]
        %v6006 = vld [vmem:[%s502 + $0x560] sm:$0xff]
        %v6007 = vld [vmem:[%s502 + $0x568] sm:$0xff]
        %v6008 = vld [vmem:[%s502 + $0x570] sm:$0xff]
        %v6009 = vld [vmem:[%s502 + $0x578] sm:$0xff]
        %v6010 = vld [vmem:[%s502 + $0x580] sm:$0xff]
        %v6011 = vld [vmem:[%s502 + $0x588] sm:$0xff]
        %v6012 = vld [vmem:[%s502 + $0x590] sm:$0xff]
        %v6013 = vld [vmem:[%s502 + $0x598] sm:$0xff]
        %v6014 = vld [vmem:[%s502 + $0x5a0] sm:$0xff]
        %v6015 = vld [vmem:[%s502 + $0x5a8] sm:$0xff]
        %v6016 = vld [vmem:[%s502 + $0x5b0] sm:$0xff]
        %v6017 = vld [vmem:[%s502 + $0x5b8] sm:$0xff]
        %v6018 = vld [vmem:[%s502 + $0x5c0] sm:$0xff]
        %v6019 = vld [vmem:[%s502 + $0x5c8] sm:$0xff]
        %v6020 = vld [vmem:[%s502 + $0x5d0] sm:$0xff]
        %v6021 = vld [vmem:[%s502 + $0x5d8] sm:$0xff]
        %v6022 = vld [vmem:[%s502 + $0x5e0] sm:$0xff]
        %v6023 = vld [vmem:[%s502 + $0x5e8] sm:$0xff]
        %v6024 = vld [vmem:[%s502 + $0x5f0] sm:$0xff]
        %v6025 = vld [vmem:[%s502 + $0x5f8] sm:$0xff]
        %v6090 = vunpack.c.l.b16 %v5962
        %v6091 = vunpack.c.h.b16 %v5962
        %v6092 = vunpack.c.l.b16 %v5963
        %v6093 = vunpack.c.h.b16 %v5963
        %v6094 = vunpack.c.l.b16 %v5964
        %v6095 = vunpack.c.h.b16 %v5964
        %v6096 = vunpack.c.l.b16 %v5965
        %v6097 = vunpack.c.h.b16 %v5965
        %v6098 = vunpack.c.l.b16 %v5966
        %v6099 = vunpack.c.h.b16 %v5966
        %v6100 = vunpack.c.l.b16 %v5967
        %v6101 = vunpack.c.h.b16 %v5967
        %v6102 = vunpack.c.l.b16 %v5968
        %v6103 = vunpack.c.h.b16 %v5968
        %v6104 = vunpack.c.l.b16 %v5969
        %v6105 = vunpack.c.h.b16 %v5969
        %v6106 = vunpack.c.l.b16 %v5970
        %v6107 = vunpack.c.h.b16 %v5970
        %v6108 = vunpack.c.l.b16 %v5971
        %v6109 = vunpack.c.h.b16 %v5971
        %v6110 = vunpack.c.l.b16 %v5972
        %v6111 = vunpack.c.h.b16 %v5972
        %v6112 = vunpack.c.l.b16 %v5973
        %v6113 = vunpack.c.h.b16 %v5973
        %v6114 = vunpack.c.l.b16 %v5974
        %v6115 = vunpack.c.h.b16 %v5974
        %v6116 = vunpack.c.l.b16 %v5975
        %v6117 = vunpack.c.h.b16 %v5975
        %v6118 = vunpack.c.l.b16 %v5976
        %v6119 = vunpack.c.h.b16 %v5976
        %v6120 = vunpack.c.l.b16 %v5977
        %v6121 = vunpack.c.h.b16 %v5977
        %v6122 = vunpack.c.l.b16 %v5978
        %v6123 = vunpack.c.h.b16 %v5978
        %v6124 = vunpack.c.l.b16 %v5979
        %v6125 = vunpack.c.h.b16 %v5979
        %v6126 = vunpack.c.l.b16 %v5980
        %v6127 = vunpack.c.h.b16 %v5980
        %v6128 = vunpack.c.l.b16 %v5981
        %v6129 = vunpack.c.h.b16 %v5981
        %v6130 = vunpack.c.l.b16 %v5982
        %v6131 = vunpack.c.h.b16 %v5982
        %v6132 = vunpack.c.l.b16 %v5983
        %v6133 = vunpack.c.h.b16 %v5983
        %v6134 = vunpack.c.l.b16 %v5984
        %v6135 = vunpack.c.h.b16 %v5984
        %v6136 = vunpack.c.l.b16 %v5985
        %v6137 = vunpack.c.h.b16 %v5985
        %v6138 = vunpack.c.l.b16 %v5986
        %v6139 = vunpack.c.h.b16 %v5986
        %v6140 = vunpack.c.l.b16 %v5987
        %v6141 = vunpack.c.h.b16 %v5987
        %v6142 = vunpack.c.l.b16 %v5988
        %v6143 = vunpack.c.h.b16 %v5988
        %v6144 = vunpack.c.l.b16 %v5989
        %v6145 = vunpack.c.h.b16 %v5989
        %v6146 = vunpack.c.l.b16 %v5990
        %v6147 = vunpack.c.h.b16 %v5990
        %v6148 = vunpack.c.l.b16 %v5991
        %v6149 = vunpack.c.h.b16 %v5991
        %v6150 = vunpack.c.l.b16 %v5992
        %v6151 = vunpack.c.h.b16 %v5992
        %v6152 = vunpack.c.l.b16 %v5993
        %v6153 = vunpack.c.h.b16 %v5993
        %v6154 = vunpack.c.l.b16 %v5994
        %v6155 = vunpack.c.h.b16 %v5994
        %v6156 = vunpack.c.l.b16 %v5995
        %v6157 = vunpack.c.h.b16 %v5995
        %v6158 = vunpack.c.l.b16 %v5996
        %v6159 = vunpack.c.h.b16 %v5996
        %v6160 = vunpack.c.l.b16 %v5997
        %v6161 = vunpack.c.h.b16 %v5997
        %v6162 = vunpack.c.l.b16 %v5998
        %v6163 = vunpack.c.h.b16 %v5998
        %v6164 = vunpack.c.l.b16 %v5999
        %v6165 = vunpack.c.h.b16 %v5999
        %v6166 = vunpack.c.l.b16 %v6000
        %v6167 = vunpack.c.h.b16 %v6000
        %v6168 = vunpack.c.l.b16 %v6001
        %v6169 = vunpack.c.h.b16 %v6001
        %v6170 = vunpack.c.l.b16 %v6002
        %v6171 = vunpack.c.h.b16 %v6002
        %v6172 = vunpack.c.l.b16 %v6003
        %v6173 = vunpack.c.h.b16 %v6003
        %v6174 = vunpack.c.l.b16 %v6004
        %v6175 = vunpack.c.h.b16 %v6004
        %v6176 = vunpack.c.l.b16 %v6005
        %v6177 = vunpack.c.h.b16 %v6005
        %v6178 = vunpack.c.l.b16 %v6006
        %v6179 = vunpack.c.h.b16 %v6006
        %v6180 = vunpack.c.l.b16 %v6007
        %v6181 = vunpack.c.h.b16 %v6007
        %v6182 = vunpack.c.l.b16 %v6008
        %v6183 = vunpack.c.h.b16 %v6008
        %v6184 = vunpack.c.l.b16 %v6009
        %v6185 = vunpack.c.h.b16 %v6009
        %v6186 = vunpack.c.l.b16 %v6010
        %v6187 = vunpack.c.h.b16 %v6010
        %v6188 = vunpack.c.l.b16 %v6011
        %v6189 = vunpack.c.h.b16 %v6011
        %v6190 = vunpack.c.l.b16 %v6012
        %v6191 = vunpack.c.h.b16 %v6012
        %v6192 = vunpack.c.l.b16 %v6013
        %v6193 = vunpack.c.h.b16 %v6013
        %v6194 = vunpack.c.l.b16 %v6014
        %v6195 = vunpack.c.h.b16 %v6014
        %v6196 = vunpack.c.l.b16 %v6015
        %v6197 = vunpack.c.h.b16 %v6015
        %v6198 = vunpack.c.l.b16 %v6016
        %v6199 = vunpack.c.h.b16 %v6016
        %v6200 = vunpack.c.l.b16 %v6017
        %v6201 = vunpack.c.h.b16 %v6017
        %v6202 = vunpack.c.l.b16 %v6018
        %v6203 = vunpack.c.h.b16 %v6018
        %v6204 = vunpack.c.l.b16 %v6019
        %v6205 = vunpack.c.h.b16 %v6019
        %v6206 = vunpack.c.l.b16 %v6020
        %v6207 = vunpack.c.h.b16 %v6020
        %v6208 = vunpack.c.l.b16 %v6021
        %v6209 = vunpack.c.h.b16 %v6021
        %v6210 = vunpack.c.l.b16 %v6022
        %v6211 = vunpack.c.h.b16 %v6022
        %v6212 = vunpack.c.l.b16 %v6023
        %v6213 = vunpack.c.h.b16 %v6023
        %v6214 = vunpack.c.l.b16 %v6024
        %v6215 = vunpack.c.h.b16 %v6024
        %v6216 = vunpack.c.l.b16 %v6025
        %v6217 = vunpack.c.h.b16 %v6025
        %v6218 = vpack.c.b16 %v6092, %v6090
        %v6219 = vpack.c.b16 %v6093, %v6091
        %v6220 = vpack.c.b16 %v6096, %v6094
        %v6221 = vpack.c.b16 %v6097, %v6095
        %v6222 = vpack.c.b16 %v6100, %v6098
        %v6223 = vpack.c.b16 %v6101, %v6099
        %v6224 = vpack.c.b16 %v6104, %v6102
        %v6225 = vpack.c.b16 %v6105, %v6103
        %v6226 = vpack.c.b16 %v6108, %v6106
        %v6227 = vpack.c.b16 %v6109, %v6107
        %v6228 = vpack.c.b16 %v6112, %v6110
        %v6229 = vpack.c.b16 %v6113, %v6111
        %v6230 = vpack.c.b16 %v6116, %v6114
        %v6231 = vpack.c.b16 %v6117, %v6115
        %v6232 = vpack.c.b16 %v6120, %v6118
        %v6233 = vpack.c.b16 %v6121, %v6119
        %v6234 = vpack.c.b16 %v6124, %v6122
        %v6235 = vpack.c.b16 %v6125, %v6123
        %v6236 = vpack.c.b16 %v6128, %v6126
        %v6237 = vpack.c.b16 %v6129, %v6127
        %v6238 = vpack.c.b16 %v6132, %v6130
        %v6239 = vpack.c.b16 %v6133, %v6131
        %v6240 = vpack.c.b16 %v6136, %v6134
        %v6241 = vpack.c.b16 %v6137, %v6135
        %v6242 = vpack.c.b16 %v6140, %v6138
        %v6243 = vpack.c.b16 %v6141, %v6139
        %v6244 = vpack.c.b16 %v6144, %v6142
        %v6245 = vpack.c.b16 %v6145, %v6143
        %v6246 = vpack.c.b16 %v6148, %v6146
        %v6247 = vpack.c.b16 %v6149, %v6147
        %v6248 = vpack.c.b16 %v6152, %v6150
        %v6249 = vpack.c.b16 %v6153, %v6151
        %v6250 = vpack.c.b16 %v6156, %v6154
        %v6251 = vpack.c.b16 %v6157, %v6155
        %v6252 = vpack.c.b16 %v6160, %v6158
        %v6253 = vpack.c.b16 %v6161, %v6159
        %v6254 = vpack.c.b16 %v6164, %v6162
        %v6255 = vpack.c.b16 %v6165, %v6163
        %v6256 = vpack.c.b16 %v6168, %v6166
        %v6257 = vpack.c.b16 %v6169, %v6167
        %v6258 = vpack.c.b16 %v6172, %v6170
        %v6259 = vpack.c.b16 %v6173, %v6171
        %v6260 = vpack.c.b16 %v6176, %v6174
        %v6261 = vpack.c.b16 %v6177, %v6175
        %v6262 = vpack.c.b16 %v6180, %v6178
        %v6263 = vpack.c.b16 %v6181, %v6179
        %v6264 = vpack.c.b16 %v6184, %v6182
        %v6265 = vpack.c.b16 %v6185, %v6183
        %v6266 = vpack.c.b16 %v6188, %v6186
        %v6267 = vpack.c.b16 %v6189, %v6187
        %v6268 = vpack.c.b16 %v6192, %v6190
        %v6269 = vpack.c.b16 %v6193, %v6191
        %v6270 = vpack.c.b16 %v6196, %v6194
        %v6271 = vpack.c.b16 %v6197, %v6195
        %v6272 = vpack.c.b16 %v6200, %v6198
        %v6273 = vpack.c.b16 %v6201, %v6199
        %v6274 = vpack.c.b16 %v6204, %v6202
        %v6275 = vpack.c.b16 %v6205, %v6203
        %v6276 = vpack.c.b16 %v6208, %v6206
        %v6277 = vpack.c.b16 %v6209, %v6207
        %v6278 = vpack.c.b16 %v6212, %v6210
        %v6279 = vpack.c.b16 %v6213, %v6211
        %v6280 = vpack.c.b16 %v6216, %v6214
        %v6281 = vpack.c.b16 %v6217, %v6215
        %6346 = vmatprep.subr.bf16.mxu0 %v6219
        %6347 = vmatpush1.bf16.msra.mxu0 %v6218
        %6348 = vmatprep.subr.bf16.mxu0 %v6221
        %6349 = vmatpush1.bf16.msra.mxu0 %v6220
        %6350 = vmatprep.subr.bf16.mxu0 %v6223
        %6351 = vmatpush1.bf16.msra.mxu0 %v6222
        %6352 = vmatprep.subr.bf16.mxu0 %v6225
        %6353 = vmatpush1.bf16.msra.mxu0 %v6224
        %6354 = vmatprep.subr.bf16.mxu0 %v6227
        %6355 = vmatpush1.bf16.msra.mxu0 %v6226
        %6356 = vmatprep.subr.bf16.mxu0 %v6229
        %6357 = vmatpush1.bf16.msra.mxu0 %v6228
        %6358 = vmatprep.subr.bf16.mxu0 %v6231
        %6359 = vmatpush1.bf16.msra.mxu0 %v6230
        %6360 = vmatprep.subr.bf16.mxu0 %v6233
        %6361 = vmatpush1.bf16.msra.mxu0 %v6232
        %6362 = vmatprep.subr.bf16.mxu0 %v6235
        %6363 = vmatpush1.bf16.msra.mxu0 %v6234
        %6364 = vmatprep.subr.bf16.mxu0 %v6237
        %6365 = vmatpush1.bf16.msra.mxu0 %v6236
        %6366 = vmatprep.subr.bf16.mxu0 %v6239
        %6367 = vmatpush1.bf16.msra.mxu0 %v6238
        %6368 = vmatprep.subr.bf16.mxu0 %v6241
        %6369 = vmatpush1.bf16.msra.mxu0 %v6240
        %6370 = vmatprep.subr.bf16.mxu0 %v6243
        %6371 = vmatpush1.bf16.msra.mxu0 %v6242
        %6372 = vmatprep.subr.bf16.mxu0 %v6245
        %6373 = vmatpush1.bf16.msra.mxu0 %v6244
        %6374 = vmatprep.subr.bf16.mxu0 %v6247
        %6375 = vmatpush1.bf16.msra.mxu0 %v6246
        %6376 = vmatprep.subr.bf16.mxu0 %v6249
        %6377 = vmatpush1.bf16.msra.mxu0 %v6248
        %6378 = vmatprep.mubr.bf16.mxu0 %v5959
        %6379 = vmatmul.mubr.bf16.gmra.mrb[0].mxu0 %v5958
        %v6380 = vpop.f32.mrb[0].mxu0
        %v6381 = vadd.f32 0.0, %v6380
        %v6382 = vpop.f32.mrb[0].mxu0
        %v6383 = vadd.f32 0.0, %v6382
        %v6384 = vpop.f32.mrb[0].mxu0
        %v6385 = vadd.f32 0.0, %v6384
        %v6386 = vpop.f32.mrb[0].mxu0
        %v6387 = vadd.f32 0.0, %v6386
        %6388 = vdwg.mxu0
        %6389 = vmatprep.subr.bf16.mxu0 %v6251
        %6390 = vmatpush1.bf16.msra.mxu0 %v6250
        %6391 = vmatprep.subr.bf16.mxu0 %v6253
        %6392 = vmatpush1.bf16.msra.mxu0 %v6252
        %6393 = vmatprep.subr.bf16.mxu0 %v6255
        %6394 = vmatpush1.bf16.msra.mxu0 %v6254
        %6395 = vmatprep.subr.bf16.mxu0 %v6257
        %6396 = vmatpush1.bf16.msra.mxu0 %v6256
        %6397 = vmatprep.subr.bf16.mxu0 %v6259
        %6398 = vmatpush1.bf16.msra.mxu0 %v6258
        %6399 = vmatprep.subr.bf16.mxu0 %v6261
        %6400 = vmatpush1.bf16.msra.mxu0 %v6260
        %6401 = vmatprep.subr.bf16.mxu0 %v6263
        %6402 = vmatpush1.bf16.msra.mxu0 %v6262
        %6403 = vmatprep.subr.bf16.mxu0 %v6265
        %6404 = vmatpush1.bf16.msra.mxu0 %v6264
        %6405 = vmatprep.subr.bf16.mxu0 %v6267
        %6406 = vmatpush1.bf16.msra.mxu0 %v6266
        %6407 = vmatprep.subr.bf16.mxu0 %v6269
        %6408 = vmatpush1.bf16.msra.mxu0 %v6268
        %6409 = vmatprep.subr.bf16.mxu0 %v6271
        %6410 = vmatpush1.bf16.msra.mxu0 %v6270
        %6411 = vmatprep.subr.bf16.mxu0 %v6273
        %6412 = vmatpush1.bf16.msra.mxu0 %v6272
        %6413 = vmatprep.subr.bf16.mxu0 %v6275
        %6414 = vmatpush1.bf16.msra.mxu0 %v6274
        %6415 = vmatprep.subr.bf16.mxu0 %v6277
        %6416 = vmatpush1.bf16.msra.mxu0 %v6276
        %6417 = vmatprep.subr.bf16.mxu0 %v6279
        %6418 = vmatpush1.bf16.msra.mxu0 %v6278
        %6419 = vmatprep.subr.bf16.mxu0 %v6281
        %6420 = vmatpush1.bf16.msra.mxu0 %v6280
        %6421 = vmatprep.mubr.bf16.mxu0 %v5961
        %6422 = vmatmul.mubr.bf16.gmra.mrb[0].mxu0 %v5960
        %v6423 = vpop.f32.mrb[0].mxu0
        %v6424 = vadd.f32 %v6381, %v6423
        %v6425 = vpop.f32.mrb[0].mxu0
        %v6426 = vadd.f32 %v6383, %v6425
        %v6427 = vpop.f32.mrb[0].mxu0
        %v6428 = vadd.f32 %v6385, %v6427
        %v6429 = vpop.f32.mrb[0].mxu0
        %v6430 = vadd.f32 %v6387, %v6429
        %6431 = vdwg.mxu0
        %v6432 = vadd.f32 %v5450, %v6424
        %v6433 = vadd.f32 %v5452, %v6426
        %v6434 = vadd.f32 %v5454, %v6428
        %v6435 = vadd.f32 %v5456, %v6430
        %v6436 = vld [vmem:[%s493 + $0x30] sm:$0xff]
        %v6437 = vld [vmem:[%s493 + $0x38] sm:$0xff]
        %v6438 = vld [vmem:[%s493 + $0x70] sm:$0xff]
        %v6439 = vld [vmem:[%s493 + $0x78] sm:$0xff]
        %v6440 = vld [vmem:[%s493 + $0xb0] sm:$0xff]
        %v6441 = vld [vmem:[%s493 + $0xb8] sm:$0xff]
        %v6442 = vld [vmem:[%s493 + $0xf0] sm:$0xff]
        %v6443 = vld [vmem:[%s493 + $0xf8] sm:$0xff]
        %v6444 = vld [vmem:[%s493 + $0x130] sm:$0xff]
        %v6445 = vld [vmem:[%s493 + $0x138] sm:$0xff]
        %v6446 = vld [vmem:[%s493 + $0x170] sm:$0xff]
        %v6447 = vld [vmem:[%s493 + $0x178] sm:$0xff]
        %v6448 = vld [vmem:[%s493 + $0x1b0] sm:$0xff]
        %v6449 = vld [vmem:[%s493 + $0x1b8] sm:$0xff]
        %v6450 = vld [vmem:[%s493 + $0x1f0] sm:$0xff]
        %v6451 = vld [vmem:[%s493 + $0x1f8] sm:$0xff]
        %v6452 = vld [vmem:[%s493 + $0x230] sm:$0xff]
        %v6453 = vld [vmem:[%s493 + $0x238] sm:$0xff]
        %v6454 = vld [vmem:[%s493 + $0x270] sm:$0xff]
        %v6455 = vld [vmem:[%s493 + $0x278] sm:$0xff]
        %v6456 = vld [vmem:[%s493 + $0x2b0] sm:$0xff]
        %v6457 = vld [vmem:[%s493 + $0x2b8] sm:$0xff]
        %v6458 = vld [vmem:[%s493 + $0x2f0] sm:$0xff]
        %v6459 = vld [vmem:[%s493 + $0x2f8] sm:$0xff]
        %v6460 = vld [vmem:[%s493 + $0x330] sm:$0xff]
        %v6461 = vld [vmem:[%s493 + $0x338] sm:$0xff]
        %v6462 = vld [vmem:[%s493 + $0x370] sm:$0xff]
        %v6463 = vld [vmem:[%s493 + $0x378] sm:$0xff]
        %v6464 = vld [vmem:[%s493 + $0x3b0] sm:$0xff]
        %v6465 = vld [vmem:[%s493 + $0x3b8] sm:$0xff]
        %v6466 = vld [vmem:[%s493 + $0x3f0] sm:$0xff]
        %v6467 = vld [vmem:[%s493 + $0x3f8] sm:$0xff]
        %v6468 = vld [vmem:[%s493 + $0x430] sm:$0xff]
        %v6469 = vld [vmem:[%s493 + $0x438] sm:$0xff]
        %v6470 = vld [vmem:[%s493 + $0x470] sm:$0xff]
        %v6471 = vld [vmem:[%s493 + $0x478] sm:$0xff]
        %v6472 = vld [vmem:[%s493 + $0x4b0] sm:$0xff]
        %v6473 = vld [vmem:[%s493 + $0x4b8] sm:$0xff]
        %v6474 = vld [vmem:[%s493 + $0x4f0] sm:$0xff]
        %v6475 = vld [vmem:[%s493 + $0x4f8] sm:$0xff]
        %v6476 = vld [vmem:[%s493 + $0x530] sm:$0xff]
        %v6477 = vld [vmem:[%s493 + $0x538] sm:$0xff]
        %v6478 = vld [vmem:[%s493 + $0x570] sm:$0xff]
        %v6479 = vld [vmem:[%s493 + $0x578] sm:$0xff]
        %v6480 = vld [vmem:[%s493 + $0x5b0] sm:$0xff]
        %v6481 = vld [vmem:[%s493 + $0x5b8] sm:$0xff]
        %v6482 = vld [vmem:[%s493 + $0x5f0] sm:$0xff]
        %v6483 = vld [vmem:[%s493 + $0x5f8] sm:$0xff]
        %v6484 = vld [vmem:[%s493 + $0x630] sm:$0xff]
        %v6485 = vld [vmem:[%s493 + $0x638] sm:$0xff]
        %v6486 = vld [vmem:[%s493 + $0x670] sm:$0xff]
        %v6487 = vld [vmem:[%s493 + $0x678] sm:$0xff]
        %v6488 = vld [vmem:[%s493 + $0x6b0] sm:$0xff]
        %v6489 = vld [vmem:[%s493 + $0x6b8] sm:$0xff]
        %v6490 = vld [vmem:[%s493 + $0x6f0] sm:$0xff]
        %v6491 = vld [vmem:[%s493 + $0x6f8] sm:$0xff]
        %v6492 = vld [vmem:[%s493 + $0x730] sm:$0xff]
        %v6493 = vld [vmem:[%s493 + $0x738] sm:$0xff]
        %v6494 = vld [vmem:[%s493 + $0x770] sm:$0xff]
        %v6495 = vld [vmem:[%s493 + $0x778] sm:$0xff]
        %v6496 = vld [vmem:[%s493 + $0x7b0] sm:$0xff]
        %v6497 = vld [vmem:[%s493 + $0x7b8] sm:$0xff]
        %v6498 = vld [vmem:[%s493 + $0x7f0] sm:$0xff]
        %v6499 = vld [vmem:[%s493 + $0x7f8] sm:$0xff]
        %v6500 = vld [vmem:[%s511 + $0xc] sm:$0xf]
        %v6502 = vlaneseq
        %v6503 = vshrl.u32 %v6502, 7
        %v6504 = vsub.s32 0, %v6503
        %v6505 = vrot.slane %v6500, %v6504
        %v6506 = vlaneseq
        %v6507 = vshrl.u32 %v6506, 7
        %v6508 = vsub.s32 1, %v6507
        %v6509 = vrot.slane %v6500, %v6508
        %v6510 = vlaneseq
        %v6511 = vshrl.u32 %v6510, 7
        %v6512 = vsub.s32 2, %v6511
        %v6513 = vrot.slane %v6500, %v6512
        %v6514 = vlaneseq
        %v6515 = vshrl.u32 %v6514, 7
        %v6516 = vsub.s32 3, %v6515
        %v6517 = vrot.slane %v6500, %v6516
        %v6586 = vunpack.c.l.b16 %v6436
        %v6587 = vunpack.c.h.b16 %v6436
        %v6588 = vunpack.c.l.b16 %v6437
        %v6589 = vunpack.c.h.b16 %v6437
        %v6590 = vunpack.c.l.b16 %v6438
        %v6591 = vunpack.c.h.b16 %v6438
        %v6592 = vunpack.c.l.b16 %v6439
        %v6593 = vunpack.c.h.b16 %v6439
        %v6594 = vunpack.c.l.b16 %v6440
        %v6595 = vunpack.c.h.b16 %v6440
        %v6596 = vunpack.c.l.b16 %v6441
        %v6597 = vunpack.c.h.b16 %v6441
        %v6598 = vunpack.c.l.b16 %v6442
        %v6599 = vunpack.c.h.b16 %v6442
        %v6600 = vunpack.c.l.b16 %v6443
        %v6601 = vunpack.c.h.b16 %v6443
        %v6602 = vunpack.c.l.b16 %v6444
        %v6603 = vunpack.c.h.b16 %v6444
        %v6604 = vunpack.c.l.b16 %v6445
        %v6605 = vunpack.c.h.b16 %v6445
        %v6606 = vunpack.c.l.b16 %v6446
        %v6607 = vunpack.c.h.b16 %v6446
        %v6608 = vunpack.c.l.b16 %v6447
        %v6609 = vunpack.c.h.b16 %v6447
        %v6610 = vunpack.c.l.b16 %v6448
        %v6611 = vunpack.c.h.b16 %v6448
        %v6612 = vunpack.c.l.b16 %v6449
        %v6613 = vunpack.c.h.b16 %v6449
        %v6614 = vunpack.c.l.b16 %v6450
        %v6615 = vunpack.c.h.b16 %v6450
        %v6616 = vunpack.c.l.b16 %v6451
        %v6617 = vunpack.c.h.b16 %v6451
        %v6618 = vunpack.c.l.b16 %v6452
        %v6619 = vunpack.c.h.b16 %v6452
        %v6620 = vunpack.c.l.b16 %v6453
        %v6621 = vunpack.c.h.b16 %v6453
        %v6622 = vunpack.c.l.b16 %v6454
        %v6623 = vunpack.c.h.b16 %v6454
        %v6624 = vunpack.c.l.b16 %v6455
        %v6625 = vunpack.c.h.b16 %v6455
        %v6626 = vunpack.c.l.b16 %v6456
        %v6627 = vunpack.c.h.b16 %v6456
        %v6628 = vunpack.c.l.b16 %v6457
        %v6629 = vunpack.c.h.b16 %v6457
        %v6630 = vunpack.c.l.b16 %v6458
        %v6631 = vunpack.c.h.b16 %v6458
        %v6632 = vunpack.c.l.b16 %v6459
        %v6633 = vunpack.c.h.b16 %v6459
        %v6634 = vunpack.c.l.b16 %v6460
        %v6635 = vunpack.c.h.b16 %v6460
        %v6636 = vunpack.c.l.b16 %v6461
        %v6637 = vunpack.c.h.b16 %v6461
        %v6638 = vunpack.c.l.b16 %v6462
        %v6639 = vunpack.c.h.b16 %v6462
        %v6640 = vunpack.c.l.b16 %v6463
        %v6641 = vunpack.c.h.b16 %v6463
        %v6642 = vunpack.c.l.b16 %v6464
        %v6643 = vunpack.c.h.b16 %v6464
        %v6644 = vunpack.c.l.b16 %v6465
        %v6645 = vunpack.c.h.b16 %v6465
        %v6646 = vunpack.c.l.b16 %v6466
        %v6647 = vunpack.c.h.b16 %v6466
        %v6648 = vunpack.c.l.b16 %v6467
        %v6649 = vunpack.c.h.b16 %v6467
        %v6650 = vunpack.c.l.b16 %v6468
        %v6651 = vunpack.c.h.b16 %v6468
        %v6652 = vunpack.c.l.b16 %v6469
        %v6653 = vunpack.c.h.b16 %v6469
        %v6654 = vunpack.c.l.b16 %v6470
        %v6655 = vunpack.c.h.b16 %v6470
        %v6656 = vunpack.c.l.b16 %v6471
        %v6657 = vunpack.c.h.b16 %v6471
        %v6658 = vunpack.c.l.b16 %v6472
        %v6659 = vunpack.c.h.b16 %v6472
        %v6660 = vunpack.c.l.b16 %v6473
        %v6661 = vunpack.c.h.b16 %v6473
        %v6662 = vunpack.c.l.b16 %v6474
        %v6663 = vunpack.c.h.b16 %v6474
        %v6664 = vunpack.c.l.b16 %v6475
        %v6665 = vunpack.c.h.b16 %v6475
        %v6666 = vunpack.c.l.b16 %v6476
        %v6667 = vunpack.c.h.b16 %v6476
        %v6668 = vunpack.c.l.b16 %v6477
        %v6669 = vunpack.c.h.b16 %v6477
        %v6670 = vunpack.c.l.b16 %v6478
        %v6671 = vunpack.c.h.b16 %v6478
        %v6672 = vunpack.c.l.b16 %v6479
        %v6673 = vunpack.c.h.b16 %v6479
        %v6674 = vunpack.c.l.b16 %v6480
        %v6675 = vunpack.c.h.b16 %v6480
        %v6676 = vunpack.c.l.b16 %v6481
        %v6677 = vunpack.c.h.b16 %v6481
        %v6678 = vunpack.c.l.b16 %v6482
        %v6679 = vunpack.c.h.b16 %v6482
        %v6680 = vunpack.c.l.b16 %v6483
        %v6681 = vunpack.c.h.b16 %v6483
        %v6682 = vunpack.c.l.b16 %v6484
        %v6683 = vunpack.c.h.b16 %v6484
        %v6684 = vunpack.c.l.b16 %v6485
        %v6685 = vunpack.c.h.b16 %v6485
        %v6686 = vunpack.c.l.b16 %v6486
        %v6687 = vunpack.c.h.b16 %v6486
        %v6688 = vunpack.c.l.b16 %v6487
        %v6689 = vunpack.c.h.b16 %v6487
        %v6690 = vunpack.c.l.b16 %v6488
        %v6691 = vunpack.c.h.b16 %v6488
        %v6692 = vunpack.c.l.b16 %v6489
        %v6693 = vunpack.c.h.b16 %v6489
        %v6694 = vunpack.c.l.b16 %v6490
        %v6695 = vunpack.c.h.b16 %v6490
        %v6696 = vunpack.c.l.b16 %v6491
        %v6697 = vunpack.c.h.b16 %v6491
        %v6698 = vunpack.c.l.b16 %v6492
        %v6699 = vunpack.c.h.b16 %v6492
        %v6700 = vunpack.c.l.b16 %v6493
        %v6701 = vunpack.c.h.b16 %v6493
        %v6702 = vunpack.c.l.b16 %v6494
        %v6703 = vunpack.c.h.b16 %v6494
        %v6704 = vunpack.c.l.b16 %v6495
        %v6705 = vunpack.c.h.b16 %v6495
        %v6706 = vunpack.c.l.b16 %v6496
        %v6707 = vunpack.c.h.b16 %v6496
        %v6708 = vunpack.c.l.b16 %v6497
        %v6709 = vunpack.c.h.b16 %v6497
        %v6710 = vunpack.c.l.b16 %v6498
        %v6711 = vunpack.c.h.b16 %v6498
        %v6712 = vunpack.c.l.b16 %v6499
        %v6713 = vunpack.c.h.b16 %v6499
        %v6714 = vpack.c.b16 %v6590, %v6586
        %v6715 = vpack.c.b16 %v6591, %v6587
        %v6716 = vpack.c.b16 %v6592, %v6588
        %v6717 = vpack.c.b16 %v6593, %v6589
        %v6718 = vpack.c.b16 %v6598, %v6594
        %v6719 = vpack.c.b16 %v6599, %v6595
        %v6720 = vpack.c.b16 %v6600, %v6596
        %v6721 = vpack.c.b16 %v6601, %v6597
        %v6722 = vpack.c.b16 %v6606, %v6602
        %v6723 = vpack.c.b16 %v6607, %v6603
        %v6724 = vpack.c.b16 %v6608, %v6604
        %v6725 = vpack.c.b16 %v6609, %v6605
        %v6726 = vpack.c.b16 %v6614, %v6610
        %v6727 = vpack.c.b16 %v6615, %v6611
        %v6728 = vpack.c.b16 %v6616, %v6612
        %v6729 = vpack.c.b16 %v6617, %v6613
        %v6730 = vpack.c.b16 %v6622, %v6618
        %v6731 = vpack.c.b16 %v6623, %v6619
        %v6732 = vpack.c.b16 %v6624, %v6620
        %v6733 = vpack.c.b16 %v6625, %v6621
        %v6734 = vpack.c.b16 %v6630, %v6626
        %v6735 = vpack.c.b16 %v6631, %v6627
        %v6736 = vpack.c.b16 %v6632, %v6628
        %v6737 = vpack.c.b16 %v6633, %v6629
        %v6738 = vpack.c.b16 %v6638, %v6634
        %v6739 = vpack.c.b16 %v6639, %v6635
        %v6740 = vpack.c.b16 %v6640, %v6636
        %v6741 = vpack.c.b16 %v6641, %v6637
        %v6742 = vpack.c.b16 %v6646, %v6642
        %v6743 = vpack.c.b16 %v6647, %v6643
        %v6744 = vpack.c.b16 %v6648, %v6644
        %v6745 = vpack.c.b16 %v6649, %v6645
        %v6746 = vpack.c.b16 %v6654, %v6650
        %v6747 = vpack.c.b16 %v6655, %v6651
        %v6748 = vpack.c.b16 %v6656, %v6652
        %v6749 = vpack.c.b16 %v6657, %v6653
        %v6750 = vpack.c.b16 %v6662, %v6658
        %v6751 = vpack.c.b16 %v6663, %v6659
        %v6752 = vpack.c.b16 %v6664, %v6660
        %v6753 = vpack.c.b16 %v6665, %v6661
        %v6754 = vpack.c.b16 %v6670, %v6666
        %v6755 = vpack.c.b16 %v6671, %v6667
        %v6756 = vpack.c.b16 %v6672, %v6668
        %v6757 = vpack.c.b16 %v6673, %v6669
        %v6758 = vpack.c.b16 %v6678, %v6674
        %v6759 = vpack.c.b16 %v6679, %v6675
        %v6760 = vpack.c.b16 %v6680, %v6676
        %v6761 = vpack.c.b16 %v6681, %v6677
        %v6762 = vpack.c.b16 %v6686, %v6682
        %v6763 = vpack.c.b16 %v6687, %v6683
        %v6764 = vpack.c.b16 %v6688, %v6684
        %v6765 = vpack.c.b16 %v6689, %v6685
        %v6766 = vpack.c.b16 %v6694, %v6690
        %v6767 = vpack.c.b16 %v6695, %v6691
        %v6768 = vpack.c.b16 %v6696, %v6692
        %v6769 = vpack.c.b16 %v6697, %v6693
        %v6770 = vpack.c.b16 %v6702, %v6698
        %v6771 = vpack.c.b16 %v6703, %v6699
        %v6772 = vpack.c.b16 %v6704, %v6700
        %v6773 = vpack.c.b16 %v6705, %v6701
        %v6774 = vpack.c.b16 %v6710, %v6706
        %v6775 = vpack.c.b16 %v6711, %v6707
        %v6776 = vpack.c.b16 %v6712, %v6708
        %v6777 = vpack.c.b16 %v6713, %v6709
        %6842 = vmatprep.subr.bf16.mxu0 %v6715
        %6843 = vmatpush1.bf16.msra.mxu0 %v6714
        %6844 = vmatprep.subr.bf16.mxu0 %v6719
        %6845 = vmatpush1.bf16.msra.mxu0 %v6718
        %6846 = vmatprep.subr.bf16.mxu0 %v6723
        %6847 = vmatpush1.bf16.msra.mxu0 %v6722
        %6848 = vmatprep.subr.bf16.mxu0 %v6727
        %6849 = vmatpush1.bf16.msra.mxu0 %v6726
        %6850 = vmatprep.subr.bf16.mxu0 %v6731
        %6851 = vmatpush1.bf16.msra.mxu0 %v6730
        %6852 = vmatprep.subr.bf16.mxu0 %v6735
        %6853 = vmatpush1.bf16.msra.mxu0 %v6734
        %6854 = vmatprep.subr.bf16.mxu0 %v6739
        %6855 = vmatpush1.bf16.msra.mxu0 %v6738
        %6856 = vmatprep.subr.bf16.mxu0 %v6743
        %6857 = vmatpush1.bf16.msra.mxu0 %v6742
        %6858 = vmatprep.subr.bf16.mxu0 %v6747
        %6859 = vmatpush1.bf16.msra.mxu0 %v6746
        %6860 = vmatprep.subr.bf16.mxu0 %v6751
        %6861 = vmatpush1.bf16.msra.mxu0 %v6750
        %6862 = vmatprep.subr.bf16.mxu0 %v6755
        %6863 = vmatpush1.bf16.msra.mxu0 %v6754
        %6864 = vmatprep.subr.bf16.mxu0 %v6759
        %6865 = vmatpush1.bf16.msra.mxu0 %v6758
        %6866 = vmatprep.subr.bf16.mxu0 %v6763
        %6867 = vmatpush1.bf16.msra.mxu0 %v6762
        %6868 = vmatprep.subr.bf16.mxu0 %v6767
        %6869 = vmatpush1.bf16.msra.mxu0 %v6766
        %6870 = vmatprep.subr.bf16.mxu0 %v6771
        %6871 = vmatpush1.bf16.msra.mxu0 %v6770
        %6872 = vmatprep.subr.bf16.mxu0 %v6775
        %6873 = vmatpush1.bf16.msra.mxu0 %v6774
        %6874 = vmatprep.mubr.bf16.mxu0 %v3509
        %6875 = vmatmul.mubr.bf16.gmra.mrb[0].mxu0 %v3508
        %v6876 = vpop.f32.mrb[0].mxu0
        %v6877 = vadd.f32 %v6505, %v6876
        %v6878 = vpop.f32.mrb[0].mxu0
        %v6879 = vadd.f32 %v6509, %v6878
        %v6880 = vpop.f32.mrb[0].mxu0
        %v6881 = vadd.f32 %v6505, %v6880
        %v6882 = vpop.f32.mrb[0].mxu0
        %v6883 = vadd.f32 %v6509, %v6882
        %6884 = vdwg.mxu0
        %6885 = vmatprep.subr.bf16.mxu0 %v6717
        %6886 = vmatpush1.bf16.msra.mxu0 %v6716
        %6887 = vmatprep.subr.bf16.mxu0 %v6721
        %6888 = vmatpush1.bf16.msra.mxu0 %v6720
        %6889 = vmatprep.subr.bf16.mxu0 %v6725
        %6890 = vmatpush1.bf16.msra.mxu0 %v6724
        %6891 = vmatprep.subr.bf16.mxu0 %v6729
        %6892 = vmatpush1.bf16.msra.mxu0 %v6728
        %6893 = vmatprep.subr.bf16.mxu0 %v6733
        %6894 = vmatpush1.bf16.msra.mxu0 %v6732
        %6895 = vmatprep.subr.bf16.mxu0 %v6737
        %6896 = vmatpush1.bf16.msra.mxu0 %v6736
        %6897 = vmatprep.subr.bf16.mxu0 %v6741
        %6898 = vmatpush1.bf16.msra.mxu0 %v6740
        %6899 = vmatprep.subr.bf16.mxu0 %v6745
        %6900 = vmatpush1.bf16.msra.mxu0 %v6744
        %6901 = vmatprep.subr.bf16.mxu0 %v6749
        %6902 = vmatpush1.bf16.msra.mxu0 %v6748
        %6903 = vmatprep.subr.bf16.mxu0 %v6753
        %6904 = vmatpush1.bf16.msra.mxu0 %v6752
        %6905 = vmatprep.subr.bf16.mxu0 %v6757
        %6906 = vmatpush1.bf16.msra.mxu0 %v6756
        %6907 = vmatprep.subr.bf16.mxu0 %v6761
        %6908 = vmatpush1.bf16.msra.mxu0 %v6760
        %6909 = vmatprep.subr.bf16.mxu0 %v6765
        %6910 = vmatpush1.bf16.msra.mxu0 %v6764
        %6911 = vmatprep.subr.bf16.mxu0 %v6769
        %6912 = vmatpush1.bf16.msra.mxu0 %v6768
        %6913 = vmatprep.subr.bf16.mxu0 %v6773
        %6914 = vmatpush1.bf16.msra.mxu0 %v6772
        %6915 = vmatprep.subr.bf16.mxu0 %v6777
        %6916 = vmatpush1.bf16.msra.mxu0 %v6776
        %6917 = vmatprep.mubr.bf16.mxu0 %v3509
        %6918 = vmatmul.mubr.bf16.gmra.mrb[0].mxu0 %v3508
        %v6919 = vpop.f32.mrb[0].mxu0
        %v6920 = vadd.f32 %v6513, %v6919
        %v6921 = vpop.f32.mrb[0].mxu0
        %v6922 = vadd.f32 %v6517, %v6921
        %v6923 = vpop.f32.mrb[0].mxu0
        %v6924 = vadd.f32 %v6513, %v6923
        %v6925 = vpop.f32.mrb[0].mxu0
        %v6926 = vadd.f32 %v6517, %v6925
        %6927 = vdwg.mxu0
        %v6928 = vmax.f32 %v6877, 0.0
        %v6929 = vmax.f32 %v6879, 0.0
        %v6930 = vmax.f32 %v6920, 0.0
        %v6931 = vmax.f32 %v6922, 0.0
        %v6932 = vmax.f32 %v6881, 0.0
        %v6933 = vmax.f32 %v6883, 0.0
        %v6934 = vmax.f32 %v6924, 0.0
        %v6935 = vmax.f32 %v6926, 0.0
        %v6936 = vpack.c.bf16 %v6932, %v6928
        %v6937 = vpack.c.bf16 %v6933, %v6929
        %v6938 = vpack.c.bf16 %v6934, %v6930
        %v6939 = vpack.c.bf16 %v6935, %v6931
        %v6940 = vld [vmem:[%s502 + $0x600] sm:$0xff]
        %v6941 = vld [vmem:[%s502 + $0x608] sm:$0xff]
        %v6942 = vld [vmem:[%s502 + $0x610] sm:$0xff]
        %v6943 = vld [vmem:[%s502 + $0x618] sm:$0xff]
        %v6944 = vld [vmem:[%s502 + $0x620] sm:$0xff]
        %v6945 = vld [vmem:[%s502 + $0x628] sm:$0xff]
        %v6946 = vld [vmem:[%s502 + $0x630] sm:$0xff]
        %v6947 = vld [vmem:[%s502 + $0x638] sm:$0xff]
        %v6948 = vld [vmem:[%s502 + $0x640] sm:$0xff]
        %v6949 = vld [vmem:[%s502 + $0x648] sm:$0xff]
        %v6950 = vld [vmem:[%s502 + $0x650] sm:$0xff]
        %v6951 = vld [vmem:[%s502 + $0x658] sm:$0xff]
        %v6952 = vld [vmem:[%s502 + $0x660] sm:$0xff]
        %v6953 = vld [vmem:[%s502 + $0x668] sm:$0xff]
        %v6954 = vld [vmem:[%s502 + $0x670] sm:$0xff]
        %v6955 = vld [vmem:[%s502 + $0x678] sm:$0xff]
        %v6956 = vld [vmem:[%s502 + $0x680] sm:$0xff]
        %v6957 = vld [vmem:[%s502 + $0x688] sm:$0xff]
        %v6958 = vld [vmem:[%s502 + $0x690] sm:$0xff]
        %v6959 = vld [vmem:[%s502 + $0x698] sm:$0xff]
        %v6960 = vld [vmem:[%s502 + $0x6a0] sm:$0xff]
        %v6961 = vld [vmem:[%s502 + $0x6a8] sm:$0xff]
        %v6962 = vld [vmem:[%s502 + $0x6b0] sm:$0xff]
        %v6963 = vld [vmem:[%s502 + $0x6b8] sm:$0xff]
        %v6964 = vld [vmem:[%s502 + $0x6c0] sm:$0xff]
        %v6965 = vld [vmem:[%s502 + $0x6c8] sm:$0xff]
        %v6966 = vld [vmem:[%s502 + $0x6d0] sm:$0xff]
        %v6967 = vld [vmem:[%s502 + $0x6d8] sm:$0xff]
        %v6968 = vld [vmem:[%s502 + $0x6e0] sm:$0xff]
        %v6969 = vld [vmem:[%s502 + $0x6e8] sm:$0xff]
        %v6970 = vld [vmem:[%s502 + $0x6f0] sm:$0xff]
        %v6971 = vld [vmem:[%s502 + $0x6f8] sm:$0xff]
        %v6972 = vld [vmem:[%s502 + $0x700] sm:$0xff]
        %v6973 = vld [vmem:[%s502 + $0x708] sm:$0xff]
        %v6974 = vld [vmem:[%s502 + $0x710] sm:$0xff]
        %v6975 = vld [vmem:[%s502 + $0x718] sm:$0xff]
        %v6976 = vld [vmem:[%s502 + $0x720] sm:$0xff]
        %v6977 = vld [vmem:[%s502 + $0x728] sm:$0xff]
        %v6978 = vld [vmem:[%s502 + $0x730] sm:$0xff]
        %v6979 = vld [vmem:[%s502 + $0x738] sm:$0xff]
        %v6980 = vld [vmem:[%s502 + $0x740] sm:$0xff]
        %v6981 = vld [vmem:[%s502 + $0x748] sm:$0xff]
        %v6982 = vld [vmem:[%s502 + $0x750] sm:$0xff]
        %v6983 = vld [vmem:[%s502 + $0x758] sm:$0xff]
        %v6984 = vld [vmem:[%s502 + $0x760] sm:$0xff]
        %v6985 = vld [vmem:[%s502 + $0x768] sm:$0xff]
        %v6986 = vld [vmem:[%s502 + $0x770] sm:$0xff]
        %v6987 = vld [vmem:[%s502 + $0x778] sm:$0xff]
        %v6988 = vld [vmem:[%s502 + $0x780] sm:$0xff]
        %v6989 = vld [vmem:[%s502 + $0x788] sm:$0xff]
        %v6990 = vld [vmem:[%s502 + $0x790] sm:$0xff]
        %v6991 = vld [vmem:[%s502 + $0x798] sm:$0xff]
        %v6992 = vld [vmem:[%s502 + $0x7a0] sm:$0xff]
        %v6993 = vld [vmem:[%s502 + $0x7a8] sm:$0xff]
        %v6994 = vld [vmem:[%s502 + $0x7b0] sm:$0xff]
        %v6995 = vld [vmem:[%s502 + $0x7b8] sm:$0xff]
        %v6996 = vld [vmem:[%s502 + $0x7c0] sm:$0xff]
        %v6997 = vld [vmem:[%s502 + $0x7c8] sm:$0xff]
        %v6998 = vld [vmem:[%s502 + $0x7d0] sm:$0xff]
        %v6999 = vld [vmem:[%s502 + $0x7d8] sm:$0xff]
        %v7000 = vld [vmem:[%s502 + $0x7e0] sm:$0xff]
        %v7001 = vld [vmem:[%s502 + $0x7e8] sm:$0xff]
        %v7002 = vld [vmem:[%s502 + $0x7f0] sm:$0xff]
        %v7003 = vld [vmem:[%s502 + $0x7f8] sm:$0xff]
        %v7068 = vunpack.c.l.b16 %v6940
        %v7069 = vunpack.c.h.b16 %v6940
        %v7070 = vunpack.c.l.b16 %v6941
        %v7071 = vunpack.c.h.b16 %v6941
        %v7072 = vunpack.c.l.b16 %v6942
        %v7073 = vunpack.c.h.b16 %v6942
        %v7074 = vunpack.c.l.b16 %v6943
        %v7075 = vunpack.c.h.b16 %v6943
        %v7076 = vunpack.c.l.b16 %v6944
        %v7077 = vunpack.c.h.b16 %v6944
        %v7078 = vunpack.c.l.b16 %v6945
        %v7079 = vunpack.c.h.b16 %v6945
        %v7080 = vunpack.c.l.b16 %v6946
        %v7081 = vunpack.c.h.b16 %v6946
        %v7082 = vunpack.c.l.b16 %v6947
        %v7083 = vunpack.c.h.b16 %v6947
        %v7084 = vunpack.c.l.b16 %v6948
        %v7085 = vunpack.c.h.b16 %v6948
        %v7086 = vunpack.c.l.b16 %v6949
        %v7087 = vunpack.c.h.b16 %v6949
        %v7088 = vunpack.c.l.b16 %v6950
        %v7089 = vunpack.c.h.b16 %v6950
        %v7090 = vunpack.c.l.b16 %v6951
        %v7091 = vunpack.c.h.b16 %v6951
        %v7092 = vunpack.c.l.b16 %v6952
        %v7093 = vunpack.c.h.b16 %v6952
        %v7094 = vunpack.c.l.b16 %v6953
        %v7095 = vunpack.c.h.b16 %v6953
        %v7096 = vunpack.c.l.b16 %v6954
        %v7097 = vunpack.c.h.b16 %v6954
        %v7098 = vunpack.c.l.b16 %v6955
        %v7099 = vunpack.c.h.b16 %v6955
        %v7100 = vunpack.c.l.b16 %v6956
        %v7101 = vunpack.c.h.b16 %v6956
        %v7102 = vunpack.c.l.b16 %v6957
        %v7103 = vunpack.c.h.b16 %v6957
        %v7104 = vunpack.c.l.b16 %v6958
        %v7105 = vunpack.c.h.b16 %v6958
        %v7106 = vunpack.c.l.b16 %v6959
        %v7107 = vunpack.c.h.b16 %v6959
        %v7108 = vunpack.c.l.b16 %v6960
        %v7109 = vunpack.c.h.b16 %v6960
        %v7110 = vunpack.c.l.b16 %v6961
        %v7111 = vunpack.c.h.b16 %v6961
        %v7112 = vunpack.c.l.b16 %v6962
        %v7113 = vunpack.c.h.b16 %v6962
        %v7114 = vunpack.c.l.b16 %v6963
        %v7115 = vunpack.c.h.b16 %v6963
        %v7116 = vunpack.c.l.b16 %v6964
        %v7117 = vunpack.c.h.b16 %v6964
        %v7118 = vunpack.c.l.b16 %v6965
        %v7119 = vunpack.c.h.b16 %v6965
        %v7120 = vunpack.c.l.b16 %v6966
        %v7121 = vunpack.c.h.b16 %v6966
        %v7122 = vunpack.c.l.b16 %v6967
        %v7123 = vunpack.c.h.b16 %v6967
        %v7124 = vunpack.c.l.b16 %v6968
        %v7125 = vunpack.c.h.b16 %v6968
        %v7126 = vunpack.c.l.b16 %v6969
        %v7127 = vunpack.c.h.b16 %v6969
        %v7128 = vunpack.c.l.b16 %v6970
        %v7129 = vunpack.c.h.b16 %v6970
        %v7130 = vunpack.c.l.b16 %v6971
        %v7131 = vunpack.c.h.b16 %v6971
        %v7132 = vunpack.c.l.b16 %v6972
        %v7133 = vunpack.c.h.b16 %v6972
        %v7134 = vunpack.c.l.b16 %v6973
        %v7135 = vunpack.c.h.b16 %v6973
        %v7136 = vunpack.c.l.b16 %v6974
        %v7137 = vunpack.c.h.b16 %v6974
        %v7138 = vunpack.c.l.b16 %v6975
        %v7139 = vunpack.c.h.b16 %v6975
        %v7140 = vunpack.c.l.b16 %v6976
        %v7141 = vunpack.c.h.b16 %v6976
        %v7142 = vunpack.c.l.b16 %v6977
        %v7143 = vunpack.c.h.b16 %v6977
        %v7144 = vunpack.c.l.b16 %v6978
        %v7145 = vunpack.c.h.b16 %v6978
        %v7146 = vunpack.c.l.b16 %v6979
        %v7147 = vunpack.c.h.b16 %v6979
        %v7148 = vunpack.c.l.b16 %v6980
        %v7149 = vunpack.c.h.b16 %v6980
        %v7150 = vunpack.c.l.b16 %v6981
        %v7151 = vunpack.c.h.b16 %v6981
        %v7152 = vunpack.c.l.b16 %v6982
        %v7153 = vunpack.c.h.b16 %v6982
        %v7154 = vunpack.c.l.b16 %v6983
        %v7155 = vunpack.c.h.b16 %v6983
        %v7156 = vunpack.c.l.b16 %v6984
        %v7157 = vunpack.c.h.b16 %v6984
        %v7158 = vunpack.c.l.b16 %v6985
        %v7159 = vunpack.c.h.b16 %v6985
        %v7160 = vunpack.c.l.b16 %v6986
        %v7161 = vunpack.c.h.b16 %v6986
        %v7162 = vunpack.c.l.b16 %v6987
        %v7163 = vunpack.c.h.b16 %v6987
        %v7164 = vunpack.c.l.b16 %v6988
        %v7165 = vunpack.c.h.b16 %v6988
        %v7166 = vunpack.c.l.b16 %v6989
        %v7167 = vunpack.c.h.b16 %v6989
        %v7168 = vunpack.c.l.b16 %v6990
        %v7169 = vunpack.c.h.b16 %v6990
        %v7170 = vunpack.c.l.b16 %v6991
        %v7171 = vunpack.c.h.b16 %v6991
        %v7172 = vunpack.c.l.b16 %v6992
        %v7173 = vunpack.c.h.b16 %v6992
        %v7174 = vunpack.c.l.b16 %v6993
        %v7175 = vunpack.c.h.b16 %v6993
        %v7176 = vunpack.c.l.b16 %v6994
        %v7177 = vunpack.c.h.b16 %v6994
        %v7178 = vunpack.c.l.b16 %v6995
        %v7179 = vunpack.c.h.b16 %v6995
        %v7180 = vunpack.c.l.b16 %v6996
        %v7181 = vunpack.c.h.b16 %v6996
        %v7182 = vunpack.c.l.b16 %v6997
        %v7183 = vunpack.c.h.b16 %v6997
        %v7184 = vunpack.c.l.b16 %v6998
        %v7185 = vunpack.c.h.b16 %v6998
        %v7186 = vunpack.c.l.b16 %v6999
        %v7187 = vunpack.c.h.b16 %v6999
        %v7188 = vunpack.c.l.b16 %v7000
        %v7189 = vunpack.c.h.b16 %v7000
        %v7190 = vunpack.c.l.b16 %v7001
        %v7191 = vunpack.c.h.b16 %v7001
        %v7192 = vunpack.c.l.b16 %v7002
        %v7193 = vunpack.c.h.b16 %v7002
        %v7194 = vunpack.c.l.b16 %v7003
        %v7195 = vunpack.c.h.b16 %v7003
        %v7196 = vpack.c.b16 %v7070, %v7068
        %v7197 = vpack.c.b16 %v7071, %v7069
        %v7198 = vpack.c.b16 %v7074, %v7072
        %v7199 = vpack.c.b16 %v7075, %v7073
        %v7200 = vpack.c.b16 %v7078, %v7076
        %v7201 = vpack.c.b16 %v7079, %v7077
        %v7202 = vpack.c.b16 %v7082, %v7080
        %v7203 = vpack.c.b16 %v7083, %v7081
        %v7204 = vpack.c.b16 %v7086, %v7084
        %v7205 = vpack.c.b16 %v7087, %v7085
        %v7206 = vpack.c.b16 %v7090, %v7088
        %v7207 = vpack.c.b16 %v7091, %v7089
        %v7208 = vpack.c.b16 %v7094, %v7092
        %v7209 = vpack.c.b16 %v7095, %v7093
        %v7210 = vpack.c.b16 %v7098, %v7096
        %v7211 = vpack.c.b16 %v7099, %v7097
        %v7212 = vpack.c.b16 %v7102, %v7100
        %v7213 = vpack.c.b16 %v7103, %v7101
        %v7214 = vpack.c.b16 %v7106, %v7104
        %v7215 = vpack.c.b16 %v7107, %v7105
        %v7216 = vpack.c.b16 %v7110, %v7108
        %v7217 = vpack.c.b16 %v7111, %v7109
        %v7218 = vpack.c.b16 %v7114, %v7112
        %v7219 = vpack.c.b16 %v7115, %v7113
        %v7220 = vpack.c.b16 %v7118, %v7116
        %v7221 = vpack.c.b16 %v7119, %v7117
        %v7222 = vpack.c.b16 %v7122, %v7120
        %v7223 = vpack.c.b16 %v7123, %v7121
        %v7224 = vpack.c.b16 %v7126, %v7124
        %v7225 = vpack.c.b16 %v7127, %v7125
        %v7226 = vpack.c.b16 %v7130, %v7128
        %v7227 = vpack.c.b16 %v7131, %v7129
        %v7228 = vpack.c.b16 %v7134, %v7132
        %v7229 = vpack.c.b16 %v7135, %v7133
        %v7230 = vpack.c.b16 %v7138, %v7136
        %v7231 = vpack.c.b16 %v7139, %v7137
        %v7232 = vpack.c.b16 %v7142, %v7140
        %v7233 = vpack.c.b16 %v7143, %v7141
        %v7234 = vpack.c.b16 %v7146, %v7144
        %v7235 = vpack.c.b16 %v7147, %v7145
        %v7236 = vpack.c.b16 %v7150, %v7148
        %v7237 = vpack.c.b16 %v7151, %v7149
        %v7238 = vpack.c.b16 %v7154, %v7152
        %v7239 = vpack.c.b16 %v7155, %v7153
        %v7240 = vpack.c.b16 %v7158, %v7156
        %v7241 = vpack.c.b16 %v7159, %v7157
        %v7242 = vpack.c.b16 %v7162, %v7160
        %v7243 = vpack.c.b16 %v7163, %v7161
        %v7244 = vpack.c.b16 %v7166, %v7164
        %v7245 = vpack.c.b16 %v7167, %v7165
        %v7246 = vpack.c.b16 %v7170, %v7168
        %v7247 = vpack.c.b16 %v7171, %v7169
        %v7248 = vpack.c.b16 %v7174, %v7172
        %v7249 = vpack.c.b16 %v7175, %v7173
        %v7250 = vpack.c.b16 %v7178, %v7176
        %v7251 = vpack.c.b16 %v7179, %v7177
        %v7252 = vpack.c.b16 %v7182, %v7180
        %v7253 = vpack.c.b16 %v7183, %v7181
        %v7254 = vpack.c.b16 %v7186, %v7184
        %v7255 = vpack.c.b16 %v7187, %v7185
        %v7256 = vpack.c.b16 %v7190, %v7188
        %v7257 = vpack.c.b16 %v7191, %v7189
        %v7258 = vpack.c.b16 %v7194, %v7192
        %v7259 = vpack.c.b16 %v7195, %v7193
        %7324 = vmatprep.subr.bf16.mxu0 %v7197
        %7325 = vmatpush1.bf16.msra.mxu0 %v7196
        %7326 = vmatprep.subr.bf16.mxu0 %v7199
        %7327 = vmatpush1.bf16.msra.mxu0 %v7198
        %7328 = vmatprep.subr.bf16.mxu0 %v7201
        %7329 = vmatpush1.bf16.msra.mxu0 %v7200
        %7330 = vmatprep.subr.bf16.mxu0 %v7203
        %7331 = vmatpush1.bf16.msra.mxu0 %v7202
        %7332 = vmatprep.subr.bf16.mxu0 %v7205
        %7333 = vmatpush1.bf16.msra.mxu0 %v7204
        %7334 = vmatprep.subr.bf16.mxu0 %v7207
        %7335 = vmatpush1.bf16.msra.mxu0 %v7206
        %7336 = vmatprep.subr.bf16.mxu0 %v7209
        %7337 = vmatpush1.bf16.msra.mxu0 %v7208
        %7338 = vmatprep.subr.bf16.mxu0 %v7211
        %7339 = vmatpush1.bf16.msra.mxu0 %v7210
        %7340 = vmatprep.subr.bf16.mxu0 %v7213
        %7341 = vmatpush1.bf16.msra.mxu0 %v7212
        %7342 = vmatprep.subr.bf16.mxu0 %v7215
        %7343 = vmatpush1.bf16.msra.mxu0 %v7214
        %7344 = vmatprep.subr.bf16.mxu0 %v7217
        %7345 = vmatpush1.bf16.msra.mxu0 %v7216
        %7346 = vmatprep.subr.bf16.mxu0 %v7219
        %7347 = vmatpush1.bf16.msra.mxu0 %v7218
        %7348 = vmatprep.subr.bf16.mxu0 %v7221
        %7349 = vmatpush1.bf16.msra.mxu0 %v7220
        %7350 = vmatprep.subr.bf16.mxu0 %v7223
        %7351 = vmatpush1.bf16.msra.mxu0 %v7222
        %7352 = vmatprep.subr.bf16.mxu0 %v7225
        %7353 = vmatpush1.bf16.msra.mxu0 %v7224
        %7354 = vmatprep.subr.bf16.mxu0 %v7227
        %7355 = vmatpush1.bf16.msra.mxu0 %v7226
        %7356 = vmatprep.mubr.bf16.mxu0 %v6937
        %7357 = vmatmul.mubr.bf16.gmra.mrb[0].mxu0 %v6936
        %v7358 = vpop.f32.mrb[0].mxu0
        %v7359 = vadd.f32 0.0, %v7358
        %v7360 = vpop.f32.mrb[0].mxu0
        %v7361 = vadd.f32 0.0, %v7360
        %v7362 = vpop.f32.mrb[0].mxu0
        %v7363 = vadd.f32 0.0, %v7362
        %v7364 = vpop.f32.mrb[0].mxu0
        %v7365 = vadd.f32 0.0, %v7364
        %7366 = vdwg.mxu0
        %7367 = vmatprep.subr.bf16.mxu0 %v7229
        %7368 = vmatpush1.bf16.msra.mxu0 %v7228
        %7369 = vmatprep.subr.bf16.mxu0 %v7231
        %7370 = vmatpush1.bf16.msra.mxu0 %v7230
        %7371 = vmatprep.subr.bf16.mxu0 %v7233
        %7372 = vmatpush1.bf16.msra.mxu0 %v7232
        %7373 = vmatprep.subr.bf16.mxu0 %v7235
        %7374 = vmatpush1.bf16.msra.mxu0 %v7234
        %7375 = vmatprep.subr.bf16.mxu0 %v7237
        %7376 = vmatpush1.bf16.msra.mxu0 %v7236
        %7377 = vmatprep.subr.bf16.mxu0 %v7239
        %7378 = vmatpush1.bf16.msra.mxu0 %v7238
        %7379 = vmatprep.subr.bf16.mxu0 %v7241
        %7380 = vmatpush1.bf16.msra.mxu0 %v7240
        %7381 = vmatprep.subr.bf16.mxu0 %v7243
        %7382 = vmatpush1.bf16.msra.mxu0 %v7242
        %7383 = vmatprep.subr.bf16.mxu0 %v7245
        %7384 = vmatpush1.bf16.msra.mxu0 %v7244
        %7385 = vmatprep.subr.bf16.mxu0 %v7247
        %7386 = vmatpush1.bf16.msra.mxu0 %v7246
        %7387 = vmatprep.subr.bf16.mxu0 %v7249
        %7388 = vmatpush1.bf16.msra.mxu0 %v7248
        %7389 = vmatprep.subr.bf16.mxu0 %v7251
        %7390 = vmatpush1.bf16.msra.mxu0 %v7250
        %7391 = vmatprep.subr.bf16.mxu0 %v7253
        %7392 = vmatpush1.bf16.msra.mxu0 %v7252
        %7393 = vmatprep.subr.bf16.mxu0 %v7255
        %7394 = vmatpush1.bf16.msra.mxu0 %v7254
        %7395 = vmatprep.subr.bf16.mxu0 %v7257
        %7396 = vmatpush1.bf16.msra.mxu0 %v7256
        %7397 = vmatprep.subr.bf16.mxu0 %v7259
        %7398 = vmatpush1.bf16.msra.mxu0 %v7258
        %7399 = vmatprep.mubr.bf16.mxu0 %v6939
        %7400 = vmatmul.mubr.bf16.gmra.mrb[0].mxu0 %v6938
        %v7401 = vpop.f32.mrb[0].mxu0
        %v7402 = vadd.f32 %v7359, %v7401
        %v7403 = vpop.f32.mrb[0].mxu0
        %v7404 = vadd.f32 %v7361, %v7403
        %v7405 = vpop.f32.mrb[0].mxu0
        %v7406 = vadd.f32 %v7363, %v7405
        %v7407 = vpop.f32.mrb[0].mxu0
        %v7408 = vadd.f32 %v7365, %v7407
        %7409 = vdwg.mxu0
        %v7410 = vadd.f32 %v6432, %v7402
        %v7411 = vadd.f32 %v6433, %v7404
        %v7412 = vadd.f32 %v6434, %v7406
        %v7413 = vadd.f32 %v6435, %v7408
        %v7414 = vlaneseq
        %v7415 = vshrl.u32 %v7414, 7
        %v7416 = vsub.s32 6, %v7415
        %v7417 = vrot.slane %v600, %v7416
        %v7418 = vlaneseq
        %v7419 = vshrl.u32 %v7418, 7
        %v7420 = vsub.s32 6, %v7419
        %v7421 = vrot.slane %v601, %v7420
        %v7422 = vadd.f32 %v7410, %v7417
        %v7423 = vadd.f32 %v7411, %v7421
        %v7424 = vadd.f32 %v7412, %v7417
        %v7425 = vadd.f32 %v7413, %v7421
        %v7426 = vadd.f32 %v3504, %v7422
        %v7427 = vadd.f32 %v3505, %v7423
        %v7428 = vadd.f32 %v3506, %v7424
        %v7429 = vadd.f32 %v3507, %v7425
        %v7430 = vadd.f32 %v7426, %v7427
        %7431 = vadd.xlane.f32.xlu0 %v7430
        %v7432 = vpop.xlane.xlu0 %7431
        %v7433 = vadd.f32 %v7428, %v7429
        %7434 = vadd.xlane.f32.xlu0 %v7433
        %v7435 = vpop.xlane.xlu0 %7434
        %v7436 = vmul.f32 %v7432, %v3457
        %v7437 = vmul.f32 %v7435, %v3457
        %v7438 = vsub.f32 %v7426, %v7436
        %v7439 = vsub.f32 %v7427, %v7436
        %v7440 = vsub.f32 %v7428, %v7437
        %v7441 = vsub.f32 %v7429, %v7437
        %v7442 = vmul.f32 %v7438, %v7438
        %v7443 = vmul.f32 %v7439, %v7439
        %v7444 = vmul.f32 %v7440, %v7440
        %v7445 = vmul.f32 %v7441, %v7441
        %v7446 = vadd.f32 %v7442, %v7443
        %7447 = vadd.xlane.f32.xlu0 %v7446
        %v7448 = vpop.xlane.xlu0 %7447
        %v7449 = vadd.f32 %v7444, %v7445
        %7450 = vadd.xlane.f32.xlu0 %v7449
        %v7451 = vpop.xlane.xlu0 %7450
        %v7452 = vmul.f32 %v7448, %v3457
        %v7453 = vmul.f32 %v7451, %v3457
        %v7454 = vadd.f32 %v7452, 1e-05
        %v7455 = vadd.f32 %v7453, 1e-05
        %v7456 = vrsqrt.pop %v7454
        %v7457 = vrsqrt.pop %v7455
        %v7458 = vmul.f32 %v7438, %v7456
        %v7459 = vmul.f32 %v7439, %v7456
        %v7460 = vmul.f32 %v7440, %v7457
        %v7461 = vmul.f32 %v7441, %v7457
        %v7462 = vlaneseq
        %v7463 = vshrl.u32 %v7462, 7
        %v7464 = vsub.s32 7, %v7463
        %v7465 = vrot.slane %v600, %v7464
        %v7466 = vlaneseq
        %v7467 = vshrl.u32 %v7466, 7
        %v7468 = vsub.s32 7, %v7467
        %v7469 = vrot.slane %v601, %v7468
        %v7470 = vmul.f32 %v7458, %v7465
        %v7471 = vmul.f32 %v7459, %v7469
        %v7472 = vmul.f32 %v7460, %v7465
        %v7473 = vmul.f32 %v7461, %v7469
        %v7474 = vlaneseq
        %v7475 = vshrl.u32 %v7474, 7
        %v7476 = vsub.s32 0, %v7475
        %v7477 = vrot.slane %v602, %v7476
        %v7478 = vlaneseq
        %v7479 = vshrl.u32 %v7478, 7
        %v7480 = vsub.s32 0, %v7479
        %v7481 = vrot.slane %v603, %v7480
        %v7482 = vadd.f32 %v7470, %v7477
        %v7483 = vadd.f32 %v7471, %v7481
        %v7484 = vadd.f32 %v7472, %v7477
        %v7485 = vadd.f32 %v7473, %v7481
        %7486 = vst [vmem:[#allocation2] sm:$0xff] %v7482
        %7487 = vst [vmem:[#allocation2 + $0x8] sm:$0xff] %v7483
        %7488 = vst [vmem:[#allocation2 + $0x10] sm:$0xff] %v7484
        %7489 = vst [vmem:[#allocation2 + $0x18] sm:$0xff] %v7485
        %p7490 = scmp.eq.s32.totalorder %s37, 5
        // Predicated region
        $region93: #{tpu_custom_call.1} parent=55 // pred_check
          %p7491 = pneg %p7490
        $region94: #{tpu_custom_call.1} parent=55 // pred_check_branch
          %7493 = sbr.rel (%p7491) target = $region96
        $region95: #{tpu_custom_call.1} parent=55 // pred_region
          %v7494 = vpack.c.bf16 %v7484, %v7482
          %v7495 = vpack.c.bf16 %v7485, %v7483
          %v7496 = vld [vmem:[#allocation16] sm:$0xf]
          %v7497 = vld [vmem:[#allocation16 + $0x4] sm:$0xf]
          %v7498 = vld [vmem:[#allocation16 + $0x8] sm:$0xf]
          %v7499 = vld [vmem:[#allocation16 + $0xc] sm:$0xf]
          %v7500 = vld [vmem:[#allocation16 + $0x10] sm:$0xf]
          %v7501 = vld [vmem:[#allocation16 + $0x14] sm:$0xf]
          %v7502 = vld [vmem:[#allocation16 + $0x18] sm:$0xf]
          %v7503 = vld [vmem:[#allocation16 + $0x1c] sm:$0xf]
          %v7504 = vld [vmem:[#allocation16 + $0x20] sm:$0xf]
          %v7505 = vld [vmem:[#allocation16 + $0x24] sm:$0xf]
          %v7506 = vld [vmem:[#allocation16 + $0x28] sm:$0xf]
          %v7507 = vld [vmem:[#allocation16 + $0x2c] sm:$0xf]
          %v7508 = vld [vmem:[#allocation16 + $0x30] sm:$0xf]
          %v7509 = vld [vmem:[#allocation16 + $0x34] sm:$0xf]
          %v7510 = vld [vmem:[#allocation16 + $0x38] sm:$0xf]
          %v7511 = vld [vmem:[#allocation16 + $0x3c] sm:$0xf]
          %v7512 = vld [vmem:[#allocation16 + $0x40] sm:$0xf]
          %v7513 = vld [vmem:[#allocation16 + $0x44] sm:$0xf]
          %v7514 = vld [vmem:[#allocation16 + $0x48] sm:$0xf]
          %v7515 = vld [vmem:[#allocation16 + $0x4c] sm:$0xf]
          %v7516 = vld [vmem:[#allocation16 + $0x50] sm:$0xf]
          %v7517 = vld [vmem:[#allocation16 + $0x54] sm:$0xf]
          %v7518 = vld [vmem:[#allocation16 + $0x58] sm:$0xf]
          %v7519 = vld [vmem:[#allocation16 + $0x5c] sm:$0xf]
          %v7520 = vld [vmem:[#allocation16 + $0x60] sm:$0xf]
          %v7521 = vld [vmem:[#allocation16 + $0x64] sm:$0xf]
          %v7522 = vld [vmem:[#allocation16 + $0x68] sm:$0xf]
          %v7523 = vld [vmem:[#allocation16 + $0x6c] sm:$0xf]
          %v7524 = vld [vmem:[#allocation16 + $0x70] sm:$0xf]
          %v7525 = vld [vmem:[#allocation16 + $0x74] sm:$0xf]
          %v7526 = vld [vmem:[#allocation16 + $0x78] sm:$0xf]
          %v7527 = vld [vmem:[#allocation16 + $0x7c] sm:$0xf]
          %v7528 = vld [vmem:[#allocation17] sm:$0x1]
          %v7530 = vlaneseq
          %v7531 = vshrl.u32 %v7530, 7
          %v7532 = vsub.s32 0, %v7531
          %v7533 = vrot.slane %v7528, %v7532
          %v7567 = vunpack.c.l.b16 %v7496
          %v7568 = vunpack.c.l.b16 %v7497
          %v7569 = vunpack.c.l.b16 %v7498
          %v7570 = vunpack.c.l.b16 %v7499
          %v7571 = vunpack.c.l.b16 %v7500
          %v7572 = vunpack.c.l.b16 %v7501
          %v7573 = vunpack.c.l.b16 %v7502
          %v7574 = vunpack.c.l.b16 %v7503
          %v7575 = vunpack.c.l.b16 %v7504
          %v7576 = vunpack.c.l.b16 %v7505
          %v7577 = vunpack.c.l.b16 %v7506
          %v7578 = vunpack.c.l.b16 %v7507
          %v7579 = vunpack.c.l.b16 %v7508
          %v7580 = vunpack.c.l.b16 %v7509
          %v7581 = vunpack.c.l.b16 %v7510
          %v7582 = vunpack.c.l.b16 %v7511
          %v7583 = vunpack.c.l.b16 %v7512
          %v7584 = vunpack.c.l.b16 %v7513
          %v7585 = vunpack.c.l.b16 %v7514
          %v7586 = vunpack.c.l.b16 %v7515
          %v7587 = vunpack.c.l.b16 %v7516
          %v7588 = vunpack.c.l.b16 %v7517
          %v7589 = vunpack.c.l.b16 %v7518
          %v7590 = vunpack.c.l.b16 %v7519
          %v7591 = vunpack.c.l.b16 %v7520
          %v7592 = vunpack.c.l.b16 %v7521
          %v7593 = vunpack.c.l.b16 %v7522
          %v7594 = vunpack.c.l.b16 %v7523
          %v7595 = vunpack.c.l.b16 %v7524
          %v7596 = vunpack.c.l.b16 %v7525
          %v7597 = vunpack.c.l.b16 %v7526
          %v7598 = vunpack.c.l.b16 %v7527
          %v7599 = vpack.c.b16 %v7568, %v7567
          %v7600 = vpack.c.b16 %v7570, %v7569
          %v7601 = vpack.c.b16 %v7572, %v7571
          %v7602 = vpack.c.b16 %v7574, %v7573
          %v7603 = vpack.c.b16 %v7576, %v7575
          %v7604 = vpack.c.b16 %v7578, %v7577
          %v7605 = vpack.c.b16 %v7580, %v7579
          %v7606 = vpack.c.b16 %v7582, %v7581
          %v7607 = vpack.c.b16 %v7584, %v7583
          %v7608 = vpack.c.b16 %v7586, %v7585
          %v7609 = vpack.c.b16 %v7588, %v7587
          %v7610 = vpack.c.b16 %v7590, %v7589
          %v7611 = vpack.c.b16 %v7592, %v7591
          %v7612 = vpack.c.b16 %v7594, %v7593
          %v7613 = vpack.c.b16 %v7596, %v7595
          %v7614 = vpack.c.b16 %v7598, %v7597
          %7631 = vmatprep.subr.bf16.mxu0 0
          %7632 = vmatpush1.bf16.msra.mxu0 %v7599
          %7633 = vmatprep.subr.bf16.mxu0 0
          %7634 = vmatpush1.bf16.msra.mxu0 %v7600
          %7635 = vmatprep.subr.bf16.mxu0 0
          %7636 = vmatpush1.bf16.msra.mxu0 %v7601
          %7637 = vmatprep.subr.bf16.mxu0 0
          %7638 = vmatpush1.bf16.msra.mxu0 %v7602
          %7639 = vmatprep.subr.bf16.mxu0 0
          %7640 = vmatpush1.bf16.msra.mxu0 %v7603
          %7641 = vmatprep.subr.bf16.mxu0 0
          %7642 = vmatpush1.bf16.msra.mxu0 %v7604
          %7643 = vmatprep.subr.bf16.mxu0 0
          %7644 = vmatpush1.bf16.msra.mxu0 %v7605
          %7645 = vmatprep.subr.bf16.mxu0 0
          %7646 = vmatpush1.bf16.msra.mxu0 %v7606
          %7647 = vmatprep.subr.bf16.mxu0 0
          %7648 = vmatpush1.bf16.msra.mxu0 %v7607
          %7649 = vmatprep.subr.bf16.mxu0 0
          %7650 = vmatpush1.bf16.msra.mxu0 %v7608
          %7651 = vmatprep.subr.bf16.mxu0 0
          %7652 = vmatpush1.bf16.msra.mxu0 %v7609
          %7653 = vmatprep.subr.bf16.mxu0 0
          %7654 = vmatpush1.bf16.msra.mxu0 %v7610
          %7655 = vmatprep.subr.bf16.mxu0 0
          %7656 = vmatpush1.bf16.msra.mxu0 %v7611
          %7657 = vmatprep.subr.bf16.mxu0 0
          %7658 = vmatpush1.bf16.msra.mxu0 %v7612
          %7659 = vmatprep.subr.bf16.mxu0 0
          %7660 = vmatpush1.bf16.msra.mxu0 %v7613
          %7661 = vmatprep.subr.bf16.mxu0 0
          %7662 = vmatpush1.bf16.msra.mxu0 %v7614
          %7663 = vmatprep.mubr.bf16.mxu0 %v7495
          %7664 = vmatmul.mubr.bf16.gmra.mrb[0].mxu0 %v7494
          %v7665 = vpop.f32.mrb[0].mxu0
          %v7666 = vadd.f32 %v7533, %v7665
          %v7667 = vpop.f32.mrb[0].mxu0
          %v7668 = vpop.f32.mrb[0].mxu0
          %v7669 = vadd.f32 %v7533, %v7668
          %v7670 = vpop.f32.mrb[0].mxu0
          %7671 = vdwg.mxu0
          %7672 = vst [vmem:[#allocation19] sm:$0xff] %v7666
          %7673 = vst [vmem:[#allocation19 + $0x8] sm:$0xff] %v7669
        $region96: #{tpu_custom_call.1} parent=55 // pred_fallthru
          _
        // Predicated region
        $region97: #{tpu_custom_call.1} parent=55 // pred_check
          %p7674 = pneg %p286
        $region98: #{tpu_custom_call.1} parent=55 // pred_check_branch
          %7676 = sbr.rel (%p7674) target = $region100
        $region99: #{tpu_custom_call.1} parent=55 // pred_region
          %s7677 = smul.u32 2, %s36
          %s7679 = ssub.s32 256, 256
          %7680 = vsyncadd [#allocation7], %s7679
          %s7681 = smul.addr %s7677, 128
          %s7682 = scalar_lea.hbm %s9, %s7681
          %s7683 = sshll.u32 [#allocation19], 4
          %s7684 = int_to_ptr.vmem [resolvable:$true] %s7683
          %7689 = dma.vmem_to_hbm [thread:$0]  %s7684, 256, %s7682, [#allocation7], 128, 128, 8
        $region100: #{tpu_custom_call.1} parent=55 // pred_fallthru
          _
        // Predicated region
        $region101: #{tpu_custom_call.1} parent=55 // pred_check
          %p7690 = pneg %p286
        $region102: #{tpu_custom_call.1} parent=55 // pred_check_branch
          %7692 = sbr.rel (%p7690) target = $region104
        $region103: #{tpu_custom_call.1} parent=55 // pred_region
          %7693 = dma.done [#allocation7], 256
        $region104: #{tpu_custom_call.1} parent=55 // pred_fallthru
          _
      $region56: #{tpu_custom_call.1} parent=5 // pred_fallthru
        _
      %p7694 = scmp.le.s32.totalorder 2, %s27
      // Predicated region
      $region105: #{tpu_custom_call.1} parent=5 // pred_check
        %p7695 = pneg %p7694
      $region106: #{tpu_custom_call.1} parent=5 // pred_check_branch
        %7697 = sbr.rel (%p7695) target = $region108
      $region107: #{tpu_custom_call.1} parent=5 // pred_region
        %s7698 = ssub.s32 %s27, 2
      $region108: #{tpu_custom_call.1} parent=5 // pred_fallthru
        _
    $region6: #{tpu_custom_call.1} parent=1 // loop_footer
      %s31 = sadd.s32 1, %s27
    $region7: #{tpu_custom_call.1} parent=1 // loop_footer_branch
      %26 = sbr.rel target = $region3
    $region8: #{tpu_custom_call.1} parent=1 // loop_exit
      _
    %7699 = vsyncpa [#allocation6], 1
    %s7700 = scalar_lea.sflag [#allocation6], 1
    %7701 = vsyncpa %s7700, 1
    %7702 = vsyncpa [#allocation9], 1
    %s7703 = scalar_lea.sflag [#allocation9], 1
    %7704 = vsyncpa %s7703, 1
    %7705 = vsyncpa [#allocation12], 1
    %s7706 = scalar_lea.sflag [#allocation12], 1
    %7707 = vsyncpa %s7706, 1
    %7708 = vsyncpa [#allocation15], 1
    %s7709 = scalar_lea.sflag [#allocation15], 1
    %7710 = vsyncpa %s7709, 1
    %7711 = vsyncpa [#allocation18], 1
    %7712 = vsyncpa [#allocation7], 1
    %s7713 = scalar_lea.sflag [#allocation7], 1
    %7714 = vsyncpa %s7713, 1

</llo_original>
